<compile_context>
chip_gen: v7x
topology: tpu7x:2x2x1
jax: 0.10.0
libtpu: 0.0.40
codegen_flags: <defaults>
</compile_context>

<pallas_src>
import jax
import jax.numpy as jnp
from jax import lax
from jax.experimental import pallas as pl
from jax.experimental.pallas import tpu as pltpu

BN_EPS = 1e-5  # PyTorch F.batch_norm default


def _vmem_spec():
    # Whole-array-in-VMEM spec; every operand here is tiny (<= ~256 KiB).
    return pl.BlockSpec(memory_space=pltpu.MemorySpace.VMEM)


def _pgeom(n, hh, ww):
    """Zero-margin padded geometry for one conv layer's (hh, ww) input."""
    hp, wp = hh + 2, ww + 2
    return dict(h=hh, w=ww, wp=wp, istride=hp * wp, Rp=n * hp * wp, pad=wp + 1)


# ---------------------------------------------------------------------------
# Fused kernel
# ---------------------------------------------------------------------------
def _make_kernel(n, h, w):
    h1, w1 = h, w
    h2, w2 = h1 // 2, w1 // 2
    h3, w3 = h2 // 2, w2 // 2
    h4, w4 = h3 // 2, w3 // 2
    m1 = n * h1 * w1
    g2, g3, g4 = _pgeom(n, h2, w2), _pgeom(n, h3, w3), _pgeom(n, h4, w4)

    def kernel(patches_ref, wc1_ref, wstk_ref, bn_ref, msk_ref, wfc_ref,
               bfc_ref, out_ref, s2_ref, s3_ref, s4_ref, p1_ref, fc_ref):
        f32, bf16 = jnp.float32, jnp.bfloat16

        # Zero the padded conv scratches once per call: their zero margins are
        # what makes every 3x3 tap a pure shifted slice (no border masks).
        s2_ref[...] = jnp.zeros(s2_ref.shape, f32)
        s3_ref[...] = jnp.zeros(s3_ref.shape, f32)
        s4_ref[...] = jnp.zeros(s4_ref.shape, f32)
        p1_ref[m1:m1 + w1 + 2, :] = jnp.zeros((w1 + 2, 64), f32)

        def bn_relu(acc, layer, count, mask=None):
            """Training-mode BN (batch stats, biased var, eps=1e-5) + ReLU.
            Channel sums on the XLU (jnp.sum), not the MXU; f32 throughout."""
            am = acc if mask is None else acc * mask
            s1 = jnp.sum(am, axis=0, keepdims=True)
            s2 = jnp.sum(am * acc, axis=0, keepdims=True)
            mean = s1 * (1.0 / count)
            var = jnp.maximum(s2 * (1.0 / count) - mean * mean, 0.0)
            inv_std = lax.rsqrt(var + BN_EPS)
            gamma = bn_ref[2 * layer:2 * layer + 1, :]
            beta = bn_ref[2 * layer + 1:2 * layer + 2, :]
            scale = gamma * inv_std
            shift = beta - mean * scale
            return jnp.maximum(acc * scale + shift, 0.0)

        def conv3x3(S, widx, g):
            """3x3/s1/p1 conv over the zero-margin padded scratch S.  The
            three row-taps of each kernel column are lane-concatenated so each
            accumulating bf16 dot has K=192 (3 dots per layer instead of 9)."""
            Rp, wp, pad = g["Rp"], g["wp"], g["pad"]
            acc = None
            for kj in range(3):
                taps = [S[pl.ds(pad + (kj - 1) + (ki - 1) * wp, Rp), :]
                        for ki in range(3)]
                lhs = jnp.concatenate(taps, axis=-1).astype(bf16)
                d = jnp.dot(lhs, wstk_ref[3 * widx + kj],
                            preferred_element_type=f32)
                acc = d if acc is None else acc + d
            return acc

        def pool2x2(y, P, hh, ww, pitch, src_pos, emit):
            """2x2/s2 max pool: stage y in P, 4-way max of shifted row slices
            (VPU), write it back, then extract each pooled output row with one
            stride-2 sublane read and hand it to `emit`."""
            M = y.shape[0]
            P[0:M, :] = y
            z = jnp.maximum(
                jnp.maximum(y, P[1:M + 1, :]),
                jnp.maximum(P[pitch:M + pitch, :],
                            P[pitch + 1:M + pitch + 1, :]))
            P[0:M, :] = z
            half = ww // 2
            for img in range(n):
                for io in range(hh // 2):
                    start = src_pos(img, 2 * io)
                    if half > 1:
                        chunk = P[pl.ds(start, half, stride=2), :]
                    else:
                        chunk = P[pl.ds(start, 1), :]
                    emit(img, io, chunk)

        def scatter_into(S, g):
            """Write pooled row (img, io) into the interior of the next
            layer's zero-margin padded conv scratch."""
            wp, pad, istride, wn = g["wp"], g["pad"], g["istride"], g["w"]

            def emit(img, io, chunk):
                r = pad + img * istride + (io + 1) * wp + 1
                S[r:r + wn, :] = chunk
            return emit

        def emit_fc(img, io, chunk):   # layer-4 pool output is 1x1 per image
            fc_ref[img:img + 1, :] = chunk

        # ---- block 1: conv (Cin=1, im2col'd in the wrapper) + BN/ReLU/pool --
        acc = jnp.dot(patches_ref[...], wc1_ref[...],
                      preferred_element_type=f32)
        y = bn_relu(acc, 0, m1)
        pool2x2(y, p1_ref, h1, w1, w1,
                lambda img, i: img * h1 * w1 + i * w1,
                scatter_into(s2_ref, g2))

        # ---- blocks 2-4 -----------------------------------------------------
        blocks = [(s2_ref, g2, lambda: scatter_into(s3_ref, g3)),
                  (s3_ref, g3, lambda: scatter_into(s4_ref, g4)),
                  (s4_ref, g4, lambda: emit_fc)]
        moff = 0
        for widx, (S, g, mk_emit) in enumerate(blocks):
            acc = conv3x3(S, widx, g)
            mask = msk_ref[moff:moff + g["Rp"], :]   # interior-row mask
            moff += g["Rp"]
            y = bn_relu(acc, widx + 1, n * g["h"] * g["w"], mask)
            # S doubles as this block's pool scratch (its staged input is dead)
            pool2x2(y, S, g["h"], g["w"], g["wp"],
                    lambda img, i, _g=g: (img * _g["istride"]
                                          + (i + 1) * _g["wp"] + 1),
                    mk_emit())

        # ---- classifier: lane-dense 128-wide output, logits live in [:, :5] -
        out_ref[...] = (jnp.dot(fc_ref[...].astype(bf16), wfc_ref[...],
                                preferred_element_type=f32) + bfc_ref[...])

    return kernel


# ---------------------------------------------------------------------------
# JAX glue (layout + parameter packing; all tiny, runs under the same jit)
# ---------------------------------------------------------------------------
def im2col_3x3_same(x_nhwc):
    """3x3 / stride-1 / pad-1 patches -> (N*H*W, 9*Cin), tap order (kh, kw)."""
    nn, hh, ww, cc = x_nhwc.shape
    xp = jnp.pad(x_nhwc, ((0, 0), (1, 1), (1, 1), (0, 0)))
    cols = []
    for kh in range(3):
        for kw in range(3):
            cols.append(xp[:, kh:kh + hh, kw:kw + ww, :])
    return jnp.concatenate(cols, axis=-1).reshape(nn * hh * ww, 9 * cc)


def _interior_mask(n, hh, ww):
    """(n*(hh+2)*(ww+2), 1) f32: 1 at real-pixel rows of the padded layout."""
    hp, wp = hh + 2, ww + 2
    p = jnp.arange(n * hp * wp)
    ip = (p // wp) % hp
    jp = p % wp
    m = (ip >= 1) & (ip <= hh) & (jp >= 1) & (jp <= ww)
    return m.astype(jnp.float32).reshape(-1, 1)


def _conv_w_kpack(w_oihw):
    """OIHW 3x3 weight -> (3, 192, 64): one (192, 64) stack per kernel column
    kj with rows ki*64 + cin, matching the lane-concat order of the taps."""
    return jnp.transpose(w_oihw, (3, 2, 1, 0)).reshape(3, 192, 64)


@jax.jit
def basenet_forward(x_nchw, params):
    # TODO(synk): F.batch_norm (training mode) also updates running_mean /
    # running_var in place; that side effect does not affect the forward
    # output and is not reproduced here.
    n = x_nchw.shape[0]
    h, w = x_nchw.shape[2], x_nchw.shape[3]
    assert h == 16 and w == 16, "BaseNet's (5, 64) head implies 16x16 inputs"
    x = jnp.transpose(x_nchw, (0, 2, 3, 1)).astype(jnp.float32)  # NCHW -> NHWC

    h2, w2 = h // 2, w // 2
    h3, w3 = h2 // 2, w2 // 2
    h4, w4 = h3 // 2, w3 // 2
    m1 = n * h * w
    g2, g3, g4 = _pgeom(n, h2, w2), _pgeom(n, h3, w3), _pgeom(n, h4, w4)

    # -- coalesced kernel inputs (7 arrays instead of 19) ---------------------
    patches = im2col_3x3_same(x).astype(jnp.bfloat16)             # (m1, 9)
    wc1 = (jnp.transpose(params["conv0_w"], (2, 3, 1, 0))
           .reshape(9, 64).astype(jnp.bfloat16))                  # (9, 64)
    wstk = jnp.stack([_conv_w_kpack(params[f"conv{i}_w"])
                      for i in (1, 2, 3)]).reshape(9, 192, 64)
    wstk = wstk.astype(jnp.bfloat16)                              # (9, 192, 64)
    bn = jnp.stack([params[f"bn{i}_{k}"]
                    for i in range(4) for k in ("g", "b")]
                   ).astype(jnp.float32)                          # (8, 64)
    masks = jnp.concatenate([_interior_mask(n, h2, w2),
                             _interior_mask(n, h3, w3),
                             _interior_mask(n, h4, w4)], axis=0)  # (sum Rp, 1)
    # Lane-dense classifier: zero-pad 5 -> 128 output columns, slice after.
    wfc = (jnp.zeros((64, 128), jnp.float32)
           .at[:, :5].set(params["fc_w"].T).astype(jnp.bfloat16))
    bfc = jnp.zeros((1, 128), jnp.float32).at[0, :5].set(params["fc_b"])
    inputs = [patches, wc1, wstk, bn, masks, wfc, bfc]

    scratch_shapes = [
        pltpu.VMEM((g2["Rp"] + 2 * g2["pad"], 64), jnp.float32),  # conv2 in / pool2
        pltpu.VMEM((g3["Rp"] + 2 * g3["pad"], 64), jnp.float32),  # conv3 in / pool3
        pltpu.VMEM((g4["Rp"] + 2 * g4["pad"], 64), jnp.float32),  # conv4 in / pool4
        pltpu.VMEM((m1 + w + 2, 64), jnp.float32),                # pool1 stage
        pltpu.VMEM((n, 64), jnp.float32),                         # fc input rows
    ]

    flops = (2 * m1 * 9 * 64
             + sum(2 * g["Rp"] * 576 * 64 for g in (g2, g3, g4))
             + 2 * n * 64 * 128)
    bytes_accessed = int(sum(a.size * a.dtype.itemsize for a in inputs)
                         + n * 128 * 4)

    out = pl.pallas_call(
        _make_kernel(n, h, w),
        out_shape=jax.ShapeDtypeStruct((n, 128), jnp.float32),
        in_specs=[_vmem_spec()] * len(inputs),
        out_specs=_vmem_spec(),
        scratch_shapes=scratch_shapes,
        compiler_params=pltpu.CompilerParams(
            vmem_limit_bytes=16 * 1024 * 1024),
        cost_estimate=pl.CostEstimate(flops=int(flops),
                                      transcendentals=4 * 64,
                                      bytes_accessed=bytes_accessed),
    )(*inputs)
    return out[:, :5]


def init_params(key):
    """Deterministic parameter init matching BaseNet.__init__ shapes/inits."""
    params = {}
    keys = jax.random.split(key, 4)
    cins = [1, 64, 64, 64]
    for i in range(4):
        fan_in = cins[i] * 3 * 3
        std = (2.0 / fan_in) ** 0.5      # kaiming_normal_, fan_in, relu gain
        params[f"conv{i}_w"] = std * jax.random.normal(
            keys[i], (64, cins[i], 3, 3), jnp.float32)
        # Conv biases provably cancel under training-mode batch norm, so the
        # kernel does not consume them (they are zeros here anyway).
        params[f"conv{i}_b"] = jnp.zeros((64,), jnp.float32)
        params[f"bn{i}_g"] = jnp.ones((64,), jnp.float32)
        params[f"bn{i}_b"] = jnp.zeros((64,), jnp.float32)
    # The final linear weight in the module is torch.ones([5, 64]) (no kaiming).
    params["fc_w"] = jnp.ones((5, 64), jnp.float32)
    params["fc_b"] = jnp.zeros((5,), jnp.float32)
    return params


if __name__ == "__main__":
    key = jax.random.PRNGKey(0)
    pkey, xkey = jax.random.split(key)
    params = init_params(pkey)
    # Conv1 expects 1 input channel; 16x16 spatial reduces to 1x1 after the
    # four 2x2 pools, matching the (5, 64) classifier head.
    x = jax.random.normal(xkey, (2, 1, 16, 16), jnp.float32)
    out = basenet_forward(x, params)
    out = jax.block_until_ready(out)
    assert out.shape == (2, 5), out.shape
    print("KERNEL_OK")
</pallas_src>

<mosaic_0001>
module attributes {stable_mosaic.version = 11 : i64} {
  func.func @kernel(%arg0: memref<512x9xbf16, #tpu.memory_space<vmem>>, %arg1: memref<9x64xbf16, #tpu.memory_space<vmem>>, %arg2: memref<9x192x64xbf16, #tpu.memory_space<vmem>>, %arg3: memref<8x64xf32, #tpu.memory_space<vmem>>, %arg4: memref<304x1xf32, #tpu.memory_space<vmem>>, %arg5: memref<64x128xbf16, #tpu.memory_space<vmem>>, %arg6: memref<1x128xf32, #tpu.memory_space<vmem>>, %arg7: memref<2x128xf32, #tpu.memory_space<vmem>>, %arg8: memref<222x64xf32, #tpu.memory_space<vmem>>, %arg9: memref<86x64xf32, #tpu.memory_space<vmem>>, %arg10: memref<42x64xf32, #tpu.memory_space<vmem>>, %arg11: memref<530x64xf32, #tpu.memory_space<vmem>>, %arg12: memref<2x64xf32, #tpu.memory_space<vmem>>) attributes {dimension_semantics = [], scalar_prefetch = 0 : i64, scratch_operands = 5 : i64, tpu.core_type = #tpu.core_type<tc>} {
    %cst = arith.constant 0.000000e+00 : f32
    %0 = vector.broadcast %cst : f32 to vector<222x64xf32>
    %c0 = arith.constant 0 : index
    %c0_0 = arith.constant 0 : index
    %1 = vector.load %arg8[%c0, %c0_0] : memref<222x64xf32, #tpu.memory_space<vmem>>, vector<222x64xf32>
    tpu.vector_store %arg8[%c0, %c0_0], %0 {strides = array<i32>} : memref<222x64xf32, #tpu.memory_space<vmem>>, vector<222x64xf32>,
    %cst_1 = arith.constant 0.000000e+00 : f32
    %2 = vector.broadcast %cst_1 : f32 to vector<86x64xf32>
    %c0_2 = arith.constant 0 : index
    %c0_3 = arith.constant 0 : index
    %3 = vector.load %arg9[%c0_2, %c0_3] : memref<86x64xf32, #tpu.memory_space<vmem>>, vector<86x64xf32>
    tpu.vector_store %arg9[%c0_2, %c0_3], %2 {strides = array<i32>} : memref<86x64xf32, #tpu.memory_space<vmem>>, vector<86x64xf32>,
    %cst_4 = arith.constant 0.000000e+00 : f32
    %4 = vector.broadcast %cst_4 : f32 to vector<42x64xf32>
    %c0_5 = arith.constant 0 : index
    %c0_6 = arith.constant 0 : index
    %5 = vector.load %arg10[%c0_5, %c0_6] : memref<42x64xf32, #tpu.memory_space<vmem>>, vector<42x64xf32>
    tpu.vector_store %arg10[%c0_5, %c0_6], %4 {strides = array<i32>} : memref<42x64xf32, #tpu.memory_space<vmem>>, vector<42x64xf32>,
    %cst_7 = arith.constant 0.000000e+00 : f32
    %6 = vector.broadcast %cst_7 : f32 to vector<18x64xf32>
    %c512 = arith.constant 512 : index
    %c0_8 = arith.constant 0 : index
    %7 = vector.load %arg11[%c512, %c0_8] : memref<530x64xf32, #tpu.memory_space<vmem>>, vector<18x64xf32>
    tpu.vector_store %arg11[%c512, %c0_8], %6 {strides = array<i32>} : memref<530x64xf32, #tpu.memory_space<vmem>>, vector<18x64xf32>,
    %c0_9 = arith.constant 0 : index
    %c0_10 = arith.constant 0 : index
    %8 = vector.load %arg0[%c0_9, %c0_10] : memref<512x9xbf16, #tpu.memory_space<vmem>>, vector<512x9xbf16>
    %c0_11 = arith.constant 0 : index
    %c0_12 = arith.constant 0 : index
    %9 = vector.load %arg1[%c0_11, %c0_12] : memref<9x64xbf16, #tpu.memory_space<vmem>>, vector<9x64xbf16>
    %cst_13 = arith.constant dense<0.000000e+00> : vector<512x64xf32>
    %10 = tpu.matmul %8, %9, %cst_13 {dimension_numbers = #tpu.dot_dimension_numbers<[1], [0], [0], [1], [0, 0, 1, 1], [], []>} : vector<512x9xbf16>, vector<9x64xbf16>, vector<512x64xf32> -> vector<512x64xf32>
    %cst_14 = arith.constant dense<0.000000e+00> : vector<64xf32>
    %11 = vector.multi_reduction <add>, %10, %cst_14 [0] : vector<512x64xf32> to vector<64xf32>
    %12 = vector.shape_cast %11 : vector<64xf32> to vector<1x64xf32>
    %13 = arith.mulf %10, %10 : vector<512x64xf32>
    %cst_15 = arith.constant dense<0.000000e+00> : vector<64xf32>
    %14 = vector.multi_reduction <add>, %13, %cst_15 [0] : vector<512x64xf32> to vector<64xf32>
    %15 = vector.shape_cast %14 : vector<64xf32> to vector<1x64xf32>
    %cst_16 = arith.constant 0.001953125 : f32
    %16 = vector.broadcast %cst_16 : f32 to vector<1x64xf32>
    %17 = arith.mulf %12, %16 : vector<1x64xf32>
    %cst_17 = arith.constant 0.001953125 : f32
    %18 = vector.broadcast %cst_17 : f32 to vector<1x64xf32>
    %19 = arith.mulf %15, %18 : vector<1x64xf32>
    %20 = arith.mulf %17, %17 : vector<1x64xf32>
    %21 = arith.subf %19, %20 : vector<1x64xf32>
    %cst_18 = arith.constant 0.000000e+00 : f32
    %22 = vector.broadcast %cst_18 : f32 to vector<1x64xf32>
    %23 = arith.maximumf %21, %22 : vector<1x64xf32>
    %cst_19 = arith.constant 9.99999974E-6 : f32
    %24 = vector.broadcast %cst_19 : f32 to vector<1x64xf32>
    %25 = arith.addf %23, %24 : vector<1x64xf32>
    %26 = math.rsqrt %25 : vector<1x64xf32>
    %c0_20 = arith.constant 0 : index
    %c0_21 = arith.constant 0 : index
    %27 = vector.load %arg3[%c0_20, %c0_21] : memref<8x64xf32, #tpu.memory_space<vmem>>, vector<1x64xf32>
    %c1 = arith.constant 1 : index
    %c0_22 = arith.constant 0 : index
    %28 = vector.load %arg3[%c1, %c0_22] : memref<8x64xf32, #tpu.memory_space<vmem>>, vector<1x64xf32>
    %29 = arith.mulf %27, %26 : vector<1x64xf32>
    %30 = arith.mulf %17, %29 : vector<1x64xf32>
    %31 = arith.subf %28, %30 : vector<1x64xf32>
    %32 = vector.broadcast %29 : vector<1x64xf32> to vector<512x64xf32>
    %33 = arith.mulf %10, %32 : vector<512x64xf32>
    %34 = vector.broadcast %31 : vector<1x64xf32> to vector<512x64xf32>
    %35 = arith.addf %33, %34 : vector<512x64xf32>
    %cst_23 = arith.constant 0.000000e+00 : f32
    %36 = vector.broadcast %cst_23 : f32 to vector<512x64xf32>
    %37 = arith.maximumf %35, %36 : vector<512x64xf32>
    %c0_24 = arith.constant 0 : index
    %c0_25 = arith.constant 0 : index
    %38 = vector.load %arg11[%c0_24, %c0_25] : memref<530x64xf32, #tpu.memory_space<vmem>>, vector<512x64xf32>
    tpu.vector_store %arg11[%c0_24, %c0_25], %37 {strides = array<i32>} : memref<530x64xf32, #tpu.memory_space<vmem>>, vector<512x64xf32>,
    %c1_26 = arith.constant 1 : index
    %c0_27 = arith.constant 0 : index
    %39 = vector.load %arg11[%c1_26, %c0_27] : memref<530x64xf32, #tpu.memory_space<vmem>>, vector<512x64xf32>
    %40 = arith.maximumf %37, %39 : vector<512x64xf32>
    %c16 = arith.constant 16 : index
    %c0_28 = arith.constant 0 : index
    %41 = vector.load %arg11[%c16, %c0_28] : memref<530x64xf32, #tpu.memory_space<vmem>>, vector<512x64xf32>
    %c17 = arith.constant 17 : index
    %c0_29 = arith.constant 0 : index
    %42 = vector.load %arg11[%c17, %c0_29] : memref<530x64xf32, #tpu.memory_space<vmem>>, vector<512x64xf32>
    %43 = arith.maximumf %41, %42 : vector<512x64xf32>
    %44 = arith.maximumf %40, %43 : vector<512x64xf32>
    %c0_30 = arith.constant 0 : index
    %c0_31 = arith.constant 0 : index
    %45 = vector.load %arg11[%c0_30, %c0_31] : memref<530x64xf32, #tpu.memory_space<vmem>>, vector<512x64xf32>
    tpu.vector_store %arg11[%c0_30, %c0_31], %44 {strides = array<i32>} : memref<530x64xf32, #tpu.memory_space<vmem>>, vector<512x64xf32>,
    %c0_32 = arith.constant 0 : index
    %c0_33 = arith.constant 0 : index
    %46 = tpu.strided_load %arg11[%c0_32, %c0_33] {strides = array<i32: 2, 1>} : memref<530x64xf32, #tpu.memory_space<vmem>>, vector<8x64xf32>
    %c22 = arith.constant 22 : index
    %c0_34 = arith.constant 0 : index
    %47 = vector.load %arg8[%c22, %c0_34] : memref<222x64xf32, #tpu.memory_space<vmem>>, vector<8x64xf32>
    tpu.vector_store %arg8[%c22, %c0_34], %46 {strides = array<i32>} : memref<222x64xf32, #tpu.memory_space<vmem>>, vector<8x64xf32>,
    %c32 = arith.constant 32 : index
    %c0_35 = arith.constant 0 : index
    %48 = tpu.strided_load %arg11[%c32, %c0_35] {strides = array<i32: 2, 1>} : memref<530x64xf32, #tpu.memory_space<vmem>>, vector<8x64xf32>
    %c32_36 = arith.constant 32 : index
    %c0_37 = arith.constant 0 : index
    %49 = vector.load %arg8[%c32_36, %c0_37] : memref<222x64xf32, #tpu.memory_space<vmem>>, vector<8x64xf32>
    tpu.vector_store %arg8[%c32_36, %c0_37], %48 {strides = array<i32>} : memref<222x64xf32, #tpu.memory_space<vmem>>, vector<8x64xf32>,
    %c64 = arith.constant 64 : index
    %c0_38 = arith.constant 0 : index
    %50 = tpu.strided_load %arg11[%c64, %c0_38] {strides = array<i32: 2, 1>} : memref<530x64xf32, #tpu.memory_space<vmem>>, vector<8x64xf32>
    %c42 = arith.constant 42 : index
    %c0_39 = arith.constant 0 : index
    %51 = vector.load %arg8[%c42, %c0_39] : memref<222x64xf32, #tpu.memory_space<vmem>>, vector<8x64xf32>
    tpu.vector_store %arg8[%c42, %c0_39], %50 {strides = array<i32>} : memref<222x64xf32, #tpu.memory_space<vmem>>, vector<8x64xf32>,
    %c96 = arith.constant 96 : index
    %c0_40 = arith.constant 0 : index
    %52 = tpu.strided_load %arg11[%c96, %c0_40] {strides = array<i32: 2, 1>} : memref<530x64xf32, #tpu.memory_space<vmem>>, vector<8x64xf32>
    %c52 = arith.constant 52 : index
    %c0_41 = arith.constant 0 : index
    %53 = vector.load %arg8[%c52, %c0_41] : memref<222x64xf32, #tpu.memory_space<vmem>>, vector<8x64xf32>
    tpu.vector_store %arg8[%c52, %c0_41], %52 {strides = array<i32>} : memref<222x64xf32, #tpu.memory_space<vmem>>, vector<8x64xf32>,
    %c128 = arith.constant 128 : index
    %c0_42 = arith.constant 0 : index
    %54 = tpu.strided_load %arg11[%c128, %c0_42] {strides = array<i32: 2, 1>} : memref<530x64xf32, #tpu.memory_space<vmem>>, vector<8x64xf32>
    %c62 = arith.constant 62 : index
    %c0_43 = arith.constant 0 : index
    %55 = vector.load %arg8[%c62, %c0_43] : memref<222x64xf32, #tpu.memory_space<vmem>>, vector<8x64xf32>
    tpu.vector_store %arg8[%c62, %c0_43], %54 {strides = array<i32>} : memref<222x64xf32, #tpu.memory_space<vmem>>, vector<8x64xf32>,
    %c160 = arith.constant 160 : index
    %c0_44 = arith.constant 0 : index
    %56 = tpu.strided_load %arg11[%c160, %c0_44] {strides = array<i32: 2, 1>} : memref<530x64xf32, #tpu.memory_space<vmem>>, vector<8x64xf32>
    %c72 = arith.constant 72 : index
    %c0_45 = arith.constant 0 : index
    %57 = vector.load %arg8[%c72, %c0_45] : memref<222x64xf32, #tpu.memory_space<vmem>>, vector<8x64xf32>
    tpu.vector_store %arg8[%c72, %c0_45], %56 {strides = array<i32>} : memref<222x64xf32, #tpu.memory_space<vmem>>, vector<8x64xf32>,
    %c192 = arith.constant 192 : index
    %c0_46 = arith.constant 0 : index
    %58 = tpu.strided_load %arg11[%c192, %c0_46] {strides = array<i32: 2, 1>} : memref<530x64xf32, #tpu.memory_space<vmem>>, vector<8x64xf32>
    %c82 = arith.constant 82 : index
    %c0_47 = arith.constant 0 : index
    %59 = vector.load %arg8[%c82, %c0_47] : memref<222x64xf32, #tpu.memory_space<vmem>>, vector<8x64xf32>
    tpu.vector_store %arg8[%c82, %c0_47], %58 {strides = array<i32>} : memref<222x64xf32, #tpu.memory_space<vmem>>, vector<8x64xf32>,
    %c224 = arith.constant 224 : index
    %c0_48 = arith.constant 0 : index
    %60 = tpu.strided_load %arg11[%c224, %c0_48] {strides = array<i32: 2, 1>} : memref<530x64xf32, #tpu.memory_space<vmem>>, vector<8x64xf32>
    %c92 = arith.constant 92 : index
    %c0_49 = arith.constant 0 : index
    %61 = vector.load %arg8[%c92, %c0_49] : memref<222x64xf32, #tpu.memory_space<vmem>>, vector<8x64xf32>
    tpu.vector_store %arg8[%c92, %c0_49], %60 {strides = array<i32>} : memref<222x64xf32, #tpu.memory_space<vmem>>, vector<8x64xf32>,
    %c256 = arith.constant 256 : index
    %c0_50 = arith.constant 0 : index
    %62 = tpu.strided_load %arg11[%c256, %c0_50] {strides = array<i32: 2, 1>} : memref<530x64xf32, #tpu.memory_space<vmem>>, vector<8x64xf32>
    %c122 = arith.constant 122 : index
    %c0_51 = arith.constant 0 : index
    %63 = vector.load %arg8[%c122, %c0_51] : memref<222x64xf32, #tpu.memory_space<vmem>>, vector<8x64xf32>
    tpu.vector_store %arg8[%c122, %c0_51], %62 {strides = array<i32>} : memref<222x64xf32, #tpu.memory_space<vmem>>, vector<8x64xf32>,
    %c288 = arith.constant 288 : index
    %c0_52 = arith.constant 0 : index
    %64 = tpu.strided_load %arg11[%c288, %c0_52] {strides = array<i32: 2, 1>} : memref<530x64xf32, #tpu.memory_space<vmem>>, vector<8x64xf32>
    %c132 = arith.constant 132 : index
    %c0_53 = arith.constant 0 : index
    %65 = vector.load %arg8[%c132, %c0_53] : memref<222x64xf32, #tpu.memory_space<vmem>>, vector<8x64xf32>
    tpu.vector_store %arg8[%c132, %c0_53], %64 {strides = array<i32>} : memref<222x64xf32, #tpu.memory_space<vmem>>, vector<8x64xf32>,
    %c320 = arith.constant 320 : index
    %c0_54 = arith.constant 0 : index
    %66 = tpu.strided_load %arg11[%c320, %c0_54] {strides = array<i32: 2, 1>} : memref<530x64xf32, #tpu.memory_space<vmem>>, vector<8x64xf32>
    %c142 = arith.constant 142 : index
    %c0_55 = arith.constant 0 : index
    %67 = vector.load %arg8[%c142, %c0_55] : memref<222x64xf32, #tpu.memory_space<vmem>>, vector<8x64xf32>
    tpu.vector_store %arg8[%c142, %c0_55], %66 {strides = array<i32>} : memref<222x64xf32, #tpu.memory_space<vmem>>, vector<8x64xf32>,
    %c352 = arith.constant 352 : index
    %c0_56 = arith.constant 0 : index
    %68 = tpu.strided_load %arg11[%c352, %c0_56] {strides = array<i32: 2, 1>} : memref<530x64xf32, #tpu.memory_space<vmem>>, vector<8x64xf32>
    %c152 = arith.constant 152 : index
    %c0_57 = arith.constant 0 : index
    %69 = vector.load %arg8[%c152, %c0_57] : memref<222x64xf32, #tpu.memory_space<vmem>>, vector<8x64xf32>
    tpu.vector_store %arg8[%c152, %c0_57], %68 {strides = array<i32>} : memref<222x64xf32, #tpu.memory_space<vmem>>, vector<8x64xf32>,
    %c384 = arith.constant 384 : index
    %c0_58 = arith.constant 0 : index
    %70 = tpu.strided_load %arg11[%c384, %c0_58] {strides = array<i32: 2, 1>} : memref<530x64xf32, #tpu.memory_space<vmem>>, vector<8x64xf32>
    %c162 = arith.constant 162 : index
    %c0_59 = arith.constant 0 : index
    %71 = vector.load %arg8[%c162, %c0_59] : memref<222x64xf32, #tpu.memory_space<vmem>>, vector<8x64xf32>
    tpu.vector_store %arg8[%c162, %c0_59], %70 {strides = array<i32>} : memref<222x64xf32, #tpu.memory_space<vmem>>, vector<8x64xf32>,
    %c416 = arith.constant 416 : index
    %c0_60 = arith.constant 0 : index
    %72 = tpu.strided_load %arg11[%c416, %c0_60] {strides = array<i32: 2, 1>} : memref<530x64xf32, #tpu.memory_space<vmem>>, vector<8x64xf32>
    %c172 = arith.constant 172 : index
    %c0_61 = arith.constant 0 : index
    %73 = vector.load %arg8[%c172, %c0_61] : memref<222x64xf32, #tpu.memory_space<vmem>>, vector<8x64xf32>
    tpu.vector_store %arg8[%c172, %c0_61], %72 {strides = array<i32>} : memref<222x64xf32, #tpu.memory_space<vmem>>, vector<8x64xf32>,
    %c448 = arith.constant 448 : index
    %c0_62 = arith.constant 0 : index
    %74 = tpu.strided_load %arg11[%c448, %c0_62] {strides = array<i32: 2, 1>} : memref<530x64xf32, #tpu.memory_space<vmem>>, vector<8x64xf32>
    %c182 = arith.constant 182 : index
    %c0_63 = arith.constant 0 : index
    %75 = vector.load %arg8[%c182, %c0_63] : memref<222x64xf32, #tpu.memory_space<vmem>>, vector<8x64xf32>
    tpu.vector_store %arg8[%c182, %c0_63], %74 {strides = array<i32>} : memref<222x64xf32, #tpu.memory_space<vmem>>, vector<8x64xf32>,
    %c480 = arith.constant 480 : index
    %c0_64 = arith.constant 0 : index
    %76 = tpu.strided_load %arg11[%c480, %c0_64] {strides = array<i32: 2, 1>} : memref<530x64xf32, #tpu.memory_space<vmem>>, vector<8x64xf32>
    %c192_65 = arith.constant 192 : index
    %c0_66 = arith.constant 0 : index
    %77 = vector.load %arg8[%c192_65, %c0_66] : memref<222x64xf32, #tpu.memory_space<vmem>>, vector<8x64xf32>
    tpu.vector_store %arg8[%c192_65, %c0_66], %76 {strides = array<i32>} : memref<222x64xf32, #tpu.memory_space<vmem>>, vector<8x64xf32>,
    %c0_67 = arith.constant 0 : index
    %c0_68 = arith.constant 0 : index
    %78 = vector.load %arg8[%c0_67, %c0_68] : memref<222x64xf32, #tpu.memory_space<vmem>>, vector<200x64xf32>
    %c10 = arith.constant 10 : index
    %c0_69 = arith.constant 0 : index
    %79 = vector.load %arg8[%c10, %c0_69] : memref<222x64xf32, #tpu.memory_space<vmem>>, vector<200x64xf32>
    %c20 = arith.constant 20 : index
    %c0_70 = arith.constant 0 : index
    %80 = vector.load %arg8[%c20, %c0_70] : memref<222x64xf32, #tpu.memory_space<vmem>>, vector<200x64xf32>
    %81 = tpu.concatenate %78, %79, %80 in 1 : vector<200x64xf32>, vector<200x64xf32>, vector<200x64xf32> -> vector<200x192xf32>
    %82 = arith.truncf %81 : vector<200x192xf32> to vector<200x192xbf16>
    %c0_71 = arith.constant 0 : index
    %c0_72 = arith.constant 0 : index
    %c0_73 = arith.constant 0 : index
    %83 = vector.load %arg2[%c0_71, %c0_72, %c0_73] : memref<9x192x64xbf16, #tpu.memory_space<vmem>>, vector<1x192x64xbf16>
    %84 = vector.shape_cast %83 : vector<1x192x64xbf16> to vector<192x64xbf16>
    %cst_74 = arith.constant dense<0.000000e+00> : vector<200x64xf32>
    %85 = tpu.matmul %82, %84, %cst_74 {dimension_numbers = #tpu.dot_dimension_numbers<[1], [0], [0], [1], [0, 0, 1, 1], [], []>} : vector<200x192xbf16>, vector<192x64xbf16>, vector<200x64xf32> -> vector<200x64xf32>
    %c1_75 = arith.constant 1 : index
    %c0_76 = arith.constant 0 : index
    %86 = vector.load %arg8[%c1_75, %c0_76] : memref<222x64xf32, #tpu.memory_space<vmem>>, vector<200x64xf32>
    %c11 = arith.constant 11 : index
    %c0_77 = arith.constant 0 : index
    %87 = vector.load %arg8[%c11, %c0_77] : memref<222x64xf32, #tpu.memory_space<vmem>>, vector<200x64xf32>
    %c21 = arith.constant 21 : index
    %c0_78 = arith.constant 0 : index
    %88 = vector.load %arg8[%c21, %c0_78] : memref<222x64xf32, #tpu.memory_space<vmem>>, vector<200x64xf32>
    %89 = tpu.concatenate %86, %87, %88 in 1 : vector<200x64xf32>, vector<200x64xf32>, vector<200x64xf32> -> vector<200x192xf32>
    %90 = arith.truncf %89 : vector<200x192xf32> to vector<200x192xbf16>
    %c1_79 = arith.constant 1 : index
    %c0_80 = arith.constant 0 : index
    %c0_81 = arith.constant 0 : index
    %91 = vector.load %arg2[%c1_79, %c0_80, %c0_81] : memref<9x192x64xbf16, #tpu.memory_space<vmem>>, vector<1x192x64xbf16>
    %92 = vector.shape_cast %91 : vector<1x192x64xbf16> to vector<192x64xbf16>
    %cst_82 = arith.constant dense<0.000000e+00> : vector<200x64xf32>
    %93 = tpu.matmul %90, %92, %cst_82 {dimension_numbers = #tpu.dot_dimension_numbers<[1], [0], [0], [1], [0, 0, 1, 1], [], []>} : vector<200x192xbf16>, vector<192x64xbf16>, vector<200x64xf32> -> vector<200x64xf32>
    %94 = arith.addf %85, %93 : vector<200x64xf32>
    %c2 = arith.constant 2 : index
    %c0_83 = arith.constant 0 : index
    %95 = vector.load %arg8[%c2, %c0_83] : memref<222x64xf32, #tpu.memory_space<vmem>>, vector<200x64xf32>
    %c12 = arith.constant 12 : index
    %c0_84 = arith.constant 0 : index
    %96 = vector.load %arg8[%c12, %c0_84] : memref<222x64xf32, #tpu.memory_space<vmem>>, vector<200x64xf32>
    %c22_85 = arith.constant 22 : index
    %c0_86 = arith.constant 0 : index
    %97 = vector.load %arg8[%c22_85, %c0_86] : memref<222x64xf32, #tpu.memory_space<vmem>>, vector<200x64xf32>
    %98 = tpu.concatenate %95, %96, %97 in 1 : vector<200x64xf32>, vector<200x64xf32>, vector<200x64xf32> -> vector<200x192xf32>
    %99 = arith.truncf %98 : vector<200x192xf32> to vector<200x192xbf16>
    %c2_87 = arith.constant 2 : index
    %c0_88 = arith.constant 0 : index
    %c0_89 = arith.constant 0 : index
    %100 = vector.load %arg2[%c2_87, %c0_88, %c0_89] : memref<9x192x64xbf16, #tpu.memory_space<vmem>>, vector<1x192x64xbf16>
    %101 = vector.shape_cast %100 : vector<1x192x64xbf16> to vector<192x64xbf16>
    %cst_90 = arith.constant dense<0.000000e+00> : vector<200x64xf32>
    %102 = tpu.matmul %99, %101, %cst_90 {dimension_numbers = #tpu.dot_dimension_numbers<[1], [0], [0], [1], [0, 0, 1, 1], [], []>} : vector<200x192xbf16>, vector<192x64xbf16>, vector<200x64xf32> -> vector<200x64xf32>
    %103 = arith.addf %94, %102 : vector<200x64xf32>
    %c0_91 = arith.constant 0 : index
    %c0_92 = arith.constant 0 : index
    %104 = vector.load %arg4[%c0_91, %c0_92] : memref<304x1xf32, #tpu.memory_space<vmem>>, vector<200x1xf32>
    %105 = vector.broadcast %104 : vector<200x1xf32> to vector<200x64xf32>
    %106 = arith.mulf %103, %105 : vector<200x64xf32>
    %cst_93 = arith.constant dense<0.000000e+00> : vector<64xf32>
    %107 = vector.multi_reduction <add>, %106, %cst_93 [0] : vector<200x64xf32> to vector<64xf32>
    %108 = vector.shape_cast %107 : vector<64xf32> to vector<1x64xf32>
    %109 = arith.mulf %106, %103 : vector<200x64xf32>
    %cst_94 = arith.constant dense<0.000000e+00> : vector<64xf32>
    %110 = vector.multi_reduction <add>, %109, %cst_94 [0] : vector<200x64xf32> to vector<64xf32>
    %111 = vector.shape_cast %110 : vector<64xf32> to vector<1x64xf32>
    %cst_95 = arith.constant 7.812500e-03 : f32
    %112 = vector.broadcast %cst_95 : f32 to vector<1x64xf32>
    %113 = arith.mulf %108, %112 : vector<1x64xf32>
    %cst_96 = arith.constant 7.812500e-03 : f32
    %114 = vector.broadcast %cst_96 : f32 to vector<1x64xf32>
    %115 = arith.mulf %111, %114 : vector<1x64xf32>
    %116 = arith.mulf %113, %113 : vector<1x64xf32>
    %117 = arith.subf %115, %116 : vector<1x64xf32>
    %cst_97 = arith.constant 0.000000e+00 : f32
    %118 = vector.broadcast %cst_97 : f32 to vector<1x64xf32>
    %119 = arith.maximumf %117, %118 : vector<1x64xf32>
    %cst_98 = arith.constant 9.99999974E-6 : f32
    %120 = vector.broadcast %cst_98 : f32 to vector<1x64xf32>
    %121 = arith.addf %119, %120 : vector<1x64xf32>
    %122 = math.rsqrt %121 : vector<1x64xf32>
    %c2_99 = arith.constant 2 : index
    %c0_100 = arith.constant 0 : index
    %123 = vector.load %arg3[%c2_99, %c0_100] : memref<8x64xf32, #tpu.memory_space<vmem>>, vector<1x64xf32>
    %c3 = arith.constant 3 : index
    %c0_101 = arith.constant 0 : index
    %124 = vector.load %arg3[%c3, %c0_101] : memref<8x64xf32, #tpu.memory_space<vmem>>, vector<1x64xf32>
    %125 = arith.mulf %123, %122 : vector<1x64xf32>
    %126 = arith.mulf %113, %125 : vector<1x64xf32>
    %127 = arith.subf %124, %126 : vector<1x64xf32>
    %128 = vector.broadcast %125 : vector<1x64xf32> to vector<200x64xf32>
    %129 = arith.mulf %103, %128 : vector<200x64xf32>
    %130 = vector.broadcast %127 : vector<1x64xf32> to vector<200x64xf32>
    %131 = arith.addf %129, %130 : vector<200x64xf32>
    %cst_102 = arith.constant 0.000000e+00 : f32
    %132 = vector.broadcast %cst_102 : f32 to vector<200x64xf32>
    %133 = arith.maximumf %131, %132 : vector<200x64xf32>
    %c0_103 = arith.constant 0 : index
    %c0_104 = arith.constant 0 : index
    %134 = vector.load %arg8[%c0_103, %c0_104] : memref<222x64xf32, #tpu.memory_space<vmem>>, vector<200x64xf32>
    tpu.vector_store %arg8[%c0_103, %c0_104], %133 {strides = array<i32>} : memref<222x64xf32, #tpu.memory_space<vmem>>, vector<200x64xf32>,
    %c1_105 = arith.constant 1 : index
    %c0_106 = arith.constant 0 : index
    %135 = vector.load %arg8[%c1_105, %c0_106] : memref<222x64xf32, #tpu.memory_space<vmem>>, vector<200x64xf32>
    %136 = arith.maximumf %133, %135 : vector<200x64xf32>
    %c10_107 = arith.constant 10 : index
    %c0_108 = arith.constant 0 : index
    %137 = vector.load %arg8[%c10_107, %c0_108] : memref<222x64xf32, #tpu.memory_space<vmem>>, vector<200x64xf32>
    %c11_109 = arith.constant 11 : index
    %c0_110 = arith.constant 0 : index
    %138 = vector.load %arg8[%c11_109, %c0_110] : memref<222x64xf32, #tpu.memory_space<vmem>>, vector<200x64xf32>
    %139 = arith.maximumf %137, %138 : vector<200x64xf32>
    %140 = arith.maximumf %136, %139 : vector<200x64xf32>
    %c0_111 = arith.constant 0 : index
    %c0_112 = arith.constant 0 : index
    %141 = vector.load %arg8[%c0_111, %c0_112] : memref<222x64xf32, #tpu.memory_space<vmem>>, vector<200x64xf32>
    tpu.vector_store %arg8[%c0_111, %c0_112], %140 {strides = array<i32>} : memref<222x64xf32, #tpu.memory_space<vmem>>, vector<200x64xf32>,
    %c11_113 = arith.constant 11 : index
    %c0_114 = arith.constant 0 : index
    %142 = tpu.strided_load %arg8[%c11_113, %c0_114] {strides = array<i32: 2, 1>} : memref<222x64xf32, #tpu.memory_space<vmem>>, vector<4x64xf32>
    %c14 = arith.constant 14 : index
    %c0_115 = arith.constant 0 : index
    %143 = vector.load %arg9[%c14, %c0_115] : memref<86x64xf32, #tpu.memory_space<vmem>>, vector<4x64xf32>
    tpu.vector_store %arg9[%c14, %c0_115], %142 {strides = array<i32>} : memref<86x64xf32, #tpu.memory_space<vmem>>, vector<4x64xf32>,
    %c31 = arith.constant 31 : index
    %c0_116 = arith.constant 0 : index
    %144 = tpu.strided_load %arg8[%c31, %c0_116] {strides = array<i32: 2, 1>} : memref<222x64xf32, #tpu.memory_space<vmem>>, vector<4x64xf32>
    %c20_117 = arith.constant 20 : index
    %c0_118 = arith.constant 0 : index
    %145 = vector.load %arg9[%c20_117, %c0_118] : memref<86x64xf32, #tpu.memory_space<vmem>>, vector<4x64xf32>
    tpu.vector_store %arg9[%c20_117, %c0_118], %144 {strides = array<i32>} : memref<86x64xf32, #tpu.memory_space<vmem>>, vector<4x64xf32>,
    %c51 = arith.constant 51 : index
    %c0_119 = arith.constant 0 : index
    %146 = tpu.strided_load %arg8[%c51, %c0_119] {strides = array<i32: 2, 1>} : memref<222x64xf32, #tpu.memory_space<vmem>>, vector<4x64xf32>
    %c26 = arith.constant 26 : index
    %c0_120 = arith.constant 0 : index
    %147 = vector.load %arg9[%c26, %c0_120] : memref<86x64xf32, #tpu.memory_space<vmem>>, vector<4x64xf32>
    tpu.vector_store %arg9[%c26, %c0_120], %146 {strides = array<i32>} : memref<86x64xf32, #tpu.memory_space<vmem>>, vector<4x64xf32>,
    %c71 = arith.constant 71 : index
    %c0_121 = arith.constant 0 : index
    %148 = tpu.strided_load %arg8[%c71, %c0_121] {strides = array<i32: 2, 1>} : memref<222x64xf32, #tpu.memory_space<vmem>>, vector<4x64xf32>
    %c32_122 = arith.constant 32 : index
    %c0_123 = arith.constant 0 : index
    %149 = vector.load %arg9[%c32_122, %c0_123] : memref<86x64xf32, #tpu.memory_space<vmem>>, vector<4x64xf32>
    tpu.vector_store %arg9[%c32_122, %c0_123], %148 {strides = array<i32>} : memref<86x64xf32, #tpu.memory_space<vmem>>, vector<4x64xf32>,
    %c111 = arith.constant 111 : index
    %c0_124 = arith.constant 0 : index
    %150 = tpu.strided_load %arg8[%c111, %c0_124] {strides = array<i32: 2, 1>} : memref<222x64xf32, #tpu.memory_space<vmem>>, vector<4x64xf32>
    %c50 = arith.constant 50 : index
    %c0_125 = arith.constant 0 : index
    %151 = vector.load %arg9[%c50, %c0_125] : memref<86x64xf32, #tpu.memory_space<vmem>>, vector<4x64xf32>
    tpu.vector_store %arg9[%c50, %c0_125], %150 {strides = array<i32>} : memref<86x64xf32, #tpu.memory_space<vmem>>, vector<4x64xf32>,
    %c131 = arith.constant 131 : index
    %c0_126 = arith.constant 0 : index
    %152 = tpu.strided_load %arg8[%c131, %c0_126] {strides = array<i32: 2, 1>} : memref<222x64xf32, #tpu.memory_space<vmem>>, vector<4x64xf32>
    %c56 = arith.constant 56 : index
    %c0_127 = arith.constant 0 : index
    %153 = vector.load %arg9[%c56, %c0_127] : memref<86x64xf32, #tpu.memory_space<vmem>>, vector<4x64xf32>
    tpu.vector_store %arg9[%c56, %c0_127], %152 {strides = array<i32>} : memref<86x64xf32, #tpu.memory_space<vmem>>, vector<4x64xf32>,
    %c151 = arith.constant 151 : index
    %c0_128 = arith.constant 0 : index
    %154 = tpu.strided_load %arg8[%c151, %c0_128] {strides = array<i32: 2, 1>} : memref<222x64xf32, #tpu.memory_space<vmem>>, vector<4x64xf32>
    %c62_129 = arith.constant 62 : index
    %c0_130 = arith.constant 0 : index
    %155 = vector.load %arg9[%c62_129, %c0_130] : memref<86x64xf32, #tpu.memory_space<vmem>>, vector<4x64xf32>
    tpu.vector_store %arg9[%c62_129, %c0_130], %154 {strides = array<i32>} : memref<86x64xf32, #tpu.memory_space<vmem>>, vector<4x64xf32>,
    %c171 = arith.constant 171 : index
    %c0_131 = arith.constant 0 : index
    %156 = tpu.strided_load %arg8[%c171, %c0_131] {strides = array<i32: 2, 1>} : memref<222x64xf32, #tpu.memory_space<vmem>>, vector<4x64xf32>
    %c68 = arith.constant 68 : index
    %c0_132 = arith.constant 0 : index
    %157 = vector.load %arg9[%c68, %c0_132] : memref<86x64xf32, #tpu.memory_space<vmem>>, vector<4x64xf32>
    tpu.vector_store %arg9[%c68, %c0_132], %156 {strides = array<i32>} : memref<86x64xf32, #tpu.memory_space<vmem>>, vector<4x64xf32>,
    %c0_133 = arith.constant 0 : index
    %c0_134 = arith.constant 0 : index
    %158 = vector.load %arg9[%c0_133, %c0_134] : memref<86x64xf32, #tpu.memory_space<vmem>>, vector<72x64xf32>
    %c6 = arith.constant 6 : index
    %c0_135 = arith.constant 0 : index
    %159 = vector.load %arg9[%c6, %c0_135] : memref<86x64xf32, #tpu.memory_space<vmem>>, vector<72x64xf32>
    %c12_136 = arith.constant 12 : index
    %c0_137 = arith.constant 0 : index
    %160 = vector.load %arg9[%c12_136, %c0_137] : memref<86x64xf32, #tpu.memory_space<vmem>>, vector<72x64xf32>
    %161 = tpu.concatenate %158, %159, %160 in 1 : vector<72x64xf32>, vector<72x64xf32>, vector<72x64xf32> -> vector<72x192xf32>
    %162 = arith.truncf %161 : vector<72x192xf32> to vector<72x192xbf16>
    %c3_138 = arith.constant 3 : index
    %c0_139 = arith.constant 0 : index
    %c0_140 = arith.constant 0 : index
    %163 = vector.load %arg2[%c3_138, %c0_139, %c0_140] : memref<9x192x64xbf16, #tpu.memory_space<vmem>>, vector<1x192x64xbf16>
    %164 = vector.shape_cast %163 : vector<1x192x64xbf16> to vector<192x64xbf16>
    %cst_141 = arith.constant dense<0.000000e+00> : vector<72x64xf32>
    %165 = tpu.matmul %162, %164, %cst_141 {dimension_numbers = #tpu.dot_dimension_numbers<[1], [0], [0], [1], [0, 0, 1, 1], [], []>} : vector<72x192xbf16>, vector<192x64xbf16>, vector<72x64xf32> -> vector<72x64xf32>
    %c1_142 = arith.constant 1 : index
    %c0_143 = arith.constant 0 : index
    %166 = vector.load %arg9[%c1_142, %c0_143] : memref<86x64xf32, #tpu.memory_space<vmem>>, vector<72x64xf32>
    %c7 = arith.constant 7 : index
    %c0_144 = arith.constant 0 : index
    %167 = vector.load %arg9[%c7, %c0_144] : memref<86x64xf32, #tpu.memory_space<vmem>>, vector<72x64xf32>
    %c13 = arith.constant 13 : index
    %c0_145 = arith.constant 0 : index
    %168 = vector.load %arg9[%c13, %c0_145] : memref<86x64xf32, #tpu.memory_space<vmem>>, vector<72x64xf32>
    %169 = tpu.concatenate %166, %167, %168 in 1 : vector<72x64xf32>, vector<72x64xf32>, vector<72x64xf32> -> vector<72x192xf32>
    %170 = arith.truncf %169 : vector<72x192xf32> to vector<72x192xbf16>
    %c4 = arith.constant 4 : index
    %c0_146 = arith.constant 0 : index
    %c0_147 = arith.constant 0 : index
    %171 = vector.load %arg2[%c4, %c0_146, %c0_147] : memref<9x192x64xbf16, #tpu.memory_space<vmem>>, vector<1x192x64xbf16>
    %172 = vector.shape_cast %171 : vector<1x192x64xbf16> to vector<192x64xbf16>
    %cst_148 = arith.constant dense<0.000000e+00> : vector<72x64xf32>
    %173 = tpu.matmul %170, %172, %cst_148 {dimension_numbers = #tpu.dot_dimension_numbers<[1], [0], [0], [1], [0, 0, 1, 1], [], []>} : vector<72x192xbf16>, vector<192x64xbf16>, vector<72x64xf32> -> vector<72x64xf32>
    %174 = arith.addf %165, %173 : vector<72x64xf32>
    %c2_149 = arith.constant 2 : index
    %c0_150 = arith.constant 0 : index
    %175 = vector.load %arg9[%c2_149, %c0_150] : memref<86x64xf32, #tpu.memory_space<vmem>>, vector<72x64xf32>
    %c8 = arith.constant 8 : index
    %c0_151 = arith.constant 0 : index
    %176 = vector.load %arg9[%c8, %c0_151] : memref<86x64xf32, #tpu.memory_space<vmem>>, vector<72x64xf32>
    %c14_152 = arith.constant 14 : index
    %c0_153 = arith.constant 0 : index
    %177 = vector.load %arg9[%c14_152, %c0_153] : memref<86x64xf32, #tpu.memory_space<vmem>>, vector<72x64xf32>
    %178 = tpu.concatenate %175, %176, %177 in 1 : vector<72x64xf32>, vector<72x64xf32>, vector<72x64xf32> -> vector<72x192xf32>
    %179 = arith.truncf %178 : vector<72x192xf32> to vector<72x192xbf16>
    %c5 = arith.constant 5 : index
    %c0_154 = arith.constant 0 : index
    %c0_155 = arith.constant 0 : index
    %180 = vector.load %arg2[%c5, %c0_154, %c0_155] : memref<9x192x64xbf16, #tpu.memory_space<vmem>>, vector<1x192x64xbf16>
    %181 = vector.shape_cast %180 : vector<1x192x64xbf16> to vector<192x64xbf16>
    %cst_156 = arith.constant dense<0.000000e+00> : vector<72x64xf32>
    %182 = tpu.matmul %179, %181, %cst_156 {dimension_numbers = #tpu.dot_dimension_numbers<[1], [0], [0], [1], [0, 0, 1, 1], [], []>} : vector<72x192xbf16>, vector<192x64xbf16>, vector<72x64xf32> -> vector<72x64xf32>
    %183 = arith.addf %174, %182 : vector<72x64xf32>
    %c200 = arith.constant 200 : index
    %c0_157 = arith.constant 0 : index
    %184 = vector.load %arg4[%c200, %c0_157] : memref<304x1xf32, #tpu.memory_space<vmem>>, vector<72x1xf32>
    %185 = vector.broadcast %184 : vector<72x1xf32> to vector<72x64xf32>
    %186 = arith.mulf %183, %185 : vector<72x64xf32>
    %cst_158 = arith.constant dense<0.000000e+00> : vector<64xf32>
    %187 = vector.multi_reduction <add>, %186, %cst_158 [0] : vector<72x64xf32> to vector<64xf32>
    %188 = vector.shape_cast %187 : vector<64xf32> to vector<1x64xf32>
    %189 = arith.mulf %186, %183 : vector<72x64xf32>
    %cst_159 = arith.constant dense<0.000000e+00> : vector<64xf32>
    %190 = vector.multi_reduction <add>, %189, %cst_159 [0] : vector<72x64xf32> to vector<64xf32>
    %191 = vector.shape_cast %190 : vector<64xf32> to vector<1x64xf32>
    %cst_160 = arith.constant 3.125000e-02 : f32
    %192 = vector.broadcast %cst_160 : f32 to vector<1x64xf32>
    %193 = arith.mulf %188, %192 : vector<1x64xf32>
    %cst_161 = arith.constant 3.125000e-02 : f32
    %194 = vector.broadcast %cst_161 : f32 to vector<1x64xf32>
    %195 = arith.mulf %191, %194 : vector<1x64xf32>
    %196 = arith.mulf %193, %193 : vector<1x64xf32>
    %197 = arith.subf %195, %196 : vector<1x64xf32>
    %cst_162 = arith.constant 0.000000e+00 : f32
    %198 = vector.broadcast %cst_162 : f32 to vector<1x64xf32>
    %199 = arith.maximumf %197, %198 : vector<1x64xf32>
    %cst_163 = arith.constant 9.99999974E-6 : f32
    %200 = vector.broadcast %cst_163 : f32 to vector<1x64xf32>
    %201 = arith.addf %199, %200 : vector<1x64xf32>
    %202 = math.rsqrt %201 : vector<1x64xf32>
    %c4_164 = arith.constant 4 : index
    %c0_165 = arith.constant 0 : index
    %203 = vector.load %arg3[%c4_164, %c0_165] : memref<8x64xf32, #tpu.memory_space<vmem>>, vector<1x64xf32>
    %c5_166 = arith.constant 5 : index
    %c0_167 = arith.constant 0 : index
    %204 = vector.load %arg3[%c5_166, %c0_167] : memref<8x64xf32, #tpu.memory_space<vmem>>, vector<1x64xf32>
    %205 = arith.mulf %203, %202 : vector<1x64xf32>
    %206 = arith.mulf %193, %205 : vector<1x64xf32>
    %207 = arith.subf %204, %206 : vector<1x64xf32>
    %208 = vector.broadcast %205 : vector<1x64xf32> to vector<72x64xf32>
    %209 = arith.mulf %183, %208 : vector<72x64xf32>
    %210 = vector.broadcast %207 : vector<1x64xf32> to vector<72x64xf32>
    %211 = arith.addf %209, %210 : vector<72x64xf32>
    %cst_168 = arith.constant 0.000000e+00 : f32
    %212 = vector.broadcast %cst_168 : f32 to vector<72x64xf32>
    %213 = arith.maximumf %211, %212 : vector<72x64xf32>
    %c0_169 = arith.constant 0 : index
    %c0_170 = arith.constant 0 : index
    %214 = vector.load %arg9[%c0_169, %c0_170] : memref<86x64xf32, #tpu.memory_space<vmem>>, vector<72x64xf32>
    tpu.vector_store %arg9[%c0_169, %c0_170], %213 {strides = array<i32>} : memref<86x64xf32, #tpu.memory_space<vmem>>, vector<72x64xf32>,
    %c1_171 = arith.constant 1 : index
    %c0_172 = arith.constant 0 : index
    %215 = vector.load %arg9[%c1_171, %c0_172] : memref<86x64xf32, #tpu.memory_space<vmem>>, vector<72x64xf32>
    %216 = arith.maximumf %213, %215 : vector<72x64xf32>
    %c6_173 = arith.constant 6 : index
    %c0_174 = arith.constant 0 : index
    %217 = vector.load %arg9[%c6_173, %c0_174] : memref<86x64xf32, #tpu.memory_space<vmem>>, vector<72x64xf32>
    %c7_175 = arith.constant 7 : index
    %c0_176 = arith.constant 0 : index
    %218 = vector.load %arg9[%c7_175, %c0_176] : memref<86x64xf32, #tpu.memory_space<vmem>>, vector<72x64xf32>
    %219 = arith.maximumf %217, %218 : vector<72x64xf32>
    %220 = arith.maximumf %216, %219 : vector<72x64xf32>
    %c0_177 = arith.constant 0 : index
    %c0_178 = arith.constant 0 : index
    %221 = vector.load %arg9[%c0_177, %c0_178] : memref<86x64xf32, #tpu.memory_space<vmem>>, vector<72x64xf32>
    tpu.vector_store %arg9[%c0_177, %c0_178], %220 {strides = array<i32>} : memref<86x64xf32, #tpu.memory_space<vmem>>, vector<72x64xf32>,
    %c7_179 = arith.constant 7 : index
    %c0_180 = arith.constant 0 : index
    %222 = tpu.strided_load %arg9[%c7_179, %c0_180] {strides = array<i32: 2, 1>} : memref<86x64xf32, #tpu.memory_space<vmem>>, vector<2x64xf32>
    %c10_181 = arith.constant 10 : index
    %c0_182 = arith.constant 0 : index
    %223 = vector.load %arg10[%c10_181, %c0_182] : memref<42x64xf32, #tpu.memory_space<vmem>>, vector<2x64xf32>
    tpu.vector_store %arg10[%c10_181, %c0_182], %222 {strides = array<i32>} : memref<42x64xf32, #tpu.memory_space<vmem>>, vector<2x64xf32>,
    %c19 = arith.constant 19 : index
    %c0_183 = arith.constant 0 : index
    %224 = tpu.strided_load %arg9[%c19, %c0_183] {strides = array<i32: 2, 1>} : memref<86x64xf32, #tpu.memory_space<vmem>>, vector<2x64xf32>
    %c14_184 = arith.constant 14 : index
    %c0_185 = arith.constant 0 : index
    %225 = vector.load %arg10[%c14_184, %c0_185] : memref<42x64xf32, #tpu.memory_space<vmem>>, vector<2x64xf32>
    tpu.vector_store %arg10[%c14_184, %c0_185], %224 {strides = array<i32>} : memref<42x64xf32, #tpu.memory_space<vmem>>, vector<2x64xf32>,
    %c43 = arith.constant 43 : index
    %c0_186 = arith.constant 0 : index
    %226 = tpu.strided_load %arg9[%c43, %c0_186] {strides = array<i32: 2, 1>} : memref<86x64xf32, #tpu.memory_space<vmem>>, vector<2x64xf32>
    %c26_187 = arith.constant 26 : index
    %c0_188 = arith.constant 0 : index
    %227 = vector.load %arg10[%c26_187, %c0_188] : memref<42x64xf32, #tpu.memory_space<vmem>>, vector<2x64xf32>
    tpu.vector_store %arg10[%c26_187, %c0_188], %226 {strides = array<i32>} : memref<42x64xf32, #tpu.memory_space<vmem>>, vector<2x64xf32>,
    %c55 = arith.constant 55 : index
    %c0_189 = arith.constant 0 : index
    %228 = tpu.strided_load %arg9[%c55, %c0_189] {strides = array<i32: 2, 1>} : memref<86x64xf32, #tpu.memory_space<vmem>>, vector<2x64xf32>
    %c30 = arith.constant 30 : index
    %c0_190 = arith.constant 0 : index
    %229 = vector.load %arg10[%c30, %c0_190] : memref<42x64xf32, #tpu.memory_space<vmem>>, vector<2x64xf32>
    tpu.vector_store %arg10[%c30, %c0_190], %228 {strides = array<i32>} : memref<42x64xf32, #tpu.memory_space<vmem>>, vector<2x64xf32>,
    %c0_191 = arith.constant 0 : index
    %c0_192 = arith.constant 0 : index
    %230 = vector.load %arg10[%c0_191, %c0_192] : memref<42x64xf32, #tpu.memory_space<vmem>>, vector<32x64xf32>
    %c4_193 = arith.constant 4 : index
    %c0_194 = arith.constant 0 : index
    %231 = vector.load %arg10[%c4_193, %c0_194] : memref<42x64xf32, #tpu.memory_space<vmem>>, vector<32x64xf32>
    %c8_195 = arith.constant 8 : index
    %c0_196 = arith.constant 0 : index
    %232 = vector.load %arg10[%c8_195, %c0_196] : memref<42x64xf32, #tpu.memory_space<vmem>>, vector<32x64xf32>
    %233 = tpu.concatenate %230, %231, %232 in 1 : vector<32x64xf32>, vector<32x64xf32>, vector<32x64xf32> -> vector<32x192xf32>
    %234 = arith.truncf %233 : vector<32x192xf32> to vector<32x192xbf16>
    %c6_197 = arith.constant 6 : index
    %c0_198 = arith.constant 0 : index
    %c0_199 = arith.constant 0 : index
    %235 = vector.load %arg2[%c6_197, %c0_198, %c0_199] : memref<9x192x64xbf16, #tpu.memory_space<vmem>>, vector<1x192x64xbf16>
    %236 = vector.shape_cast %235 : vector<1x192x64xbf16> to vector<192x64xbf16>
    %cst_200 = arith.constant dense<0.000000e+00> : vector<32x64xf32>
    %237 = tpu.matmul %234, %236, %cst_200 {dimension_numbers = #tpu.dot_dimension_numbers<[1], [0], [0], [1], [0, 0, 1, 1], [], []>} : vector<32x192xbf16>, vector<192x64xbf16>, vector<32x64xf32> -> vector<32x64xf32>
    %c1_201 = arith.constant 1 : index
    %c0_202 = arith.constant 0 : index
    %238 = vector.load %arg10[%c1_201, %c0_202] : memref<42x64xf32, #tpu.memory_space<vmem>>, vector<32x64xf32>
    %c5_203 = arith.constant 5 : index
    %c0_204 = arith.constant 0 : index
    %239 = vector.load %arg10[%c5_203, %c0_204] : memref<42x64xf32, #tpu.memory_space<vmem>>, vector<32x64xf32>
    %c9 = arith.constant 9 : index
    %c0_205 = arith.constant 0 : index
    %240 = vector.load %arg10[%c9, %c0_205] : memref<42x64xf32, #tpu.memory_space<vmem>>, vector<32x64xf32>
    %241 = tpu.concatenate %238, %239, %240 in 1 : vector<32x64xf32>, vector<32x64xf32>, vector<32x64xf32> -> vector<32x192xf32>
    %242 = arith.truncf %241 : vector<32x192xf32> to vector<32x192xbf16>
    %c7_206 = arith.constant 7 : index
    %c0_207 = arith.constant 0 : index
    %c0_208 = arith.constant 0 : index
    %243 = vector.load %arg2[%c7_206, %c0_207, %c0_208] : memref<9x192x64xbf16, #tpu.memory_space<vmem>>, vector<1x192x64xbf16>
    %244 = vector.shape_cast %243 : vector<1x192x64xbf16> to vector<192x64xbf16>
    %cst_209 = arith.constant dense<0.000000e+00> : vector<32x64xf32>
    %245 = tpu.matmul %242, %244, %cst_209 {dimension_numbers = #tpu.dot_dimension_numbers<[1], [0], [0], [1], [0, 0, 1, 1], [], []>} : vector<32x192xbf16>, vector<192x64xbf16>, vector<32x64xf32> -> vector<32x64xf32>
    %246 = arith.addf %237, %245 : vector<32x64xf32>
    %c2_210 = arith.constant 2 : index
    %c0_211 = arith.constant 0 : index
    %247 = vector.load %arg10[%c2_210, %c0_211] : memref<42x64xf32, #tpu.memory_space<vmem>>, vector<32x64xf32>
    %c6_212 = arith.constant 6 : index
    %c0_213 = arith.constant 0 : index
    %248 = vector.load %arg10[%c6_212, %c0_213] : memref<42x64xf32, #tpu.memory_space<vmem>>, vector<32x64xf32>
    %c10_214 = arith.constant 10 : index
    %c0_215 = arith.constant 0 : index
    %249 = vector.load %arg10[%c10_214, %c0_215] : memref<42x64xf32, #tpu.memory_space<vmem>>, vector<32x64xf32>
    %250 = tpu.concatenate %247, %248, %249 in 1 : vector<32x64xf32>, vector<32x64xf32>, vector<32x64xf32> -> vector<32x192xf32>
    %251 = arith.truncf %250 : vector<32x192xf32> to vector<32x192xbf16>
    %c8_216 = arith.constant 8 : index
    %c0_217 = arith.constant 0 : index
    %c0_218 = arith.constant 0 : index
    %252 = vector.load %arg2[%c8_216, %c0_217, %c0_218] : memref<9x192x64xbf16, #tpu.memory_space<vmem>>, vector<1x192x64xbf16>
    %253 = vector.shape_cast %252 : vector<1x192x64xbf16> to vector<192x64xbf16>
    %cst_219 = arith.constant dense<0.000000e+00> : vector<32x64xf32>
    %254 = tpu.matmul %251, %253, %cst_219 {dimension_numbers = #tpu.dot_dimension_numbers<[1], [0], [0], [1], [0, 0, 1, 1], [], []>} : vector<32x192xbf16>, vector<192x64xbf16>, vector<32x64xf32> -> vector<32x64xf32>
    %255 = arith.addf %246, %254 : vector<32x64xf32>
    %c272 = arith.constant 272 : index
    %c0_220 = arith.constant 0 : index
    %256 = vector.load %arg4[%c272, %c0_220] : memref<304x1xf32, #tpu.memory_space<vmem>>, vector<32x1xf32>
    %257 = vector.broadcast %256 : vector<32x1xf32> to vector<32x64xf32>
    %258 = arith.mulf %255, %257 : vector<32x64xf32>
    %cst_221 = arith.constant dense<0.000000e+00> : vector<64xf32>
    %259 = vector.multi_reduction <add>, %258, %cst_221 [0] : vector<32x64xf32> to vector<64xf32>
    %260 = vector.shape_cast %259 : vector<64xf32> to vector<1x64xf32>
    %261 = arith.mulf %258, %255 : vector<32x64xf32>
    %cst_222 = arith.constant dense<0.000000e+00> : vector<64xf32>
    %262 = vector.multi_reduction <add>, %261, %cst_222 [0] : vector<32x64xf32> to vector<64xf32>
    %263 = vector.shape_cast %262 : vector<64xf32> to vector<1x64xf32>
    %cst_223 = arith.constant 1.250000e-01 : f32
    %264 = vector.broadcast %cst_223 : f32 to vector<1x64xf32>
    %265 = arith.mulf %260, %264 : vector<1x64xf32>
    %cst_224 = arith.constant 1.250000e-01 : f32
    %266 = vector.broadcast %cst_224 : f32 to vector<1x64xf32>
    %267 = arith.mulf %263, %266 : vector<1x64xf32>
    %268 = arith.mulf %265, %265 : vector<1x64xf32>
    %269 = arith.subf %267, %268 : vector<1x64xf32>
    %cst_225 = arith.constant 0.000000e+00 : f32
    %270 = vector.broadcast %cst_225 : f32 to vector<1x64xf32>
    %271 = arith.maximumf %269, %270 : vector<1x64xf32>
    %cst_226 = arith.constant 9.99999974E-6 : f32
    %272 = vector.broadcast %cst_226 : f32 to vector<1x64xf32>
    %273 = arith.addf %271, %272 : vector<1x64xf32>
    %274 = math.rsqrt %273 : vector<1x64xf32>
    %c6_227 = arith.constant 6 : index
    %c0_228 = arith.constant 0 : index
    %275 = vector.load %arg3[%c6_227, %c0_228] : memref<8x64xf32, #tpu.memory_space<vmem>>, vector<1x64xf32>
    %c7_229 = arith.constant 7 : index
    %c0_230 = arith.constant 0 : index
    %276 = vector.load %arg3[%c7_229, %c0_230] : memref<8x64xf32, #tpu.memory_space<vmem>>, vector<1x64xf32>
    %277 = arith.mulf %275, %274 : vector<1x64xf32>
    %278 = arith.mulf %265, %277 : vector<1x64xf32>
    %279 = arith.subf %276, %278 : vector<1x64xf32>
    %280 = vector.broadcast %277 : vector<1x64xf32> to vector<32x64xf32>
    %281 = arith.mulf %255, %280 : vector<32x64xf32>
    %282 = vector.broadcast %279 : vector<1x64xf32> to vector<32x64xf32>
    %283 = arith.addf %281, %282 : vector<32x64xf32>
    %cst_231 = arith.constant 0.000000e+00 : f32
    %284 = vector.broadcast %cst_231 : f32 to vector<32x64xf32>
    %285 = arith.maximumf %283, %284 : vector<32x64xf32>
    %c0_232 = arith.constant 0 : index
    %c0_233 = arith.constant 0 : index
    %286 = vector.load %arg10[%c0_232, %c0_233] : memref<42x64xf32, #tpu.memory_space<vmem>>, vector<32x64xf32>
    tpu.vector_store %arg10[%c0_232, %c0_233], %285 {strides = array<i32>} : memref<42x64xf32, #tpu.memory_space<vmem>>, vector<32x64xf32>,
    %c1_234 = arith.constant 1 : index
    %c0_235 = arith.constant 0 : index
    %287 = vector.load %arg10[%c1_234, %c0_235] : memref<42x64xf32, #tpu.memory_space<vmem>>, vector<32x64xf32>
    %288 = arith.maximumf %285, %287 : vector<32x64xf32>
    %c4_236 = arith.constant 4 : index
    %c0_237 = arith.constant 0 : index
    %289 = vector.load %arg10[%c4_236, %c0_237] : memref<42x64xf32, #tpu.memory_space<vmem>>, vector<32x64xf32>
    %c5_238 = arith.constant 5 : index
    %c0_239 = arith.constant 0 : index
    %290 = vector.load %arg10[%c5_238, %c0_239] : memref<42x64xf32, #tpu.memory_space<vmem>>, vector<32x64xf32>
    %291 = arith.maximumf %289, %290 : vector<32x64xf32>
    %292 = arith.maximumf %288, %291 : vector<32x64xf32>
    %c0_240 = arith.constant 0 : index
    %c0_241 = arith.constant 0 : index
    %293 = vector.load %arg10[%c0_240, %c0_241] : memref<42x64xf32, #tpu.memory_space<vmem>>, vector<32x64xf32>
    tpu.vector_store %arg10[%c0_240, %c0_241], %292 {strides = array<i32>} : memref<42x64xf32, #tpu.memory_space<vmem>>, vector<32x64xf32>,
    %c5_242 = arith.constant 5 : index
    %c0_243 = arith.constant 0 : index
    %294 = vector.load %arg10[%c5_242, %c0_243] : memref<42x64xf32, #tpu.memory_space<vmem>>, vector<1x64xf32>
    %c0_244 = arith.constant 0 : index
    %c0_245 = arith.constant 0 : index
    %295 = vector.load %arg12[%c0_244, %c0_245] : memref<2x64xf32, #tpu.memory_space<vmem>>, vector<1x64xf32>
    tpu.vector_store %arg12[%c0_244, %c0_245], %294 {strides = array<i32>} : memref<2x64xf32, #tpu.memory_space<vmem>>, vector<1x64xf32>,
    %c21_246 = arith.constant 21 : index
    %c0_247 = arith.constant 0 : index
    %296 = vector.load %arg10[%c21_246, %c0_247] : memref<42x64xf32, #tpu.memory_space<vmem>>, vector<1x64xf32>
    %c1_248 = arith.constant 1 : index
    %c0_249 = arith.constant 0 : index
    %297 = vector.load %arg12[%c1_248, %c0_249] : memref<2x64xf32, #tpu.memory_space<vmem>>, vector<1x64xf32>
    tpu.vector_store %arg12[%c1_248, %c0_249], %296 {strides = array<i32>} : memref<2x64xf32, #tpu.memory_space<vmem>>, vector<1x64xf32>,
    %c0_250 = arith.constant 0 : index
    %c0_251 = arith.constant 0 : index
    %298 = vector.load %arg12[%c0_250, %c0_251] : memref<2x64xf32, #tpu.memory_space<vmem>>, vector<2x64xf32>
    %299 = arith.truncf %298 : vector<2x64xf32> to vector<2x64xbf16>
    %c0_252 = arith.constant 0 : index
    %c0_253 = arith.constant 0 : index
    %300 = vector.load %arg5[%c0_252, %c0_253] : memref<64x128xbf16, #tpu.memory_space<vmem>>, vector<64x128xbf16>
    %cst_254 = arith.constant dense<0.000000e+00> : vector<2x128xf32>
    %301 = tpu.matmul %299, %300, %cst_254 {dimension_numbers = #tpu.dot_dimension_numbers<[1], [0], [0], [1], [0, 0, 1, 1], [], []>} : vector<2x64xbf16>, vector<64x128xbf16>, vector<2x128xf32> -> vector<2x128xf32>
    %c0_255 = arith.constant 0 : index
    %c0_256 = arith.constant 0 : index
    %302 = vector.load %arg6[%c0_255, %c0_256] : memref<1x128xf32, #tpu.memory_space<vmem>>, vector<1x128xf32>
    %303 = vector.broadcast %302 : vector<1x128xf32> to vector<2x128xf32>
    %304 = arith.addf %301, %303 : vector<2x128xf32>
    %c0_257 = arith.constant 0 : index
    %c0_258 = arith.constant 0 : index
    %305 = vector.load %arg7[%c0_257, %c0_258] : memref<2x128xf32, #tpu.memory_space<vmem>>, vector<2x128xf32>
    tpu.vector_store %arg7[%c0_257, %c0_258], %304 {strides = array<i32>} : memref<2x128xf32, #tpu.memory_space<vmem>>, vector<2x128xf32>,
    return
  }
}

</mosaic_0001>

<llo_original>
// kernel: basenet_forward.1
$region0: #{basenet_forward.1}
  #allocation0 [shape = 'u32[]', space=smem, size = 0x4, offset = 0x4, fixed_abs, tag = 'smem constant byte address 0x4 - core index']
  #allocation1 [shape = 'u32[144,128]{1,0:T(1,128)}', space=vmem, size = 0x12000, scoped, tag = 'internal scratch']
  #allocation2 [shape = 'f32[222,64]{1,0:T(8,128)}', space=vmem, size = 0x1c000, scoped, tag = 'scratch operand']
  #allocation3 [shape = 'f32[86,64]{1,0:T(8,128)}', space=vmem, size = 0xb000, scoped, tag = 'scratch operand']
  #allocation4 [shape = 'f32[42,64]{1,0:T(8,128)}', space=vmem, size = 0x6000, scoped, tag = 'scratch operand']
  #allocation5 [shape = 'f32[530,64]{1,0:T(8,128)}', space=vmem, size = 0x43000, scoped, tag = 'scratch operand']
  #allocation6 [shape = 'f32[2,64]{1,0:T(2,128)}', space=vmem, size = 0x400, scoped, tag = 'scratch operand']
  %s0 = inlined_call_operand.vmem [shape: bf16[512,9], index: 0, kind: input, shape index: {}]
  %s1 = inlined_call_operand.vmem [shape: bf16[9,64], index: 1, kind: input, shape index: {}]
  %s2 = inlined_call_operand.vmem [shape: bf16[9,192,64], index: 2, kind: input, shape index: {}]
  %s3 = inlined_call_operand.vmem [shape: f32[8,64], index: 3, kind: input, shape index: {}]
  %s4 = inlined_call_operand.vmem [shape: f32[304,1], index: 4, kind: input, shape index: {}]
  %s5 = inlined_call_operand.vmem [shape: bf16[64,128], index: 5, kind: input, shape index: {}]
  %s6 = inlined_call_operand.vmem [shape: f32[1,128], index: 6, kind: input, shape index: {}]
  %s7 = inlined_call_operand.hbm [shape: f32[2,128], index: 7, kind: output, shape index: {}]
  %s8 = sld [smem:[#allocation0]]
  $region38: #{basenet_forward.1} parent=0
    _
  %s10 = ssub.s32 1, %s8
  %s11 = scalar_select 0, %s10, %s8
  $region1: #{basenet_forward.1} parent=0
    #allocation7 [shape = 'u8[1024]{0}', space=vmem, size = 0x400, scoped, tag = 'output window, operand 0, single buffered']
    #allocation8 [shape = 's32[1]{0}', space=sflag, size = 0x4, scoped, tag = 'scoped memory for basenet_forward.1']
    %12 = vsyncpa [#allocation8], 0
    // Predicated region
    $region2: #{basenet_forward.1} parent=1 // pred_check
      _
    $region3: #{basenet_forward.1} parent=1 // pred_check_branch
      %14 = sbr.rel (0) target = $region5
    $region4: #{basenet_forward.1} parent=1 // pred_region
      _
    $region5: #{basenet_forward.1} parent=1 // pred_fallthru
      _
    // Predicated region
    $region6: #{basenet_forward.1} parent=1 // pred_check
      _
    $region7: #{basenet_forward.1} parent=1 // pred_check_branch
      %16 = sbr.rel (0) target = $region9
    $region8: #{basenet_forward.1} parent=1 // pred_region
      _
    $region9: #{basenet_forward.1} parent=1 // pred_fallthru
      _
    // Predicated region
    $region10: #{basenet_forward.1} parent=1 // pred_check
      _
    $region11: #{basenet_forward.1} parent=1 // pred_check_branch
      %18 = sbr.rel (0) target = $region13
    $region12: #{basenet_forward.1} parent=1 // pred_region
      _
    $region13: #{basenet_forward.1} parent=1 // pred_fallthru
      _
    // Predicated region
    $region14: #{basenet_forward.1} parent=1 // pred_check
      _
    $region15: #{basenet_forward.1} parent=1 // pred_check_branch
      %20 = sbr.rel (0) target = $region17
    $region16: #{basenet_forward.1} parent=1 // pred_region
      _
    $region17: #{basenet_forward.1} parent=1 // pred_fallthru
      _
    // Predicated region
    $region18: #{basenet_forward.1} parent=1 // pred_check
      _
    $region19: #{basenet_forward.1} parent=1 // pred_check_branch
      %22 = sbr.rel (0) target = $region21
    $region20: #{basenet_forward.1} parent=1 // pred_region
      _
    $region21: #{basenet_forward.1} parent=1 // pred_fallthru
      _
    // Predicated region
    $region22: #{basenet_forward.1} parent=1 // pred_check
      _
    $region23: #{basenet_forward.1} parent=1 // pred_check_branch
      %24 = sbr.rel (0) target = $region25
    $region24: #{basenet_forward.1} parent=1 // pred_region
      _
    $region25: #{basenet_forward.1} parent=1 // pred_fallthru
      _
    // Predicated region
    $region26: #{basenet_forward.1} parent=1 // pred_check
      _
    $region27: #{basenet_forward.1} parent=1 // pred_check_branch
      %26 = sbr.rel (0) target = $region29
    $region28: #{basenet_forward.1} parent=1 // pred_region
      _
    $region29: #{basenet_forward.1} parent=1 // pred_fallthru
      _
    %vm28 = vcmask 523264
    %29 = vst.msk [vmem:[#allocation2] sm:$0xff] %vm28, 0.0
    %30 = vst.msk [vmem:[#allocation2 + $0x8] sm:$0xff] %vm28, 0.0
    %31 = vst.msk [vmem:[#allocation2 + $0x10] sm:$0xff] %vm28, 0.0
    %32 = vst.msk [vmem:[#allocation2 + $0x18] sm:$0xff] %vm28, 0.0
    %33 = vst.msk [vmem:[#allocation2 + $0x20] sm:$0xff] %vm28, 0.0
    %34 = vst.msk [vmem:[#allocation2 + $0x28] sm:$0xff] %vm28, 0.0
    %35 = vst.msk [vmem:[#allocation2 + $0x30] sm:$0xff] %vm28, 0.0
    %36 = vst.msk [vmem:[#allocation2 + $0x38] sm:$0xff] %vm28, 0.0
    %37 = vst.msk [vmem:[#allocation2 + $0x40] sm:$0xff] %vm28, 0.0
    %38 = vst.msk [vmem:[#allocation2 + $0x48] sm:$0xff] %vm28, 0.0
    %39 = vst.msk [vmem:[#allocation2 + $0x50] sm:$0xff] %vm28, 0.0
    %40 = vst.msk [vmem:[#allocation2 + $0x58] sm:$0xff] %vm28, 0.0
    %41 = vst.msk [vmem:[#allocation2 + $0x60] sm:$0xff] %vm28, 0.0
    %42 = vst.msk [vmem:[#allocation2 + $0x68] sm:$0xff] %vm28, 0.0
    %43 = vst.msk [vmem:[#allocation2 + $0x70] sm:$0xff] %vm28, 0.0
    %44 = vst.msk [vmem:[#allocation2 + $0x78] sm:$0xff] %vm28, 0.0
    %45 = vst.msk [vmem:[#allocation2 + $0x80] sm:$0xff] %vm28, 0.0
    %46 = vst.msk [vmem:[#allocation2 + $0x88] sm:$0xff] %vm28, 0.0
    %47 = vst.msk [vmem:[#allocation2 + $0x90] sm:$0xff] %vm28, 0.0
    %48 = vst.msk [vmem:[#allocation2 + $0x98] sm:$0xff] %vm28, 0.0
    %49 = vst.msk [vmem:[#allocation2 + $0xa0] sm:$0xff] %vm28, 0.0
    %50 = vst.msk [vmem:[#allocation2 + $0xa8] sm:$0xff] %vm28, 0.0
    %51 = vst.msk [vmem:[#allocation2 + $0xb0] sm:$0xff] %vm28, 0.0
    %52 = vst.msk [vmem:[#allocation2 + $0xb8] sm:$0xff] %vm28, 0.0
    %53 = vst.msk [vmem:[#allocation2 + $0xc0] sm:$0xff] %vm28, 0.0
    %54 = vst.msk [vmem:[#allocation2 + $0xc8] sm:$0xff] %vm28, 0.0
    %55 = vst.msk [vmem:[#allocation2 + $0xd0] sm:$0xff] %vm28, 0.0
    %vm56 = vcmask 521216
    %57 = vst.msk [vmem:[#allocation2 + $0xd8] sm:$0x3f] %vm56, 0.0
    %58 = vst.msk [vmem:[#allocation3] sm:$0xff] %vm28, 0.0
    %59 = vst.msk [vmem:[#allocation3 + $0x8] sm:$0xff] %vm28, 0.0
    %60 = vst.msk [vmem:[#allocation3 + $0x10] sm:$0xff] %vm28, 0.0
    %61 = vst.msk [vmem:[#allocation3 + $0x18] sm:$0xff] %vm28, 0.0
    %62 = vst.msk [vmem:[#allocation3 + $0x20] sm:$0xff] %vm28, 0.0
    %63 = vst.msk [vmem:[#allocation3 + $0x28] sm:$0xff] %vm28, 0.0
    %64 = vst.msk [vmem:[#allocation3 + $0x30] sm:$0xff] %vm28, 0.0
    %65 = vst.msk [vmem:[#allocation3 + $0x38] sm:$0xff] %vm28, 0.0
    %66 = vst.msk [vmem:[#allocation3 + $0x40] sm:$0xff] %vm28, 0.0
    %67 = vst.msk [vmem:[#allocation3 + $0x48] sm:$0xff] %vm28, 0.0
    %68 = vst.msk [vmem:[#allocation3 + $0x50] sm:$0x3f] %vm56, 0.0
    %69 = vst.msk [vmem:[#allocation4] sm:$0xff] %vm28, 0.0
    %70 = vst.msk [vmem:[#allocation4 + $0x8] sm:$0xff] %vm28, 0.0
    %71 = vst.msk [vmem:[#allocation4 + $0x10] sm:$0xff] %vm28, 0.0
    %72 = vst.msk [vmem:[#allocation4 + $0x18] sm:$0xff] %vm28, 0.0
    %73 = vst.msk [vmem:[#allocation4 + $0x20] sm:$0xff] %vm28, 0.0
    %vm74 = vcmask 517120
    %75 = vst.msk [vmem:[#allocation4 + $0x28] sm:$0x3] %vm74, 0.0
    %76 = vst.msk [vmem:[#allocation5 + $0x200] sm:$0xff] %vm28, 0.0
    %77 = vst.msk [vmem:[#allocation5 + $0x208] sm:$0xff] %vm28, 0.0
    %78 = vst.msk [vmem:[#allocation5 + $0x210] sm:$0x3] %vm74, 0.0
    %v79 = vld [vmem:[%s0] sm:$0xf]
    %v80 = vld [vmem:[%s0 + $0x4] sm:$0xf]
    %v81 = vld [vmem:[%s0 + $0x8] sm:$0xf]
    %v82 = vld [vmem:[%s0 + $0xc] sm:$0xf]
    %v83 = vld [vmem:[%s0 + $0x10] sm:$0xf]
    %v84 = vld [vmem:[%s0 + $0x14] sm:$0xf]
    %v85 = vld [vmem:[%s0 + $0x18] sm:$0xf]
    %v86 = vld [vmem:[%s0 + $0x1c] sm:$0xf]
    %v87 = vld [vmem:[%s0 + $0x20] sm:$0xf]
    %v88 = vld [vmem:[%s0 + $0x24] sm:$0xf]
    %v89 = vld [vmem:[%s0 + $0x28] sm:$0xf]
    %v90 = vld [vmem:[%s0 + $0x2c] sm:$0xf]
    %v91 = vld [vmem:[%s0 + $0x30] sm:$0xf]
    %v92 = vld [vmem:[%s0 + $0x34] sm:$0xf]
    %v93 = vld [vmem:[%s0 + $0x38] sm:$0xf]
    %v94 = vld [vmem:[%s0 + $0x3c] sm:$0xf]
    %v95 = vld [vmem:[%s0 + $0x40] sm:$0xf]
    %v96 = vld [vmem:[%s0 + $0x44] sm:$0xf]
    %v97 = vld [vmem:[%s0 + $0x48] sm:$0xf]
    %v98 = vld [vmem:[%s0 + $0x4c] sm:$0xf]
    %v99 = vld [vmem:[%s0 + $0x50] sm:$0xf]
    %v100 = vld [vmem:[%s0 + $0x54] sm:$0xf]
    %v101 = vld [vmem:[%s0 + $0x58] sm:$0xf]
    %v102 = vld [vmem:[%s0 + $0x5c] sm:$0xf]
    %v103 = vld [vmem:[%s0 + $0x60] sm:$0xf]
    %v104 = vld [vmem:[%s0 + $0x64] sm:$0xf]
    %v105 = vld [vmem:[%s0 + $0x68] sm:$0xf]
    %v106 = vld [vmem:[%s0 + $0x6c] sm:$0xf]
    %v107 = vld [vmem:[%s0 + $0x70] sm:$0xf]
    %v108 = vld [vmem:[%s0 + $0x74] sm:$0xf]
    %v109 = vld [vmem:[%s0 + $0x78] sm:$0xf]
    %v110 = vld [vmem:[%s0 + $0x7c] sm:$0xf]
    %v111 = vld [vmem:[%s0 + $0x80] sm:$0xf]
    %v112 = vld [vmem:[%s0 + $0x84] sm:$0xf]
    %v113 = vld [vmem:[%s0 + $0x88] sm:$0xf]
    %v114 = vld [vmem:[%s0 + $0x8c] sm:$0xf]
    %v115 = vld [vmem:[%s0 + $0x90] sm:$0xf]
    %v116 = vld [vmem:[%s0 + $0x94] sm:$0xf]
    %v117 = vld [vmem:[%s0 + $0x98] sm:$0xf]
    %v118 = vld [vmem:[%s0 + $0x9c] sm:$0xf]
    %v119 = vld [vmem:[%s0 + $0xa0] sm:$0xf]
    %v120 = vld [vmem:[%s0 + $0xa4] sm:$0xf]
    %v121 = vld [vmem:[%s0 + $0xa8] sm:$0xf]
    %v122 = vld [vmem:[%s0 + $0xac] sm:$0xf]
    %v123 = vld [vmem:[%s0 + $0xb0] sm:$0xf]
    %v124 = vld [vmem:[%s0 + $0xb4] sm:$0xf]
    %v125 = vld [vmem:[%s0 + $0xb8] sm:$0xf]
    %v126 = vld [vmem:[%s0 + $0xbc] sm:$0xf]
    %v127 = vld [vmem:[%s0 + $0xc0] sm:$0xf]
    %v128 = vld [vmem:[%s0 + $0xc4] sm:$0xf]
    %v129 = vld [vmem:[%s0 + $0xc8] sm:$0xf]
    %v130 = vld [vmem:[%s0 + $0xcc] sm:$0xf]
    %v131 = vld [vmem:[%s0 + $0xd0] sm:$0xf]
    %v132 = vld [vmem:[%s0 + $0xd4] sm:$0xf]
    %v133 = vld [vmem:[%s0 + $0xd8] sm:$0xf]
    %v134 = vld [vmem:[%s0 + $0xdc] sm:$0xf]
    %v135 = vld [vmem:[%s0 + $0xe0] sm:$0xf]
    %v136 = vld [vmem:[%s0 + $0xe4] sm:$0xf]
    %v137 = vld [vmem:[%s0 + $0xe8] sm:$0xf]
    %v138 = vld [vmem:[%s0 + $0xec] sm:$0xf]
    %v139 = vld [vmem:[%s0 + $0xf0] sm:$0xf]
    %v140 = vld [vmem:[%s0 + $0xf4] sm:$0xf]
    %v141 = vld [vmem:[%s0 + $0xf8] sm:$0xf]
    %v142 = vld [vmem:[%s0 + $0xfc] sm:$0xf]
    %v143 = vld [vmem:[%s1] sm:$0xf]
    %v144 = vld [vmem:[%s1 + $0x4] sm:$0x1]
    %v209 = vunpack.c.l.b16 %v79
    %v210 = vunpack.c.l.b16 %v80
    %v211 = vunpack.c.l.b16 %v81
    %v212 = vunpack.c.l.b16 %v82
    %v213 = vunpack.c.l.b16 %v83
    %v214 = vunpack.c.l.b16 %v84
    %v215 = vunpack.c.l.b16 %v85
    %v216 = vunpack.c.l.b16 %v86
    %v217 = vunpack.c.l.b16 %v87
    %v218 = vunpack.c.l.b16 %v88
    %v219 = vunpack.c.l.b16 %v89
    %v220 = vunpack.c.l.b16 %v90
    %v221 = vunpack.c.l.b16 %v91
    %v222 = vunpack.c.l.b16 %v92
    %v223 = vunpack.c.l.b16 %v93
    %v224 = vunpack.c.l.b16 %v94
    %v225 = vunpack.c.l.b16 %v95
    %v226 = vunpack.c.l.b16 %v96
    %v227 = vunpack.c.l.b16 %v97
    %v228 = vunpack.c.l.b16 %v98
    %v229 = vunpack.c.l.b16 %v99
    %v230 = vunpack.c.l.b16 %v100
    %v231 = vunpack.c.l.b16 %v101
    %v232 = vunpack.c.l.b16 %v102
    %v233 = vunpack.c.l.b16 %v103
    %v234 = vunpack.c.l.b16 %v104
    %v235 = vunpack.c.l.b16 %v105
    %v236 = vunpack.c.l.b16 %v106
    %v237 = vunpack.c.l.b16 %v107
    %v238 = vunpack.c.l.b16 %v108
    %v239 = vunpack.c.l.b16 %v109
    %v240 = vunpack.c.l.b16 %v110
    %v241 = vunpack.c.l.b16 %v111
    %v242 = vunpack.c.l.b16 %v112
    %v243 = vunpack.c.l.b16 %v113
    %v244 = vunpack.c.l.b16 %v114
    %v245 = vunpack.c.l.b16 %v115
    %v246 = vunpack.c.l.b16 %v116
    %v247 = vunpack.c.l.b16 %v117
    %v248 = vunpack.c.l.b16 %v118
    %v249 = vunpack.c.l.b16 %v119
    %v250 = vunpack.c.l.b16 %v120
    %v251 = vunpack.c.l.b16 %v121
    %v252 = vunpack.c.l.b16 %v122
    %v253 = vunpack.c.l.b16 %v123
    %v254 = vunpack.c.l.b16 %v124
    %v255 = vunpack.c.l.b16 %v125
    %v256 = vunpack.c.l.b16 %v126
    %v257 = vunpack.c.l.b16 %v127
    %v258 = vunpack.c.l.b16 %v128
    %v259 = vunpack.c.l.b16 %v129
    %v260 = vunpack.c.l.b16 %v130
    %v261 = vunpack.c.l.b16 %v131
    %v262 = vunpack.c.l.b16 %v132
    %v263 = vunpack.c.l.b16 %v133
    %v264 = vunpack.c.l.b16 %v134
    %v265 = vunpack.c.l.b16 %v135
    %v266 = vunpack.c.l.b16 %v136
    %v267 = vunpack.c.l.b16 %v137
    %v268 = vunpack.c.l.b16 %v138
    %v269 = vunpack.c.l.b16 %v139
    %v270 = vunpack.c.l.b16 %v140
    %v271 = vunpack.c.l.b16 %v141
    %v272 = vunpack.c.l.b16 %v142
    %v273 = vpack.c.b16 %v210, %v209
    %v274 = vpack.c.b16 %v212, %v211
    %v275 = vpack.c.b16 %v214, %v213
    %v276 = vpack.c.b16 %v216, %v215
    %v277 = vpack.c.b16 %v218, %v217
    %v278 = vpack.c.b16 %v220, %v219
    %v279 = vpack.c.b16 %v222, %v221
    %v280 = vpack.c.b16 %v224, %v223
    %v281 = vpack.c.b16 %v226, %v225
    %v282 = vpack.c.b16 %v228, %v227
    %v283 = vpack.c.b16 %v230, %v229
    %v284 = vpack.c.b16 %v232, %v231
    %v285 = vpack.c.b16 %v234, %v233
    %v286 = vpack.c.b16 %v236, %v235
    %v287 = vpack.c.b16 %v238, %v237
    %v288 = vpack.c.b16 %v240, %v239
    %v289 = vpack.c.b16 %v242, %v241
    %v290 = vpack.c.b16 %v244, %v243
    %v291 = vpack.c.b16 %v246, %v245
    %v292 = vpack.c.b16 %v248, %v247
    %v293 = vpack.c.b16 %v250, %v249
    %v294 = vpack.c.b16 %v252, %v251
    %v295 = vpack.c.b16 %v254, %v253
    %v296 = vpack.c.b16 %v256, %v255
    %v297 = vpack.c.b16 %v258, %v257
    %v298 = vpack.c.b16 %v260, %v259
    %v299 = vpack.c.b16 %v262, %v261
    %v300 = vpack.c.b16 %v264, %v263
    %v301 = vpack.c.b16 %v266, %v265
    %v302 = vpack.c.b16 %v268, %v267
    %v303 = vpack.c.b16 %v270, %v269
    %v304 = vpack.c.b16 %v272, %v271
    %v307 = vunpack.c.l.b16 %v143
    %v308 = vunpack.c.l.b16 %v144
    %v309 = vpack.c.b16 %v308, %v307
    %vm310 = vcmask 72704
    %v312 = vsel %vm310, %v273, 0
    %v315 = vsel %vm310, %v274, 0
    %v318 = vsel %vm310, %v275, 0
    %v321 = vsel %vm310, %v276, 0
    %v324 = vsel %vm310, %v277, 0
    %v327 = vsel %vm310, %v278, 0
    %v330 = vsel %vm310, %v279, 0
    %v333 = vsel %vm310, %v280, 0
    %v336 = vsel %vm310, %v281, 0
    %v339 = vsel %vm310, %v282, 0
    %v342 = vsel %vm310, %v283, 0
    %v345 = vsel %vm310, %v284, 0
    %v348 = vsel %vm310, %v285, 0
    %v351 = vsel %vm310, %v286, 0
    %v354 = vsel %vm310, %v287, 0
    %v357 = vsel %vm310, %v288, 0
    %v360 = vsel %vm310, %v289, 0
    %v363 = vsel %vm310, %v290, 0
    %v366 = vsel %vm310, %v291, 0
    %v369 = vsel %vm310, %v292, 0
    %v372 = vsel %vm310, %v293, 0
    %v375 = vsel %vm310, %v294, 0
    %v378 = vsel %vm310, %v295, 0
    %v381 = vsel %vm310, %v296, 0
    %v384 = vsel %vm310, %v297, 0
    %v387 = vsel %vm310, %v298, 0
    %v390 = vsel %vm310, %v299, 0
    %v393 = vsel %vm310, %v300, 0
    %v396 = vsel %vm310, %v301, 0
    %v399 = vsel %vm310, %v302, 0
    %v402 = vsel %vm310, %v303, 0
    %v405 = vsel %vm310, %v304, 0
    %vm407 = vcmask 1043456
    %vm408 = vcmask 1044480
    %v409 = vsel %vm407, 4294967295, 65535
    %v410 = vsel %vm408, %v409, 0
    %v412 = vand.u32 %v309, %v410
    %414 = vmatprep.subr.bf16.mxu0 0
    %415 = vmatpush1.bf16.msra.mxu0 %v412
    %416 = vmatprep.subr.bf16.mxu0 0
    %417 = vmatpush1.bf16.msra.mxu0 0
    %418 = vmatprep.subr.bf16.mxu0 0
    %419 = vmatpush1.bf16.msra.mxu0 0
    %420 = vmatprep.subr.bf16.mxu0 0
    %421 = vmatpush1.bf16.msra.mxu0 0
    %422 = vmatprep.subr.bf16.mxu0 0
    %423 = vmatpush1.bf16.msra.mxu0 0
    %424 = vmatprep.subr.bf16.mxu0 0
    %425 = vmatpush1.bf16.msra.mxu0 0
    %426 = vmatprep.subr.bf16.mxu0 0
    %427 = vmatpush1.bf16.msra.mxu0 0
    %428 = vmatprep.subr.bf16.mxu0 0
    %429 = vmatpush1.bf16.msra.mxu0 0
    %430 = vmatprep.subr.bf16.mxu0 0
    %431 = vmatpush1.bf16.msra.mxu0 0
    %432 = vmatprep.subr.bf16.mxu0 0
    %433 = vmatpush1.bf16.msra.mxu0 0
    %434 = vmatprep.subr.bf16.mxu0 0
    %435 = vmatpush1.bf16.msra.mxu0 0
    %436 = vmatprep.subr.bf16.mxu0 0
    %437 = vmatpush1.bf16.msra.mxu0 0
    %438 = vmatprep.subr.bf16.mxu0 0
    %439 = vmatpush1.bf16.msra.mxu0 0
    %440 = vmatprep.subr.bf16.mxu0 0
    %441 = vmatpush1.bf16.msra.mxu0 0
    %442 = vmatprep.subr.bf16.mxu0 0
    %443 = vmatpush1.bf16.msra.mxu0 0
    %444 = vmatprep.subr.bf16.mxu0 0
    %445 = vmatpush1.bf16.msra.mxu0 0
    %446 = vmatprep.mubr.bf16.mxu0 0
    %447 = vmatmul.mubr.bf16.gmra.mrb[0].mxu0 %v312
    %v448 = vpop.f32.mrb[0].mxu0
    %v449 = vadd.f32 0.0, %v448
    %v450 = vpop.f32.mrb[0].mxu0
    %v451 = vpop.f32.mrb[0].mxu0
    %v452 = vadd.f32 0.0, %v451
    %v453 = vpop.f32.mrb[0].mxu0
    %454 = vmatprep.mubr.bf16.mxu0 0
    %455 = vmatmul.mubr.bf16.gmra.mrb[0].mxu0 %v315
    %v456 = vpop.f32.mrb[0].mxu0
    %v457 = vadd.f32 0.0, %v456
    %v458 = vpop.f32.mrb[0].mxu0
    %v459 = vpop.f32.mrb[0].mxu0
    %v460 = vadd.f32 0.0, %v459
    %v461 = vpop.f32.mrb[0].mxu0
    %462 = vmatprep.mubr.bf16.mxu0 0
    %463 = vmatmul.mubr.bf16.gmra.mrb[0].mxu0 %v318
    %v464 = vpop.f32.mrb[0].mxu0
    %v465 = vadd.f32 0.0, %v464
    %v466 = vpop.f32.mrb[0].mxu0
    %v467 = vpop.f32.mrb[0].mxu0
    %v468 = vadd.f32 0.0, %v467
    %v469 = vpop.f32.mrb[0].mxu0
    %470 = vmatprep.mubr.bf16.mxu0 0
    %471 = vmatmul.mubr.bf16.gmra.mrb[0].mxu0 %v321
    %v472 = vpop.f32.mrb[0].mxu0
    %v473 = vadd.f32 0.0, %v472
    %v474 = vpop.f32.mrb[0].mxu0
    %v475 = vpop.f32.mrb[0].mxu0
    %v476 = vadd.f32 0.0, %v475
    %v477 = vpop.f32.mrb[0].mxu0
    %478 = vmatprep.mubr.bf16.mxu0 0
    %479 = vmatmul.mubr.bf16.gmra.mrb[0].mxu0 %v324
    %v480 = vpop.f32.mrb[0].mxu0
    %v481 = vadd.f32 0.0, %v480
    %v482 = vpop.f32.mrb[0].mxu0
    %v483 = vpop.f32.mrb[0].mxu0
    %v484 = vadd.f32 0.0, %v483
    %v485 = vpop.f32.mrb[0].mxu0
    %486 = vmatprep.mubr.bf16.mxu0 0
    %487 = vmatmul.mubr.bf16.gmra.mrb[0].mxu0 %v327
    %v488 = vpop.f32.mrb[0].mxu0
    %v489 = vadd.f32 0.0, %v488
    %v490 = vpop.f32.mrb[0].mxu0
    %v491 = vpop.f32.mrb[0].mxu0
    %v492 = vadd.f32 0.0, %v491
    %v493 = vpop.f32.mrb[0].mxu0
    %494 = vmatprep.mubr.bf16.mxu0 0
    %495 = vmatmul.mubr.bf16.gmra.mrb[0].mxu0 %v330
    %v496 = vpop.f32.mrb[0].mxu0
    %v497 = vadd.f32 0.0, %v496
    %v498 = vpop.f32.mrb[0].mxu0
    %v499 = vpop.f32.mrb[0].mxu0
    %v500 = vadd.f32 0.0, %v499
    %v501 = vpop.f32.mrb[0].mxu0
    %502 = vmatprep.mubr.bf16.mxu0 0
    %503 = vmatmul.mubr.bf16.gmra.mrb[0].mxu0 %v333
    %v504 = vpop.f32.mrb[0].mxu0
    %v505 = vadd.f32 0.0, %v504
    %v506 = vpop.f32.mrb[0].mxu0
    %v507 = vpop.f32.mrb[0].mxu0
    %v508 = vadd.f32 0.0, %v507
    %v509 = vpop.f32.mrb[0].mxu0
    %510 = vmatprep.mubr.bf16.mxu0 0
    %511 = vmatmul.mubr.bf16.gmra.mrb[0].mxu0 %v336
    %v512 = vpop.f32.mrb[0].mxu0
    %v513 = vadd.f32 0.0, %v512
    %v514 = vpop.f32.mrb[0].mxu0
    %v515 = vpop.f32.mrb[0].mxu0
    %v516 = vadd.f32 0.0, %v515
    %v517 = vpop.f32.mrb[0].mxu0
    %518 = vmatprep.mubr.bf16.mxu0 0
    %519 = vmatmul.mubr.bf16.gmra.mrb[0].mxu0 %v339
    %v520 = vpop.f32.mrb[0].mxu0
    %v521 = vadd.f32 0.0, %v520
    %v522 = vpop.f32.mrb[0].mxu0
    %v523 = vpop.f32.mrb[0].mxu0
    %v524 = vadd.f32 0.0, %v523
    %v525 = vpop.f32.mrb[0].mxu0
    %526 = vmatprep.mubr.bf16.mxu0 0
    %527 = vmatmul.mubr.bf16.gmra.mrb[0].mxu0 %v342
    %v528 = vpop.f32.mrb[0].mxu0
    %v529 = vadd.f32 0.0, %v528
    %v530 = vpop.f32.mrb[0].mxu0
    %v531 = vpop.f32.mrb[0].mxu0
    %v532 = vadd.f32 0.0, %v531
    %v533 = vpop.f32.mrb[0].mxu0
    %534 = vmatprep.mubr.bf16.mxu0 0
    %535 = vmatmul.mubr.bf16.gmra.mrb[0].mxu0 %v345
    %v536 = vpop.f32.mrb[0].mxu0
    %v537 = vadd.f32 0.0, %v536
    %v538 = vpop.f32.mrb[0].mxu0
    %v539 = vpop.f32.mrb[0].mxu0
    %v540 = vadd.f32 0.0, %v539
    %v541 = vpop.f32.mrb[0].mxu0
    %542 = vmatprep.mubr.bf16.mxu0 0
    %543 = vmatmul.mubr.bf16.gmra.mrb[0].mxu0 %v348
    %v544 = vpop.f32.mrb[0].mxu0
    %v545 = vadd.f32 0.0, %v544
    %v546 = vpop.f32.mrb[0].mxu0
    %v547 = vpop.f32.mrb[0].mxu0
    %v548 = vadd.f32 0.0, %v547
    %v549 = vpop.f32.mrb[0].mxu0
    %550 = vmatprep.mubr.bf16.mxu0 0
    %551 = vmatmul.mubr.bf16.gmra.mrb[0].mxu0 %v351
    %v552 = vpop.f32.mrb[0].mxu0
    %v553 = vadd.f32 0.0, %v552
    %v554 = vpop.f32.mrb[0].mxu0
    %v555 = vpop.f32.mrb[0].mxu0
    %v556 = vadd.f32 0.0, %v555
    %v557 = vpop.f32.mrb[0].mxu0
    %558 = vmatprep.mubr.bf16.mxu0 0
    %559 = vmatmul.mubr.bf16.gmra.mrb[0].mxu0 %v354
    %v560 = vpop.f32.mrb[0].mxu0
    %v561 = vadd.f32 0.0, %v560
    %v562 = vpop.f32.mrb[0].mxu0
    %v563 = vpop.f32.mrb[0].mxu0
    %v564 = vadd.f32 0.0, %v563
    %v565 = vpop.f32.mrb[0].mxu0
    %566 = vmatprep.mubr.bf16.mxu0 0
    %567 = vmatmul.mubr.bf16.gmra.mrb[0].mxu0 %v357
    %v568 = vpop.f32.mrb[0].mxu0
    %v569 = vadd.f32 0.0, %v568
    %v570 = vpop.f32.mrb[0].mxu0
    %v571 = vpop.f32.mrb[0].mxu0
    %v572 = vadd.f32 0.0, %v571
    %v573 = vpop.f32.mrb[0].mxu0
    %574 = vmatprep.mubr.bf16.mxu0 0
    %575 = vmatmul.mubr.bf16.gmra.mrb[0].mxu0 %v360
    %v576 = vpop.f32.mrb[0].mxu0
    %v577 = vadd.f32 0.0, %v576
    %v578 = vpop.f32.mrb[0].mxu0
    %v579 = vpop.f32.mrb[0].mxu0
    %v580 = vadd.f32 0.0, %v579
    %v581 = vpop.f32.mrb[0].mxu0
    %582 = vmatprep.mubr.bf16.mxu0 0
    %583 = vmatmul.mubr.bf16.gmra.mrb[0].mxu0 %v363
    %v584 = vpop.f32.mrb[0].mxu0
    %v585 = vadd.f32 0.0, %v584
    %v586 = vpop.f32.mrb[0].mxu0
    %v587 = vpop.f32.mrb[0].mxu0
    %v588 = vadd.f32 0.0, %v587
    %v589 = vpop.f32.mrb[0].mxu0
    %590 = vmatprep.mubr.bf16.mxu0 0
    %591 = vmatmul.mubr.bf16.gmra.mrb[0].mxu0 %v366
    %v592 = vpop.f32.mrb[0].mxu0
    %v593 = vadd.f32 0.0, %v592
    %v594 = vpop.f32.mrb[0].mxu0
    %v595 = vpop.f32.mrb[0].mxu0
    %v596 = vadd.f32 0.0, %v595
    %v597 = vpop.f32.mrb[0].mxu0
    %598 = vmatprep.mubr.bf16.mxu0 0
    %599 = vmatmul.mubr.bf16.gmra.mrb[0].mxu0 %v369
    %v600 = vpop.f32.mrb[0].mxu0
    %v601 = vadd.f32 0.0, %v600
    %v602 = vpop.f32.mrb[0].mxu0
    %v603 = vpop.f32.mrb[0].mxu0
    %v604 = vadd.f32 0.0, %v603
    %v605 = vpop.f32.mrb[0].mxu0
    %606 = vmatprep.mubr.bf16.mxu0 0
    %607 = vmatmul.mubr.bf16.gmra.mrb[0].mxu0 %v372
    %v608 = vpop.f32.mrb[0].mxu0
    %v609 = vadd.f32 0.0, %v608
    %v610 = vpop.f32.mrb[0].mxu0
    %v611 = vpop.f32.mrb[0].mxu0
    %v612 = vadd.f32 0.0, %v611
    %v613 = vpop.f32.mrb[0].mxu0
    %614 = vmatprep.mubr.bf16.mxu0 0
    %615 = vmatmul.mubr.bf16.gmra.mrb[0].mxu0 %v375
    %v616 = vpop.f32.mrb[0].mxu0
    %v617 = vadd.f32 0.0, %v616
    %v618 = vpop.f32.mrb[0].mxu0
    %v619 = vpop.f32.mrb[0].mxu0
    %v620 = vadd.f32 0.0, %v619
    %v621 = vpop.f32.mrb[0].mxu0
    %622 = vmatprep.mubr.bf16.mxu0 0
    %623 = vmatmul.mubr.bf16.gmra.mrb[0].mxu0 %v378
    %v624 = vpop.f32.mrb[0].mxu0
    %v625 = vadd.f32 0.0, %v624
    %v626 = vpop.f32.mrb[0].mxu0
    %v627 = vpop.f32.mrb[0].mxu0
    %v628 = vadd.f32 0.0, %v627
    %v629 = vpop.f32.mrb[0].mxu0
    %630 = vmatprep.mubr.bf16.mxu0 0
    %631 = vmatmul.mubr.bf16.gmra.mrb[0].mxu0 %v381
    %v632 = vpop.f32.mrb[0].mxu0
    %v633 = vadd.f32 0.0, %v632
    %v634 = vpop.f32.mrb[0].mxu0
    %v635 = vpop.f32.mrb[0].mxu0
    %v636 = vadd.f32 0.0, %v635
    %v637 = vpop.f32.mrb[0].mxu0
    %638 = vmatprep.mubr.bf16.mxu0 0
    %639 = vmatmul.mubr.bf16.gmra.mrb[0].mxu0 %v384
    %v640 = vpop.f32.mrb[0].mxu0
    %v641 = vadd.f32 0.0, %v640
    %v642 = vpop.f32.mrb[0].mxu0
    %v643 = vpop.f32.mrb[0].mxu0
    %v644 = vadd.f32 0.0, %v643
    %v645 = vpop.f32.mrb[0].mxu0
    %646 = vmatprep.mubr.bf16.mxu0 0
    %647 = vmatmul.mubr.bf16.gmra.mrb[0].mxu0 %v387
    %v648 = vpop.f32.mrb[0].mxu0
    %v649 = vadd.f32 0.0, %v648
    %v650 = vpop.f32.mrb[0].mxu0
    %v651 = vpop.f32.mrb[0].mxu0
    %v652 = vadd.f32 0.0, %v651
    %v653 = vpop.f32.mrb[0].mxu0
    %654 = vmatprep.mubr.bf16.mxu0 0
    %655 = vmatmul.mubr.bf16.gmra.mrb[0].mxu0 %v390
    %v656 = vpop.f32.mrb[0].mxu0
    %v657 = vadd.f32 0.0, %v656
    %v658 = vpop.f32.mrb[0].mxu0
    %v659 = vpop.f32.mrb[0].mxu0
    %v660 = vadd.f32 0.0, %v659
    %v661 = vpop.f32.mrb[0].mxu0
    %662 = vmatprep.mubr.bf16.mxu0 0
    %663 = vmatmul.mubr.bf16.gmra.mrb[0].mxu0 %v393
    %v664 = vpop.f32.mrb[0].mxu0
    %v665 = vadd.f32 0.0, %v664
    %v666 = vpop.f32.mrb[0].mxu0
    %v667 = vpop.f32.mrb[0].mxu0
    %v668 = vadd.f32 0.0, %v667
    %v669 = vpop.f32.mrb[0].mxu0
    %670 = vmatprep.mubr.bf16.mxu0 0
    %671 = vmatmul.mubr.bf16.gmra.mrb[0].mxu0 %v396
    %v672 = vpop.f32.mrb[0].mxu0
    %v673 = vadd.f32 0.0, %v672
    %v674 = vpop.f32.mrb[0].mxu0
    %v675 = vpop.f32.mrb[0].mxu0
    %v676 = vadd.f32 0.0, %v675
    %v677 = vpop.f32.mrb[0].mxu0
    %678 = vmatprep.mubr.bf16.mxu0 0
    %679 = vmatmul.mubr.bf16.gmra.mrb[0].mxu0 %v399
    %v680 = vpop.f32.mrb[0].mxu0
    %v681 = vadd.f32 0.0, %v680
    %v682 = vpop.f32.mrb[0].mxu0
    %v683 = vpop.f32.mrb[0].mxu0
    %v684 = vadd.f32 0.0, %v683
    %v685 = vpop.f32.mrb[0].mxu0
    %686 = vmatprep.mubr.bf16.mxu0 0
    %687 = vmatmul.mubr.bf16.gmra.mrb[0].mxu0 %v402
    %v688 = vpop.f32.mrb[0].mxu0
    %v689 = vadd.f32 0.0, %v688
    %v690 = vpop.f32.mrb[0].mxu0
    %v691 = vpop.f32.mrb[0].mxu0
    %v692 = vadd.f32 0.0, %v691
    %v693 = vpop.f32.mrb[0].mxu0
    %694 = vmatprep.mubr.bf16.mxu0 0
    %695 = vmatmul.mubr.bf16.gmra.mrb[0].mxu0 %v405
    %v696 = vpop.f32.mrb[0].mxu0
    %v697 = vadd.f32 0.0, %v696
    %v698 = vpop.f32.mrb[0].mxu0
    %v699 = vpop.f32.mrb[0].mxu0
    %v700 = vadd.f32 0.0, %v699
    %v701 = vpop.f32.mrb[0].mxu0
    %702 = vdwg.mxu0
    %v703 = vsel %vm28, %v449, 0.0
    %v704 = vsel %vm28, %v452, 0.0
    %v705 = vadd.f32 %v703, %v704
    %v706 = vsel %vm28, %v457, 0.0
    %v707 = vadd.f32 %v705, %v706
    %v708 = vsel %vm28, %v460, 0.0
    %v709 = vadd.f32 %v707, %v708
    %v710 = vsel %vm28, %v465, 0.0
    %v711 = vadd.f32 %v709, %v710
    %v712 = vsel %vm28, %v468, 0.0
    %v713 = vadd.f32 %v711, %v712
    %v714 = vsel %vm28, %v473, 0.0
    %v715 = vadd.f32 %v713, %v714
    %v716 = vsel %vm28, %v476, 0.0
    %v717 = vadd.f32 %v715, %v716
    %v718 = vsel %vm28, %v481, 0.0
    %v719 = vadd.f32 %v717, %v718
    %v720 = vsel %vm28, %v484, 0.0
    %v721 = vadd.f32 %v719, %v720
    %v722 = vsel %vm28, %v489, 0.0
    %v723 = vadd.f32 %v721, %v722
    %v724 = vsel %vm28, %v492, 0.0
    %v725 = vadd.f32 %v723, %v724
    %v726 = vsel %vm28, %v497, 0.0
    %v727 = vadd.f32 %v725, %v726
    %v728 = vsel %vm28, %v500, 0.0
    %v729 = vadd.f32 %v727, %v728
    %v730 = vsel %vm28, %v505, 0.0
    %v731 = vadd.f32 %v729, %v730
    %v732 = vsel %vm28, %v508, 0.0
    %v733 = vadd.f32 %v731, %v732
    %v734 = vsel %vm28, %v513, 0.0
    %v735 = vadd.f32 %v733, %v734
    %v736 = vsel %vm28, %v516, 0.0
    %v737 = vadd.f32 %v735, %v736
    %v738 = vsel %vm28, %v521, 0.0
    %v739 = vadd.f32 %v737, %v738
    %v740 = vsel %vm28, %v524, 0.0
    %v741 = vadd.f32 %v739, %v740
    %v742 = vsel %vm28, %v529, 0.0
    %v743 = vadd.f32 %v741, %v742
    %v744 = vsel %vm28, %v532, 0.0
    %v745 = vadd.f32 %v743, %v744
    %v746 = vsel %vm28, %v537, 0.0
    %v747 = vadd.f32 %v745, %v746
    %v748 = vsel %vm28, %v540, 0.0
    %v749 = vadd.f32 %v747, %v748
    %v750 = vsel %vm28, %v545, 0.0
    %v751 = vadd.f32 %v749, %v750
    %v752 = vsel %vm28, %v548, 0.0
    %v753 = vadd.f32 %v751, %v752
    %v754 = vsel %vm28, %v553, 0.0
    %v755 = vadd.f32 %v753, %v754
    %v756 = vsel %vm28, %v556, 0.0
    %v757 = vadd.f32 %v755, %v756
    %v758 = vsel %vm28, %v561, 0.0
    %v759 = vadd.f32 %v757, %v758
    %v760 = vsel %vm28, %v564, 0.0
    %v761 = vadd.f32 %v759, %v760
    %v762 = vsel %vm28, %v569, 0.0
    %v763 = vadd.f32 %v761, %v762
    %v764 = vsel %vm28, %v572, 0.0
    %v765 = vadd.f32 %v763, %v764
    %v766 = vsel %vm28, %v577, 0.0
    %v767 = vadd.f32 %v765, %v766
    %v768 = vsel %vm28, %v580, 0.0
    %v769 = vadd.f32 %v767, %v768
    %v770 = vsel %vm28, %v585, 0.0
    %v771 = vadd.f32 %v769, %v770
    %v772 = vsel %vm28, %v588, 0.0
    %v773 = vadd.f32 %v771, %v772
    %v774 = vsel %vm28, %v593, 0.0
    %v775 = vadd.f32 %v773, %v774
    %v776 = vsel %vm28, %v596, 0.0
    %v777 = vadd.f32 %v775, %v776
    %v778 = vsel %vm28, %v601, 0.0
    %v779 = vadd.f32 %v777, %v778
    %v780 = vsel %vm28, %v604, 0.0
    %v781 = vadd.f32 %v779, %v780
    %v782 = vsel %vm28, %v609, 0.0
    %v783 = vadd.f32 %v781, %v782
    %v784 = vsel %vm28, %v612, 0.0
    %v785 = vadd.f32 %v783, %v784
    %v786 = vsel %vm28, %v617, 0.0
    %v787 = vadd.f32 %v785, %v786
    %v788 = vsel %vm28, %v620, 0.0
    %v789 = vadd.f32 %v787, %v788
    %v790 = vsel %vm28, %v625, 0.0
    %v791 = vadd.f32 %v789, %v790
    %v792 = vsel %vm28, %v628, 0.0
    %v793 = vadd.f32 %v791, %v792
    %v794 = vsel %vm28, %v633, 0.0
    %v795 = vadd.f32 %v793, %v794
    %v796 = vsel %vm28, %v636, 0.0
    %v797 = vadd.f32 %v795, %v796
    %v798 = vsel %vm28, %v641, 0.0
    %v799 = vadd.f32 %v797, %v798
    %v800 = vsel %vm28, %v644, 0.0
    %v801 = vadd.f32 %v799, %v800
    %v802 = vsel %vm28, %v649, 0.0
    %v803 = vadd.f32 %v801, %v802
    %v804 = vsel %vm28, %v652, 0.0
    %v805 = vadd.f32 %v803, %v804
    %v806 = vsel %vm28, %v657, 0.0
    %v807 = vadd.f32 %v805, %v806
    %v808 = vsel %vm28, %v660, 0.0
    %v809 = vadd.f32 %v807, %v808
    %v810 = vsel %vm28, %v665, 0.0
    %v811 = vadd.f32 %v809, %v810
    %v812 = vsel %vm28, %v668, 0.0
    %v813 = vadd.f32 %v811, %v812
    %v814 = vsel %vm28, %v673, 0.0
    %v815 = vadd.f32 %v813, %v814
    %v816 = vsel %vm28, %v676, 0.0
    %v817 = vadd.f32 %v815, %v816
    %v818 = vsel %vm28, %v681, 0.0
    %v819 = vadd.f32 %v817, %v818
    %v820 = vsel %vm28, %v684, 0.0
    %v821 = vadd.f32 %v819, %v820
    %v822 = vsel %vm28, %v689, 0.0
    %v823 = vadd.f32 %v821, %v822
    %v824 = vsel %vm28, %v692, 0.0
    %v825 = vadd.f32 %v823, %v824
    %v826 = vsel %vm28, %v697, 0.0
    %v827 = vadd.f32 %v825, %v826
    %v828 = vsel %vm28, %v700, 0.0
    %v829 = vadd.f32 %v827, %v828
    %v830 = vrot.slane %v829, 4
    %v831 = vadd.f32 %v829, %v830
    %v832 = vrot.slane %v831, 2
    %v833 = vadd.f32 %v831, %v832
    %v834 = vrot.slane %v833, 1
    %v835 = vadd.f32 %v833, %v834
    %v836 = vmul.f32 %v449, %v449
    %v837 = vmul.f32 %v452, %v452
    %v838 = vmul.f32 %v457, %v457
    %v839 = vmul.f32 %v460, %v460
    %v840 = vmul.f32 %v465, %v465
    %v841 = vmul.f32 %v468, %v468
    %v842 = vmul.f32 %v473, %v473
    %v843 = vmul.f32 %v476, %v476
    %v844 = vmul.f32 %v481, %v481
    %v845 = vmul.f32 %v484, %v484
    %v846 = vmul.f32 %v489, %v489
    %v847 = vmul.f32 %v492, %v492
    %v848 = vmul.f32 %v497, %v497
    %v849 = vmul.f32 %v500, %v500
    %v850 = vmul.f32 %v505, %v505
    %v851 = vmul.f32 %v508, %v508
    %v852 = vmul.f32 %v513, %v513
    %v853 = vmul.f32 %v516, %v516
    %v854 = vmul.f32 %v521, %v521
    %v855 = vmul.f32 %v524, %v524
    %v856 = vmul.f32 %v529, %v529
    %v857 = vmul.f32 %v532, %v532
    %v858 = vmul.f32 %v537, %v537
    %v859 = vmul.f32 %v540, %v540
    %v860 = vmul.f32 %v545, %v545
    %v861 = vmul.f32 %v548, %v548
    %v862 = vmul.f32 %v553, %v553
    %v863 = vmul.f32 %v556, %v556
    %v864 = vmul.f32 %v561, %v561
    %v865 = vmul.f32 %v564, %v564
    %v866 = vmul.f32 %v569, %v569
    %v867 = vmul.f32 %v572, %v572
    %v868 = vmul.f32 %v577, %v577
    %v869 = vmul.f32 %v580, %v580
    %v870 = vmul.f32 %v585, %v585
    %v871 = vmul.f32 %v588, %v588
    %v872 = vmul.f32 %v593, %v593
    %v873 = vmul.f32 %v596, %v596
    %v874 = vmul.f32 %v601, %v601
    %v875 = vmul.f32 %v604, %v604
    %v876 = vmul.f32 %v609, %v609
    %v877 = vmul.f32 %v612, %v612
    %v878 = vmul.f32 %v617, %v617
    %v879 = vmul.f32 %v620, %v620
    %v880 = vmul.f32 %v625, %v625
    %v881 = vmul.f32 %v628, %v628
    %v882 = vmul.f32 %v633, %v633
    %v883 = vmul.f32 %v636, %v636
    %v884 = vmul.f32 %v641, %v641
    %v885 = vmul.f32 %v644, %v644
    %v886 = vmul.f32 %v649, %v649
    %v887 = vmul.f32 %v652, %v652
    %v888 = vmul.f32 %v657, %v657
    %v889 = vmul.f32 %v660, %v660
    %v890 = vmul.f32 %v665, %v665
    %v891 = vmul.f32 %v668, %v668
    %v892 = vmul.f32 %v673, %v673
    %v893 = vmul.f32 %v676, %v676
    %v894 = vmul.f32 %v681, %v681
    %v895 = vmul.f32 %v684, %v684
    %v896 = vmul.f32 %v689, %v689
    %v897 = vmul.f32 %v692, %v692
    %v898 = vmul.f32 %v697, %v697
    %v899 = vmul.f32 %v700, %v700
    %v900 = vsel %vm28, %v836, 0.0
    %v901 = vsel %vm28, %v837, 0.0
    %v902 = vadd.f32 %v900, %v901
    %v903 = vsel %vm28, %v838, 0.0
    %v904 = vadd.f32 %v902, %v903
    %v905 = vsel %vm28, %v839, 0.0
    %v906 = vadd.f32 %v904, %v905
    %v907 = vsel %vm28, %v840, 0.0
    %v908 = vadd.f32 %v906, %v907
    %v909 = vsel %vm28, %v841, 0.0
    %v910 = vadd.f32 %v908, %v909
    %v911 = vsel %vm28, %v842, 0.0
    %v912 = vadd.f32 %v910, %v911
    %v913 = vsel %vm28, %v843, 0.0
    %v914 = vadd.f32 %v912, %v913
    %v915 = vsel %vm28, %v844, 0.0
    %v916 = vadd.f32 %v914, %v915
    %v917 = vsel %vm28, %v845, 0.0
    %v918 = vadd.f32 %v916, %v917
    %v919 = vsel %vm28, %v846, 0.0
    %v920 = vadd.f32 %v918, %v919
    %v921 = vsel %vm28, %v847, 0.0
    %v922 = vadd.f32 %v920, %v921
    %v923 = vsel %vm28, %v848, 0.0
    %v924 = vadd.f32 %v922, %v923
    %v925 = vsel %vm28, %v849, 0.0
    %v926 = vadd.f32 %v924, %v925
    %v927 = vsel %vm28, %v850, 0.0
    %v928 = vadd.f32 %v926, %v927
    %v929 = vsel %vm28, %v851, 0.0
    %v930 = vadd.f32 %v928, %v929
    %v931 = vsel %vm28, %v852, 0.0
    %v932 = vadd.f32 %v930, %v931
    %v933 = vsel %vm28, %v853, 0.0
    %v934 = vadd.f32 %v932, %v933
    %v935 = vsel %vm28, %v854, 0.0
    %v936 = vadd.f32 %v934, %v935
    %v937 = vsel %vm28, %v855, 0.0
    %v938 = vadd.f32 %v936, %v937
    %v939 = vsel %vm28, %v856, 0.0
    %v940 = vadd.f32 %v938, %v939
    %v941 = vsel %vm28, %v857, 0.0
    %v942 = vadd.f32 %v940, %v941
    %v943 = vsel %vm28, %v858, 0.0
    %v944 = vadd.f32 %v942, %v943
    %v945 = vsel %vm28, %v859, 0.0
    %v946 = vadd.f32 %v944, %v945
    %v947 = vsel %vm28, %v860, 0.0
    %v948 = vadd.f32 %v946, %v947
    %v949 = vsel %vm28, %v861, 0.0
    %v950 = vadd.f32 %v948, %v949
    %v951 = vsel %vm28, %v862, 0.0
    %v952 = vadd.f32 %v950, %v951
    %v953 = vsel %vm28, %v863, 0.0
    %v954 = vadd.f32 %v952, %v953
    %v955 = vsel %vm28, %v864, 0.0
    %v956 = vadd.f32 %v954, %v955
    %v957 = vsel %vm28, %v865, 0.0
    %v958 = vadd.f32 %v956, %v957
    %v959 = vsel %vm28, %v866, 0.0
    %v960 = vadd.f32 %v958, %v959
    %v961 = vsel %vm28, %v867, 0.0
    %v962 = vadd.f32 %v960, %v961
    %v963 = vsel %vm28, %v868, 0.0
    %v964 = vadd.f32 %v962, %v963
    %v965 = vsel %vm28, %v869, 0.0
    %v966 = vadd.f32 %v964, %v965
    %v967 = vsel %vm28, %v870, 0.0
    %v968 = vadd.f32 %v966, %v967
    %v969 = vsel %vm28, %v871, 0.0
    %v970 = vadd.f32 %v968, %v969
    %v971 = vsel %vm28, %v872, 0.0
    %v972 = vadd.f32 %v970, %v971
    %v973 = vsel %vm28, %v873, 0.0
    %v974 = vadd.f32 %v972, %v973
    %v975 = vsel %vm28, %v874, 0.0
    %v976 = vadd.f32 %v974, %v975
    %v977 = vsel %vm28, %v875, 0.0
    %v978 = vadd.f32 %v976, %v977
    %v979 = vsel %vm28, %v876, 0.0
    %v980 = vadd.f32 %v978, %v979
    %v981 = vsel %vm28, %v877, 0.0
    %v982 = vadd.f32 %v980, %v981
    %v983 = vsel %vm28, %v878, 0.0
    %v984 = vadd.f32 %v982, %v983
    %v985 = vsel %vm28, %v879, 0.0
    %v986 = vadd.f32 %v984, %v985
    %v987 = vsel %vm28, %v880, 0.0
    %v988 = vadd.f32 %v986, %v987
    %v989 = vsel %vm28, %v881, 0.0
    %v990 = vadd.f32 %v988, %v989
    %v991 = vsel %vm28, %v882, 0.0
    %v992 = vadd.f32 %v990, %v991
    %v993 = vsel %vm28, %v883, 0.0
    %v994 = vadd.f32 %v992, %v993
    %v995 = vsel %vm28, %v884, 0.0
    %v996 = vadd.f32 %v994, %v995
    %v997 = vsel %vm28, %v885, 0.0
    %v998 = vadd.f32 %v996, %v997
    %v999 = vsel %vm28, %v886, 0.0
    %v1000 = vadd.f32 %v998, %v999
    %v1001 = vsel %vm28, %v887, 0.0
    %v1002 = vadd.f32 %v1000, %v1001
    %v1003 = vsel %vm28, %v888, 0.0
    %v1004 = vadd.f32 %v1002, %v1003
    %v1005 = vsel %vm28, %v889, 0.0
    %v1006 = vadd.f32 %v1004, %v1005
    %v1007 = vsel %vm28, %v890, 0.0
    %v1008 = vadd.f32 %v1006, %v1007
    %v1009 = vsel %vm28, %v891, 0.0
    %v1010 = vadd.f32 %v1008, %v1009
    %v1011 = vsel %vm28, %v892, 0.0
    %v1012 = vadd.f32 %v1010, %v1011
    %v1013 = vsel %vm28, %v893, 0.0
    %v1014 = vadd.f32 %v1012, %v1013
    %v1015 = vsel %vm28, %v894, 0.0
    %v1016 = vadd.f32 %v1014, %v1015
    %v1017 = vsel %vm28, %v895, 0.0
    %v1018 = vadd.f32 %v1016, %v1017
    %v1019 = vsel %vm28, %v896, 0.0
    %v1020 = vadd.f32 %v1018, %v1019
    %v1021 = vsel %vm28, %v897, 0.0
    %v1022 = vadd.f32 %v1020, %v1021
    %v1023 = vsel %vm28, %v898, 0.0
    %v1024 = vadd.f32 %v1022, %v1023
    %v1025 = vsel %vm28, %v899, 0.0
    %v1026 = vadd.f32 %v1024, %v1025
    %v1027 = vrot.slane %v1026, 4
    %v1028 = vadd.f32 %v1026, %v1027
    %v1029 = vrot.slane %v1028, 2
    %v1030 = vadd.f32 %v1028, %v1029
    %v1031 = vrot.slane %v1030, 1
    %v1032 = vadd.f32 %v1030, %v1031
    %v1033 = vmul.f32 %v835, 0.001953125
    %v1034 = vmul.f32 %v1032, 0.001953125
    %v1035 = vmul.f32 %v1033, %v1033
    %v1036 = vsub.f32 %v1034, %v1035
    %v1037 = vmax.f32 %v1036, 0.0
    %v1038 = vadd.f32 %v1037, 1e-05
    %v1039 = vrsqrt.pop %v1038
    %v1040 = vld [vmem:[%s3] sm:$0x1]
    %v1041 = vld [vmem:[%s3 + $0x1] sm:$0x1]
    %v1042 = vmul.f32 %v1040, %v1039
    %v1043 = vmul.f32 %v1033, %v1042
    %v1044 = vsub.f32 %v1041, %v1043
    %v1045 = vlaneseq
    %v1046 = vshrl.u32 %v1045, 7
    %v1047 = vsub.s32 0, %v1046
    %v1048 = vrot.slane %v1042, %v1047
    %v1049 = vmul.f32 %v449, %v1048
    %v1050 = vmul.f32 %v452, %v1048
    %v1051 = vmul.f32 %v457, %v1048
    %v1052 = vmul.f32 %v460, %v1048
    %v1053 = vmul.f32 %v465, %v1048
    %v1054 = vmul.f32 %v468, %v1048
    %v1055 = vmul.f32 %v473, %v1048
    %v1056 = vmul.f32 %v476, %v1048
    %v1057 = vmul.f32 %v481, %v1048
    %v1058 = vmul.f32 %v484, %v1048
    %v1059 = vmul.f32 %v489, %v1048
    %v1060 = vmul.f32 %v492, %v1048
    %v1061 = vmul.f32 %v497, %v1048
    %v1062 = vmul.f32 %v500, %v1048
    %v1063 = vmul.f32 %v505, %v1048
    %v1064 = vmul.f32 %v508, %v1048
    %v1065 = vmul.f32 %v513, %v1048
    %v1066 = vmul.f32 %v516, %v1048
    %v1067 = vmul.f32 %v521, %v1048
    %v1068 = vmul.f32 %v524, %v1048
    %v1069 = vmul.f32 %v529, %v1048
    %v1070 = vmul.f32 %v532, %v1048
    %v1071 = vmul.f32 %v537, %v1048
    %v1072 = vmul.f32 %v540, %v1048
    %v1073 = vmul.f32 %v545, %v1048
    %v1074 = vmul.f32 %v548, %v1048
    %v1075 = vmul.f32 %v553, %v1048
    %v1076 = vmul.f32 %v556, %v1048
    %v1077 = vmul.f32 %v561, %v1048
    %v1078 = vmul.f32 %v564, %v1048
    %v1079 = vmul.f32 %v569, %v1048
    %v1080 = vmul.f32 %v572, %v1048
    %v1081 = vmul.f32 %v577, %v1048
    %v1082 = vmul.f32 %v580, %v1048
    %v1083 = vmul.f32 %v585, %v1048
    %v1084 = vmul.f32 %v588, %v1048
    %v1085 = vmul.f32 %v593, %v1048
    %v1086 = vmul.f32 %v596, %v1048
    %v1087 = vmul.f32 %v601, %v1048
    %v1088 = vmul.f32 %v604, %v1048
    %v1089 = vmul.f32 %v609, %v1048
    %v1090 = vmul.f32 %v612, %v1048
    %v1091 = vmul.f32 %v617, %v1048
    %v1092 = vmul.f32 %v620, %v1048
    %v1093 = vmul.f32 %v625, %v1048
    %v1094 = vmul.f32 %v628, %v1048
    %v1095 = vmul.f32 %v633, %v1048
    %v1096 = vmul.f32 %v636, %v1048
    %v1097 = vmul.f32 %v641, %v1048
    %v1098 = vmul.f32 %v644, %v1048
    %v1099 = vmul.f32 %v649, %v1048
    %v1100 = vmul.f32 %v652, %v1048
    %v1101 = vmul.f32 %v657, %v1048
    %v1102 = vmul.f32 %v660, %v1048
    %v1103 = vmul.f32 %v665, %v1048
    %v1104 = vmul.f32 %v668, %v1048
    %v1105 = vmul.f32 %v673, %v1048
    %v1106 = vmul.f32 %v676, %v1048
    %v1107 = vmul.f32 %v681, %v1048
    %v1108 = vmul.f32 %v684, %v1048
    %v1109 = vmul.f32 %v689, %v1048
    %v1110 = vmul.f32 %v692, %v1048
    %v1111 = vmul.f32 %v697, %v1048
    %v1112 = vmul.f32 %v700, %v1048
    %v1113 = vlaneseq
    %v1114 = vshrl.u32 %v1113, 7
    %v1115 = vsub.s32 0, %v1114
    %v1116 = vrot.slane %v1044, %v1115
    %v1117 = vadd.f32 %v1049, %v1116
    %v1118 = vadd.f32 %v1050, %v1116
    %v1119 = vadd.f32 %v1051, %v1116
    %v1120 = vadd.f32 %v1052, %v1116
    %v1121 = vadd.f32 %v1053, %v1116
    %v1122 = vadd.f32 %v1054, %v1116
    %v1123 = vadd.f32 %v1055, %v1116
    %v1124 = vadd.f32 %v1056, %v1116
    %v1125 = vadd.f32 %v1057, %v1116
    %v1126 = vadd.f32 %v1058, %v1116
    %v1127 = vadd.f32 %v1059, %v1116
    %v1128 = vadd.f32 %v1060, %v1116
    %v1129 = vadd.f32 %v1061, %v1116
    %v1130 = vadd.f32 %v1062, %v1116
    %v1131 = vadd.f32 %v1063, %v1116
    %v1132 = vadd.f32 %v1064, %v1116
    %v1133 = vadd.f32 %v1065, %v1116
    %v1134 = vadd.f32 %v1066, %v1116
    %v1135 = vadd.f32 %v1067, %v1116
    %v1136 = vadd.f32 %v1068, %v1116
    %v1137 = vadd.f32 %v1069, %v1116
    %v1138 = vadd.f32 %v1070, %v1116
    %v1139 = vadd.f32 %v1071, %v1116
    %v1140 = vadd.f32 %v1072, %v1116
    %v1141 = vadd.f32 %v1073, %v1116
    %v1142 = vadd.f32 %v1074, %v1116
    %v1143 = vadd.f32 %v1075, %v1116
    %v1144 = vadd.f32 %v1076, %v1116
    %v1145 = vadd.f32 %v1077, %v1116
    %v1146 = vadd.f32 %v1078, %v1116
    %v1147 = vadd.f32 %v1079, %v1116
    %v1148 = vadd.f32 %v1080, %v1116
    %v1149 = vadd.f32 %v1081, %v1116
    %v1150 = vadd.f32 %v1082, %v1116
    %v1151 = vadd.f32 %v1083, %v1116
    %v1152 = vadd.f32 %v1084, %v1116
    %v1153 = vadd.f32 %v1085, %v1116
    %v1154 = vadd.f32 %v1086, %v1116
    %v1155 = vadd.f32 %v1087, %v1116
    %v1156 = vadd.f32 %v1088, %v1116
    %v1157 = vadd.f32 %v1089, %v1116
    %v1158 = vadd.f32 %v1090, %v1116
    %v1159 = vadd.f32 %v1091, %v1116
    %v1160 = vadd.f32 %v1092, %v1116
    %v1161 = vadd.f32 %v1093, %v1116
    %v1162 = vadd.f32 %v1094, %v1116
    %v1163 = vadd.f32 %v1095, %v1116
    %v1164 = vadd.f32 %v1096, %v1116
    %v1165 = vadd.f32 %v1097, %v1116
    %v1166 = vadd.f32 %v1098, %v1116
    %v1167 = vadd.f32 %v1099, %v1116
    %v1168 = vadd.f32 %v1100, %v1116
    %v1169 = vadd.f32 %v1101, %v1116
    %v1170 = vadd.f32 %v1102, %v1116
    %v1171 = vadd.f32 %v1103, %v1116
    %v1172 = vadd.f32 %v1104, %v1116
    %v1173 = vadd.f32 %v1105, %v1116
    %v1174 = vadd.f32 %v1106, %v1116
    %v1175 = vadd.f32 %v1107, %v1116
    %v1176 = vadd.f32 %v1108, %v1116
    %v1177 = vadd.f32 %v1109, %v1116
    %v1178 = vadd.f32 %v1110, %v1116
    %v1179 = vadd.f32 %v1111, %v1116
    %v1180 = vadd.f32 %v1112, %v1116
    %v1181 = vmax.f32 %v1117, 0.0
    %v1182 = vmax.f32 %v1118, 0.0
    %v1183 = vmax.f32 %v1119, 0.0
    %v1184 = vmax.f32 %v1120, 0.0
    %v1185 = vmax.f32 %v1121, 0.0
    %v1186 = vmax.f32 %v1122, 0.0
    %v1187 = vmax.f32 %v1123, 0.0
    %v1188 = vmax.f32 %v1124, 0.0
    %v1189 = vmax.f32 %v1125, 0.0
    %v1190 = vmax.f32 %v1126, 0.0
    %v1191 = vmax.f32 %v1127, 0.0
    %v1192 = vmax.f32 %v1128, 0.0
    %v1193 = vmax.f32 %v1129, 0.0
    %v1194 = vmax.f32 %v1130, 0.0
    %v1195 = vmax.f32 %v1131, 0.0
    %v1196 = vmax.f32 %v1132, 0.0
    %v1197 = vmax.f32 %v1133, 0.0
    %v1198 = vmax.f32 %v1134, 0.0
    %v1199 = vmax.f32 %v1135, 0.0
    %v1200 = vmax.f32 %v1136, 0.0
    %v1201 = vmax.f32 %v1137, 0.0
    %v1202 = vmax.f32 %v1138, 0.0
    %v1203 = vmax.f32 %v1139, 0.0
    %v1204 = vmax.f32 %v1140, 0.0
    %v1205 = vmax.f32 %v1141, 0.0
    %v1206 = vmax.f32 %v1142, 0.0
    %v1207 = vmax.f32 %v1143, 0.0
    %v1208 = vmax.f32 %v1144, 0.0
    %v1209 = vmax.f32 %v1145, 0.0
    %v1210 = vmax.f32 %v1146, 0.0
    %v1211 = vmax.f32 %v1147, 0.0
    %v1212 = vmax.f32 %v1148, 0.0
    %v1213 = vmax.f32 %v1149, 0.0
    %v1214 = vmax.f32 %v1150, 0.0
    %v1215 = vmax.f32 %v1151, 0.0
    %v1216 = vmax.f32 %v1152, 0.0
    %v1217 = vmax.f32 %v1153, 0.0
    %v1218 = vmax.f32 %v1154, 0.0
    %v1219 = vmax.f32 %v1155, 0.0
    %v1220 = vmax.f32 %v1156, 0.0
    %v1221 = vmax.f32 %v1157, 0.0
    %v1222 = vmax.f32 %v1158, 0.0
    %v1223 = vmax.f32 %v1159, 0.0
    %v1224 = vmax.f32 %v1160, 0.0
    %v1225 = vmax.f32 %v1161, 0.0
    %v1226 = vmax.f32 %v1162, 0.0
    %v1227 = vmax.f32 %v1163, 0.0
    %v1228 = vmax.f32 %v1164, 0.0
    %v1229 = vmax.f32 %v1165, 0.0
    %v1230 = vmax.f32 %v1166, 0.0
    %v1231 = vmax.f32 %v1167, 0.0
    %v1232 = vmax.f32 %v1168, 0.0
    %v1233 = vmax.f32 %v1169, 0.0
    %v1234 = vmax.f32 %v1170, 0.0
    %v1235 = vmax.f32 %v1171, 0.0
    %v1236 = vmax.f32 %v1172, 0.0
    %v1237 = vmax.f32 %v1173, 0.0
    %v1238 = vmax.f32 %v1174, 0.0
    %v1239 = vmax.f32 %v1175, 0.0
    %v1240 = vmax.f32 %v1176, 0.0
    %v1241 = vmax.f32 %v1177, 0.0
    %v1242 = vmax.f32 %v1178, 0.0
    %v1243 = vmax.f32 %v1179, 0.0
    %v1244 = vmax.f32 %v1180, 0.0
    %1245 = vst.msk [vmem:[#allocation5] sm:$0xff] %vm28, %v1181
    %1246 = vst.msk [vmem:[#allocation5 + $0x8] sm:$0xff] %vm28, %v1182
    %1247 = vst.msk [vmem:[#allocation5 + $0x10] sm:$0xff] %vm28, %v1183
    %1248 = vst.msk [vmem:[#allocation5 + $0x18] sm:$0xff] %vm28, %v1184
    %1249 = vst.msk [vmem:[#allocation5 + $0x20] sm:$0xff] %vm28, %v1185
    %1250 = vst.msk [vmem:[#allocation5 + $0x28] sm:$0xff] %vm28, %v1186
    %1251 = vst.msk [vmem:[#allocation5 + $0x30] sm:$0xff] %vm28, %v1187
    %1252 = vst.msk [vmem:[#allocation5 + $0x38] sm:$0xff] %vm28, %v1188
    %1253 = vst.msk [vmem:[#allocation5 + $0x40] sm:$0xff] %vm28, %v1189
    %1254 = vst.msk [vmem:[#allocation5 + $0x48] sm:$0xff] %vm28, %v1190
    %1255 = vst.msk [vmem:[#allocation5 + $0x50] sm:$0xff] %vm28, %v1191
    %1256 = vst.msk [vmem:[#allocation5 + $0x58] sm:$0xff] %vm28, %v1192
    %1257 = vst.msk [vmem:[#allocation5 + $0x60] sm:$0xff] %vm28, %v1193
    %1258 = vst.msk [vmem:[#allocation5 + $0x68] sm:$0xff] %vm28, %v1194
    %1259 = vst.msk [vmem:[#allocation5 + $0x70] sm:$0xff] %vm28, %v1195
    %1260 = vst.msk [vmem:[#allocation5 + $0x78] sm:$0xff] %vm28, %v1196
    %1261 = vst.msk [vmem:[#allocation5 + $0x80] sm:$0xff] %vm28, %v1197
    %1262 = vst.msk [vmem:[#allocation5 + $0x88] sm:$0xff] %vm28, %v1198
    %1263 = vst.msk [vmem:[#allocation5 + $0x90] sm:$0xff] %vm28, %v1199
    %1264 = vst.msk [vmem:[#allocation5 + $0x98] sm:$0xff] %vm28, %v1200
    %1265 = vst.msk [vmem:[#allocation5 + $0xa0] sm:$0xff] %vm28, %v1201
    %1266 = vst.msk [vmem:[#allocation5 + $0xa8] sm:$0xff] %vm28, %v1202
    %1267 = vst.msk [vmem:[#allocation5 + $0xb0] sm:$0xff] %vm28, %v1203
    %1268 = vst.msk [vmem:[#allocation5 + $0xb8] sm:$0xff] %vm28, %v1204
    %1269 = vst.msk [vmem:[#allocation5 + $0xc0] sm:$0xff] %vm28, %v1205
    %1270 = vst.msk [vmem:[#allocation5 + $0xc8] sm:$0xff] %vm28, %v1206
    %1271 = vst.msk [vmem:[#allocation5 + $0xd0] sm:$0xff] %vm28, %v1207
    %1272 = vst.msk [vmem:[#allocation5 + $0xd8] sm:$0xff] %vm28, %v1208
    %1273 = vst.msk [vmem:[#allocation5 + $0xe0] sm:$0xff] %vm28, %v1209
    %1274 = vst.msk [vmem:[#allocation5 + $0xe8] sm:$0xff] %vm28, %v1210
    %1275 = vst.msk [vmem:[#allocation5 + $0xf0] sm:$0xff] %vm28, %v1211
    %1276 = vst.msk [vmem:[#allocation5 + $0xf8] sm:$0xff] %vm28, %v1212
    %1277 = vst.msk [vmem:[#allocation5 + $0x100] sm:$0xff] %vm28, %v1213
    %1278 = vst.msk [vmem:[#allocation5 + $0x108] sm:$0xff] %vm28, %v1214
    %1279 = vst.msk [vmem:[#allocation5 + $0x110] sm:$0xff] %vm28, %v1215
    %1280 = vst.msk [vmem:[#allocation5 + $0x118] sm:$0xff] %vm28, %v1216
    %1281 = vst.msk [vmem:[#allocation5 + $0x120] sm:$0xff] %vm28, %v1217
    %1282 = vst.msk [vmem:[#allocation5 + $0x128] sm:$0xff] %vm28, %v1218
    %1283 = vst.msk [vmem:[#allocation5 + $0x130] sm:$0xff] %vm28, %v1219
    %1284 = vst.msk [vmem:[#allocation5 + $0x138] sm:$0xff] %vm28, %v1220
    %1285 = vst.msk [vmem:[#allocation5 + $0x140] sm:$0xff] %vm28, %v1221
    %1286 = vst.msk [vmem:[#allocation5 + $0x148] sm:$0xff] %vm28, %v1222
    %1287 = vst.msk [vmem:[#allocation5 + $0x150] sm:$0xff] %vm28, %v1223
    %1288 = vst.msk [vmem:[#allocation5 + $0x158] sm:$0xff] %vm28, %v1224
    %1289 = vst.msk [vmem:[#allocation5 + $0x160] sm:$0xff] %vm28, %v1225
    %1290 = vst.msk [vmem:[#allocation5 + $0x168] sm:$0xff] %vm28, %v1226
    %1291 = vst.msk [vmem:[#allocation5 + $0x170] sm:$0xff] %vm28, %v1227
    %1292 = vst.msk [vmem:[#allocation5 + $0x178] sm:$0xff] %vm28, %v1228
    %1293 = vst.msk [vmem:[#allocation5 + $0x180] sm:$0xff] %vm28, %v1229
    %1294 = vst.msk [vmem:[#allocation5 + $0x188] sm:$0xff] %vm28, %v1230
    %1295 = vst.msk [vmem:[#allocation5 + $0x190] sm:$0xff] %vm28, %v1231
    %1296 = vst.msk [vmem:[#allocation5 + $0x198] sm:$0xff] %vm28, %v1232
    %1297 = vst.msk [vmem:[#allocation5 + $0x1a0] sm:$0xff] %vm28, %v1233
    %1298 = vst.msk [vmem:[#allocation5 + $0x1a8] sm:$0xff] %vm28, %v1234
    %1299 = vst.msk [vmem:[#allocation5 + $0x1b0] sm:$0xff] %vm28, %v1235
    %1300 = vst.msk [vmem:[#allocation5 + $0x1b8] sm:$0xff] %vm28, %v1236
    %1301 = vst.msk [vmem:[#allocation5 + $0x1c0] sm:$0xff] %vm28, %v1237
    %1302 = vst.msk [vmem:[#allocation5 + $0x1c8] sm:$0xff] %vm28, %v1238
    %1303 = vst.msk [vmem:[#allocation5 + $0x1d0] sm:$0xff] %vm28, %v1239
    %1304 = vst.msk [vmem:[#allocation5 + $0x1d8] sm:$0xff] %vm28, %v1240
    %1305 = vst.msk [vmem:[#allocation5 + $0x1e0] sm:$0xff] %vm28, %v1241
    %1306 = vst.msk [vmem:[#allocation5 + $0x1e8] sm:$0xff] %vm28, %v1242
    %1307 = vst.msk [vmem:[#allocation5 + $0x1f0] sm:$0xff] %vm28, %v1243
    %1308 = vst.msk [vmem:[#allocation5 + $0x1f8] sm:$0xff] %vm28, %v1244
    %v1309 = vld [vmem:[#allocation5 + $0x1] sm:$0xff]
    %v1310 = vld [vmem:[#allocation5 + $0x9] sm:$0xff]
    %v1311 = vld [vmem:[#allocation5 + $0x11] sm:$0xff]
    %v1312 = vld [vmem:[#allocation5 + $0x19] sm:$0xff]
    %v1313 = vld [vmem:[#allocation5 + $0x21] sm:$0xff]
    %v1314 = vld [vmem:[#allocation5 + $0x29] sm:$0xff]
    %v1315 = vld [vmem:[#allocation5 + $0x31] sm:$0xff]
    %v1316 = vld [vmem:[#allocation5 + $0x39] sm:$0xff]
    %v1317 = vld [vmem:[#allocation5 + $0x41] sm:$0xff]
    %v1318 = vld [vmem:[#allocation5 + $0x49] sm:$0xff]
    %v1319 = vld [vmem:[#allocation5 + $0x51] sm:$0xff]
    %v1320 = vld [vmem:[#allocation5 + $0x59] sm:$0xff]
    %v1321 = vld [vmem:[#allocation5 + $0x61] sm:$0xff]
    %v1322 = vld [vmem:[#allocation5 + $0x69] sm:$0xff]
    %v1323 = vld [vmem:[#allocation5 + $0x71] sm:$0xff]
    %v1324 = vld [vmem:[#allocation5 + $0x79] sm:$0xff]
    %v1325 = vld [vmem:[#allocation5 + $0x81] sm:$0xff]
    %v1326 = vld [vmem:[#allocation5 + $0x89] sm:$0xff]
    %v1327 = vld [vmem:[#allocation5 + $0x91] sm:$0xff]
    %v1328 = vld [vmem:[#allocation5 + $0x99] sm:$0xff]
    %v1329 = vld [vmem:[#allocation5 + $0xa1] sm:$0xff]
    %v1330 = vld [vmem:[#allocation5 + $0xa9] sm:$0xff]
    %v1331 = vld [vmem:[#allocation5 + $0xb1] sm:$0xff]
    %v1332 = vld [vmem:[#allocation5 + $0xb9] sm:$0xff]
    %v1333 = vld [vmem:[#allocation5 + $0xc1] sm:$0xff]
    %v1334 = vld [vmem:[#allocation5 + $0xc9] sm:$0xff]
    %v1335 = vld [vmem:[#allocation5 + $0xd1] sm:$0xff]
    %v1336 = vld [vmem:[#allocation5 + $0xd9] sm:$0xff]
    %v1337 = vld [vmem:[#allocation5 + $0xe1] sm:$0xff]
    %v1338 = vld [vmem:[#allocation5 + $0xe9] sm:$0xff]
    %v1339 = vld [vmem:[#allocation5 + $0xf1] sm:$0xff]
    %v1340 = vld [vmem:[#allocation5 + $0xf9] sm:$0xff]
    %v1341 = vld [vmem:[#allocation5 + $0x101] sm:$0xff]
    %v1342 = vld [vmem:[#allocation5 + $0x109] sm:$0xff]
    %v1343 = vld [vmem:[#allocation5 + $0x111] sm:$0xff]
    %v1344 = vld [vmem:[#allocation5 + $0x119] sm:$0xff]
    %v1345 = vld [vmem:[#allocation5 + $0x121] sm:$0xff]
    %v1346 = vld [vmem:[#allocation5 + $0x129] sm:$0xff]
    %v1347 = vld [vmem:[#allocation5 + $0x131] sm:$0xff]
    %v1348 = vld [vmem:[#allocation5 + $0x139] sm:$0xff]
    %v1349 = vld [vmem:[#allocation5 + $0x141] sm:$0xff]
    %v1350 = vld [vmem:[#allocation5 + $0x149] sm:$0xff]
    %v1351 = vld [vmem:[#allocation5 + $0x151] sm:$0xff]
    %v1352 = vld [vmem:[#allocation5 + $0x159] sm:$0xff]
    %v1353 = vld [vmem:[#allocation5 + $0x161] sm:$0xff]
    %v1354 = vld [vmem:[#allocation5 + $0x169] sm:$0xff]
    %v1355 = vld [vmem:[#allocation5 + $0x171] sm:$0xff]
    %v1356 = vld [vmem:[#allocation5 + $0x179] sm:$0xff]
    %v1357 = vld [vmem:[#allocation5 + $0x181] sm:$0xff]
    %v1358 = vld [vmem:[#allocation5 + $0x189] sm:$0xff]
    %v1359 = vld [vmem:[#allocation5 + $0x191] sm:$0xff]
    %v1360 = vld [vmem:[#allocation5 + $0x199] sm:$0xff]
    %v1361 = vld [vmem:[#allocation5 + $0x1a1] sm:$0xff]
    %v1362 = vld [vmem:[#allocation5 + $0x1a9] sm:$0xff]
    %v1363 = vld [vmem:[#allocation5 + $0x1b1] sm:$0xff]
    %v1364 = vld [vmem:[#allocation5 + $0x1b9] sm:$0xff]
    %v1365 = vld [vmem:[#allocation5 + $0x1c1] sm:$0xff]
    %v1366 = vld [vmem:[#allocation5 + $0x1c9] sm:$0xff]
    %v1367 = vld [vmem:[#allocation5 + $0x1d1] sm:$0xff]
    %v1368 = vld [vmem:[#allocation5 + $0x1d9] sm:$0xff]
    %v1369 = vld [vmem:[#allocation5 + $0x1e1] sm:$0xff]
    %v1370 = vld [vmem:[#allocation5 + $0x1e9] sm:$0xff]
    %v1371 = vld [vmem:[#allocation5 + $0x1f1] sm:$0xff]
    %v1372 = vld [vmem:[#allocation5 + $0x1f9] sm:$0xff]
    %v1373 = vmax.f32 %v1181, %v1309
    %v1374 = vmax.f32 %v1182, %v1310
    %v1375 = vmax.f32 %v1183, %v1311
    %v1376 = vmax.f32 %v1184, %v1312
    %v1377 = vmax.f32 %v1185, %v1313
    %v1378 = vmax.f32 %v1186, %v1314
    %v1379 = vmax.f32 %v1187, %v1315
    %v1380 = vmax.f32 %v1188, %v1316
    %v1381 = vmax.f32 %v1189, %v1317
    %v1382 = vmax.f32 %v1190, %v1318
    %v1383 = vmax.f32 %v1191, %v1319
    %v1384 = vmax.f32 %v1192, %v1320
    %v1385 = vmax.f32 %v1193, %v1321
    %v1386 = vmax.f32 %v1194, %v1322
    %v1387 = vmax.f32 %v1195, %v1323
    %v1388 = vmax.f32 %v1196, %v1324
    %v1389 = vmax.f32 %v1197, %v1325
    %v1390 = vmax.f32 %v1198, %v1326
    %v1391 = vmax.f32 %v1199, %v1327
    %v1392 = vmax.f32 %v1200, %v1328
    %v1393 = vmax.f32 %v1201, %v1329
    %v1394 = vmax.f32 %v1202, %v1330
    %v1395 = vmax.f32 %v1203, %v1331
    %v1396 = vmax.f32 %v1204, %v1332
    %v1397 = vmax.f32 %v1205, %v1333
    %v1398 = vmax.f32 %v1206, %v1334
    %v1399 = vmax.f32 %v1207, %v1335
    %v1400 = vmax.f32 %v1208, %v1336
    %v1401 = vmax.f32 %v1209, %v1337
    %v1402 = vmax.f32 %v1210, %v1338
    %v1403 = vmax.f32 %v1211, %v1339
    %v1404 = vmax.f32 %v1212, %v1340
    %v1405 = vmax.f32 %v1213, %v1341
    %v1406 = vmax.f32 %v1214, %v1342
    %v1407 = vmax.f32 %v1215, %v1343
    %v1408 = vmax.f32 %v1216, %v1344
    %v1409 = vmax.f32 %v1217, %v1345
    %v1410 = vmax.f32 %v1218, %v1346
    %v1411 = vmax.f32 %v1219, %v1347
    %v1412 = vmax.f32 %v1220, %v1348
    %v1413 = vmax.f32 %v1221, %v1349
    %v1414 = vmax.f32 %v1222, %v1350
    %v1415 = vmax.f32 %v1223, %v1351
    %v1416 = vmax.f32 %v1224, %v1352
    %v1417 = vmax.f32 %v1225, %v1353
    %v1418 = vmax.f32 %v1226, %v1354
    %v1419 = vmax.f32 %v1227, %v1355
    %v1420 = vmax.f32 %v1228, %v1356
    %v1421 = vmax.f32 %v1229, %v1357
    %v1422 = vmax.f32 %v1230, %v1358
    %v1423 = vmax.f32 %v1231, %v1359
    %v1424 = vmax.f32 %v1232, %v1360
    %v1425 = vmax.f32 %v1233, %v1361
    %v1426 = vmax.f32 %v1234, %v1362
    %v1427 = vmax.f32 %v1235, %v1363
    %v1428 = vmax.f32 %v1236, %v1364
    %v1429 = vmax.f32 %v1237, %v1365
    %v1430 = vmax.f32 %v1238, %v1366
    %v1431 = vmax.f32 %v1239, %v1367
    %v1432 = vmax.f32 %v1240, %v1368
    %v1433 = vmax.f32 %v1241, %v1369
    %v1434 = vmax.f32 %v1242, %v1370
    %v1435 = vmax.f32 %v1243, %v1371
    %v1436 = vmax.f32 %v1244, %v1372
    %v1437 = vld [vmem:[#allocation5 + $0x10] sm:$0xff]
    %v1438 = vld [vmem:[#allocation5 + $0x18] sm:$0xff]
    %v1439 = vld [vmem:[#allocation5 + $0x20] sm:$0xff]
    %v1440 = vld [vmem:[#allocation5 + $0x28] sm:$0xff]
    %v1441 = vld [vmem:[#allocation5 + $0x30] sm:$0xff]
    %v1442 = vld [vmem:[#allocation5 + $0x38] sm:$0xff]
    %v1443 = vld [vmem:[#allocation5 + $0x40] sm:$0xff]
    %v1444 = vld [vmem:[#allocation5 + $0x48] sm:$0xff]
    %v1445 = vld [vmem:[#allocation5 + $0x50] sm:$0xff]
    %v1446 = vld [vmem:[#allocation5 + $0x58] sm:$0xff]
    %v1447 = vld [vmem:[#allocation5 + $0x60] sm:$0xff]
    %v1448 = vld [vmem:[#allocation5 + $0x68] sm:$0xff]
    %v1449 = vld [vmem:[#allocation5 + $0x70] sm:$0xff]
    %v1450 = vld [vmem:[#allocation5 + $0x78] sm:$0xff]
    %v1451 = vld [vmem:[#allocation5 + $0x80] sm:$0xff]
    %v1452 = vld [vmem:[#allocation5 + $0x88] sm:$0xff]
    %v1453 = vld [vmem:[#allocation5 + $0x90] sm:$0xff]
    %v1454 = vld [vmem:[#allocation5 + $0x98] sm:$0xff]
    %v1455 = vld [vmem:[#allocation5 + $0xa0] sm:$0xff]
    %v1456 = vld [vmem:[#allocation5 + $0xa8] sm:$0xff]
    %v1457 = vld [vmem:[#allocation5 + $0xb0] sm:$0xff]
    %v1458 = vld [vmem:[#allocation5 + $0xb8] sm:$0xff]
    %v1459 = vld [vmem:[#allocation5 + $0xc0] sm:$0xff]
    %v1460 = vld [vmem:[#allocation5 + $0xc8] sm:$0xff]
    %v1461 = vld [vmem:[#allocation5 + $0xd0] sm:$0xff]
    %v1462 = vld [vmem:[#allocation5 + $0xd8] sm:$0xff]
    %v1463 = vld [vmem:[#allocation5 + $0xe0] sm:$0xff]
    %v1464 = vld [vmem:[#allocation5 + $0xe8] sm:$0xff]
    %v1465 = vld [vmem:[#allocation5 + $0xf0] sm:$0xff]
    %v1466 = vld [vmem:[#allocation5 + $0xf8] sm:$0xff]
    %v1467 = vld [vmem:[#allocation5 + $0x100] sm:$0xff]
    %v1468 = vld [vmem:[#allocation5 + $0x108] sm:$0xff]
    %v1469 = vld [vmem:[#allocation5 + $0x110] sm:$0xff]
    %v1470 = vld [vmem:[#allocation5 + $0x118] sm:$0xff]
    %v1471 = vld [vmem:[#allocation5 + $0x120] sm:$0xff]
    %v1472 = vld [vmem:[#allocation5 + $0x128] sm:$0xff]
    %v1473 = vld [vmem:[#allocation5 + $0x130] sm:$0xff]
    %v1474 = vld [vmem:[#allocation5 + $0x138] sm:$0xff]
    %v1475 = vld [vmem:[#allocation5 + $0x140] sm:$0xff]
    %v1476 = vld [vmem:[#allocation5 + $0x148] sm:$0xff]
    %v1477 = vld [vmem:[#allocation5 + $0x150] sm:$0xff]
    %v1478 = vld [vmem:[#allocation5 + $0x158] sm:$0xff]
    %v1479 = vld [vmem:[#allocation5 + $0x160] sm:$0xff]
    %v1480 = vld [vmem:[#allocation5 + $0x168] sm:$0xff]
    %v1481 = vld [vmem:[#allocation5 + $0x170] sm:$0xff]
    %v1482 = vld [vmem:[#allocation5 + $0x178] sm:$0xff]
    %v1483 = vld [vmem:[#allocation5 + $0x180] sm:$0xff]
    %v1484 = vld [vmem:[#allocation5 + $0x188] sm:$0xff]
    %v1485 = vld [vmem:[#allocation5 + $0x190] sm:$0xff]
    %v1486 = vld [vmem:[#allocation5 + $0x198] sm:$0xff]
    %v1487 = vld [vmem:[#allocation5 + $0x1a0] sm:$0xff]
    %v1488 = vld [vmem:[#allocation5 + $0x1a8] sm:$0xff]
    %v1489 = vld [vmem:[#allocation5 + $0x1b0] sm:$0xff]
    %v1490 = vld [vmem:[#allocation5 + $0x1b8] sm:$0xff]
    %v1491 = vld [vmem:[#allocation5 + $0x1c0] sm:$0xff]
    %v1492 = vld [vmem:[#allocation5 + $0x1c8] sm:$0xff]
    %v1493 = vld [vmem:[#allocation5 + $0x1d0] sm:$0xff]
    %v1494 = vld [vmem:[#allocation5 + $0x1d8] sm:$0xff]
    %v1495 = vld [vmem:[#allocation5 + $0x1e0] sm:$0xff]
    %v1496 = vld [vmem:[#allocation5 + $0x1e8] sm:$0xff]
    %v1497 = vld [vmem:[#allocation5 + $0x1f0] sm:$0xff]
    %v1498 = vld [vmem:[#allocation5 + $0x1f8] sm:$0xff]
    %v1499 = vld [vmem:[#allocation5 + $0x200] sm:$0xff]
    %v1500 = vld [vmem:[#allocation5 + $0x208] sm:$0xff]
    %v1501 = vld [vmem:[#allocation5 + $0x201] sm:$0xff]
    %v1502 = vld [vmem:[#allocation5 + $0x209] sm:$0xff]
    %v1503 = vmax.f32 %v1437, %v1311
    %v1504 = vmax.f32 %v1438, %v1312
    %v1505 = vmax.f32 %v1439, %v1313
    %v1506 = vmax.f32 %v1440, %v1314
    %v1507 = vmax.f32 %v1441, %v1315
    %v1508 = vmax.f32 %v1442, %v1316
    %v1509 = vmax.f32 %v1443, %v1317
    %v1510 = vmax.f32 %v1444, %v1318
    %v1511 = vmax.f32 %v1445, %v1319
    %v1512 = vmax.f32 %v1446, %v1320
    %v1513 = vmax.f32 %v1447, %v1321
    %v1514 = vmax.f32 %v1448, %v1322
    %v1515 = vmax.f32 %v1449, %v1323
    %v1516 = vmax.f32 %v1450, %v1324
    %v1517 = vmax.f32 %v1451, %v1325
    %v1518 = vmax.f32 %v1452, %v1326
    %v1519 = vmax.f32 %v1453, %v1327
    %v1520 = vmax.f32 %v1454, %v1328
    %v1521 = vmax.f32 %v1455, %v1329
    %v1522 = vmax.f32 %v1456, %v1330
    %v1523 = vmax.f32 %v1457, %v1331
    %v1524 = vmax.f32 %v1458, %v1332
    %v1525 = vmax.f32 %v1459, %v1333
    %v1526 = vmax.f32 %v1460, %v1334
    %v1527 = vmax.f32 %v1461, %v1335
    %v1528 = vmax.f32 %v1462, %v1336
    %v1529 = vmax.f32 %v1463, %v1337
    %v1530 = vmax.f32 %v1464, %v1338
    %v1531 = vmax.f32 %v1465, %v1339
    %v1532 = vmax.f32 %v1466, %v1340
    %v1533 = vmax.f32 %v1467, %v1341
    %v1534 = vmax.f32 %v1468, %v1342
    %v1535 = vmax.f32 %v1469, %v1343
    %v1536 = vmax.f32 %v1470, %v1344
    %v1537 = vmax.f32 %v1471, %v1345
    %v1538 = vmax.f32 %v1472, %v1346
    %v1539 = vmax.f32 %v1473, %v1347
    %v1540 = vmax.f32 %v1474, %v1348
    %v1541 = vmax.f32 %v1475, %v1349
    %v1542 = vmax.f32 %v1476, %v1350
    %v1543 = vmax.f32 %v1477, %v1351
    %v1544 = vmax.f32 %v1478, %v1352
    %v1545 = vmax.f32 %v1479, %v1353
    %v1546 = vmax.f32 %v1480, %v1354
    %v1547 = vmax.f32 %v1481, %v1355
    %v1548 = vmax.f32 %v1482, %v1356
    %v1549 = vmax.f32 %v1483, %v1357
    %v1550 = vmax.f32 %v1484, %v1358
    %v1551 = vmax.f32 %v1485, %v1359
    %v1552 = vmax.f32 %v1486, %v1360
    %v1553 = vmax.f32 %v1487, %v1361
    %v1554 = vmax.f32 %v1488, %v1362
    %v1555 = vmax.f32 %v1489, %v1363
    %v1556 = vmax.f32 %v1490, %v1364
    %v1557 = vmax.f32 %v1491, %v1365
    %v1558 = vmax.f32 %v1492, %v1366
    %v1559 = vmax.f32 %v1493, %v1367
    %v1560 = vmax.f32 %v1494, %v1368
    %v1561 = vmax.f32 %v1495, %v1369
    %v1562 = vmax.f32 %v1496, %v1370
    %v1563 = vmax.f32 %v1497, %v1371
    %v1564 = vmax.f32 %v1498, %v1372
    %v1565 = vmax.f32 %v1499, %v1501
    %v1566 = vmax.f32 %v1500, %v1502
    %v1567 = vmax.f32 %v1373, %v1503
    %v1568 = vmax.f32 %v1374, %v1504
    %v1569 = vmax.f32 %v1375, %v1505
    %v1570 = vmax.f32 %v1376, %v1506
    %v1571 = vmax.f32 %v1377, %v1507
    %v1572 = vmax.f32 %v1378, %v1508
    %v1573 = vmax.f32 %v1379, %v1509
    %v1574 = vmax.f32 %v1380, %v1510
    %v1575 = vmax.f32 %v1381, %v1511
    %v1576 = vmax.f32 %v1382, %v1512
    %v1577 = vmax.f32 %v1383, %v1513
    %v1578 = vmax.f32 %v1384, %v1514
    %v1579 = vmax.f32 %v1385, %v1515
    %v1580 = vmax.f32 %v1386, %v1516
    %v1581 = vmax.f32 %v1387, %v1517
    %v1582 = vmax.f32 %v1388, %v1518
    %v1583 = vmax.f32 %v1389, %v1519
    %v1584 = vmax.f32 %v1390, %v1520
    %v1585 = vmax.f32 %v1391, %v1521
    %v1586 = vmax.f32 %v1392, %v1522
    %v1587 = vmax.f32 %v1393, %v1523
    %v1588 = vmax.f32 %v1394, %v1524
    %v1589 = vmax.f32 %v1395, %v1525
    %v1590 = vmax.f32 %v1396, %v1526
    %v1591 = vmax.f32 %v1397, %v1527
    %v1592 = vmax.f32 %v1398, %v1528
    %v1593 = vmax.f32 %v1399, %v1529
    %v1594 = vmax.f32 %v1400, %v1530
    %v1595 = vmax.f32 %v1401, %v1531
    %v1596 = vmax.f32 %v1402, %v1532
    %v1597 = vmax.f32 %v1403, %v1533
    %v1598 = vmax.f32 %v1404, %v1534
    %v1599 = vmax.f32 %v1405, %v1535
    %v1600 = vmax.f32 %v1406, %v1536
    %v1601 = vmax.f32 %v1407, %v1537
    %v1602 = vmax.f32 %v1408, %v1538
    %v1603 = vmax.f32 %v1409, %v1539
    %v1604 = vmax.f32 %v1410, %v1540
    %v1605 = vmax.f32 %v1411, %v1541
    %v1606 = vmax.f32 %v1412, %v1542
    %v1607 = vmax.f32 %v1413, %v1543
    %v1608 = vmax.f32 %v1414, %v1544
    %v1609 = vmax.f32 %v1415, %v1545
    %v1610 = vmax.f32 %v1416, %v1546
    %v1611 = vmax.f32 %v1417, %v1547
    %v1612 = vmax.f32 %v1418, %v1548
    %v1613 = vmax.f32 %v1419, %v1549
    %v1614 = vmax.f32 %v1420, %v1550
    %v1615 = vmax.f32 %v1421, %v1551
    %v1616 = vmax.f32 %v1422, %v1552
    %v1617 = vmax.f32 %v1423, %v1553
    %v1618 = vmax.f32 %v1424, %v1554
    %v1619 = vmax.f32 %v1425, %v1555
    %v1620 = vmax.f32 %v1426, %v1556
    %v1621 = vmax.f32 %v1427, %v1557
    %v1622 = vmax.f32 %v1428, %v1558
    %v1623 = vmax.f32 %v1429, %v1559
    %v1624 = vmax.f32 %v1430, %v1560
    %v1625 = vmax.f32 %v1431, %v1561
    %v1626 = vmax.f32 %v1432, %v1562
    %v1627 = vmax.f32 %v1433, %v1563
    %v1628 = vmax.f32 %v1434, %v1564
    %v1629 = vmax.f32 %v1435, %v1565
    %v1630 = vmax.f32 %v1436, %v1566
    %1631 = vst.msk [vmem:[#allocation5] sm:$0xff] %vm28, %v1567
    %1632 = vst.msk [vmem:[#allocation5 + $0x8] sm:$0xff] %vm28, %v1568
    %1633 = vst.msk [vmem:[#allocation5 + $0x10] sm:$0xff] %vm28, %v1569
    %1634 = vst.msk [vmem:[#allocation5 + $0x18] sm:$0xff] %vm28, %v1570
    %1635 = vst.msk [vmem:[#allocation5 + $0x20] sm:$0xff] %vm28, %v1571
    %1636 = vst.msk [vmem:[#allocation5 + $0x28] sm:$0xff] %vm28, %v1572
    %1637 = vst.msk [vmem:[#allocation5 + $0x30] sm:$0xff] %vm28, %v1573
    %1638 = vst.msk [vmem:[#allocation5 + $0x38] sm:$0xff] %vm28, %v1574
    %1639 = vst.msk [vmem:[#allocation5 + $0x40] sm:$0xff] %vm28, %v1575
    %1640 = vst.msk [vmem:[#allocation5 + $0x48] sm:$0xff] %vm28, %v1576
    %1641 = vst.msk [vmem:[#allocation5 + $0x50] sm:$0xff] %vm28, %v1577
    %1642 = vst.msk [vmem:[#allocation5 + $0x58] sm:$0xff] %vm28, %v1578
    %1643 = vst.msk [vmem:[#allocation5 + $0x60] sm:$0xff] %vm28, %v1579
    %1644 = vst.msk [vmem:[#allocation5 + $0x68] sm:$0xff] %vm28, %v1580
    %1645 = vst.msk [vmem:[#allocation5 + $0x70] sm:$0xff] %vm28, %v1581
    %1646 = vst.msk [vmem:[#allocation5 + $0x78] sm:$0xff] %vm28, %v1582
    %1647 = vst.msk [vmem:[#allocation5 + $0x80] sm:$0xff] %vm28, %v1583
    %1648 = vst.msk [vmem:[#allocation5 + $0x88] sm:$0xff] %vm28, %v1584
    %1649 = vst.msk [vmem:[#allocation5 + $0x90] sm:$0xff] %vm28, %v1585
    %1650 = vst.msk [vmem:[#allocation5 + $0x98] sm:$0xff] %vm28, %v1586
    %1651 = vst.msk [vmem:[#allocation5 + $0xa0] sm:$0xff] %vm28, %v1587
    %1652 = vst.msk [vmem:[#allocation5 + $0xa8] sm:$0xff] %vm28, %v1588
    %1653 = vst.msk [vmem:[#allocation5 + $0xb0] sm:$0xff] %vm28, %v1589
    %1654 = vst.msk [vmem:[#allocation5 + $0xb8] sm:$0xff] %vm28, %v1590
    %1655 = vst.msk [vmem:[#allocation5 + $0xc0] sm:$0xff] %vm28, %v1591
    %1656 = vst.msk [vmem:[#allocation5 + $0xc8] sm:$0xff] %vm28, %v1592
    %1657 = vst.msk [vmem:[#allocation5 + $0xd0] sm:$0xff] %vm28, %v1593
    %1658 = vst.msk [vmem:[#allocation5 + $0xd8] sm:$0xff] %vm28, %v1594
    %1659 = vst.msk [vmem:[#allocation5 + $0xe0] sm:$0xff] %vm28, %v1595
    %1660 = vst.msk [vmem:[#allocation5 + $0xe8] sm:$0xff] %vm28, %v1596
    %1661 = vst.msk [vmem:[#allocation5 + $0xf0] sm:$0xff] %vm28, %v1597
    %1662 = vst.msk [vmem:[#allocation5 + $0xf8] sm:$0xff] %vm28, %v1598
    %1663 = vst.msk [vmem:[#allocation5 + $0x100] sm:$0xff] %vm28, %v1599
    %1664 = vst.msk [vmem:[#allocation5 + $0x108] sm:$0xff] %vm28, %v1600
    %1665 = vst.msk [vmem:[#allocation5 + $0x110] sm:$0xff] %vm28, %v1601
    %1666 = vst.msk [vmem:[#allocation5 + $0x118] sm:$0xff] %vm28, %v1602
    %1667 = vst.msk [vmem:[#allocation5 + $0x120] sm:$0xff] %vm28, %v1603
    %1668 = vst.msk [vmem:[#allocation5 + $0x128] sm:$0xff] %vm28, %v1604
    %1669 = vst.msk [vmem:[#allocation5 + $0x130] sm:$0xff] %vm28, %v1605
    %1670 = vst.msk [vmem:[#allocation5 + $0x138] sm:$0xff] %vm28, %v1606
    %1671 = vst.msk [vmem:[#allocation5 + $0x140] sm:$0xff] %vm28, %v1607
    %1672 = vst.msk [vmem:[#allocation5 + $0x148] sm:$0xff] %vm28, %v1608
    %1673 = vst.msk [vmem:[#allocation5 + $0x150] sm:$0xff] %vm28, %v1609
    %1674 = vst.msk [vmem:[#allocation5 + $0x158] sm:$0xff] %vm28, %v1610
    %1675 = vst.msk [vmem:[#allocation5 + $0x160] sm:$0xff] %vm28, %v1611
    %1676 = vst.msk [vmem:[#allocation5 + $0x168] sm:$0xff] %vm28, %v1612
    %1677 = vst.msk [vmem:[#allocation5 + $0x170] sm:$0xff] %vm28, %v1613
    %1678 = vst.msk [vmem:[#allocation5 + $0x178] sm:$0xff] %vm28, %v1614
    %1679 = vst.msk [vmem:[#allocation5 + $0x180] sm:$0xff] %vm28, %v1615
    %1680 = vst.msk [vmem:[#allocation5 + $0x188] sm:$0xff] %vm28, %v1616
    %1681 = vst.msk [vmem:[#allocation5 + $0x190] sm:$0xff] %vm28, %v1617
    %1682 = vst.msk [vmem:[#allocation5 + $0x198] sm:$0xff] %vm28, %v1618
    %1683 = vst.msk [vmem:[#allocation5 + $0x1a0] sm:$0xff] %vm28, %v1619
    %1684 = vst.msk [vmem:[#allocation5 + $0x1a8] sm:$0xff] %vm28, %v1620
    %1685 = vst.msk [vmem:[#allocation5 + $0x1b0] sm:$0xff] %vm28, %v1621
    %1686 = vst.msk [vmem:[#allocation5 + $0x1b8] sm:$0xff] %vm28, %v1622
    %1687 = vst.msk [vmem:[#allocation5 + $0x1c0] sm:$0xff] %vm28, %v1623
    %1688 = vst.msk [vmem:[#allocation5 + $0x1c8] sm:$0xff] %vm28, %v1624
    %1689 = vst.msk [vmem:[#allocation5 + $0x1d0] sm:$0xff] %vm28, %v1625
    %1690 = vst.msk [vmem:[#allocation5 + $0x1d8] sm:$0xff] %vm28, %v1626
    %1691 = vst.msk [vmem:[#allocation5 + $0x1e0] sm:$0xff] %vm28, %v1627
    %1692 = vst.msk [vmem:[#allocation5 + $0x1e8] sm:$0xff] %vm28, %v1628
    %1693 = vst.msk [vmem:[#allocation5 + $0x1f0] sm:$0xff] %vm28, %v1629
    %1694 = vst.msk [vmem:[#allocation5 + $0x1f8] sm:$0xff] %vm28, %v1630
    %v1695 = vld [vmem:[#allocation5] ss:$2 sm:$0xff]
    %1696 = vst.msk [vmem:[#allocation2 + $0x16] sm:$0xff] %vm28, %v1695
    %s1697 = scalar_lea.vmem [#allocation5], 32
    %v1698 = vld [vmem:[%s1697] ss:$2 sm:$0xff]
    %1699 = vst.msk [vmem:[#allocation2 + $0x20] sm:$0xff] %vm28, %v1698
    %s1700 = scalar_lea.vmem [#allocation5], 64
    %v1701 = vld [vmem:[%s1700] ss:$2 sm:$0xff]
    %1702 = vst.msk [vmem:[#allocation2 + $0x2a] sm:$0xff] %vm28, %v1701
    %s1703 = scalar_lea.vmem [#allocation5], 96
    %v1704 = vld [vmem:[%s1703] ss:$2 sm:$0xff]
    %1705 = vst.msk [vmem:[#allocation2 + $0x34] sm:$0xff] %vm28, %v1704
    %s1706 = scalar_lea.vmem [#allocation5], 128
    %v1707 = vld [vmem:[%s1706] ss:$2 sm:$0xff]
    %1708 = vst.msk [vmem:[#allocation2 + $0x3e] sm:$0xff] %vm28, %v1707
    %s1709 = scalar_lea.vmem [#allocation5], 160
    %v1710 = vld [vmem:[%s1709] ss:$2 sm:$0xff]
    %1711 = vst.msk [vmem:[#allocation2 + $0x48] sm:$0xff] %vm28, %v1710
    %s1712 = scalar_lea.vmem [#allocation5], 192
    %v1713 = vld [vmem:[%s1712] ss:$2 sm:$0xff]
    %1714 = vst.msk [vmem:[#allocation2 + $0x52] sm:$0xff] %vm28, %v1713
    %s1715 = scalar_lea.vmem [#allocation5], 224
    %v1716 = vld [vmem:[%s1715] ss:$2 sm:$0xff]
    %1717 = vst.msk [vmem:[#allocation2 + $0x5c] sm:$0xff] %vm28, %v1716
    %s1718 = scalar_lea.vmem [#allocation5], 256
    %v1719 = vld [vmem:[%s1718] ss:$2 sm:$0xff]
    %1720 = vst.msk [vmem:[#allocation2 + $0x7a] sm:$0xff] %vm28, %v1719
    %s1721 = scalar_lea.vmem [#allocation5], 288
    %v1722 = vld [vmem:[%s1721] ss:$2 sm:$0xff]
    %1723 = vst.msk [vmem:[#allocation2 + $0x84] sm:$0xff] %vm28, %v1722
    %s1724 = scalar_lea.vmem [#allocation5], 320
    %v1725 = vld [vmem:[%s1724] ss:$2 sm:$0xff]
    %1726 = vst.msk [vmem:[#allocation2 + $0x8e] sm:$0xff] %vm28, %v1725
    %s1727 = scalar_lea.vmem [#allocation5], 352
    %v1728 = vld [vmem:[%s1727] ss:$2 sm:$0xff]
    %1729 = vst.msk [vmem:[#allocation2 + $0x98] sm:$0xff] %vm28, %v1728
    %s1730 = scalar_lea.vmem [#allocation5], 384
    %v1731 = vld [vmem:[%s1730] ss:$2 sm:$0xff]
    %1732 = vst.msk [vmem:[#allocation2 + $0xa2] sm:$0xff] %vm28, %v1731
    %s1733 = scalar_lea.vmem [#allocation5], 416
    %v1734 = vld [vmem:[%s1733] ss:$2 sm:$0xff]
    %1735 = vst.msk [vmem:[#allocation2 + $0xac] sm:$0xff] %vm28, %v1734
    %s1736 = scalar_lea.vmem [#allocation5], 448
    %v1737 = vld [vmem:[%s1736] ss:$2 sm:$0xff]
    %1738 = vst.msk [vmem:[#allocation2 + $0xb6] sm:$0xff] %vm28, %v1737
    %s1739 = scalar_lea.vmem [#allocation5], 480
    %v1740 = vld [vmem:[%s1739] ss:$2 sm:$0xff]
    %1741 = vst.msk [vmem:[#allocation2 + $0xc0] sm:$0xff] %vm28, %v1740
    %v1742 = vld [vmem:[#allocation2] sm:$0xff]
    %v1743 = vld [vmem:[#allocation2 + $0x8] sm:$0xff]
    %v1744 = vld [vmem:[#allocation2 + $0x10] sm:$0xff]
    %v1745 = vld [vmem:[#allocation2 + $0x18] sm:$0xff]
    %v1746 = vld [vmem:[#allocation2 + $0x20] sm:$0xff]
    %v1747 = vld [vmem:[#allocation2 + $0x28] sm:$0xff]
    %v1748 = vld [vmem:[#allocation2 + $0x30] sm:$0xff]
    %v1749 = vld [vmem:[#allocation2 + $0x38] sm:$0xff]
    %v1750 = vld [vmem:[#allocation2 + $0x40] sm:$0xff]
    %v1751 = vld [vmem:[#allocation2 + $0x48] sm:$0xff]
    %v1752 = vld [vmem:[#allocation2 + $0x50] sm:$0xff]
    %v1753 = vld [vmem:[#allocation2 + $0x58] sm:$0xff]
    %v1754 = vld [vmem:[#allocation2 + $0x60] sm:$0xff]
    %v1755 = vld [vmem:[#allocation2 + $0x68] sm:$0xff]
    %v1756 = vld [vmem:[#allocation2 + $0x70] sm:$0xff]
    %v1757 = vld [vmem:[#allocation2 + $0x78] sm:$0xff]
    %v1758 = vld [vmem:[#allocation2 + $0x80] sm:$0xff]
    %v1759 = vld [vmem:[#allocation2 + $0x88] sm:$0xff]
    %v1760 = vld [vmem:[#allocation2 + $0x90] sm:$0xff]
    %v1761 = vld [vmem:[#allocation2 + $0x98] sm:$0xff]
    %v1762 = vld [vmem:[#allocation2 + $0xa0] sm:$0xff]
    %v1763 = vld [vmem:[#allocation2 + $0xa8] sm:$0xff]
    %v1764 = vld [vmem:[#allocation2 + $0xb0] sm:$0xff]
    %v1765 = vld [vmem:[#allocation2 + $0xb8] sm:$0xff]
    %v1766 = vld [vmem:[#allocation2 + $0xc0] sm:$0xff]
    %v1767 = vld [vmem:[#allocation2 + $0xa] sm:$0xff]
    %v1768 = vld [vmem:[#allocation2 + $0x12] sm:$0xff]
    %v1769 = vld [vmem:[#allocation2 + $0x1a] sm:$0xff]
    %v1770 = vld [vmem:[#allocation2 + $0x22] sm:$0xff]
    %v1771 = vld [vmem:[#allocation2 + $0x2a] sm:$0xff]
    %v1772 = vld [vmem:[#allocation2 + $0x32] sm:$0xff]
    %v1773 = vld [vmem:[#allocation2 + $0x3a] sm:$0xff]
    %v1774 = vld [vmem:[#allocation2 + $0x42] sm:$0xff]
    %v1775 = vld [vmem:[#allocation2 + $0x4a] sm:$0xff]
    %v1776 = vld [vmem:[#allocation2 + $0x52] sm:$0xff]
    %v1777 = vld [vmem:[#allocation2 + $0x5a] sm:$0xff]
    %v1778 = vld [vmem:[#allocation2 + $0x62] sm:$0xff]
    %v1779 = vld [vmem:[#allocation2 + $0x6a] sm:$0xff]
    %v1780 = vld [vmem:[#allocation2 + $0x72] sm:$0xff]
    %v1781 = vld [vmem:[#allocation2 + $0x7a] sm:$0xff]
    %v1782 = vld [vmem:[#allocation2 + $0x82] sm:$0xff]
    %v1783 = vld [vmem:[#allocation2 + $0x8a] sm:$0xff]
    %v1784 = vld [vmem:[#allocation2 + $0x92] sm:$0xff]
    %v1785 = vld [vmem:[#allocation2 + $0x9a] sm:$0xff]
    %v1786 = vld [vmem:[#allocation2 + $0xa2] sm:$0xff]
    %v1787 = vld [vmem:[#allocation2 + $0xaa] sm:$0xff]
    %v1788 = vld [vmem:[#allocation2 + $0xb2] sm:$0xff]
    %v1789 = vld [vmem:[#allocation2 + $0xba] sm:$0xff]
    %v1790 = vld [vmem:[#allocation2 + $0xc2] sm:$0xff]
    %v1791 = vld [vmem:[#allocation2 + $0xca] sm:$0xff]
    %v1792 = vld [vmem:[#allocation2 + $0x14] sm:$0xff]
    %v1793 = vld [vmem:[#allocation2 + $0x1c] sm:$0xff]
    %v1794 = vld [vmem:[#allocation2 + $0x24] sm:$0xff]
    %v1795 = vld [vmem:[#allocation2 + $0x2c] sm:$0xff]
    %v1796 = vld [vmem:[#allocation2 + $0x34] sm:$0xff]
    %v1797 = vld [vmem:[#allocation2 + $0x3c] sm:$0xff]
    %v1798 = vld [vmem:[#allocation2 + $0x44] sm:$0xff]
    %v1799 = vld [vmem:[#allocation2 + $0x4c] sm:$0xff]
    %v1800 = vld [vmem:[#allocation2 + $0x54] sm:$0xff]
    %v1801 = vld [vmem:[#allocation2 + $0x5c] sm:$0xff]
    %v1802 = vld [vmem:[#allocation2 + $0x64] sm:$0xff]
    %v1803 = vld [vmem:[#allocation2 + $0x6c] sm:$0xff]
    %v1804 = vld [vmem:[#allocation2 + $0x74] sm:$0xff]
    %v1805 = vld [vmem:[#allocation2 + $0x7c] sm:$0xff]
    %v1806 = vld [vmem:[#allocation2 + $0x84] sm:$0xff]
    %v1807 = vld [vmem:[#allocation2 + $0x8c] sm:$0xff]
    %v1808 = vld [vmem:[#allocation2 + $0x94] sm:$0xff]
    %v1809 = vld [vmem:[#allocation2 + $0x9c] sm:$0xff]
    %v1810 = vld [vmem:[#allocation2 + $0xa4] sm:$0xff]
    %v1811 = vld [vmem:[#allocation2 + $0xac] sm:$0xff]
    %v1812 = vld [vmem:[#allocation2 + $0xb4] sm:$0xff]
    %v1813 = vld [vmem:[#allocation2 + $0xbc] sm:$0xff]
    %v1814 = vld [vmem:[#allocation2 + $0xc4] sm:$0xff]
    %v1815 = vld [vmem:[#allocation2 + $0xcc] sm:$0xff]
    %v1816 = vld [vmem:[#allocation2 + $0xd4] sm:$0xff]
    %1842 = vrot.lane.b32.xlu0 %v1767, 64
    %v1843 = vpop.permute.xlu0 %1842
    %1844 = vrot.lane.b32.xlu0 %v1768, 64
    %v1845 = vpop.permute.xlu0 %1844
    %1846 = vrot.lane.b32.xlu0 %v1769, 64
    %v1847 = vpop.permute.xlu0 %1846
    %1848 = vrot.lane.b32.xlu0 %v1770, 64
    %v1849 = vpop.permute.xlu0 %1848
    %1850 = vrot.lane.b32.xlu0 %v1771, 64
    %v1851 = vpop.permute.xlu0 %1850
    %1852 = vrot.lane.b32.xlu0 %v1772, 64
    %v1853 = vpop.permute.xlu0 %1852
    %1854 = vrot.lane.b32.xlu0 %v1773, 64
    %v1855 = vpop.permute.xlu0 %1854
    %1856 = vrot.lane.b32.xlu0 %v1774, 64
    %v1857 = vpop.permute.xlu0 %1856
    %1858 = vrot.lane.b32.xlu0 %v1775, 64
    %v1859 = vpop.permute.xlu0 %1858
    %1860 = vrot.lane.b32.xlu0 %v1776, 64
    %v1861 = vpop.permute.xlu0 %1860
    %1862 = vrot.lane.b32.xlu0 %v1777, 64
    %v1863 = vpop.permute.xlu0 %1862
    %1864 = vrot.lane.b32.xlu0 %v1778, 64
    %v1865 = vpop.permute.xlu0 %1864
    %1866 = vrot.lane.b32.xlu0 %v1779, 64
    %v1867 = vpop.permute.xlu0 %1866
    %1868 = vrot.lane.b32.xlu0 %v1780, 64
    %v1869 = vpop.permute.xlu0 %1868
    %1870 = vrot.lane.b32.xlu0 %v1781, 64
    %v1871 = vpop.permute.xlu0 %1870
    %1872 = vrot.lane.b32.xlu0 %v1782, 64
    %v1873 = vpop.permute.xlu0 %1872
    %1874 = vrot.lane.b32.xlu0 %v1783, 64
    %v1875 = vpop.permute.xlu0 %1874
    %1876 = vrot.lane.b32.xlu0 %v1784, 64
    %v1877 = vpop.permute.xlu0 %1876
    %1878 = vrot.lane.b32.xlu0 %v1785, 64
    %v1879 = vpop.permute.xlu0 %1878
    %1880 = vrot.lane.b32.xlu0 %v1786, 64
    %v1881 = vpop.permute.xlu0 %1880
    %1882 = vrot.lane.b32.xlu0 %v1787, 64
    %v1883 = vpop.permute.xlu0 %1882
    %1884 = vrot.lane.b32.xlu0 %v1788, 64
    %v1885 = vpop.permute.xlu0 %1884
    %1886 = vrot.lane.b32.xlu0 %v1789, 64
    %v1887 = vpop.permute.xlu0 %1886
    %1888 = vrot.lane.b32.xlu0 %v1790, 64
    %v1889 = vpop.permute.xlu0 %1888
    %1890 = vrot.lane.b32.xlu0 %v1791, 64
    %v1891 = vpop.permute.xlu0 %1890
    %v1917 = vsel %vm28, %v1742, %v1843
    %v1918 = vsel %vm28, %v1743, %v1845
    %v1919 = vsel %vm28, %v1744, %v1847
    %v1920 = vsel %vm28, %v1745, %v1849
    %v1921 = vsel %vm28, %v1746, %v1851
    %v1922 = vsel %vm28, %v1747, %v1853
    %v1923 = vsel %vm28, %v1748, %v1855
    %v1924 = vsel %vm28, %v1749, %v1857
    %v1925 = vsel %vm28, %v1750, %v1859
    %v1926 = vsel %vm28, %v1751, %v1861
    %v1927 = vsel %vm28, %v1752, %v1863
    %v1928 = vsel %vm28, %v1753, %v1865
    %v1929 = vsel %vm28, %v1754, %v1867
    %v1930 = vsel %vm28, %v1755, %v1869
    %v1931 = vsel %vm28, %v1756, %v1871
    %v1932 = vsel %vm28, %v1757, %v1873
    %v1933 = vsel %vm28, %v1758, %v1875
    %v1934 = vsel %vm28, %v1759, %v1877
    %v1935 = vsel %vm28, %v1760, %v1879
    %v1936 = vsel %vm28, %v1761, %v1881
    %v1937 = vsel %vm28, %v1762, %v1883
    %v1938 = vsel %vm28, %v1763, %v1885
    %v1939 = vsel %vm28, %v1764, %v1887
    %v1940 = vsel %vm28, %v1765, %v1889
    %v1941 = vsel %vm28, %v1766, %v1891
    %v1942 = vpack.c.bf16 %v1918, %v1917
    %v1943 = vpack.c.bf16 %v1793, %v1792
    %v1944 = vpack.c.bf16 %v1920, %v1919
    %v1945 = vpack.c.bf16 %v1795, %v1794
    %v1946 = vpack.c.bf16 %v1922, %v1921
    %v1947 = vpack.c.bf16 %v1797, %v1796
    %v1948 = vpack.c.bf16 %v1924, %v1923
    %v1949 = vpack.c.bf16 %v1799, %v1798
    %v1950 = vpack.c.bf16 %v1926, %v1925
    %v1951 = vpack.c.bf16 %v1801, %v1800
    %v1952 = vpack.c.bf16 %v1928, %v1927
    %v1953 = vpack.c.bf16 %v1803, %v1802
    %v1954 = vpack.c.bf16 %v1930, %v1929
    %v1955 = vpack.c.bf16 %v1805, %v1804
    %v1956 = vpack.c.bf16 %v1932, %v1931
    %v1957 = vpack.c.bf16 %v1807, %v1806
    %v1958 = vpack.c.bf16 %v1934, %v1933
    %v1959 = vpack.c.bf16 %v1809, %v1808
    %v1960 = vpack.c.bf16 %v1936, %v1935
    %v1961 = vpack.c.bf16 %v1811, %v1810
    %v1962 = vpack.c.bf16 %v1938, %v1937
    %v1963 = vpack.c.bf16 %v1813, %v1812
    %v1964 = vpack.c.bf16 %v1940, %v1939
    %v1965 = vpack.c.bf16 %v1815, %v1814
    %v1966 = vpack.c.bf16 %v1941, %v1941
    %v1967 = vpack.c.bf16 %v1816, %v1816
    %v1968 = vld [vmem:[%s2] sm:$0xf]
    %v1969 = vld [vmem:[%s2 + $0x4] sm:$0xf]
    %v1970 = vld [vmem:[%s2 + $0x8] sm:$0xf]
    %v1971 = vld [vmem:[%s2 + $0xc] sm:$0xf]
    %v1972 = vld [vmem:[%s2 + $0x10] sm:$0xf]
    %v1973 = vld [vmem:[%s2 + $0x14] sm:$0xf]
    %v1974 = vld [vmem:[%s2 + $0x18] sm:$0xf]
    %v1975 = vld [vmem:[%s2 + $0x1c] sm:$0xf]
    %v1976 = vld [vmem:[%s2 + $0x20] sm:$0xf]
    %v1977 = vld [vmem:[%s2 + $0x24] sm:$0xf]
    %v1978 = vld [vmem:[%s2 + $0x28] sm:$0xf]
    %v1979 = vld [vmem:[%s2 + $0x2c] sm:$0xf]
    %v1980 = vld [vmem:[%s2 + $0x30] sm:$0xf]
    %v1981 = vld [vmem:[%s2 + $0x34] sm:$0xf]
    %v1982 = vld [vmem:[%s2 + $0x38] sm:$0xf]
    %v1983 = vld [vmem:[%s2 + $0x3c] sm:$0xf]
    %v1984 = vld [vmem:[%s2 + $0x40] sm:$0xf]
    %v1985 = vld [vmem:[%s2 + $0x44] sm:$0xf]
    %v1986 = vld [vmem:[%s2 + $0x48] sm:$0xf]
    %v1987 = vld [vmem:[%s2 + $0x4c] sm:$0xf]
    %v1988 = vld [vmem:[%s2 + $0x50] sm:$0xf]
    %v1989 = vld [vmem:[%s2 + $0x54] sm:$0xf]
    %v1990 = vld [vmem:[%s2 + $0x58] sm:$0xf]
    %v1991 = vld [vmem:[%s2 + $0x5c] sm:$0xf]
    %v1992 = vld [vmem:[#allocation2 + $0x1] sm:$0xff]
    %v1993 = vld [vmem:[#allocation2 + $0x9] sm:$0xff]
    %v1994 = vld [vmem:[#allocation2 + $0x11] sm:$0xff]
    %v1995 = vld [vmem:[#allocation2 + $0x19] sm:$0xff]
    %v1996 = vld [vmem:[#allocation2 + $0x21] sm:$0xff]
    %v1997 = vld [vmem:[#allocation2 + $0x29] sm:$0xff]
    %v1998 = vld [vmem:[#allocation2 + $0x31] sm:$0xff]
    %v1999 = vld [vmem:[#allocation2 + $0x39] sm:$0xff]
    %v2000 = vld [vmem:[#allocation2 + $0x41] sm:$0xff]
    %v2001 = vld [vmem:[#allocation2 + $0x49] sm:$0xff]
    %v2002 = vld [vmem:[#allocation2 + $0x51] sm:$0xff]
    %v2003 = vld [vmem:[#allocation2 + $0x59] sm:$0xff]
    %v2004 = vld [vmem:[#allocation2 + $0x61] sm:$0xff]
    %v2005 = vld [vmem:[#allocation2 + $0x69] sm:$0xff]
    %v2006 = vld [vmem:[#allocation2 + $0x71] sm:$0xff]
    %v2007 = vld [vmem:[#allocation2 + $0x79] sm:$0xff]
    %v2008 = vld [vmem:[#allocation2 + $0x81] sm:$0xff]
    %v2009 = vld [vmem:[#allocation2 + $0x89] sm:$0xff]
    %v2010 = vld [vmem:[#allocation2 + $0x91] sm:$0xff]
    %v2011 = vld [vmem:[#allocation2 + $0x99] sm:$0xff]
    %v2012 = vld [vmem:[#allocation2 + $0xa1] sm:$0xff]
    %v2013 = vld [vmem:[#allocation2 + $0xa9] sm:$0xff]
    %v2014 = vld [vmem:[#allocation2 + $0xb1] sm:$0xff]
    %v2015 = vld [vmem:[#allocation2 + $0xb9] sm:$0xff]
    %v2016 = vld [vmem:[#allocation2 + $0xc1] sm:$0xff]
    %v2017 = vld [vmem:[#allocation2 + $0xb] sm:$0xff]
    %v2018 = vld [vmem:[#allocation2 + $0x13] sm:$0xff]
    %v2019 = vld [vmem:[#allocation2 + $0x1b] sm:$0xff]
    %v2020 = vld [vmem:[#allocation2 + $0x23] sm:$0xff]
    %v2021 = vld [vmem:[#allocation2 + $0x2b] sm:$0xff]
    %v2022 = vld [vmem:[#allocation2 + $0x33] sm:$0xff]
    %v2023 = vld [vmem:[#allocation2 + $0x3b] sm:$0xff]
    %v2024 = vld [vmem:[#allocation2 + $0x43] sm:$0xff]
    %v2025 = vld [vmem:[#allocation2 + $0x4b] sm:$0xff]
    %v2026 = vld [vmem:[#allocation2 + $0x53] sm:$0xff]
    %v2027 = vld [vmem:[#allocation2 + $0x5b] sm:$0xff]
    %v2028 = vld [vmem:[#allocation2 + $0x63] sm:$0xff]
    %v2029 = vld [vmem:[#allocation2 + $0x6b] sm:$0xff]
    %v2030 = vld [vmem:[#allocation2 + $0x73] sm:$0xff]
    %v2031 = vld [vmem:[#allocation2 + $0x7b] sm:$0xff]
    %v2032 = vld [vmem:[#allocation2 + $0x83] sm:$0xff]
    %v2033 = vld [vmem:[#allocation2 + $0x8b] sm:$0xff]
    %v2034 = vld [vmem:[#allocation2 + $0x93] sm:$0xff]
    %v2035 = vld [vmem:[#allocation2 + $0x9b] sm:$0xff]
    %v2036 = vld [vmem:[#allocation2 + $0xa3] sm:$0xff]
    %v2037 = vld [vmem:[#allocation2 + $0xab] sm:$0xff]
    %v2038 = vld [vmem:[#allocation2 + $0xb3] sm:$0xff]
    %v2039 = vld [vmem:[#allocation2 + $0xbb] sm:$0xff]
    %v2040 = vld [vmem:[#allocation2 + $0xc3] sm:$0xff]
    %v2041 = vld [vmem:[#allocation2 + $0xcb] sm:$0xff]
    %v2042 = vld [vmem:[#allocation2 + $0x15] sm:$0xff]
    %v2043 = vld [vmem:[#allocation2 + $0x1d] sm:$0xff]
    %v2044 = vld [vmem:[#allocation2 + $0x25] sm:$0xff]
    %v2045 = vld [vmem:[#allocation2 + $0x2d] sm:$0xff]
    %v2046 = vld [vmem:[#allocation2 + $0x35] sm:$0xff]
    %v2047 = vld [vmem:[#allocation2 + $0x3d] sm:$0xff]
    %v2048 = vld [vmem:[#allocation2 + $0x45] sm:$0xff]
    %v2049 = vld [vmem:[#allocation2 + $0x4d] sm:$0xff]
    %v2050 = vld [vmem:[#allocation2 + $0x55] sm:$0xff]
    %v2051 = vld [vmem:[#allocation2 + $0x5d] sm:$0xff]
    %v2052 = vld [vmem:[#allocation2 + $0x65] sm:$0xff]
    %v2053 = vld [vmem:[#allocation2 + $0x6d] sm:$0xff]
    %v2054 = vld [vmem:[#allocation2 + $0x75] sm:$0xff]
    %v2055 = vld [vmem:[#allocation2 + $0x7d] sm:$0xff]
    %v2056 = vld [vmem:[#allocation2 + $0x85] sm:$0xff]
    %v2057 = vld [vmem:[#allocation2 + $0x8d] sm:$0xff]
    %v2058 = vld [vmem:[#allocation2 + $0x95] sm:$0xff]
    %v2059 = vld [vmem:[#allocation2 + $0x9d] sm:$0xff]
    %v2060 = vld [vmem:[#allocation2 + $0xa5] sm:$0xff]
    %v2061 = vld [vmem:[#allocation2 + $0xad] sm:$0xff]
    %v2062 = vld [vmem:[#allocation2 + $0xb5] sm:$0xff]
    %v2063 = vld [vmem:[#allocation2 + $0xbd] sm:$0xff]
    %v2064 = vld [vmem:[#allocation2 + $0xc5] sm:$0xff]
    %v2065 = vld [vmem:[#allocation2 + $0xcd] sm:$0xff]
    %v2066 = vld [vmem:[#allocation2 + $0xd5] sm:$0xff]
    %2092 = vrot.lane.b32.xlu0 %v2017, 64
    %v2093 = vpop.permute.xlu0 %2092
    %2094 = vrot.lane.b32.xlu0 %v2018, 64
    %v2095 = vpop.permute.xlu0 %2094
    %2096 = vrot.lane.b32.xlu0 %v2019, 64
    %v2097 = vpop.permute.xlu0 %2096
    %2098 = vrot.lane.b32.xlu0 %v2020, 64
    %v2099 = vpop.permute.xlu0 %2098
    %2100 = vrot.lane.b32.xlu0 %v2021, 64
    %v2101 = vpop.permute.xlu0 %2100
    %2102 = vrot.lane.b32.xlu0 %v2022, 64
    %v2103 = vpop.permute.xlu0 %2102
    %2104 = vrot.lane.b32.xlu0 %v2023, 64
    %v2105 = vpop.permute.xlu0 %2104
    %2106 = vrot.lane.b32.xlu0 %v2024, 64
    %v2107 = vpop.permute.xlu0 %2106
    %2108 = vrot.lane.b32.xlu0 %v2025, 64
    %v2109 = vpop.permute.xlu0 %2108
    %2110 = vrot.lane.b32.xlu0 %v2026, 64
    %v2111 = vpop.permute.xlu0 %2110
    %2112 = vrot.lane.b32.xlu0 %v2027, 64
    %v2113 = vpop.permute.xlu0 %2112
    %2114 = vrot.lane.b32.xlu0 %v2028, 64
    %v2115 = vpop.permute.xlu0 %2114
    %2116 = vrot.lane.b32.xlu0 %v2029, 64
    %v2117 = vpop.permute.xlu0 %2116
    %2118 = vrot.lane.b32.xlu0 %v2030, 64
    %v2119 = vpop.permute.xlu0 %2118
    %2120 = vrot.lane.b32.xlu0 %v2031, 64
    %v2121 = vpop.permute.xlu0 %2120
    %2122 = vrot.lane.b32.xlu0 %v2032, 64
    %v2123 = vpop.permute.xlu0 %2122
    %2124 = vrot.lane.b32.xlu0 %v2033, 64
    %v2125 = vpop.permute.xlu0 %2124
    %2126 = vrot.lane.b32.xlu0 %v2034, 64
    %v2127 = vpop.permute.xlu0 %2126
    %2128 = vrot.lane.b32.xlu0 %v2035, 64
    %v2129 = vpop.permute.xlu0 %2128
    %2130 = vrot.lane.b32.xlu0 %v2036, 64
    %v2131 = vpop.permute.xlu0 %2130
    %2132 = vrot.lane.b32.xlu0 %v2037, 64
    %v2133 = vpop.permute.xlu0 %2132
    %2134 = vrot.lane.b32.xlu0 %v2038, 64
    %v2135 = vpop.permute.xlu0 %2134
    %2136 = vrot.lane.b32.xlu0 %v2039, 64
    %v2137 = vpop.permute.xlu0 %2136
    %2138 = vrot.lane.b32.xlu0 %v2040, 64
    %v2139 = vpop.permute.xlu0 %2138
    %2140 = vrot.lane.b32.xlu0 %v2041, 64
    %v2141 = vpop.permute.xlu0 %2140
    %v2167 = vsel %vm28, %v1992, %v2093
    %v2168 = vsel %vm28, %v1993, %v2095
    %v2169 = vsel %vm28, %v1994, %v2097
    %v2170 = vsel %vm28, %v1995, %v2099
    %v2171 = vsel %vm28, %v1996, %v2101
    %v2172 = vsel %vm28, %v1997, %v2103
    %v2173 = vsel %vm28, %v1998, %v2105
    %v2174 = vsel %vm28, %v1999, %v2107
    %v2175 = vsel %vm28, %v2000, %v2109
    %v2176 = vsel %vm28, %v2001, %v2111
    %v2177 = vsel %vm28, %v2002, %v2113
    %v2178 = vsel %vm28, %v2003, %v2115
    %v2179 = vsel %vm28, %v2004, %v2117
    %v2180 = vsel %vm28, %v2005, %v2119
    %v2181 = vsel %vm28, %v2006, %v2121
    %v2182 = vsel %vm28, %v2007, %v2123
    %v2183 = vsel %vm28, %v2008, %v2125
    %v2184 = vsel %vm28, %v2009, %v2127
    %v2185 = vsel %vm28, %v2010, %v2129
    %v2186 = vsel %vm28, %v2011, %v2131
    %v2187 = vsel %vm28, %v2012, %v2133
    %v2188 = vsel %vm28, %v2013, %v2135
    %v2189 = vsel %vm28, %v2014, %v2137
    %v2190 = vsel %vm28, %v2015, %v2139
    %v2191 = vsel %vm28, %v2016, %v2141
    %v2192 = vpack.c.bf16 %v2168, %v2167
    %v2193 = vpack.c.bf16 %v2043, %v2042
    %v2194 = vpack.c.bf16 %v2170, %v2169
    %v2195 = vpack.c.bf16 %v2045, %v2044
    %v2196 = vpack.c.bf16 %v2172, %v2171
    %v2197 = vpack.c.bf16 %v2047, %v2046
    %v2198 = vpack.c.bf16 %v2174, %v2173
    %v2199 = vpack.c.bf16 %v2049, %v2048
    %v2200 = vpack.c.bf16 %v2176, %v2175
    %v2201 = vpack.c.bf16 %v2051, %v2050
    %v2202 = vpack.c.bf16 %v2178, %v2177
    %v2203 = vpack.c.bf16 %v2053, %v2052
    %v2204 = vpack.c.bf16 %v2180, %v2179
    %v2205 = vpack.c.bf16 %v2055, %v2054
    %v2206 = vpack.c.bf16 %v2182, %v2181
    %v2207 = vpack.c.bf16 %v2057, %v2056
    %v2208 = vpack.c.bf16 %v2184, %v2183
    %v2209 = vpack.c.bf16 %v2059, %v2058
    %v2210 = vpack.c.bf16 %v2186, %v2185
    %v2211 = vpack.c.bf16 %v2061, %v2060
    %v2212 = vpack.c.bf16 %v2188, %v2187
    %v2213 = vpack.c.bf16 %v2063, %v2062
    %v2214 = vpack.c.bf16 %v2190, %v2189
    %v2215 = vpack.c.bf16 %v2065, %v2064
    %v2216 = vpack.c.bf16 %v2191, %v2191
    %v2217 = vpack.c.bf16 %v2066, %v2066
    %s2218 = scalar_lea.vmem %s2, 96
    %v2219 = vld [vmem:[%s2218] sm:$0xf]
    %v2220 = vld [vmem:[%s2218 + $0x4] sm:$0xf]
    %v2221 = vld [vmem:[%s2218 + $0x8] sm:$0xf]
    %v2222 = vld [vmem:[%s2218 + $0xc] sm:$0xf]
    %v2223 = vld [vmem:[%s2218 + $0x10] sm:$0xf]
    %v2224 = vld [vmem:[%s2218 + $0x14] sm:$0xf]
    %v2225 = vld [vmem:[%s2218 + $0x18] sm:$0xf]
    %v2226 = vld [vmem:[%s2218 + $0x1c] sm:$0xf]
    %v2227 = vld [vmem:[%s2218 + $0x20] sm:$0xf]
    %v2228 = vld [vmem:[%s2218 + $0x24] sm:$0xf]
    %v2229 = vld [vmem:[%s2218 + $0x28] sm:$0xf]
    %v2230 = vld [vmem:[%s2218 + $0x2c] sm:$0xf]
    %v2231 = vld [vmem:[%s2218 + $0x30] sm:$0xf]
    %v2232 = vld [vmem:[%s2218 + $0x34] sm:$0xf]
    %v2233 = vld [vmem:[%s2218 + $0x38] sm:$0xf]
    %v2234 = vld [vmem:[%s2218 + $0x3c] sm:$0xf]
    %v2235 = vld [vmem:[%s2218 + $0x40] sm:$0xf]
    %v2236 = vld [vmem:[%s2218 + $0x44] sm:$0xf]
    %v2237 = vld [vmem:[%s2218 + $0x48] sm:$0xf]
    %v2238 = vld [vmem:[%s2218 + $0x4c] sm:$0xf]
    %v2239 = vld [vmem:[%s2218 + $0x50] sm:$0xf]
    %v2240 = vld [vmem:[%s2218 + $0x54] sm:$0xf]
    %v2241 = vld [vmem:[%s2218 + $0x58] sm:$0xf]
    %v2242 = vld [vmem:[%s2218 + $0x5c] sm:$0xf]
    %v2267 = vunpack.c.l.b16 %v2219
    %v2268 = vunpack.c.l.b16 %v2220
    %v2269 = vunpack.c.l.b16 %v2221
    %v2270 = vunpack.c.l.b16 %v2222
    %v2271 = vunpack.c.l.b16 %v2223
    %v2272 = vunpack.c.l.b16 %v2224
    %v2273 = vunpack.c.l.b16 %v2225
    %v2274 = vunpack.c.l.b16 %v2226
    %v2275 = vunpack.c.l.b16 %v2227
    %v2276 = vunpack.c.l.b16 %v2228
    %v2277 = vunpack.c.l.b16 %v2229
    %v2278 = vunpack.c.l.b16 %v2230
    %v2279 = vunpack.c.l.b16 %v2231
    %v2280 = vunpack.c.l.b16 %v2232
    %v2281 = vunpack.c.l.b16 %v2233
    %v2282 = vunpack.c.l.b16 %v2234
    %v2283 = vunpack.c.l.b16 %v2235
    %v2284 = vunpack.c.l.b16 %v2236
    %v2285 = vunpack.c.l.b16 %v2237
    %v2286 = vunpack.c.l.b16 %v2238
    %v2287 = vunpack.c.l.b16 %v2239
    %v2288 = vunpack.c.l.b16 %v2240
    %v2289 = vunpack.c.l.b16 %v2241
    %v2290 = vunpack.c.l.b16 %v2242
    %v2291 = vpack.c.b16 %v2268, %v2267
    %v2292 = vpack.c.b16 %v2270, %v2269
    %v2293 = vpack.c.b16 %v2272, %v2271
    %v2294 = vpack.c.b16 %v2274, %v2273
    %v2295 = vpack.c.b16 %v2276, %v2275
    %v2296 = vpack.c.b16 %v2278, %v2277
    %v2297 = vpack.c.b16 %v2280, %v2279
    %v2298 = vpack.c.b16 %v2282, %v2281
    %v2299 = vpack.c.b16 %v2284, %v2283
    %v2300 = vpack.c.b16 %v2286, %v2285
    %v2301 = vpack.c.b16 %v2288, %v2287
    %v2302 = vpack.c.b16 %v2290, %v2289
    %v2316 = vsel %vm28, %v2193, 0
    %v2319 = vsel %vm28, %v2195, 0
    %v2322 = vsel %vm28, %v2197, 0
    %v2325 = vsel %vm28, %v2199, 0
    %v2328 = vsel %vm28, %v2201, 0
    %v2331 = vsel %vm28, %v2203, 0
    %v2334 = vsel %vm28, %v2205, 0
    %v2337 = vsel %vm28, %v2207, 0
    %v2340 = vsel %vm28, %v2209, 0
    %v2343 = vsel %vm28, %v2211, 0
    %v2346 = vsel %vm28, %v2213, 0
    %v2349 = vsel %vm28, %v2215, 0
    %v2352 = vsel %vm28, %v2217, 0
    %2354 = vmatprep.subr.bf16.mxu0 0
    %2355 = vmatpush1.bf16.msra.mxu0 %v2291
    %2356 = vmatprep.subr.bf16.mxu0 0
    %2357 = vmatpush1.bf16.msra.mxu0 %v2292
    %2358 = vmatprep.subr.bf16.mxu0 0
    %2359 = vmatpush1.bf16.msra.mxu0 %v2293
    %2360 = vmatprep.subr.bf16.mxu0 0
    %2361 = vmatpush1.bf16.msra.mxu0 %v2294
    %2362 = vmatprep.subr.bf16.mxu0 0
    %2363 = vmatpush1.bf16.msra.mxu0 %v2295
    %2364 = vmatprep.subr.bf16.mxu0 0
    %2365 = vmatpush1.bf16.msra.mxu0 %v2296
    %2366 = vmatprep.subr.bf16.mxu0 0
    %2367 = vmatpush1.bf16.msra.mxu0 %v2297
    %2368 = vmatprep.subr.bf16.mxu0 0
    %2369 = vmatpush1.bf16.msra.mxu0 %v2298
    %2370 = vmatprep.subr.bf16.mxu0 0
    %2371 = vmatpush1.bf16.msra.mxu0 %v2299
    %2372 = vmatprep.subr.bf16.mxu0 0
    %2373 = vmatpush1.bf16.msra.mxu0 %v2300
    %2374 = vmatprep.subr.bf16.mxu0 0
    %2375 = vmatpush1.bf16.msra.mxu0 %v2301
    %2376 = vmatprep.subr.bf16.mxu0 0
    %2377 = vmatpush1.bf16.msra.mxu0 %v2302
    %2378 = vmatprep.subr.bf16.mxu0 0
    %2379 = vmatpush1.bf16.msra.mxu0 0
    %2380 = vmatprep.subr.bf16.mxu0 0
    %2381 = vmatpush1.bf16.msra.mxu0 0
    %2382 = vmatprep.subr.bf16.mxu0 0
    %2383 = vmatpush1.bf16.msra.mxu0 0
    %2384 = vmatprep.subr.bf16.mxu0 0
    %2385 = vmatpush1.bf16.msra.mxu0 0
    %2386 = vmatprep.mubr.bf16.mxu0 %v2316
    %2387 = vmatmul.mubr.bf16.gmra.mrb[0].mxu0 %v2192
    %v2388 = vpop.f32.mrb[0].mxu0
    %v2389 = vadd.f32 0.0, %v2388
    %v2390 = vpop.f32.mrb[0].mxu0
    %v2391 = vpop.f32.mrb[0].mxu0
    %v2392 = vadd.f32 0.0, %v2391
    %v2393 = vpop.f32.mrb[0].mxu0
    %2394 = vmatprep.mubr.bf16.mxu0 %v2319
    %2395 = vmatmul.mubr.bf16.gmra.mrb[0].mxu0 %v2194
    %v2396 = vpop.f32.mrb[0].mxu0
    %v2397 = vadd.f32 0.0, %v2396
    %v2398 = vpop.f32.mrb[0].mxu0
    %v2399 = vpop.f32.mrb[0].mxu0
    %v2400 = vadd.f32 0.0, %v2399
    %v2401 = vpop.f32.mrb[0].mxu0
    %2402 = vmatprep.mubr.bf16.mxu0 %v2322
    %2403 = vmatmul.mubr.bf16.gmra.mrb[0].mxu0 %v2196
    %v2404 = vpop.f32.mrb[0].mxu0
    %v2405 = vadd.f32 0.0, %v2404
    %v2406 = vpop.f32.mrb[0].mxu0
    %v2407 = vpop.f32.mrb[0].mxu0
    %v2408 = vadd.f32 0.0, %v2407
    %v2409 = vpop.f32.mrb[0].mxu0
    %2410 = vmatprep.mubr.bf16.mxu0 %v2325
    %2411 = vmatmul.mubr.bf16.gmra.mrb[0].mxu0 %v2198
    %v2412 = vpop.f32.mrb[0].mxu0
    %v2413 = vadd.f32 0.0, %v2412
    %v2414 = vpop.f32.mrb[0].mxu0
    %v2415 = vpop.f32.mrb[0].mxu0
    %v2416 = vadd.f32 0.0, %v2415
    %v2417 = vpop.f32.mrb[0].mxu0
    %2418 = vmatprep.mubr.bf16.mxu0 %v2328
    %2419 = vmatmul.mubr.bf16.gmra.mrb[0].mxu0 %v2200
    %v2420 = vpop.f32.mrb[0].mxu0
    %v2421 = vadd.f32 0.0, %v2420
    %v2422 = vpop.f32.mrb[0].mxu0
    %v2423 = vpop.f32.mrb[0].mxu0
    %v2424 = vadd.f32 0.0, %v2423
    %v2425 = vpop.f32.mrb[0].mxu0
    %2426 = vmatprep.mubr.bf16.mxu0 %v2331
    %2427 = vmatmul.mubr.bf16.gmra.mrb[0].mxu0 %v2202
    %v2428 = vpop.f32.mrb[0].mxu0
    %v2429 = vadd.f32 0.0, %v2428
    %v2430 = vpop.f32.mrb[0].mxu0
    %v2431 = vpop.f32.mrb[0].mxu0
    %v2432 = vadd.f32 0.0, %v2431
    %v2433 = vpop.f32.mrb[0].mxu0
    %2434 = vmatprep.mubr.bf16.mxu0 %v2334
    %2435 = vmatmul.mubr.bf16.gmra.mrb[0].mxu0 %v2204
    %v2436 = vpop.f32.mrb[0].mxu0
    %v2437 = vadd.f32 0.0, %v2436
    %v2438 = vpop.f32.mrb[0].mxu0
    %v2439 = vpop.f32.mrb[0].mxu0
    %v2440 = vadd.f32 0.0, %v2439
    %v2441 = vpop.f32.mrb[0].mxu0
    %2442 = vmatprep.mubr.bf16.mxu0 %v2337
    %2443 = vmatmul.mubr.bf16.gmra.mrb[0].mxu0 %v2206
    %v2444 = vpop.f32.mrb[0].mxu0
    %v2445 = vadd.f32 0.0, %v2444
    %v2446 = vpop.f32.mrb[0].mxu0
    %v2447 = vpop.f32.mrb[0].mxu0
    %v2448 = vadd.f32 0.0, %v2447
    %v2449 = vpop.f32.mrb[0].mxu0
    %2450 = vmatprep.mubr.bf16.mxu0 %v2340
    %2451 = vmatmul.mubr.bf16.gmra.mrb[0].mxu0 %v2208
    %v2452 = vpop.f32.mrb[0].mxu0
    %v2453 = vadd.f32 0.0, %v2452
    %v2454 = vpop.f32.mrb[0].mxu0
    %v2455 = vpop.f32.mrb[0].mxu0
    %v2456 = vadd.f32 0.0, %v2455
    %v2457 = vpop.f32.mrb[0].mxu0
    %2458 = vmatprep.mubr.bf16.mxu0 %v2343
    %2459 = vmatmul.mubr.bf16.gmra.mrb[0].mxu0 %v2210
    %v2460 = vpop.f32.mrb[0].mxu0
    %v2461 = vadd.f32 0.0, %v2460
    %v2462 = vpop.f32.mrb[0].mxu0
    %v2463 = vpop.f32.mrb[0].mxu0
    %v2464 = vadd.f32 0.0, %v2463
    %v2465 = vpop.f32.mrb[0].mxu0
    %2466 = vmatprep.mubr.bf16.mxu0 %v2346
    %2467 = vmatmul.mubr.bf16.gmra.mrb[0].mxu0 %v2212
    %v2468 = vpop.f32.mrb[0].mxu0
    %v2469 = vadd.f32 0.0, %v2468
    %v2470 = vpop.f32.mrb[0].mxu0
    %v2471 = vpop.f32.mrb[0].mxu0
    %v2472 = vadd.f32 0.0, %v2471
    %v2473 = vpop.f32.mrb[0].mxu0
    %2474 = vmatprep.mubr.bf16.mxu0 %v2349
    %2475 = vmatmul.mubr.bf16.gmra.mrb[0].mxu0 %v2214
    %v2476 = vpop.f32.mrb[0].mxu0
    %v2477 = vadd.f32 0.0, %v2476
    %v2478 = vpop.f32.mrb[0].mxu0
    %v2479 = vpop.f32.mrb[0].mxu0
    %v2480 = vadd.f32 0.0, %v2479
    %v2481 = vpop.f32.mrb[0].mxu0
    %2482 = vmatprep.mubr.bf16.mxu0 %v2352
    %2483 = vmatmul.mubr.bf16.gmra.mrb[0].mxu0 %v2216
    %v2484 = vpop.f32.mrb[0].mxu0
    %v2485 = vadd.f32 0.0, %v2484
    %v2486 = vpop.f32.mrb[0].mxu0
    %v2487 = vpop.f32.mrb[0].mxu0
    %v2488 = vpop.f32.mrb[0].mxu0
    %2489 = vdwg.mxu0
    %v2514 = vunpack.c.l.b16 %v1968
    %v2515 = vunpack.c.l.b16 %v1969
    %v2516 = vunpack.c.l.b16 %v1970
    %v2517 = vunpack.c.l.b16 %v1971
    %v2518 = vunpack.c.l.b16 %v1972
    %v2519 = vunpack.c.l.b16 %v1973
    %v2520 = vunpack.c.l.b16 %v1974
    %v2521 = vunpack.c.l.b16 %v1975
    %v2522 = vunpack.c.l.b16 %v1976
    %v2523 = vunpack.c.l.b16 %v1977
    %v2524 = vunpack.c.l.b16 %v1978
    %v2525 = vunpack.c.l.b16 %v1979
    %v2526 = vunpack.c.l.b16 %v1980
    %v2527 = vunpack.c.l.b16 %v1981
    %v2528 = vunpack.c.l.b16 %v1982
    %v2529 = vunpack.c.l.b16 %v1983
    %v2530 = vunpack.c.l.b16 %v1984
    %v2531 = vunpack.c.l.b16 %v1985
    %v2532 = vunpack.c.l.b16 %v1986
    %v2533 = vunpack.c.l.b16 %v1987
    %v2534 = vunpack.c.l.b16 %v1988
    %v2535 = vunpack.c.l.b16 %v1989
    %v2536 = vunpack.c.l.b16 %v1990
    %v2537 = vunpack.c.l.b16 %v1991
    %v2538 = vpack.c.b16 %v2515, %v2514
    %v2539 = vpack.c.b16 %v2517, %v2516
    %v2540 = vpack.c.b16 %v2519, %v2518
    %v2541 = vpack.c.b16 %v2521, %v2520
    %v2542 = vpack.c.b16 %v2523, %v2522
    %v2543 = vpack.c.b16 %v2525, %v2524
    %v2544 = vpack.c.b16 %v2527, %v2526
    %v2545 = vpack.c.b16 %v2529, %v2528
    %v2546 = vpack.c.b16 %v2531, %v2530
    %v2547 = vpack.c.b16 %v2533, %v2532
    %v2548 = vpack.c.b16 %v2535, %v2534
    %v2549 = vpack.c.b16 %v2537, %v2536
    %v2563 = vsel %vm28, %v1943, 0
    %v2566 = vsel %vm28, %v1945, 0
    %v2569 = vsel %vm28, %v1947, 0
    %v2572 = vsel %vm28, %v1949, 0
    %v2575 = vsel %vm28, %v1951, 0
    %v2578 = vsel %vm28, %v1953, 0
    %v2581 = vsel %vm28, %v1955, 0
    %v2584 = vsel %vm28, %v1957, 0
    %v2587 = vsel %vm28, %v1959, 0
    %v2590 = vsel %vm28, %v1961, 0
    %v2593 = vsel %vm28, %v1963, 0
    %v2596 = vsel %vm28, %v1965, 0
    %v2599 = vsel %vm28, %v1967, 0
    %2601 = vmatprep.subr.bf16.mxu0 0
    %2602 = vmatpush1.bf16.msra.mxu0 %v2538
    %2603 = vmatprep.subr.bf16.mxu0 0
    %2604 = vmatpush1.bf16.msra.mxu0 %v2539
    %2605 = vmatprep.subr.bf16.mxu0 0
    %2606 = vmatpush1.bf16.msra.mxu0 %v2540
    %2607 = vmatprep.subr.bf16.mxu0 0
    %2608 = vmatpush1.bf16.msra.mxu0 %v2541
    %2609 = vmatprep.subr.bf16.mxu0 0
    %2610 = vmatpush1.bf16.msra.mxu0 %v2542
    %2611 = vmatprep.subr.bf16.mxu0 0
    %2612 = vmatpush1.bf16.msra.mxu0 %v2543
    %2613 = vmatprep.subr.bf16.mxu0 0
    %2614 = vmatpush1.bf16.msra.mxu0 %v2544
    %2615 = vmatprep.subr.bf16.mxu0 0
    %2616 = vmatpush1.bf16.msra.mxu0 %v2545
    %2617 = vmatprep.subr.bf16.mxu0 0
    %2618 = vmatpush1.bf16.msra.mxu0 %v2546
    %2619 = vmatprep.subr.bf16.mxu0 0
    %2620 = vmatpush1.bf16.msra.mxu0 %v2547
    %2621 = vmatprep.subr.bf16.mxu0 0
    %2622 = vmatpush1.bf16.msra.mxu0 %v2548
    %2623 = vmatprep.subr.bf16.mxu0 0
    %2624 = vmatpush1.bf16.msra.mxu0 %v2549
    %2625 = vmatprep.subr.bf16.mxu0 0
    %2626 = vmatpush1.bf16.msra.mxu0 0
    %2627 = vmatprep.subr.bf16.mxu0 0
    %2628 = vmatpush1.bf16.msra.mxu0 0
    %2629 = vmatprep.subr.bf16.mxu0 0
    %2630 = vmatpush1.bf16.msra.mxu0 0
    %2631 = vmatprep.subr.bf16.mxu0 0
    %2632 = vmatpush1.bf16.msra.mxu0 0
    %2633 = vmatprep.mubr.bf16.mxu0 %v2563
    %2634 = vmatmul.mubr.bf16.gmra.mrb[0].mxu0 %v1942
    %v2635 = vpop.f32.mrb[0].mxu0
    %v2636 = vadd.f32 %v2389, %v2635
    %v2637 = vpop.f32.mrb[0].mxu0
    %v2638 = vpop.f32.mrb[0].mxu0
    %v2639 = vadd.f32 %v2392, %v2638
    %v2640 = vpop.f32.mrb[0].mxu0
    %2641 = vmatprep.mubr.bf16.mxu0 %v2566
    %2642 = vmatmul.mubr.bf16.gmra.mrb[0].mxu0 %v1944
    %v2643 = vpop.f32.mrb[0].mxu0
    %v2644 = vadd.f32 %v2397, %v2643
    %v2645 = vpop.f32.mrb[0].mxu0
    %v2646 = vpop.f32.mrb[0].mxu0
    %v2647 = vadd.f32 %v2400, %v2646
    %v2648 = vpop.f32.mrb[0].mxu0
    %2649 = vmatprep.mubr.bf16.mxu0 %v2569
    %2650 = vmatmul.mubr.bf16.gmra.mrb[0].mxu0 %v1946
    %v2651 = vpop.f32.mrb[0].mxu0
    %v2652 = vadd.f32 %v2405, %v2651
    %v2653 = vpop.f32.mrb[0].mxu0
    %v2654 = vpop.f32.mrb[0].mxu0
    %v2655 = vadd.f32 %v2408, %v2654
    %v2656 = vpop.f32.mrb[0].mxu0
    %2657 = vmatprep.mubr.bf16.mxu0 %v2572
    %2658 = vmatmul.mubr.bf16.gmra.mrb[0].mxu0 %v1948
    %v2659 = vpop.f32.mrb[0].mxu0
    %v2660 = vadd.f32 %v2413, %v2659
    %v2661 = vpop.f32.mrb[0].mxu0
    %v2662 = vpop.f32.mrb[0].mxu0
    %v2663 = vadd.f32 %v2416, %v2662
    %v2664 = vpop.f32.mrb[0].mxu0
    %2665 = vmatprep.mubr.bf16.mxu0 %v2575
    %2666 = vmatmul.mubr.bf16.gmra.mrb[0].mxu0 %v1950
    %v2667 = vpop.f32.mrb[0].mxu0
    %v2668 = vadd.f32 %v2421, %v2667
    %v2669 = vpop.f32.mrb[0].mxu0
    %v2670 = vpop.f32.mrb[0].mxu0
    %v2671 = vadd.f32 %v2424, %v2670
    %v2672 = vpop.f32.mrb[0].mxu0
    %2673 = vmatprep.mubr.bf16.mxu0 %v2578
    %2674 = vmatmul.mubr.bf16.gmra.mrb[0].mxu0 %v1952
    %v2675 = vpop.f32.mrb[0].mxu0
    %v2676 = vadd.f32 %v2429, %v2675
    %v2677 = vpop.f32.mrb[0].mxu0
    %v2678 = vpop.f32.mrb[0].mxu0
    %v2679 = vadd.f32 %v2432, %v2678
    %v2680 = vpop.f32.mrb[0].mxu0
    %2681 = vmatprep.mubr.bf16.mxu0 %v2581
    %2682 = vmatmul.mubr.bf16.gmra.mrb[0].mxu0 %v1954
    %v2683 = vpop.f32.mrb[0].mxu0
    %v2684 = vadd.f32 %v2437, %v2683
    %v2685 = vpop.f32.mrb[0].mxu0
    %v2686 = vpop.f32.mrb[0].mxu0
    %v2687 = vadd.f32 %v2440, %v2686
    %v2688 = vpop.f32.mrb[0].mxu0
    %2689 = vmatprep.mubr.bf16.mxu0 %v2584
    %2690 = vmatmul.mubr.bf16.gmra.mrb[0].mxu0 %v1956
    %v2691 = vpop.f32.mrb[0].mxu0
    %v2692 = vadd.f32 %v2445, %v2691
    %v2693 = vpop.f32.mrb[0].mxu0
    %v2694 = vpop.f32.mrb[0].mxu0
    %v2695 = vadd.f32 %v2448, %v2694
    %v2696 = vpop.f32.mrb[0].mxu0
    %2697 = vmatprep.mubr.bf16.mxu0 %v2587
    %2698 = vmatmul.mubr.bf16.gmra.mrb[0].mxu0 %v1958
    %v2699 = vpop.f32.mrb[0].mxu0
    %v2700 = vadd.f32 %v2453, %v2699
    %v2701 = vpop.f32.mrb[0].mxu0
    %v2702 = vpop.f32.mrb[0].mxu0
    %v2703 = vadd.f32 %v2456, %v2702
    %v2704 = vpop.f32.mrb[0].mxu0
    %2705 = vmatprep.mubr.bf16.mxu0 %v2590
    %2706 = vmatmul.mubr.bf16.gmra.mrb[0].mxu0 %v1960
    %v2707 = vpop.f32.mrb[0].mxu0
    %v2708 = vadd.f32 %v2461, %v2707
    %v2709 = vpop.f32.mrb[0].mxu0
    %v2710 = vpop.f32.mrb[0].mxu0
    %v2711 = vadd.f32 %v2464, %v2710
    %v2712 = vpop.f32.mrb[0].mxu0
    %2713 = vmatprep.mubr.bf16.mxu0 %v2593
    %2714 = vmatmul.mubr.bf16.gmra.mrb[0].mxu0 %v1962
    %v2715 = vpop.f32.mrb[0].mxu0
    %v2716 = vadd.f32 %v2469, %v2715
    %v2717 = vpop.f32.mrb[0].mxu0
    %v2718 = vpop.f32.mrb[0].mxu0
    %v2719 = vadd.f32 %v2472, %v2718
    %v2720 = vpop.f32.mrb[0].mxu0
    %2721 = vmatprep.mubr.bf16.mxu0 %v2596
    %2722 = vmatmul.mubr.bf16.gmra.mrb[0].mxu0 %v1964
    %v2723 = vpop.f32.mrb[0].mxu0
    %v2724 = vadd.f32 %v2477, %v2723
    %v2725 = vpop.f32.mrb[0].mxu0
    %v2726 = vpop.f32.mrb[0].mxu0
    %v2727 = vadd.f32 %v2480, %v2726
    %v2728 = vpop.f32.mrb[0].mxu0
    %2729 = vmatprep.mubr.bf16.mxu0 %v2599
    %2730 = vmatmul.mubr.bf16.gmra.mrb[0].mxu0 %v1966
    %v2731 = vpop.f32.mrb[0].mxu0
    %v2732 = vadd.f32 %v2485, %v2731
    %v2733 = vpop.f32.mrb[0].mxu0
    %v2734 = vpop.f32.mrb[0].mxu0
    %v2735 = vpop.f32.mrb[0].mxu0
    %2736 = vdwg.mxu0
    %v2737 = vld [vmem:[#allocation2 + $0x2] sm:$0xff]
    %v2738 = vld [vmem:[#allocation2 + $0xa] sm:$0xff]
    %v2739 = vld [vmem:[#allocation2 + $0x12] sm:$0xff]
    %v2740 = vld [vmem:[#allocation2 + $0x1a] sm:$0xff]
    %v2741 = vld [vmem:[#allocation2 + $0x22] sm:$0xff]
    %v2742 = vld [vmem:[#allocation2 + $0x2a] sm:$0xff]
    %v2743 = vld [vmem:[#allocation2 + $0x32] sm:$0xff]
    %v2744 = vld [vmem:[#allocation2 + $0x3a] sm:$0xff]
    %v2745 = vld [vmem:[#allocation2 + $0x42] sm:$0xff]
    %v2746 = vld [vmem:[#allocation2 + $0x4a] sm:$0xff]
    %v2747 = vld [vmem:[#allocation2 + $0x52] sm:$0xff]
    %v2748 = vld [vmem:[#allocation2 + $0x5a] sm:$0xff]
    %v2749 = vld [vmem:[#allocation2 + $0x62] sm:$0xff]
    %v2750 = vld [vmem:[#allocation2 + $0x6a] sm:$0xff]
    %v2751 = vld [vmem:[#allocation2 + $0x72] sm:$0xff]
    %v2752 = vld [vmem:[#allocation2 + $0x7a] sm:$0xff]
    %v2753 = vld [vmem:[#allocation2 + $0x82] sm:$0xff]
    %v2754 = vld [vmem:[#allocation2 + $0x8a] sm:$0xff]
    %v2755 = vld [vmem:[#allocation2 + $0x92] sm:$0xff]
    %v2756 = vld [vmem:[#allocation2 + $0x9a] sm:$0xff]
    %v2757 = vld [vmem:[#allocation2 + $0xa2] sm:$0xff]
    %v2758 = vld [vmem:[#allocation2 + $0xaa] sm:$0xff]
    %v2759 = vld [vmem:[#allocation2 + $0xb2] sm:$0xff]
    %v2760 = vld [vmem:[#allocation2 + $0xba] sm:$0xff]
    %v2761 = vld [vmem:[#allocation2 + $0xc2] sm:$0xff]
    %v2762 = vld [vmem:[#allocation2 + $0xc] sm:$0xff]
    %v2763 = vld [vmem:[#allocation2 + $0x14] sm:$0xff]
    %v2764 = vld [vmem:[#allocation2 + $0x1c] sm:$0xff]
    %v2765 = vld [vmem:[#allocation2 + $0x24] sm:$0xff]
    %v2766 = vld [vmem:[#allocation2 + $0x2c] sm:$0xff]
    %v2767 = vld [vmem:[#allocation2 + $0x34] sm:$0xff]
    %v2768 = vld [vmem:[#allocation2 + $0x3c] sm:$0xff]
    %v2769 = vld [vmem:[#allocation2 + $0x44] sm:$0xff]
    %v2770 = vld [vmem:[#allocation2 + $0x4c] sm:$0xff]
    %v2771 = vld [vmem:[#allocation2 + $0x54] sm:$0xff]
    %v2772 = vld [vmem:[#allocation2 + $0x5c] sm:$0xff]
    %v2773 = vld [vmem:[#allocation2 + $0x64] sm:$0xff]
    %v2774 = vld [vmem:[#allocation2 + $0x6c] sm:$0xff]
    %v2775 = vld [vmem:[#allocation2 + $0x74] sm:$0xff]
    %v2776 = vld [vmem:[#allocation2 + $0x7c] sm:$0xff]
    %v2777 = vld [vmem:[#allocation2 + $0x84] sm:$0xff]
    %v2778 = vld [vmem:[#allocation2 + $0x8c] sm:$0xff]
    %v2779 = vld [vmem:[#allocation2 + $0x94] sm:$0xff]
    %v2780 = vld [vmem:[#allocation2 + $0x9c] sm:$0xff]
    %v2781 = vld [vmem:[#allocation2 + $0xa4] sm:$0xff]
    %v2782 = vld [vmem:[#allocation2 + $0xac] sm:$0xff]
    %v2783 = vld [vmem:[#allocation2 + $0xb4] sm:$0xff]
    %v2784 = vld [vmem:[#allocation2 + $0xbc] sm:$0xff]
    %v2785 = vld [vmem:[#allocation2 + $0xc4] sm:$0xff]
    %v2786 = vld [vmem:[#allocation2 + $0xcc] sm:$0xff]
    %v2787 = vld [vmem:[#allocation2 + $0x16] sm:$0xff]
    %v2788 = vld [vmem:[#allocation2 + $0x1e] sm:$0xff]
    %v2789 = vld [vmem:[#allocation2 + $0x26] sm:$0xff]
    %v2790 = vld [vmem:[#allocation2 + $0x2e] sm:$0xff]
    %v2791 = vld [vmem:[#allocation2 + $0x36] sm:$0xff]
    %v2792 = vld [vmem:[#allocation2 + $0x3e] sm:$0xff]
    %v2793 = vld [vmem:[#allocation2 + $0x46] sm:$0xff]
    %v2794 = vld [vmem:[#allocation2 + $0x4e] sm:$0xff]
    %v2795 = vld [vmem:[#allocation2 + $0x56] sm:$0xff]
    %v2796 = vld [vmem:[#allocation2 + $0x5e] sm:$0xff]
    %v2797 = vld [vmem:[#allocation2 + $0x66] sm:$0xff]
    %v2798 = vld [vmem:[#allocation2 + $0x6e] sm:$0xff]
    %v2799 = vld [vmem:[#allocation2 + $0x76] sm:$0xff]
    %v2800 = vld [vmem:[#allocation2 + $0x7e] sm:$0xff]
    %v2801 = vld [vmem:[#allocation2 + $0x86] sm:$0xff]
    %v2802 = vld [vmem:[#allocation2 + $0x8e] sm:$0xff]
    %v2803 = vld [vmem:[#allocation2 + $0x96] sm:$0xff]
    %v2804 = vld [vmem:[#allocation2 + $0x9e] sm:$0xff]
    %v2805 = vld [vmem:[#allocation2 + $0xa6] sm:$0xff]
    %v2806 = vld [vmem:[#allocation2 + $0xae] sm:$0xff]
    %v2807 = vld [vmem:[#allocation2 + $0xb6] sm:$0xff]
    %v2808 = vld [vmem:[#allocation2 + $0xbe] sm:$0xff]
    %v2809 = vld [vmem:[#allocation2 + $0xc6] sm:$0xff]
    %v2810 = vld [vmem:[#allocation2 + $0xce] sm:$0xff]
    %v2811 = vld [vmem:[#allocation2 + $0xd6] sm:$0xff]
    %2837 = vrot.lane.b32.xlu0 %v2762, 64
    %v2838 = vpop.permute.xlu0 %2837
    %2839 = vrot.lane.b32.xlu0 %v2763, 64
    %v2840 = vpop.permute.xlu0 %2839
    %2841 = vrot.lane.b32.xlu0 %v2764, 64
    %v2842 = vpop.permute.xlu0 %2841
    %2843 = vrot.lane.b32.xlu0 %v2765, 64
    %v2844 = vpop.permute.xlu0 %2843
    %2845 = vrot.lane.b32.xlu0 %v2766, 64
    %v2846 = vpop.permute.xlu0 %2845
    %2847 = vrot.lane.b32.xlu0 %v2767, 64
    %v2848 = vpop.permute.xlu0 %2847
    %2849 = vrot.lane.b32.xlu0 %v2768, 64
    %v2850 = vpop.permute.xlu0 %2849
    %2851 = vrot.lane.b32.xlu0 %v2769, 64
    %v2852 = vpop.permute.xlu0 %2851
    %2853 = vrot.lane.b32.xlu0 %v2770, 64
    %v2854 = vpop.permute.xlu0 %2853
    %2855 = vrot.lane.b32.xlu0 %v2771, 64
    %v2856 = vpop.permute.xlu0 %2855
    %2857 = vrot.lane.b32.xlu0 %v2772, 64
    %v2858 = vpop.permute.xlu0 %2857
    %2859 = vrot.lane.b32.xlu0 %v2773, 64
    %v2860 = vpop.permute.xlu0 %2859
    %2861 = vrot.lane.b32.xlu0 %v2774, 64
    %v2862 = vpop.permute.xlu0 %2861
    %2863 = vrot.lane.b32.xlu0 %v2775, 64
    %v2864 = vpop.permute.xlu0 %2863
    %2865 = vrot.lane.b32.xlu0 %v2776, 64
    %v2866 = vpop.permute.xlu0 %2865
    %2867 = vrot.lane.b32.xlu0 %v2777, 64
    %v2868 = vpop.permute.xlu0 %2867
    %2869 = vrot.lane.b32.xlu0 %v2778, 64
    %v2870 = vpop.permute.xlu0 %2869
    %2871 = vrot.lane.b32.xlu0 %v2779, 64
    %v2872 = vpop.permute.xlu0 %2871
    %2873 = vrot.lane.b32.xlu0 %v2780, 64
    %v2874 = vpop.permute.xlu0 %2873
    %2875 = vrot.lane.b32.xlu0 %v2781, 64
    %v2876 = vpop.permute.xlu0 %2875
    %2877 = vrot.lane.b32.xlu0 %v2782, 64
    %v2878 = vpop.permute.xlu0 %2877
    %2879 = vrot.lane.b32.xlu0 %v2783, 64
    %v2880 = vpop.permute.xlu0 %2879
    %2881 = vrot.lane.b32.xlu0 %v2784, 64
    %v2882 = vpop.permute.xlu0 %2881
    %2883 = vrot.lane.b32.xlu0 %v2785, 64
    %v2884 = vpop.permute.xlu0 %2883
    %2885 = vrot.lane.b32.xlu0 %v2786, 64
    %v2886 = vpop.permute.xlu0 %2885
    %v2912 = vsel %vm28, %v2737, %v2838
    %v2913 = vsel %vm28, %v2738, %v2840
    %v2914 = vsel %vm28, %v2739, %v2842
    %v2915 = vsel %vm28, %v2740, %v2844
    %v2916 = vsel %vm28, %v2741, %v2846
    %v2917 = vsel %vm28, %v2742, %v2848
    %v2918 = vsel %vm28, %v2743, %v2850
    %v2919 = vsel %vm28, %v2744, %v2852
    %v2920 = vsel %vm28, %v2745, %v2854
    %v2921 = vsel %vm28, %v2746, %v2856
    %v2922 = vsel %vm28, %v2747, %v2858
    %v2923 = vsel %vm28, %v2748, %v2860
    %v2924 = vsel %vm28, %v2749, %v2862
    %v2925 = vsel %vm28, %v2750, %v2864
    %v2926 = vsel %vm28, %v2751, %v2866
    %v2927 = vsel %vm28, %v2752, %v2868
    %v2928 = vsel %vm28, %v2753, %v2870
    %v2929 = vsel %vm28, %v2754, %v2872
    %v2930 = vsel %vm28, %v2755, %v2874
    %v2931 = vsel %vm28, %v2756, %v2876
    %v2932 = vsel %vm28, %v2757, %v2878
    %v2933 = vsel %vm28, %v2758, %v2880
    %v2934 = vsel %vm28, %v2759, %v2882
    %v2935 = vsel %vm28, %v2760, %v2884
    %v2936 = vsel %vm28, %v2761, %v2886
    %v2937 = vpack.c.bf16 %v2913, %v2912
    %v2938 = vpack.c.bf16 %v2788, %v2787
    %v2939 = vpack.c.bf16 %v2915, %v2914
    %v2940 = vpack.c.bf16 %v2790, %v2789
    %v2941 = vpack.c.bf16 %v2917, %v2916
    %v2942 = vpack.c.bf16 %v2792, %v2791
    %v2943 = vpack.c.bf16 %v2919, %v2918
    %v2944 = vpack.c.bf16 %v2794, %v2793
    %v2945 = vpack.c.bf16 %v2921, %v2920
    %v2946 = vpack.c.bf16 %v2796, %v2795
    %v2947 = vpack.c.bf16 %v2923, %v2922
    %v2948 = vpack.c.bf16 %v2798, %v2797
    %v2949 = vpack.c.bf16 %v2925, %v2924
    %v2950 = vpack.c.bf16 %v2800, %v2799
    %v2951 = vpack.c.bf16 %v2927, %v2926
    %v2952 = vpack.c.bf16 %v2802, %v2801
    %v2953 = vpack.c.bf16 %v2929, %v2928
    %v2954 = vpack.c.bf16 %v2804, %v2803
    %v2955 = vpack.c.bf16 %v2931, %v2930
    %v2956 = vpack.c.bf16 %v2806, %v2805
    %v2957 = vpack.c.bf16 %v2933, %v2932
    %v2958 = vpack.c.bf16 %v2808, %v2807
    %v2959 = vpack.c.bf16 %v2935, %v2934
    %v2960 = vpack.c.bf16 %v2810, %v2809
    %v2961 = vpack.c.bf16 %v2936, %v2936
    %v2962 = vpack.c.bf16 %v2811, %v2811
    %s2963 = scalar_lea.vmem %s2, 192
    %v2964 = vld [vmem:[%s2963] sm:$0xf]
    %v2965 = vld [vmem:[%s2963 + $0x4] sm:$0xf]
    %v2966 = vld [vmem:[%s2963 + $0x8] sm:$0xf]
    %v2967 = vld [vmem:[%s2963 + $0xc] sm:$0xf]
    %v2968 = vld [vmem:[%s2963 + $0x10] sm:$0xf]
    %v2969 = vld [vmem:[%s2963 + $0x14] sm:$0xf]
    %v2970 = vld [vmem:[%s2963 + $0x18] sm:$0xf]
    %v2971 = vld [vmem:[%s2963 + $0x1c] sm:$0xf]
    %v2972 = vld [vmem:[%s2963 + $0x20] sm:$0xf]
    %v2973 = vld [vmem:[%s2963 + $0x24] sm:$0xf]
    %v2974 = vld [vmem:[%s2963 + $0x28] sm:$0xf]
    %v2975 = vld [vmem:[%s2963 + $0x2c] sm:$0xf]
    %v2976 = vld [vmem:[%s2963 + $0x30] sm:$0xf]
    %v2977 = vld [vmem:[%s2963 + $0x34] sm:$0xf]
    %v2978 = vld [vmem:[%s2963 + $0x38] sm:$0xf]
    %v2979 = vld [vmem:[%s2963 + $0x3c] sm:$0xf]
    %v2980 = vld [vmem:[%s2963 + $0x40] sm:$0xf]
    %v2981 = vld [vmem:[%s2963 + $0x44] sm:$0xf]
    %v2982 = vld [vmem:[%s2963 + $0x48] sm:$0xf]
    %v2983 = vld [vmem:[%s2963 + $0x4c] sm:$0xf]
    %v2984 = vld [vmem:[%s2963 + $0x50] sm:$0xf]
    %v2985 = vld [vmem:[%s2963 + $0x54] sm:$0xf]
    %v2986 = vld [vmem:[%s2963 + $0x58] sm:$0xf]
    %v2987 = vld [vmem:[%s2963 + $0x5c] sm:$0xf]
    %v3012 = vunpack.c.l.b16 %v2964
    %v3013 = vunpack.c.l.b16 %v2965
    %v3014 = vunpack.c.l.b16 %v2966
    %v3015 = vunpack.c.l.b16 %v2967
    %v3016 = vunpack.c.l.b16 %v2968
    %v3017 = vunpack.c.l.b16 %v2969
    %v3018 = vunpack.c.l.b16 %v2970
    %v3019 = vunpack.c.l.b16 %v2971
    %v3020 = vunpack.c.l.b16 %v2972
    %v3021 = vunpack.c.l.b16 %v2973
    %v3022 = vunpack.c.l.b16 %v2974
    %v3023 = vunpack.c.l.b16 %v2975
    %v3024 = vunpack.c.l.b16 %v2976
    %v3025 = vunpack.c.l.b16 %v2977
    %v3026 = vunpack.c.l.b16 %v2978
    %v3027 = vunpack.c.l.b16 %v2979
    %v3028 = vunpack.c.l.b16 %v2980
    %v3029 = vunpack.c.l.b16 %v2981
    %v3030 = vunpack.c.l.b16 %v2982
    %v3031 = vunpack.c.l.b16 %v2983
    %v3032 = vunpack.c.l.b16 %v2984
    %v3033 = vunpack.c.l.b16 %v2985
    %v3034 = vunpack.c.l.b16 %v2986
    %v3035 = vunpack.c.l.b16 %v2987
    %v3036 = vpack.c.b16 %v3013, %v3012
    %v3037 = vpack.c.b16 %v3015, %v3014
    %v3038 = vpack.c.b16 %v3017, %v3016
    %v3039 = vpack.c.b16 %v3019, %v3018
    %v3040 = vpack.c.b16 %v3021, %v3020
    %v3041 = vpack.c.b16 %v3023, %v3022
    %v3042 = vpack.c.b16 %v3025, %v3024
    %v3043 = vpack.c.b16 %v3027, %v3026
    %v3044 = vpack.c.b16 %v3029, %v3028
    %v3045 = vpack.c.b16 %v3031, %v3030
    %v3046 = vpack.c.b16 %v3033, %v3032
    %v3047 = vpack.c.b16 %v3035, %v3034
    %v3061 = vsel %vm28, %v2938, 0
    %v3064 = vsel %vm28, %v2940, 0
    %v3067 = vsel %vm28, %v2942, 0
    %v3070 = vsel %vm28, %v2944, 0
    %v3073 = vsel %vm28, %v2946, 0
    %v3076 = vsel %vm28, %v2948, 0
    %v3079 = vsel %vm28, %v2950, 0
    %v3082 = vsel %vm28, %v2952, 0
    %v3085 = vsel %vm28, %v2954, 0
    %v3088 = vsel %vm28, %v2956, 0
    %v3091 = vsel %vm28, %v2958, 0
    %v3094 = vsel %vm28, %v2960, 0
    %v3097 = vsel %vm28, %v2962, 0
    %3099 = vmatprep.subr.bf16.mxu0 0
    %3100 = vmatpush1.bf16.msra.mxu0 %v3036
    %3101 = vmatprep.subr.bf16.mxu0 0
    %3102 = vmatpush1.bf16.msra.mxu0 %v3037
    %3103 = vmatprep.subr.bf16.mxu0 0
    %3104 = vmatpush1.bf16.msra.mxu0 %v3038
    %3105 = vmatprep.subr.bf16.mxu0 0
    %3106 = vmatpush1.bf16.msra.mxu0 %v3039
    %3107 = vmatprep.subr.bf16.mxu0 0
    %3108 = vmatpush1.bf16.msra.mxu0 %v3040
    %3109 = vmatprep.subr.bf16.mxu0 0
    %3110 = vmatpush1.bf16.msra.mxu0 %v3041
    %3111 = vmatprep.subr.bf16.mxu0 0
    %3112 = vmatpush1.bf16.msra.mxu0 %v3042
    %3113 = vmatprep.subr.bf16.mxu0 0
    %3114 = vmatpush1.bf16.msra.mxu0 %v3043
    %3115 = vmatprep.subr.bf16.mxu0 0
    %3116 = vmatpush1.bf16.msra.mxu0 %v3044
    %3117 = vmatprep.subr.bf16.mxu0 0
    %3118 = vmatpush1.bf16.msra.mxu0 %v3045
    %3119 = vmatprep.subr.bf16.mxu0 0
    %3120 = vmatpush1.bf16.msra.mxu0 %v3046
    %3121 = vmatprep.subr.bf16.mxu0 0
    %3122 = vmatpush1.bf16.msra.mxu0 %v3047
    %3123 = vmatprep.subr.bf16.mxu0 0
    %3124 = vmatpush1.bf16.msra.mxu0 0
    %3125 = vmatprep.subr.bf16.mxu0 0
    %3126 = vmatpush1.bf16.msra.mxu0 0
    %3127 = vmatprep.subr.bf16.mxu0 0
    %3128 = vmatpush1.bf16.msra.mxu0 0
    %3129 = vmatprep.subr.bf16.mxu0 0
    %3130 = vmatpush1.bf16.msra.mxu0 0
    %3131 = vmatprep.mubr.bf16.mxu0 %v3061
    %3132 = vmatmul.mubr.bf16.gmra.mrb[0].mxu0 %v2937
    %v3133 = vpop.f32.mrb[0].mxu0
    %v3134 = vadd.f32 0.0, %v3133
    %v3135 = vpop.f32.mrb[0].mxu0
    %v3136 = vpop.f32.mrb[0].mxu0
    %v3137 = vadd.f32 0.0, %v3136
    %v3138 = vpop.f32.mrb[0].mxu0
    %3139 = vmatprep.mubr.bf16.mxu0 %v3064
    %3140 = vmatmul.mubr.bf16.gmra.mrb[0].mxu0 %v2939
    %v3141 = vpop.f32.mrb[0].mxu0
    %v3142 = vadd.f32 0.0, %v3141
    %v3143 = vpop.f32.mrb[0].mxu0
    %v3144 = vpop.f32.mrb[0].mxu0
    %v3145 = vadd.f32 0.0, %v3144
    %v3146 = vpop.f32.mrb[0].mxu0
    %3147 = vmatprep.mubr.bf16.mxu0 %v3067
    %3148 = vmatmul.mubr.bf16.gmra.mrb[0].mxu0 %v2941
    %v3149 = vpop.f32.mrb[0].mxu0
    %v3150 = vadd.f32 0.0, %v3149
    %v3151 = vpop.f32.mrb[0].mxu0
    %v3152 = vpop.f32.mrb[0].mxu0
    %v3153 = vadd.f32 0.0, %v3152
    %v3154 = vpop.f32.mrb[0].mxu0
    %3155 = vmatprep.mubr.bf16.mxu0 %v3070
    %3156 = vmatmul.mubr.bf16.gmra.mrb[0].mxu0 %v2943
    %v3157 = vpop.f32.mrb[0].mxu0
    %v3158 = vadd.f32 0.0, %v3157
    %v3159 = vpop.f32.mrb[0].mxu0
    %v3160 = vpop.f32.mrb[0].mxu0
    %v3161 = vadd.f32 0.0, %v3160
    %v3162 = vpop.f32.mrb[0].mxu0
    %3163 = vmatprep.mubr.bf16.mxu0 %v3073
    %3164 = vmatmul.mubr.bf16.gmra.mrb[0].mxu0 %v2945
    %v3165 = vpop.f32.mrb[0].mxu0
    %v3166 = vadd.f32 0.0, %v3165
    %v3167 = vpop.f32.mrb[0].mxu0
    %v3168 = vpop.f32.mrb[0].mxu0
    %v3169 = vadd.f32 0.0, %v3168
    %v3170 = vpop.f32.mrb[0].mxu0
    %3171 = vmatprep.mubr.bf16.mxu0 %v3076
    %3172 = vmatmul.mubr.bf16.gmra.mrb[0].mxu0 %v2947
    %v3173 = vpop.f32.mrb[0].mxu0
    %v3174 = vadd.f32 0.0, %v3173
    %v3175 = vpop.f32.mrb[0].mxu0
    %v3176 = vpop.f32.mrb[0].mxu0
    %v3177 = vadd.f32 0.0, %v3176
    %v3178 = vpop.f32.mrb[0].mxu0
    %3179 = vmatprep.mubr.bf16.mxu0 %v3079
    %3180 = vmatmul.mubr.bf16.gmra.mrb[0].mxu0 %v2949
    %v3181 = vpop.f32.mrb[0].mxu0
    %v3182 = vadd.f32 0.0, %v3181
    %v3183 = vpop.f32.mrb[0].mxu0
    %v3184 = vpop.f32.mrb[0].mxu0
    %v3185 = vadd.f32 0.0, %v3184
    %v3186 = vpop.f32.mrb[0].mxu0
    %3187 = vmatprep.mubr.bf16.mxu0 %v3082
    %3188 = vmatmul.mubr.bf16.gmra.mrb[0].mxu0 %v2951
    %v3189 = vpop.f32.mrb[0].mxu0
    %v3190 = vadd.f32 0.0, %v3189
    %v3191 = vpop.f32.mrb[0].mxu0
    %v3192 = vpop.f32.mrb[0].mxu0
    %v3193 = vadd.f32 0.0, %v3192
    %v3194 = vpop.f32.mrb[0].mxu0
    %3195 = vmatprep.mubr.bf16.mxu0 %v3085
    %3196 = vmatmul.mubr.bf16.gmra.mrb[0].mxu0 %v2953
    %v3197 = vpop.f32.mrb[0].mxu0
    %v3198 = vadd.f32 0.0, %v3197
    %v3199 = vpop.f32.mrb[0].mxu0
    %v3200 = vpop.f32.mrb[0].mxu0
    %v3201 = vadd.f32 0.0, %v3200
    %v3202 = vpop.f32.mrb[0].mxu0
    %3203 = vmatprep.mubr.bf16.mxu0 %v3088
    %3204 = vmatmul.mubr.bf16.gmra.mrb[0].mxu0 %v2955
    %v3205 = vpop.f32.mrb[0].mxu0
    %v3206 = vadd.f32 0.0, %v3205
    %v3207 = vpop.f32.mrb[0].mxu0
    %v3208 = vpop.f32.mrb[0].mxu0
    %v3209 = vadd.f32 0.0, %v3208
    %v3210 = vpop.f32.mrb[0].mxu0
    %3211 = vmatprep.mubr.bf16.mxu0 %v3091
    %3212 = vmatmul.mubr.bf16.gmra.mrb[0].mxu0 %v2957
    %v3213 = vpop.f32.mrb[0].mxu0
    %v3214 = vadd.f32 0.0, %v3213
    %v3215 = vpop.f32.mrb[0].mxu0
    %v3216 = vpop.f32.mrb[0].mxu0
    %v3217 = vadd.f32 0.0, %v3216
    %v3218 = vpop.f32.mrb[0].mxu0
    %3219 = vmatprep.mubr.bf16.mxu0 %v3094
    %3220 = vmatmul.mubr.bf16.gmra.mrb[0].mxu0 %v2959
    %v3221 = vpop.f32.mrb[0].mxu0
    %v3222 = vadd.f32 0.0, %v3221
    %v3223 = vpop.f32.mrb[0].mxu0
    %v3224 = vpop.f32.mrb[0].mxu0
    %v3225 = vadd.f32 0.0, %v3224
    %v3226 = vpop.f32.mrb[0].mxu0
    %3227 = vmatprep.mubr.bf16.mxu0 %v3097
    %3228 = vmatmul.mubr.bf16.gmra.mrb[0].mxu0 %v2961
    %v3229 = vpop.f32.mrb[0].mxu0
    %v3230 = vadd.f32 0.0, %v3229
    %v3231 = vpop.f32.mrb[0].mxu0
    %v3232 = vpop.f32.mrb[0].mxu0
    %v3233 = vpop.f32.mrb[0].mxu0
    %3234 = vdwg.mxu0
    %v3235 = vadd.f32 %v2636, %v3134
    %v3236 = vadd.f32 %v2639, %v3137
    %v3237 = vadd.f32 %v2644, %v3142
    %v3238 = vadd.f32 %v2647, %v3145
    %v3239 = vadd.f32 %v2652, %v3150
    %v3240 = vadd.f32 %v2655, %v3153
    %v3241 = vadd.f32 %v2660, %v3158
    %v3242 = vadd.f32 %v2663, %v3161
    %v3243 = vadd.f32 %v2668, %v3166
    %v3244 = vadd.f32 %v2671, %v3169
    %v3245 = vadd.f32 %v2676, %v3174
    %v3246 = vadd.f32 %v2679, %v3177
    %v3247 = vadd.f32 %v2684, %v3182
    %v3248 = vadd.f32 %v2687, %v3185
    %v3249 = vadd.f32 %v2692, %v3190
    %v3250 = vadd.f32 %v2695, %v3193
    %v3251 = vadd.f32 %v2700, %v3198
    %v3252 = vadd.f32 %v2703, %v3201
    %v3253 = vadd.f32 %v2708, %v3206
    %v3254 = vadd.f32 %v2711, %v3209
    %v3255 = vadd.f32 %v2716, %v3214
    %v3256 = vadd.f32 %v2719, %v3217
    %v3257 = vadd.f32 %v2724, %v3222
    %v3258 = vadd.f32 %v2727, %v3225
    %v3259 = vadd.f32 %v2732, %v3230
    %v3260 = vld [vmem:[%s4] sm:$0xff]
    %v3261 = vld [vmem:[%s4 + $0x8] sm:$0xff]
    %v3262 = vld [vmem:[%s4 + $0x10] sm:$0xff]
    %v3263 = vld [vmem:[%s4 + $0x18] sm:$0xff]
    %v3264 = vld [vmem:[%s4 + $0x20] sm:$0xff]
    %v3265 = vld [vmem:[%s4 + $0x28] sm:$0xff]
    %v3266 = vld [vmem:[%s4 + $0x30] sm:$0xff]
    %v3267 = vld [vmem:[%s4 + $0x38] sm:$0xff]
    %v3268 = vld [vmem:[%s4 + $0x40] sm:$0xff]
    %v3269 = vld [vmem:[%s4 + $0x48] sm:$0xff]
    %v3270 = vld [vmem:[%s4 + $0x50] sm:$0xff]
    %v3271 = vld [vmem:[%s4 + $0x58] sm:$0xff]
    %v3272 = vld [vmem:[%s4 + $0x60] sm:$0xff]
    %v3273 = vld [vmem:[%s4 + $0x68] sm:$0xff]
    %v3274 = vld [vmem:[%s4 + $0x70] sm:$0xff]
    %v3275 = vld [vmem:[%s4 + $0x78] sm:$0xff]
    %v3276 = vld [vmem:[%s4 + $0x80] sm:$0xff]
    %v3277 = vld [vmem:[%s4 + $0x88] sm:$0xff]
    %v3278 = vld [vmem:[%s4 + $0x90] sm:$0xff]
    %v3279 = vld [vmem:[%s4 + $0x98] sm:$0xff]
    %v3280 = vld [vmem:[%s4 + $0xa0] sm:$0xff]
    %v3281 = vld [vmem:[%s4 + $0xa8] sm:$0xff]
    %v3282 = vld [vmem:[%s4 + $0xb0] sm:$0xff]
    %v3283 = vld [vmem:[%s4 + $0xb8] sm:$0xff]
    %v3284 = vld [vmem:[%s4 + $0xc0] sm:$0xff]
    %3286 = vset.pattern.permute.xlu0 0
    %3287 = vperm.xlu0 %3286, %v3260
    %v3288 = vpop.permute.xlu0 %3287
    %3291 = vset.pattern.permute.xlu0 0
    %3292 = vperm.xlu0 %3291, %v3261
    %v3293 = vpop.permute.xlu0 %3292
    %3296 = vset.pattern.permute.xlu0 0
    %3297 = vperm.xlu0 %3296, %v3262
    %v3298 = vpop.permute.xlu0 %3297
    %3301 = vset.pattern.permute.xlu0 0
    %3302 = vperm.xlu0 %3301, %v3263
    %v3303 = vpop.permute.xlu0 %3302
    %3306 = vset.pattern.permute.xlu0 0
    %3307 = vperm.xlu0 %3306, %v3264
    %v3308 = vpop.permute.xlu0 %3307
    %3311 = vset.pattern.permute.xlu0 0
    %3312 = vperm.xlu0 %3311, %v3265
    %v3313 = vpop.permute.xlu0 %3312
    %3316 = vset.pattern.permute.xlu0 0
    %3317 = vperm.xlu0 %3316, %v3266
    %v3318 = vpop.permute.xlu0 %3317
    %3321 = vset.pattern.permute.xlu0 0
    %3322 = vperm.xlu0 %3321, %v3267
    %v3323 = vpop.permute.xlu0 %3322
    %3326 = vset.pattern.permute.xlu0 0
    %3327 = vperm.xlu0 %3326, %v3268
    %v3328 = vpop.permute.xlu0 %3327
    %3331 = vset.pattern.permute.xlu0 0
    %3332 = vperm.xlu0 %3331, %v3269
    %v3333 = vpop.permute.xlu0 %3332
    %3336 = vset.pattern.permute.xlu0 0
    %3337 = vperm.xlu0 %3336, %v3270
    %v3338 = vpop.permute.xlu0 %3337
    %3341 = vset.pattern.permute.xlu0 0
    %3342 = vperm.xlu0 %3341, %v3271
    %v3343 = vpop.permute.xlu0 %3342
    %3346 = vset.pattern.permute.xlu0 0
    %3347 = vperm.xlu0 %3346, %v3272
    %v3348 = vpop.permute.xlu0 %3347
    %3351 = vset.pattern.permute.xlu0 0
    %3352 = vperm.xlu0 %3351, %v3273
    %v3353 = vpop.permute.xlu0 %3352
    %3356 = vset.pattern.permute.xlu0 0
    %3357 = vperm.xlu0 %3356, %v3274
    %v3358 = vpop.permute.xlu0 %3357
    %3361 = vset.pattern.permute.xlu0 0
    %3362 = vperm.xlu0 %3361, %v3275
    %v3363 = vpop.permute.xlu0 %3362
    %3366 = vset.pattern.permute.xlu0 0
    %3367 = vperm.xlu0 %3366, %v3276
    %v3368 = vpop.permute.xlu0 %3367
    %3371 = vset.pattern.permute.xlu0 0
    %3372 = vperm.xlu0 %3371, %v3277
    %v3373 = vpop.permute.xlu0 %3372
    %3376 = vset.pattern.permute.xlu0 0
    %3377 = vperm.xlu0 %3376, %v3278
    %v3378 = vpop.permute.xlu0 %3377
    %3381 = vset.pattern.permute.xlu0 0
    %3382 = vperm.xlu0 %3381, %v3279
    %v3383 = vpop.permute.xlu0 %3382
    %3386 = vset.pattern.permute.xlu0 0
    %3387 = vperm.xlu0 %3386, %v3280
    %v3388 = vpop.permute.xlu0 %3387
    %3391 = vset.pattern.permute.xlu0 0
    %3392 = vperm.xlu0 %3391, %v3281
    %v3393 = vpop.permute.xlu0 %3392
    %3396 = vset.pattern.permute.xlu0 0
    %3397 = vperm.xlu0 %3396, %v3282
    %v3398 = vpop.permute.xlu0 %3397
    %3401 = vset.pattern.permute.xlu0 0
    %3402 = vperm.xlu0 %3401, %v3283
    %v3403 = vpop.permute.xlu0 %3402
    %3406 = vset.pattern.permute.xlu0 0
    %3407 = vperm.xlu0 %3406, %v3284
    %v3408 = vpop.permute.xlu0 %3407
    %v3410 = vmul.f32 %v3235, %v3288
    %v3411 = vmul.f32 %v3236, %v3293
    %v3412 = vmul.f32 %v3237, %v3298
    %v3413 = vmul.f32 %v3238, %v3303
    %v3414 = vmul.f32 %v3239, %v3308
    %v3415 = vmul.f32 %v3240, %v3313
    %v3416 = vmul.f32 %v3241, %v3318
    %v3417 = vmul.f32 %v3242, %v3323
    %v3418 = vmul.f32 %v3243, %v3328
    %v3419 = vmul.f32 %v3244, %v3333
    %v3420 = vmul.f32 %v3245, %v3338
    %v3421 = vmul.f32 %v3246, %v3343
    %v3422 = vmul.f32 %v3247, %v3348
    %v3423 = vmul.f32 %v3248, %v3353
    %v3424 = vmul.f32 %v3249, %v3358
    %v3425 = vmul.f32 %v3250, %v3363
    %v3426 = vmul.f32 %v3251, %v3368
    %v3427 = vmul.f32 %v3252, %v3373
    %v3428 = vmul.f32 %v3253, %v3378
    %v3429 = vmul.f32 %v3254, %v3383
    %v3430 = vmul.f32 %v3255, %v3388
    %v3431 = vmul.f32 %v3256, %v3393
    %v3432 = vmul.f32 %v3257, %v3398
    %v3433 = vmul.f32 %v3258, %v3403
    %v3434 = vmul.f32 %v3259, %v3408
    %v3435 = vsel %vm28, %v3410, 0.0
    %v3436 = vsel %vm28, %v3411, 0.0
    %v3437 = vadd.f32 %v3435, %v3436
    %v3438 = vsel %vm28, %v3412, 0.0
    %v3439 = vadd.f32 %v3437, %v3438
    %v3440 = vsel %vm28, %v3413, 0.0
    %v3441 = vadd.f32 %v3439, %v3440
    %v3442 = vsel %vm28, %v3414, 0.0
    %v3443 = vadd.f32 %v3441, %v3442
    %v3444 = vsel %vm28, %v3415, 0.0
    %v3445 = vadd.f32 %v3443, %v3444
    %v3446 = vsel %vm28, %v3416, 0.0
    %v3447 = vadd.f32 %v3445, %v3446
    %v3448 = vsel %vm28, %v3417, 0.0
    %v3449 = vadd.f32 %v3447, %v3448
    %v3450 = vsel %vm28, %v3418, 0.0
    %v3451 = vadd.f32 %v3449, %v3450
    %v3452 = vsel %vm28, %v3419, 0.0
    %v3453 = vadd.f32 %v3451, %v3452
    %v3454 = vsel %vm28, %v3420, 0.0
    %v3455 = vadd.f32 %v3453, %v3454
    %v3456 = vsel %vm28, %v3421, 0.0
    %v3457 = vadd.f32 %v3455, %v3456
    %v3458 = vsel %vm28, %v3422, 0.0
    %v3459 = vadd.f32 %v3457, %v3458
    %v3460 = vsel %vm28, %v3423, 0.0
    %v3461 = vadd.f32 %v3459, %v3460
    %v3462 = vsel %vm28, %v3424, 0.0
    %v3463 = vadd.f32 %v3461, %v3462
    %v3464 = vsel %vm28, %v3425, 0.0
    %v3465 = vadd.f32 %v3463, %v3464
    %v3466 = vsel %vm28, %v3426, 0.0
    %v3467 = vadd.f32 %v3465, %v3466
    %v3468 = vsel %vm28, %v3427, 0.0
    %v3469 = vadd.f32 %v3467, %v3468
    %v3470 = vsel %vm28, %v3428, 0.0
    %v3471 = vadd.f32 %v3469, %v3470
    %v3472 = vsel %vm28, %v3429, 0.0
    %v3473 = vadd.f32 %v3471, %v3472
    %v3474 = vsel %vm28, %v3430, 0.0
    %v3475 = vadd.f32 %v3473, %v3474
    %v3476 = vsel %vm28, %v3431, 0.0
    %v3477 = vadd.f32 %v3475, %v3476
    %v3478 = vsel %vm28, %v3432, 0.0
    %v3479 = vadd.f32 %v3477, %v3478
    %v3480 = vsel %vm28, %v3433, 0.0
    %v3481 = vadd.f32 %v3479, %v3480
    %v3482 = vsel %vm28, %v3434, 0.0
    %v3483 = vadd.f32 %v3481, %v3482
    %v3484 = vrot.slane %v3483, 4
    %v3485 = vadd.f32 %v3483, %v3484
    %v3486 = vrot.slane %v3485, 2
    %v3487 = vadd.f32 %v3485, %v3486
    %v3488 = vrot.slane %v3487, 1
    %v3489 = vadd.f32 %v3487, %v3488
    %v3490 = vmul.f32 %v3410, %v3235
    %v3491 = vmul.f32 %v3411, %v3236
    %v3492 = vmul.f32 %v3412, %v3237
    %v3493 = vmul.f32 %v3413, %v3238
    %v3494 = vmul.f32 %v3414, %v3239
    %v3495 = vmul.f32 %v3415, %v3240
    %v3496 = vmul.f32 %v3416, %v3241
    %v3497 = vmul.f32 %v3417, %v3242
    %v3498 = vmul.f32 %v3418, %v3243
    %v3499 = vmul.f32 %v3419, %v3244
    %v3500 = vmul.f32 %v3420, %v3245
    %v3501 = vmul.f32 %v3421, %v3246
    %v3502 = vmul.f32 %v3422, %v3247
    %v3503 = vmul.f32 %v3423, %v3248
    %v3504 = vmul.f32 %v3424, %v3249
    %v3505 = vmul.f32 %v3425, %v3250
    %v3506 = vmul.f32 %v3426, %v3251
    %v3507 = vmul.f32 %v3427, %v3252
    %v3508 = vmul.f32 %v3428, %v3253
    %v3509 = vmul.f32 %v3429, %v3254
    %v3510 = vmul.f32 %v3430, %v3255
    %v3511 = vmul.f32 %v3431, %v3256
    %v3512 = vmul.f32 %v3432, %v3257
    %v3513 = vmul.f32 %v3433, %v3258
    %v3514 = vmul.f32 %v3434, %v3259
    %v3515 = vsel %vm28, %v3490, 0.0
    %v3516 = vsel %vm28, %v3491, 0.0
    %v3517 = vadd.f32 %v3515, %v3516
    %v3518 = vsel %vm28, %v3492, 0.0
    %v3519 = vadd.f32 %v3517, %v3518
    %v3520 = vsel %vm28, %v3493, 0.0
    %v3521 = vadd.f32 %v3519, %v3520
    %v3522 = vsel %vm28, %v3494, 0.0
    %v3523 = vadd.f32 %v3521, %v3522
    %v3524 = vsel %vm28, %v3495, 0.0
    %v3525 = vadd.f32 %v3523, %v3524
    %v3526 = vsel %vm28, %v3496, 0.0
    %v3527 = vadd.f32 %v3525, %v3526
    %v3528 = vsel %vm28, %v3497, 0.0
    %v3529 = vadd.f32 %v3527, %v3528
    %v3530 = vsel %vm28, %v3498, 0.0
    %v3531 = vadd.f32 %v3529, %v3530
    %v3532 = vsel %vm28, %v3499, 0.0
    %v3533 = vadd.f32 %v3531, %v3532
    %v3534 = vsel %vm28, %v3500, 0.0
    %v3535 = vadd.f32 %v3533, %v3534
    %v3536 = vsel %vm28, %v3501, 0.0
    %v3537 = vadd.f32 %v3535, %v3536
    %v3538 = vsel %vm28, %v3502, 0.0
    %v3539 = vadd.f32 %v3537, %v3538
    %v3540 = vsel %vm28, %v3503, 0.0
    %v3541 = vadd.f32 %v3539, %v3540
    %v3542 = vsel %vm28, %v3504, 0.0
    %v3543 = vadd.f32 %v3541, %v3542
    %v3544 = vsel %vm28, %v3505, 0.0
    %v3545 = vadd.f32 %v3543, %v3544
    %v3546 = vsel %vm28, %v3506, 0.0
    %v3547 = vadd.f32 %v3545, %v3546
    %v3548 = vsel %vm28, %v3507, 0.0
    %v3549 = vadd.f32 %v3547, %v3548
    %v3550 = vsel %vm28, %v3508, 0.0
    %v3551 = vadd.f32 %v3549, %v3550
    %v3552 = vsel %vm28, %v3509, 0.0
    %v3553 = vadd.f32 %v3551, %v3552
    %v3554 = vsel %vm28, %v3510, 0.0
    %v3555 = vadd.f32 %v3553, %v3554
    %v3556 = vsel %vm28, %v3511, 0.0
    %v3557 = vadd.f32 %v3555, %v3556
    %v3558 = vsel %vm28, %v3512, 0.0
    %v3559 = vadd.f32 %v3557, %v3558
    %v3560 = vsel %vm28, %v3513, 0.0
    %v3561 = vadd.f32 %v3559, %v3560
    %v3562 = vsel %vm28, %v3514, 0.0
    %v3563 = vadd.f32 %v3561, %v3562
    %v3564 = vrot.slane %v3563, 4
    %v3565 = vadd.f32 %v3563, %v3564
    %v3566 = vrot.slane %v3565, 2
    %v3567 = vadd.f32 %v3565, %v3566
    %v3568 = vrot.slane %v3567, 1
    %v3569 = vadd.f32 %v3567, %v3568
    %v3570 = vmul.f32 %v3489, 0.0078125
    %v3571 = vmul.f32 %v3569, 0.0078125
    %v3572 = vmul.f32 %v3570, %v3570
    %v3573 = vsub.f32 %v3571, %v3572
    %v3574 = vmax.f32 %v3573, 0.0
    %v3575 = vadd.f32 %v3574, 1e-05
    %v3576 = vrsqrt.pop %v3575
    %v3577 = vld [vmem:[%s3 + $0x2] sm:$0x1]
    %v3578 = vld [vmem:[%s3 + $0x3] sm:$0x1]
    %v3579 = vmul.f32 %v3577, %v3576
    %v3580 = vmul.f32 %v3570, %v3579
    %v3581 = vsub.f32 %v3578, %v3580
    %v3582 = vlaneseq
    %v3583 = vshrl.u32 %v3582, 7
    %v3584 = vsub.s32 0, %v3583
    %v3585 = vrot.slane %v3579, %v3584
    %v3586 = vmul.f32 %v3235, %v3585
    %v3587 = vmul.f32 %v3236, %v3585
    %v3588 = vmul.f32 %v3237, %v3585
    %v3589 = vmul.f32 %v3238, %v3585
    %v3590 = vmul.f32 %v3239, %v3585
    %v3591 = vmul.f32 %v3240, %v3585
    %v3592 = vmul.f32 %v3241, %v3585
    %v3593 = vmul.f32 %v3242, %v3585
    %v3594 = vmul.f32 %v3243, %v3585
    %v3595 = vmul.f32 %v3244, %v3585
    %v3596 = vmul.f32 %v3245, %v3585
    %v3597 = vmul.f32 %v3246, %v3585
    %v3598 = vmul.f32 %v3247, %v3585
    %v3599 = vmul.f32 %v3248, %v3585
    %v3600 = vmul.f32 %v3249, %v3585
    %v3601 = vmul.f32 %v3250, %v3585
    %v3602 = vmul.f32 %v3251, %v3585
    %v3603 = vmul.f32 %v3252, %v3585
    %v3604 = vmul.f32 %v3253, %v3585
    %v3605 = vmul.f32 %v3254, %v3585
    %v3606 = vmul.f32 %v3255, %v3585
    %v3607 = vmul.f32 %v3256, %v3585
    %v3608 = vmul.f32 %v3257, %v3585
    %v3609 = vmul.f32 %v3258, %v3585
    %v3610 = vmul.f32 %v3259, %v3585
    %v3611 = vlaneseq
    %v3612 = vshrl.u32 %v3611, 7
    %v3613 = vsub.s32 0, %v3612
    %v3614 = vrot.slane %v3581, %v3613
    %v3615 = vadd.f32 %v3586, %v3614
    %v3616 = vadd.f32 %v3587, %v3614
    %v3617 = vadd.f32 %v3588, %v3614
    %v3618 = vadd.f32 %v3589, %v3614
    %v3619 = vadd.f32 %v3590, %v3614
    %v3620 = vadd.f32 %v3591, %v3614
    %v3621 = vadd.f32 %v3592, %v3614
    %v3622 = vadd.f32 %v3593, %v3614
    %v3623 = vadd.f32 %v3594, %v3614
    %v3624 = vadd.f32 %v3595, %v3614
    %v3625 = vadd.f32 %v3596, %v3614
    %v3626 = vadd.f32 %v3597, %v3614
    %v3627 = vadd.f32 %v3598, %v3614
    %v3628 = vadd.f32 %v3599, %v3614
    %v3629 = vadd.f32 %v3600, %v3614
    %v3630 = vadd.f32 %v3601, %v3614
    %v3631 = vadd.f32 %v3602, %v3614
    %v3632 = vadd.f32 %v3603, %v3614
    %v3633 = vadd.f32 %v3604, %v3614
    %v3634 = vadd.f32 %v3605, %v3614
    %v3635 = vadd.f32 %v3606, %v3614
    %v3636 = vadd.f32 %v3607, %v3614
    %v3637 = vadd.f32 %v3608, %v3614
    %v3638 = vadd.f32 %v3609, %v3614
    %v3639 = vadd.f32 %v3610, %v3614
    %v3640 = vmax.f32 %v3615, 0.0
    %v3641 = vmax.f32 %v3616, 0.0
    %v3642 = vmax.f32 %v3617, 0.0
    %v3643 = vmax.f32 %v3618, 0.0
    %v3644 = vmax.f32 %v3619, 0.0
    %v3645 = vmax.f32 %v3620, 0.0
    %v3646 = vmax.f32 %v3621, 0.0
    %v3647 = vmax.f32 %v3622, 0.0
    %v3648 = vmax.f32 %v3623, 0.0
    %v3649 = vmax.f32 %v3624, 0.0
    %v3650 = vmax.f32 %v3625, 0.0
    %v3651 = vmax.f32 %v3626, 0.0
    %v3652 = vmax.f32 %v3627, 0.0
    %v3653 = vmax.f32 %v3628, 0.0
    %v3654 = vmax.f32 %v3629, 0.0
    %v3655 = vmax.f32 %v3630, 0.0
    %v3656 = vmax.f32 %v3631, 0.0
    %v3657 = vmax.f32 %v3632, 0.0
    %v3658 = vmax.f32 %v3633, 0.0
    %v3659 = vmax.f32 %v3634, 0.0
    %v3660 = vmax.f32 %v3635, 0.0
    %v3661 = vmax.f32 %v3636, 0.0
    %v3662 = vmax.f32 %v3637, 0.0
    %v3663 = vmax.f32 %v3638, 0.0
    %v3664 = vmax.f32 %v3639, 0.0
    %3665 = vst.msk [vmem:[#allocation2] sm:$0xff] %vm28, %v3640
    %3666 = vst.msk [vmem:[#allocation2 + $0x8] sm:$0xff] %vm28, %v3641
    %3667 = vst.msk [vmem:[#allocation2 + $0x10] sm:$0xff] %vm28, %v3642
    %3668 = vst.msk [vmem:[#allocation2 + $0x18] sm:$0xff] %vm28, %v3643
    %3669 = vst.msk [vmem:[#allocation2 + $0x20] sm:$0xff] %vm28, %v3644
    %3670 = vst.msk [vmem:[#allocation2 + $0x28] sm:$0xff] %vm28, %v3645
    %3671 = vst.msk [vmem:[#allocation2 + $0x30] sm:$0xff] %vm28, %v3646
    %3672 = vst.msk [vmem:[#allocation2 + $0x38] sm:$0xff] %vm28, %v3647
    %3673 = vst.msk [vmem:[#allocation2 + $0x40] sm:$0xff] %vm28, %v3648
    %3674 = vst.msk [vmem:[#allocation2 + $0x48] sm:$0xff] %vm28, %v3649
    %3675 = vst.msk [vmem:[#allocation2 + $0x50] sm:$0xff] %vm28, %v3650
    %3676 = vst.msk [vmem:[#allocation2 + $0x58] sm:$0xff] %vm28, %v3651
    %3677 = vst.msk [vmem:[#allocation2 + $0x60] sm:$0xff] %vm28, %v3652
    %3678 = vst.msk [vmem:[#allocation2 + $0x68] sm:$0xff] %vm28, %v3653
    %3679 = vst.msk [vmem:[#allocation2 + $0x70] sm:$0xff] %vm28, %v3654
    %3680 = vst.msk [vmem:[#allocation2 + $0x78] sm:$0xff] %vm28, %v3655
    %3681 = vst.msk [vmem:[#allocation2 + $0x80] sm:$0xff] %vm28, %v3656
    %3682 = vst.msk [vmem:[#allocation2 + $0x88] sm:$0xff] %vm28, %v3657
    %3683 = vst.msk [vmem:[#allocation2 + $0x90] sm:$0xff] %vm28, %v3658
    %3684 = vst.msk [vmem:[#allocation2 + $0x98] sm:$0xff] %vm28, %v3659
    %3685 = vst.msk [vmem:[#allocation2 + $0xa0] sm:$0xff] %vm28, %v3660
    %3686 = vst.msk [vmem:[#allocation2 + $0xa8] sm:$0xff] %vm28, %v3661
    %3687 = vst.msk [vmem:[#allocation2 + $0xb0] sm:$0xff] %vm28, %v3662
    %3688 = vst.msk [vmem:[#allocation2 + $0xb8] sm:$0xff] %vm28, %v3663
    %3689 = vst.msk [vmem:[#allocation2 + $0xc0] sm:$0xff] %vm28, %v3664
    %v3690 = vld [vmem:[#allocation2 + $0x1] sm:$0xff]
    %v3691 = vld [vmem:[#allocation2 + $0x9] sm:$0xff]
    %v3692 = vld [vmem:[#allocation2 + $0x11] sm:$0xff]
    %v3693 = vld [vmem:[#allocation2 + $0x19] sm:$0xff]
    %v3694 = vld [vmem:[#allocation2 + $0x21] sm:$0xff]
    %v3695 = vld [vmem:[#allocation2 + $0x29] sm:$0xff]
    %v3696 = vld [vmem:[#allocation2 + $0x31] sm:$0xff]
    %v3697 = vld [vmem:[#allocation2 + $0x39] sm:$0xff]
    %v3698 = vld [vmem:[#allocation2 + $0x41] sm:$0xff]
    %v3699 = vld [vmem:[#allocation2 + $0x49] sm:$0xff]
    %v3700 = vld [vmem:[#allocation2 + $0x51] sm:$0xff]
    %v3701 = vld [vmem:[#allocation2 + $0x59] sm:$0xff]
    %v3702 = vld [vmem:[#allocation2 + $0x61] sm:$0xff]
    %v3703 = vld [vmem:[#allocation2 + $0x69] sm:$0xff]
    %v3704 = vld [vmem:[#allocation2 + $0x71] sm:$0xff]
    %v3705 = vld [vmem:[#allocation2 + $0x79] sm:$0xff]
    %v3706 = vld [vmem:[#allocation2 + $0x81] sm:$0xff]
    %v3707 = vld [vmem:[#allocation2 + $0x89] sm:$0xff]
    %v3708 = vld [vmem:[#allocation2 + $0x91] sm:$0xff]
    %v3709 = vld [vmem:[#allocation2 + $0x99] sm:$0xff]
    %v3710 = vld [vmem:[#allocation2 + $0xa1] sm:$0xff]
    %v3711 = vld [vmem:[#allocation2 + $0xa9] sm:$0xff]
    %v3712 = vld [vmem:[#allocation2 + $0xb1] sm:$0xff]
    %v3713 = vld [vmem:[#allocation2 + $0xb9] sm:$0xff]
    %v3714 = vld [vmem:[#allocation2 + $0xc1] sm:$0xff]
    %v3715 = vmax.f32 %v3640, %v3690
    %v3716 = vmax.f32 %v3641, %v3691
    %v3717 = vmax.f32 %v3642, %v3692
    %v3718 = vmax.f32 %v3643, %v3693
    %v3719 = vmax.f32 %v3644, %v3694
    %v3720 = vmax.f32 %v3645, %v3695
    %v3721 = vmax.f32 %v3646, %v3696
    %v3722 = vmax.f32 %v3647, %v3697
    %v3723 = vmax.f32 %v3648, %v3698
    %v3724 = vmax.f32 %v3649, %v3699
    %v3725 = vmax.f32 %v3650, %v3700
    %v3726 = vmax.f32 %v3651, %v3701
    %v3727 = vmax.f32 %v3652, %v3702
    %v3728 = vmax.f32 %v3653, %v3703
    %v3729 = vmax.f32 %v3654, %v3704
    %v3730 = vmax.f32 %v3655, %v3705
    %v3731 = vmax.f32 %v3656, %v3706
    %v3732 = vmax.f32 %v3657, %v3707
    %v3733 = vmax.f32 %v3658, %v3708
    %v3734 = vmax.f32 %v3659, %v3709
    %v3735 = vmax.f32 %v3660, %v3710
    %v3736 = vmax.f32 %v3661, %v3711
    %v3737 = vmax.f32 %v3662, %v3712
    %v3738 = vmax.f32 %v3663, %v3713
    %v3739 = vmax.f32 %v3664, %v3714
    %v3740 = vld [vmem:[#allocation2 + $0xa] sm:$0xff]
    %v3741 = vld [vmem:[#allocation2 + $0x12] sm:$0xff]
    %v3742 = vld [vmem:[#allocation2 + $0x1a] sm:$0xff]
    %v3743 = vld [vmem:[#allocation2 + $0x22] sm:$0xff]
    %v3744 = vld [vmem:[#allocation2 + $0x2a] sm:$0xff]
    %v3745 = vld [vmem:[#allocation2 + $0x32] sm:$0xff]
    %v3746 = vld [vmem:[#allocation2 + $0x3a] sm:$0xff]
    %v3747 = vld [vmem:[#allocation2 + $0x42] sm:$0xff]
    %v3748 = vld [vmem:[#allocation2 + $0x4a] sm:$0xff]
    %v3749 = vld [vmem:[#allocation2 + $0x52] sm:$0xff]
    %v3750 = vld [vmem:[#allocation2 + $0x5a] sm:$0xff]
    %v3751 = vld [vmem:[#allocation2 + $0x62] sm:$0xff]
    %v3752 = vld [vmem:[#allocation2 + $0x6a] sm:$0xff]
    %v3753 = vld [vmem:[#allocation2 + $0x72] sm:$0xff]
    %v3754 = vld [vmem:[#allocation2 + $0x7a] sm:$0xff]
    %v3755 = vld [vmem:[#allocation2 + $0x82] sm:$0xff]
    %v3756 = vld [vmem:[#allocation2 + $0x8a] sm:$0xff]
    %v3757 = vld [vmem:[#allocation2 + $0x92] sm:$0xff]
    %v3758 = vld [vmem:[#allocation2 + $0x9a] sm:$0xff]
    %v3759 = vld [vmem:[#allocation2 + $0xa2] sm:$0xff]
    %v3760 = vld [vmem:[#allocation2 + $0xaa] sm:$0xff]
    %v3761 = vld [vmem:[#allocation2 + $0xb2] sm:$0xff]
    %v3762 = vld [vmem:[#allocation2 + $0xba] sm:$0xff]
    %v3763 = vld [vmem:[#allocation2 + $0xc2] sm:$0xff]
    %v3764 = vld [vmem:[#allocation2 + $0xca] sm:$0xff]
    %v3765 = vld [vmem:[#allocation2 + $0xb] sm:$0xff]
    %v3766 = vld [vmem:[#allocation2 + $0x13] sm:$0xff]
    %v3767 = vld [vmem:[#allocation2 + $0x1b] sm:$0xff]
    %v3768 = vld [vmem:[#allocation2 + $0x23] sm:$0xff]
    %v3769 = vld [vmem:[#allocation2 + $0x2b] sm:$0xff]
    %v3770 = vld [vmem:[#allocation2 + $0x33] sm:$0xff]
    %v3771 = vld [vmem:[#allocation2 + $0x3b] sm:$0xff]
    %v3772 = vld [vmem:[#allocation2 + $0x43] sm:$0xff]
    %v3773 = vld [vmem:[#allocation2 + $0x4b] sm:$0xff]
    %v3774 = vld [vmem:[#allocation2 + $0x53] sm:$0xff]
    %v3775 = vld [vmem:[#allocation2 + $0x5b] sm:$0xff]
    %v3776 = vld [vmem:[#allocation2 + $0x63] sm:$0xff]
    %v3777 = vld [vmem:[#allocation2 + $0x6b] sm:$0xff]
    %v3778 = vld [vmem:[#allocation2 + $0x73] sm:$0xff]
    %v3779 = vld [vmem:[#allocation2 + $0x7b] sm:$0xff]
    %v3780 = vld [vmem:[#allocation2 + $0x83] sm:$0xff]
    %v3781 = vld [vmem:[#allocation2 + $0x8b] sm:$0xff]
    %v3782 = vld [vmem:[#allocation2 + $0x93] sm:$0xff]
    %v3783 = vld [vmem:[#allocation2 + $0x9b] sm:$0xff]
    %v3784 = vld [vmem:[#allocation2 + $0xa3] sm:$0xff]
    %v3785 = vld [vmem:[#allocation2 + $0xab] sm:$0xff]
    %v3786 = vld [vmem:[#allocation2 + $0xb3] sm:$0xff]
    %v3787 = vld [vmem:[#allocation2 + $0xbb] sm:$0xff]
    %v3788 = vld [vmem:[#allocation2 + $0xc3] sm:$0xff]
    %v3789 = vld [vmem:[#allocation2 + $0xcb] sm:$0xff]
    %v3790 = vmax.f32 %v3740, %v3765
    %v3791 = vmax.f32 %v3741, %v3766
    %v3792 = vmax.f32 %v3742, %v3767
    %v3793 = vmax.f32 %v3743, %v3768
    %v3794 = vmax.f32 %v3744, %v3769
    %v3795 = vmax.f32 %v3745, %v3770
    %v3796 = vmax.f32 %v3746, %v3771
    %v3797 = vmax.f32 %v3747, %v3772
    %v3798 = vmax.f32 %v3748, %v3773
    %v3799 = vmax.f32 %v3749, %v3774
    %v3800 = vmax.f32 %v3750, %v3775
    %v3801 = vmax.f32 %v3751, %v3776
    %v3802 = vmax.f32 %v3752, %v3777
    %v3803 = vmax.f32 %v3753, %v3778
    %v3804 = vmax.f32 %v3754, %v3779
    %v3805 = vmax.f32 %v3755, %v3780
    %v3806 = vmax.f32 %v3756, %v3781
    %v3807 = vmax.f32 %v3757, %v3782
    %v3808 = vmax.f32 %v3758, %v3783
    %v3809 = vmax.f32 %v3759, %v3784
    %v3810 = vmax.f32 %v3760, %v3785
    %v3811 = vmax.f32 %v3761, %v3786
    %v3812 = vmax.f32 %v3762, %v3787
    %v3813 = vmax.f32 %v3763, %v3788
    %v3814 = vmax.f32 %v3764, %v3789
    %v3815 = vmax.f32 %v3715, %v3790
    %v3816 = vmax.f32 %v3716, %v3791
    %v3817 = vmax.f32 %v3717, %v3792
    %v3818 = vmax.f32 %v3718, %v3793
    %v3819 = vmax.f32 %v3719, %v3794
    %v3820 = vmax.f32 %v3720, %v3795
    %v3821 = vmax.f32 %v3721, %v3796
    %v3822 = vmax.f32 %v3722, %v3797
    %v3823 = vmax.f32 %v3723, %v3798
    %v3824 = vmax.f32 %v3724, %v3799
    %v3825 = vmax.f32 %v3725, %v3800
    %v3826 = vmax.f32 %v3726, %v3801
    %v3827 = vmax.f32 %v3727, %v3802
    %v3828 = vmax.f32 %v3728, %v3803
    %v3829 = vmax.f32 %v3729, %v3804
    %v3830 = vmax.f32 %v3730, %v3805
    %v3831 = vmax.f32 %v3731, %v3806
    %v3832 = vmax.f32 %v3732, %v3807
    %v3833 = vmax.f32 %v3733, %v3808
    %v3834 = vmax.f32 %v3734, %v3809
    %v3835 = vmax.f32 %v3735, %v3810
    %v3836 = vmax.f32 %v3736, %v3811
    %v3837 = vmax.f32 %v3737, %v3812
    %v3838 = vmax.f32 %v3738, %v3813
    %v3839 = vmax.f32 %v3739, %v3814
    %3840 = vst.msk [vmem:[#allocation2] sm:$0xff] %vm28, %v3815
    %3841 = vst.msk [vmem:[#allocation2 + $0x8] sm:$0xff] %vm28, %v3816
    %3842 = vst.msk [vmem:[#allocation2 + $0x10] sm:$0xff] %vm28, %v3817
    %3843 = vst.msk [vmem:[#allocation2 + $0x18] sm:$0xff] %vm28, %v3818
    %3844 = vst.msk [vmem:[#allocation2 + $0x20] sm:$0xff] %vm28, %v3819
    %3845 = vst.msk [vmem:[#allocation2 + $0x28] sm:$0xff] %vm28, %v3820
    %3846 = vst.msk [vmem:[#allocation2 + $0x30] sm:$0xff] %vm28, %v3821
    %3847 = vst.msk [vmem:[#allocation2 + $0x38] sm:$0xff] %vm28, %v3822
    %3848 = vst.msk [vmem:[#allocation2 + $0x40] sm:$0xff] %vm28, %v3823
    %3849 = vst.msk [vmem:[#allocation2 + $0x48] sm:$0xff] %vm28, %v3824
    %3850 = vst.msk [vmem:[#allocation2 + $0x50] sm:$0xff] %vm28, %v3825
    %3851 = vst.msk [vmem:[#allocation2 + $0x58] sm:$0xff] %vm28, %v3826
    %3852 = vst.msk [vmem:[#allocation2 + $0x60] sm:$0xff] %vm28, %v3827
    %3853 = vst.msk [vmem:[#allocation2 + $0x68] sm:$0xff] %vm28, %v3828
    %3854 = vst.msk [vmem:[#allocation2 + $0x70] sm:$0xff] %vm28, %v3829
    %3855 = vst.msk [vmem:[#allocation2 + $0x78] sm:$0xff] %vm28, %v3830
    %3856 = vst.msk [vmem:[#allocation2 + $0x80] sm:$0xff] %vm28, %v3831
    %3857 = vst.msk [vmem:[#allocation2 + $0x88] sm:$0xff] %vm28, %v3832
    %3858 = vst.msk [vmem:[#allocation2 + $0x90] sm:$0xff] %vm28, %v3833
    %3859 = vst.msk [vmem:[#allocation2 + $0x98] sm:$0xff] %vm28, %v3834
    %3860 = vst.msk [vmem:[#allocation2 + $0xa0] sm:$0xff] %vm28, %v3835
    %3861 = vst.msk [vmem:[#allocation2 + $0xa8] sm:$0xff] %vm28, %v3836
    %3862 = vst.msk [vmem:[#allocation2 + $0xb0] sm:$0xff] %vm28, %v3837
    %3863 = vst.msk [vmem:[#allocation2 + $0xb8] sm:$0xff] %vm28, %v3838
    %3864 = vst.msk [vmem:[#allocation2 + $0xc0] sm:$0xff] %vm28, %v3839
    %s3865 = scalar_lea.vmem [#allocation2], 11
    %v3866 = vld [vmem:[%s3865] ss:$2 sm:$0xf]
    %vm3867 = vcmask 519168
    %3868 = vst.msk [vmem:[#allocation3 + $0xe] sm:$0xf] %vm3867, %v3866
    %s3869 = scalar_lea.vmem [#allocation2], 31
    %v3870 = vld [vmem:[%s3869] ss:$2 sm:$0xf]
    %3871 = vst.msk [vmem:[#allocation3 + $0x14] sm:$0xf] %vm3867, %v3870
    %s3872 = scalar_lea.vmem [#allocation2], 51
    %v3873 = vld [vmem:[%s3872] ss:$2 sm:$0xf]
    %3874 = vst.msk [vmem:[#allocation3 + $0x1a] sm:$0xf] %vm3867, %v3873
    %s3875 = scalar_lea.vmem [#allocation2], 71
    %v3876 = vld [vmem:[%s3875] ss:$2 sm:$0xf]
    %3877 = vst.msk [vmem:[#allocation3 + $0x20] sm:$0xf] %vm3867, %v3876
    %s3878 = scalar_lea.vmem [#allocation2], 111
    %v3879 = vld [vmem:[%s3878] ss:$2 sm:$0xf]
    %3880 = vst.msk [vmem:[#allocation3 + $0x32] sm:$0xf] %vm3867, %v3879
    %s3881 = scalar_lea.vmem [#allocation2], 131
    %v3882 = vld [vmem:[%s3881] ss:$2 sm:$0xf]
    %3883 = vst.msk [vmem:[#allocation3 + $0x38] sm:$0xf] %vm3867, %v3882
    %s3884 = scalar_lea.vmem [#allocation2], 151
    %v3885 = vld [vmem:[%s3884] ss:$2 sm:$0xf]
    %3886 = vst.msk [vmem:[#allocation3 + $0x3e] sm:$0xf] %vm3867, %v3885
    %s3887 = scalar_lea.vmem [#allocation2], 171
    %v3888 = vld [vmem:[%s3887] ss:$2 sm:$0xf]
    %3889 = vst.msk [vmem:[#allocation3 + $0x44] sm:$0xf] %vm3867, %v3888
    %v3890 = vld [vmem:[#allocation3] sm:$0xff]
    %v3891 = vld [vmem:[#allocation3 + $0x8] sm:$0xff]
    %v3892 = vld [vmem:[#allocation3 + $0x10] sm:$0xff]
    %v3893 = vld [vmem:[#allocation3 + $0x18] sm:$0xff]
    %v3894 = vld [vmem:[#allocation3 + $0x20] sm:$0xff]
    %v3895 = vld [vmem:[#allocation3 + $0x28] sm:$0xff]
    %v3896 = vld [vmem:[#allocation3 + $0x30] sm:$0xff]
    %v3897 = vld [vmem:[#allocation3 + $0x38] sm:$0xff]
    %v3898 = vld [vmem:[#allocation3 + $0x40] sm:$0xff]
    %v3899 = vld [vmem:[#allocation3 + $0x6] sm:$0xff]
    %v3900 = vld [vmem:[#allocation3 + $0xe] sm:$0xff]
    %v3901 = vld [vmem:[#allocation3 + $0x16] sm:$0xff]
    %v3902 = vld [vmem:[#allocation3 + $0x1e] sm:$0xff]
    %v3903 = vld [vmem:[#allocation3 + $0x26] sm:$0xff]
    %v3904 = vld [vmem:[#allocation3 + $0x2e] sm:$0xff]
    %v3905 = vld [vmem:[#allocation3 + $0x36] sm:$0xff]
    %v3906 = vld [vmem:[#allocation3 + $0x3e] sm:$0xff]
    %v3907 = vld [vmem:[#allocation3 + $0x46] sm:$0xff]
    %v3908 = vld [vmem:[#allocation3 + $0xc] sm:$0xff]
    %v3909 = vld [vmem:[#allocation3 + $0x14] sm:$0xff]
    %v3910 = vld [vmem:[#allocation3 + $0x1c] sm:$0xff]
    %v3911 = vld [vmem:[#allocation3 + $0x24] sm:$0xff]
    %v3912 = vld [vmem:[#allocation3 + $0x2c] sm:$0xff]
    %v3913 = vld [vmem:[#allocation3 + $0x34] sm:$0xff]
    %v3914 = vld [vmem:[#allocation3 + $0x3c] sm:$0xff]
    %v3915 = vld [vmem:[#allocation3 + $0x44] sm:$0xff]
    %v3916 = vld [vmem:[#allocation3 + $0x4c] sm:$0xff]
    %3926 = vrot.lane.b32.xlu0 %v3899, 64
    %v3927 = vpop.permute.xlu0 %3926
    %3928 = vrot.lane.b32.xlu0 %v3900, 64
    %v3929 = vpop.permute.xlu0 %3928
    %3930 = vrot.lane.b32.xlu0 %v3901, 64
    %v3931 = vpop.permute.xlu0 %3930
    %3932 = vrot.lane.b32.xlu0 %v3902, 64
    %v3933 = vpop.permute.xlu0 %3932
    %3934 = vrot.lane.b32.xlu0 %v3903, 64
    %v3935 = vpop.permute.xlu0 %3934
    %3936 = vrot.lane.b32.xlu0 %v3904, 64
    %v3937 = vpop.permute.xlu0 %3936
    %3938 = vrot.lane.b32.xlu0 %v3905, 64
    %v3939 = vpop.permute.xlu0 %3938
    %3940 = vrot.lane.b32.xlu0 %v3906, 64
    %v3941 = vpop.permute.xlu0 %3940
    %3942 = vrot.lane.b32.xlu0 %v3907, 64
    %v3943 = vpop.permute.xlu0 %3942
    %v3953 = vsel %vm28, %v3890, %v3927
    %v3954 = vsel %vm28, %v3891, %v3929
    %v3955 = vsel %vm28, %v3892, %v3931
    %v3956 = vsel %vm28, %v3893, %v3933
    %v3957 = vsel %vm28, %v3894, %v3935
    %v3958 = vsel %vm28, %v3895, %v3937
    %v3959 = vsel %vm28, %v3896, %v3939
    %v3960 = vsel %vm28, %v3897, %v3941
    %v3961 = vsel %vm28, %v3898, %v3943
    %v3962 = vpack.c.bf16 %v3954, %v3953
    %v3963 = vpack.c.bf16 %v3909, %v3908
    %v3964 = vpack.c.bf16 %v3956, %v3955
    %v3965 = vpack.c.bf16 %v3911, %v3910
    %v3966 = vpack.c.bf16 %v3958, %v3957
    %v3967 = vpack.c.bf16 %v3913, %v3912
    %v3968 = vpack.c.bf16 %v3960, %v3959
    %v3969 = vpack.c.bf16 %v3915, %v3914
    %v3970 = vpack.c.bf16 %v3961, %v3961
    %v3971 = vpack.c.bf16 %v3916, %v3916
    %s3972 = scalar_lea.vmem %s2, 288
    %v3973 = vld [vmem:[%s3972] sm:$0xf]
    %v3974 = vld [vmem:[%s3972 + $0x4] sm:$0xf]
    %v3975 = vld [vmem:[%s3972 + $0x8] sm:$0xf]
    %v3976 = vld [vmem:[%s3972 + $0xc] sm:$0xf]
    %v3977 = vld [vmem:[%s3972 + $0x10] sm:$0xf]
    %v3978 = vld [vmem:[%s3972 + $0x14] sm:$0xf]
    %v3979 = vld [vmem:[%s3972 + $0x18] sm:$0xf]
    %v3980 = vld [vmem:[%s3972 + $0x1c] sm:$0xf]
    %v3981 = vld [vmem:[%s3972 + $0x20] sm:$0xf]
    %v3982 = vld [vmem:[%s3972 + $0x24] sm:$0xf]
    %v3983 = vld [vmem:[%s3972 + $0x28] sm:$0xf]
    %v3984 = vld [vmem:[%s3972 + $0x2c] sm:$0xf]
    %v3985 = vld [vmem:[%s3972 + $0x30] sm:$0xf]
    %v3986 = vld [vmem:[%s3972 + $0x34] sm:$0xf]
    %v3987 = vld [vmem:[%s3972 + $0x38] sm:$0xf]
    %v3988 = vld [vmem:[%s3972 + $0x3c] sm:$0xf]
    %v3989 = vld [vmem:[%s3972 + $0x40] sm:$0xf]
    %v3990 = vld [vmem:[%s3972 + $0x44] sm:$0xf]
    %v3991 = vld [vmem:[%s3972 + $0x48] sm:$0xf]
    %v3992 = vld [vmem:[%s3972 + $0x4c] sm:$0xf]
    %v3993 = vld [vmem:[%s3972 + $0x50] sm:$0xf]
    %v3994 = vld [vmem:[%s3972 + $0x54] sm:$0xf]
    %v3995 = vld [vmem:[%s3972 + $0x58] sm:$0xf]
    %v3996 = vld [vmem:[%s3972 + $0x5c] sm:$0xf]
    %v3997 = vld [vmem:[#allocation3 + $0x1] sm:$0xff]
    %v3998 = vld [vmem:[#allocation3 + $0x9] sm:$0xff]
    %v3999 = vld [vmem:[#allocation3 + $0x11] sm:$0xff]
    %v4000 = vld [vmem:[#allocation3 + $0x19] sm:$0xff]
    %v4001 = vld [vmem:[#allocation3 + $0x21] sm:$0xff]
    %v4002 = vld [vmem:[#allocation3 + $0x29] sm:$0xff]
    %v4003 = vld [vmem:[#allocation3 + $0x31] sm:$0xff]
    %v4004 = vld [vmem:[#allocation3 + $0x39] sm:$0xff]
    %v4005 = vld [vmem:[#allocation3 + $0x41] sm:$0xff]
    %v4006 = vld [vmem:[#allocation3 + $0x7] sm:$0xff]
    %v4007 = vld [vmem:[#allocation3 + $0xf] sm:$0xff]
    %v4008 = vld [vmem:[#allocation3 + $0x17] sm:$0xff]
    %v4009 = vld [vmem:[#allocation3 + $0x1f] sm:$0xff]
    %v4010 = vld [vmem:[#allocation3 + $0x27] sm:$0xff]
    %v4011 = vld [vmem:[#allocation3 + $0x2f] sm:$0xff]
    %v4012 = vld [vmem:[#allocation3 + $0x37] sm:$0xff]
    %v4013 = vld [vmem:[#allocation3 + $0x3f] sm:$0xff]
    %v4014 = vld [vmem:[#allocation3 + $0x47] sm:$0xff]
    %v4015 = vld [vmem:[#allocation3 + $0xd] sm:$0xff]
    %v4016 = vld [vmem:[#allocation3 + $0x15] sm:$0xff]
    %v4017 = vld [vmem:[#allocation3 + $0x1d] sm:$0xff]
    %v4018 = vld [vmem:[#allocation3 + $0x25] sm:$0xff]
    %v4019 = vld [vmem:[#allocation3 + $0x2d] sm:$0xff]
    %v4020 = vld [vmem:[#allocation3 + $0x35] sm:$0xff]
    %v4021 = vld [vmem:[#allocation3 + $0x3d] sm:$0xff]
    %v4022 = vld [vmem:[#allocation3 + $0x45] sm:$0xff]
    %v4023 = vld [vmem:[#allocation3 + $0x4d] sm:$0xff]
    %4033 = vrot.lane.b32.xlu0 %v4006, 64
    %v4034 = vpop.permute.xlu0 %4033
    %4035 = vrot.lane.b32.xlu0 %v4007, 64
    %v4036 = vpop.permute.xlu0 %4035
    %4037 = vrot.lane.b32.xlu0 %v4008, 64
    %v4038 = vpop.permute.xlu0 %4037
    %4039 = vrot.lane.b32.xlu0 %v4009, 64
    %v4040 = vpop.permute.xlu0 %4039
    %4041 = vrot.lane.b32.xlu0 %v4010, 64
    %v4042 = vpop.permute.xlu0 %4041
    %4043 = vrot.lane.b32.xlu0 %v4011, 64
    %v4044 = vpop.permute.xlu0 %4043
    %4045 = vrot.lane.b32.xlu0 %v4012, 64
    %v4046 = vpop.permute.xlu0 %4045
    %4047 = vrot.lane.b32.xlu0 %v4013, 64
    %v4048 = vpop.permute.xlu0 %4047
    %4049 = vrot.lane.b32.xlu0 %v4014, 64
    %v4050 = vpop.permute.xlu0 %4049
    %v4060 = vsel %vm28, %v3997, %v4034
    %v4061 = vsel %vm28, %v3998, %v4036
    %v4062 = vsel %vm28, %v3999, %v4038
    %v4063 = vsel %vm28, %v4000, %v4040
    %v4064 = vsel %vm28, %v4001, %v4042
    %v4065 = vsel %vm28, %v4002, %v4044
    %v4066 = vsel %vm28, %v4003, %v4046
    %v4067 = vsel %vm28, %v4004, %v4048
    %v4068 = vsel %vm28, %v4005, %v4050
    %v4069 = vpack.c.bf16 %v4061, %v4060
    %v4070 = vpack.c.bf16 %v4016, %v4015
    %v4071 = vpack.c.bf16 %v4063, %v4062
    %v4072 = vpack.c.bf16 %v4018, %v4017
    %v4073 = vpack.c.bf16 %v4065, %v4064
    %v4074 = vpack.c.bf16 %v4020, %v4019
    %v4075 = vpack.c.bf16 %v4067, %v4066
    %v4076 = vpack.c.bf16 %v4022, %v4021
    %v4077 = vpack.c.bf16 %v4068, %v4068
    %v4078 = vpack.c.bf16 %v4023, %v4023
    %s4079 = scalar_lea.vmem %s2, 384
    %v4080 = vld [vmem:[%s4079] sm:$0xf]
    %v4081 = vld [vmem:[%s4079 + $0x4] sm:$0xf]
    %v4082 = vld [vmem:[%s4079 + $0x8] sm:$0xf]
    %v4083 = vld [vmem:[%s4079 + $0xc] sm:$0xf]
    %v4084 = vld [vmem:[%s4079 + $0x10] sm:$0xf]
    %v4085 = vld [vmem:[%s4079 + $0x14] sm:$0xf]
    %v4086 = vld [vmem:[%s4079 + $0x18] sm:$0xf]
    %v4087 = vld [vmem:[%s4079 + $0x1c] sm:$0xf]
    %v4088 = vld [vmem:[%s4079 + $0x20] sm:$0xf]
    %v4089 = vld [vmem:[%s4079 + $0x24] sm:$0xf]
    %v4090 = vld [vmem:[%s4079 + $0x28] sm:$0xf]
    %v4091 = vld [vmem:[%s4079 + $0x2c] sm:$0xf]
    %v4092 = vld [vmem:[%s4079 + $0x30] sm:$0xf]
    %v4093 = vld [vmem:[%s4079 + $0x34] sm:$0xf]
    %v4094 = vld [vmem:[%s4079 + $0x38] sm:$0xf]
    %v4095 = vld [vmem:[%s4079 + $0x3c] sm:$0xf]
    %v4096 = vld [vmem:[%s4079 + $0x40] sm:$0xf]
    %v4097 = vld [vmem:[%s4079 + $0x44] sm:$0xf]
    %v4098 = vld [vmem:[%s4079 + $0x48] sm:$0xf]
    %v4099 = vld [vmem:[%s4079 + $0x4c] sm:$0xf]
    %v4100 = vld [vmem:[%s4079 + $0x50] sm:$0xf]
    %v4101 = vld [vmem:[%s4079 + $0x54] sm:$0xf]
    %v4102 = vld [vmem:[%s4079 + $0x58] sm:$0xf]
    %v4103 = vld [vmem:[%s4079 + $0x5c] sm:$0xf]
    %v4128 = vunpack.c.l.b16 %v4080
    %v4129 = vunpack.c.l.b16 %v4081
    %v4130 = vunpack.c.l.b16 %v4082
    %v4131 = vunpack.c.l.b16 %v4083
    %v4132 = vunpack.c.l.b16 %v4084
    %v4133 = vunpack.c.l.b16 %v4085
    %v4134 = vunpack.c.l.b16 %v4086
    %v4135 = vunpack.c.l.b16 %v4087
    %v4136 = vunpack.c.l.b16 %v4088
    %v4137 = vunpack.c.l.b16 %v4089
    %v4138 = vunpack.c.l.b16 %v4090
    %v4139 = vunpack.c.l.b16 %v4091
    %v4140 = vunpack.c.l.b16 %v4092
    %v4141 = vunpack.c.l.b16 %v4093
    %v4142 = vunpack.c.l.b16 %v4094
    %v4143 = vunpack.c.l.b16 %v4095
    %v4144 = vunpack.c.l.b16 %v4096
    %v4145 = vunpack.c.l.b16 %v4097
    %v4146 = vunpack.c.l.b16 %v4098
    %v4147 = vunpack.c.l.b16 %v4099
    %v4148 = vunpack.c.l.b16 %v4100
    %v4149 = vunpack.c.l.b16 %v4101
    %v4150 = vunpack.c.l.b16 %v4102
    %v4151 = vunpack.c.l.b16 %v4103
    %v4152 = vpack.c.b16 %v4129, %v4128
    %v4153 = vpack.c.b16 %v4131, %v4130
    %v4154 = vpack.c.b16 %v4133, %v4132
    %v4155 = vpack.c.b16 %v4135, %v4134
    %v4156 = vpack.c.b16 %v4137, %v4136
    %v4157 = vpack.c.b16 %v4139, %v4138
    %v4158 = vpack.c.b16 %v4141, %v4140
    %v4159 = vpack.c.b16 %v4143, %v4142
    %v4160 = vpack.c.b16 %v4145, %v4144
    %v4161 = vpack.c.b16 %v4147, %v4146
    %v4162 = vpack.c.b16 %v4149, %v4148
    %v4163 = vpack.c.b16 %v4151, %v4150
    %v4177 = vsel %vm28, %v4070, 0
    %v4180 = vsel %vm28, %v4072, 0
    %v4183 = vsel %vm28, %v4074, 0
    %v4186 = vsel %vm28, %v4076, 0
    %v4189 = vsel %vm28, %v4078, 0
    %4191 = vmatprep.subr.bf16.mxu0 0
    %4192 = vmatpush1.bf16.msra.mxu0 %v4152
    %4193 = vmatprep.subr.bf16.mxu0 0
    %4194 = vmatpush1.bf16.msra.mxu0 %v4153
    %4195 = vmatprep.subr.bf16.mxu0 0
    %4196 = vmatpush1.bf16.msra.mxu0 %v4154
    %4197 = vmatprep.subr.bf16.mxu0 0
    %4198 = vmatpush1.bf16.msra.mxu0 %v4155
    %4199 = vmatprep.subr.bf16.mxu0 0
    %4200 = vmatpush1.bf16.msra.mxu0 %v4156
    %4201 = vmatprep.subr.bf16.mxu0 0
    %4202 = vmatpush1.bf16.msra.mxu0 %v4157
    %4203 = vmatprep.subr.bf16.mxu0 0
    %4204 = vmatpush1.bf16.msra.mxu0 %v4158
    %4205 = vmatprep.subr.bf16.mxu0 0
    %4206 = vmatpush1.bf16.msra.mxu0 %v4159
    %4207 = vmatprep.subr.bf16.mxu0 0
    %4208 = vmatpush1.bf16.msra.mxu0 %v4160
    %4209 = vmatprep.subr.bf16.mxu0 0
    %4210 = vmatpush1.bf16.msra.mxu0 %v4161
    %4211 = vmatprep.subr.bf16.mxu0 0
    %4212 = vmatpush1.bf16.msra.mxu0 %v4162
    %4213 = vmatprep.subr.bf16.mxu0 0
    %4214 = vmatpush1.bf16.msra.mxu0 %v4163
    %4215 = vmatprep.subr.bf16.mxu0 0
    %4216 = vmatpush1.bf16.msra.mxu0 0
    %4217 = vmatprep.subr.bf16.mxu0 0
    %4218 = vmatpush1.bf16.msra.mxu0 0
    %4219 = vmatprep.subr.bf16.mxu0 0
    %4220 = vmatpush1.bf16.msra.mxu0 0
    %4221 = vmatprep.subr.bf16.mxu0 0
    %4222 = vmatpush1.bf16.msra.mxu0 0
    %4223 = vmatprep.mubr.bf16.mxu0 %v4177
    %4224 = vmatmul.mubr.bf16.gmra.mrb[0].mxu0 %v4069
    %v4225 = vpop.f32.mrb[0].mxu0
    %v4226 = vadd.f32 0.0, %v4225
    %v4227 = vpop.f32.mrb[0].mxu0
    %v4228 = vpop.f32.mrb[0].mxu0
    %v4229 = vadd.f32 0.0, %v4228
    %v4230 = vpop.f32.mrb[0].mxu0
    %4231 = vmatprep.mubr.bf16.mxu0 %v4180
    %4232 = vmatmul.mubr.bf16.gmra.mrb[0].mxu0 %v4071
    %v4233 = vpop.f32.mrb[0].mxu0
    %v4234 = vadd.f32 0.0, %v4233
    %v4235 = vpop.f32.mrb[0].mxu0
    %v4236 = vpop.f32.mrb[0].mxu0
    %v4237 = vadd.f32 0.0, %v4236
    %v4238 = vpop.f32.mrb[0].mxu0
    %4239 = vmatprep.mubr.bf16.mxu0 %v4183
    %4240 = vmatmul.mubr.bf16.gmra.mrb[0].mxu0 %v4073
    %v4241 = vpop.f32.mrb[0].mxu0
    %v4242 = vadd.f32 0.0, %v4241
    %v4243 = vpop.f32.mrb[0].mxu0
    %v4244 = vpop.f32.mrb[0].mxu0
    %v4245 = vadd.f32 0.0, %v4244
    %v4246 = vpop.f32.mrb[0].mxu0
    %4247 = vmatprep.mubr.bf16.mxu0 %v4186
    %4248 = vmatmul.mubr.bf16.gmra.mrb[0].mxu0 %v4075
    %v4249 = vpop.f32.mrb[0].mxu0
    %v4250 = vadd.f32 0.0, %v4249
    %v4251 = vpop.f32.mrb[0].mxu0
    %v4252 = vpop.f32.mrb[0].mxu0
    %v4253 = vadd.f32 0.0, %v4252
    %v4254 = vpop.f32.mrb[0].mxu0
    %4255 = vmatprep.mubr.bf16.mxu0 %v4189
    %4256 = vmatmul.mubr.bf16.gmra.mrb[0].mxu0 %v4077
    %v4257 = vpop.f32.mrb[0].mxu0
    %v4258 = vadd.f32 0.0, %v4257
    %v4259 = vpop.f32.mrb[0].mxu0
    %v4260 = vpop.f32.mrb[0].mxu0
    %v4261 = vpop.f32.mrb[0].mxu0
    %4262 = vdwg.mxu0
    %v4287 = vunpack.c.l.b16 %v3973
    %v4288 = vunpack.c.l.b16 %v3974
    %v4289 = vunpack.c.l.b16 %v3975
    %v4290 = vunpack.c.l.b16 %v3976
    %v4291 = vunpack.c.l.b16 %v3977
    %v4292 = vunpack.c.l.b16 %v3978
    %v4293 = vunpack.c.l.b16 %v3979
    %v4294 = vunpack.c.l.b16 %v3980
    %v4295 = vunpack.c.l.b16 %v3981
    %v4296 = vunpack.c.l.b16 %v3982
    %v4297 = vunpack.c.l.b16 %v3983
    %v4298 = vunpack.c.l.b16 %v3984
    %v4299 = vunpack.c.l.b16 %v3985
    %v4300 = vunpack.c.l.b16 %v3986
    %v4301 = vunpack.c.l.b16 %v3987
    %v4302 = vunpack.c.l.b16 %v3988
    %v4303 = vunpack.c.l.b16 %v3989
    %v4304 = vunpack.c.l.b16 %v3990
    %v4305 = vunpack.c.l.b16 %v3991
    %v4306 = vunpack.c.l.b16 %v3992
    %v4307 = vunpack.c.l.b16 %v3993
    %v4308 = vunpack.c.l.b16 %v3994
    %v4309 = vunpack.c.l.b16 %v3995
    %v4310 = vunpack.c.l.b16 %v3996
    %v4311 = vpack.c.b16 %v4288, %v4287
    %v4312 = vpack.c.b16 %v4290, %v4289
    %v4313 = vpack.c.b16 %v4292, %v4291
    %v4314 = vpack.c.b16 %v4294, %v4293
    %v4315 = vpack.c.b16 %v4296, %v4295
    %v4316 = vpack.c.b16 %v4298, %v4297
    %v4317 = vpack.c.b16 %v4300, %v4299
    %v4318 = vpack.c.b16 %v4302, %v4301
    %v4319 = vpack.c.b16 %v4304, %v4303
    %v4320 = vpack.c.b16 %v4306, %v4305
    %v4321 = vpack.c.b16 %v4308, %v4307
    %v4322 = vpack.c.b16 %v4310, %v4309
    %v4336 = vsel %vm28, %v3963, 0
    %v4339 = vsel %vm28, %v3965, 0
    %v4342 = vsel %vm28, %v3967, 0
    %v4345 = vsel %vm28, %v3969, 0
    %v4348 = vsel %vm28, %v3971, 0
    %4350 = vmatprep.subr.bf16.mxu0 0
    %4351 = vmatpush1.bf16.msra.mxu0 %v4311
    %4352 = vmatprep.subr.bf16.mxu0 0
    %4353 = vmatpush1.bf16.msra.mxu0 %v4312
    %4354 = vmatprep.subr.bf16.mxu0 0
    %4355 = vmatpush1.bf16.msra.mxu0 %v4313
    %4356 = vmatprep.subr.bf16.mxu0 0
    %4357 = vmatpush1.bf16.msra.mxu0 %v4314
    %4358 = vmatprep.subr.bf16.mxu0 0
    %4359 = vmatpush1.bf16.msra.mxu0 %v4315
    %4360 = vmatprep.subr.bf16.mxu0 0
    %4361 = vmatpush1.bf16.msra.mxu0 %v4316
    %4362 = vmatprep.subr.bf16.mxu0 0
    %4363 = vmatpush1.bf16.msra.mxu0 %v4317
    %4364 = vmatprep.subr.bf16.mxu0 0
    %4365 = vmatpush1.bf16.msra.mxu0 %v4318
    %4366 = vmatprep.subr.bf16.mxu0 0
    %4367 = vmatpush1.bf16.msra.mxu0 %v4319
    %4368 = vmatprep.subr.bf16.mxu0 0
    %4369 = vmatpush1.bf16.msra.mxu0 %v4320
    %4370 = vmatprep.subr.bf16.mxu0 0
    %4371 = vmatpush1.bf16.msra.mxu0 %v4321
    %4372 = vmatprep.subr.bf16.mxu0 0
    %4373 = vmatpush1.bf16.msra.mxu0 %v4322
    %4374 = vmatprep.subr.bf16.mxu0 0
    %4375 = vmatpush1.bf16.msra.mxu0 0
    %4376 = vmatprep.subr.bf16.mxu0 0
    %4377 = vmatpush1.bf16.msra.mxu0 0
    %4378 = vmatprep.subr.bf16.mxu0 0
    %4379 = vmatpush1.bf16.msra.mxu0 0
    %4380 = vmatprep.subr.bf16.mxu0 0
    %4381 = vmatpush1.bf16.msra.mxu0 0
    %4382 = vmatprep.mubr.bf16.mxu0 %v4336
    %4383 = vmatmul.mubr.bf16.gmra.mrb[0].mxu0 %v3962
    %v4384 = vpop.f32.mrb[0].mxu0
    %v4385 = vadd.f32 %v4226, %v4384
    %v4386 = vpop.f32.mrb[0].mxu0
    %v4387 = vpop.f32.mrb[0].mxu0
    %v4388 = vadd.f32 %v4229, %v4387
    %v4389 = vpop.f32.mrb[0].mxu0
    %4390 = vmatprep.mubr.bf16.mxu0 %v4339
    %4391 = vmatmul.mubr.bf16.gmra.mrb[0].mxu0 %v3964
    %v4392 = vpop.f32.mrb[0].mxu0
    %v4393 = vadd.f32 %v4234, %v4392
    %v4394 = vpop.f32.mrb[0].mxu0
    %v4395 = vpop.f32.mrb[0].mxu0
    %v4396 = vadd.f32 %v4237, %v4395
    %v4397 = vpop.f32.mrb[0].mxu0
    %4398 = vmatprep.mubr.bf16.mxu0 %v4342
    %4399 = vmatmul.mubr.bf16.gmra.mrb[0].mxu0 %v3966
    %v4400 = vpop.f32.mrb[0].mxu0
    %v4401 = vadd.f32 %v4242, %v4400
    %v4402 = vpop.f32.mrb[0].mxu0
    %v4403 = vpop.f32.mrb[0].mxu0
    %v4404 = vadd.f32 %v4245, %v4403
    %v4405 = vpop.f32.mrb[0].mxu0
    %4406 = vmatprep.mubr.bf16.mxu0 %v4345
    %4407 = vmatmul.mubr.bf16.gmra.mrb[0].mxu0 %v3968
    %v4408 = vpop.f32.mrb[0].mxu0
    %v4409 = vadd.f32 %v4250, %v4408
    %v4410 = vpop.f32.mrb[0].mxu0
    %v4411 = vpop.f32.mrb[0].mxu0
    %v4412 = vadd.f32 %v4253, %v4411
    %v4413 = vpop.f32.mrb[0].mxu0
    %4414 = vmatprep.mubr.bf16.mxu0 %v4348
    %4415 = vmatmul.mubr.bf16.gmra.mrb[0].mxu0 %v3970
    %v4416 = vpop.f32.mrb[0].mxu0
    %v4417 = vadd.f32 %v4258, %v4416
    %v4418 = vpop.f32.mrb[0].mxu0
    %v4419 = vpop.f32.mrb[0].mxu0
    %v4420 = vpop.f32.mrb[0].mxu0
    %4421 = vdwg.mxu0
    %v4422 = vld [vmem:[#allocation3 + $0x2] sm:$0xff]
    %v4423 = vld [vmem:[#allocation3 + $0xa] sm:$0xff]
    %v4424 = vld [vmem:[#allocation3 + $0x12] sm:$0xff]
    %v4425 = vld [vmem:[#allocation3 + $0x1a] sm:$0xff]
    %v4426 = vld [vmem:[#allocation3 + $0x22] sm:$0xff]
    %v4427 = vld [vmem:[#allocation3 + $0x2a] sm:$0xff]
    %v4428 = vld [vmem:[#allocation3 + $0x32] sm:$0xff]
    %v4429 = vld [vmem:[#allocation3 + $0x3a] sm:$0xff]
    %v4430 = vld [vmem:[#allocation3 + $0x42] sm:$0xff]
    %v4431 = vld [vmem:[#allocation3 + $0x8] sm:$0xff]
    %v4432 = vld [vmem:[#allocation3 + $0x10] sm:$0xff]
    %v4433 = vld [vmem:[#allocation3 + $0x18] sm:$0xff]
    %v4434 = vld [vmem:[#allocation3 + $0x20] sm:$0xff]
    %v4435 = vld [vmem:[#allocation3 + $0x28] sm:$0xff]
    %v4436 = vld [vmem:[#allocation3 + $0x30] sm:$0xff]
    %v4437 = vld [vmem:[#allocation3 + $0x38] sm:$0xff]
    %v4438 = vld [vmem:[#allocation3 + $0x40] sm:$0xff]
    %v4439 = vld [vmem:[#allocation3 + $0x48] sm:$0xff]
    %v4440 = vld [vmem:[#allocation3 + $0xe] sm:$0xff]
    %v4441 = vld [vmem:[#allocation3 + $0x16] sm:$0xff]
    %v4442 = vld [vmem:[#allocation3 + $0x1e] sm:$0xff]
    %v4443 = vld [vmem:[#allocation3 + $0x26] sm:$0xff]
    %v4444 = vld [vmem:[#allocation3 + $0x2e] sm:$0xff]
    %v4445 = vld [vmem:[#allocation3 + $0x36] sm:$0xff]
    %v4446 = vld [vmem:[#allocation3 + $0x3e] sm:$0xff]
    %v4447 = vld [vmem:[#allocation3 + $0x46] sm:$0xff]
    %v4448 = vld [vmem:[#allocation3 + $0x4e] sm:$0xff]
    %4458 = vrot.lane.b32.xlu0 %v4431, 64
    %v4459 = vpop.permute.xlu0 %4458
    %4460 = vrot.lane.b32.xlu0 %v4432, 64
    %v4461 = vpop.permute.xlu0 %4460
    %4462 = vrot.lane.b32.xlu0 %v4433, 64
    %v4463 = vpop.permute.xlu0 %4462
    %4464 = vrot.lane.b32.xlu0 %v4434, 64
    %v4465 = vpop.permute.xlu0 %4464
    %4466 = vrot.lane.b32.xlu0 %v4435, 64
    %v4467 = vpop.permute.xlu0 %4466
    %4468 = vrot.lane.b32.xlu0 %v4436, 64
    %v4469 = vpop.permute.xlu0 %4468
    %4470 = vrot.lane.b32.xlu0 %v4437, 64
    %v4471 = vpop.permute.xlu0 %4470
    %4472 = vrot.lane.b32.xlu0 %v4438, 64
    %v4473 = vpop.permute.xlu0 %4472
    %4474 = vrot.lane.b32.xlu0 %v4439, 64
    %v4475 = vpop.permute.xlu0 %4474
    %v4485 = vsel %vm28, %v4422, %v4459
    %v4486 = vsel %vm28, %v4423, %v4461
    %v4487 = vsel %vm28, %v4424, %v4463
    %v4488 = vsel %vm28, %v4425, %v4465
    %v4489 = vsel %vm28, %v4426, %v4467
    %v4490 = vsel %vm28, %v4427, %v4469
    %v4491 = vsel %vm28, %v4428, %v4471
    %v4492 = vsel %vm28, %v4429, %v4473
    %v4493 = vsel %vm28, %v4430, %v4475
    %v4494 = vpack.c.bf16 %v4486, %v4485
    %v4495 = vpack.c.bf16 %v4441, %v4440
    %v4496 = vpack.c.bf16 %v4488, %v4487
    %v4497 = vpack.c.bf16 %v4443, %v4442
    %v4498 = vpack.c.bf16 %v4490, %v4489
    %v4499 = vpack.c.bf16 %v4445, %v4444
    %v4500 = vpack.c.bf16 %v4492, %v4491
    %v4501 = vpack.c.bf16 %v4447, %v4446
    %v4502 = vpack.c.bf16 %v4493, %v4493
    %v4503 = vpack.c.bf16 %v4448, %v4448
    %s4504 = scalar_lea.vmem %s2, 480
    %v4505 = vld [vmem:[%s4504] sm:$0xf]
    %v4506 = vld [vmem:[%s4504 + $0x4] sm:$0xf]
    %v4507 = vld [vmem:[%s4504 + $0x8] sm:$0xf]
    %v4508 = vld [vmem:[%s4504 + $0xc] sm:$0xf]
    %v4509 = vld [vmem:[%s4504 + $0x10] sm:$0xf]
    %v4510 = vld [vmem:[%s4504 + $0x14] sm:$0xf]
    %v4511 = vld [vmem:[%s4504 + $0x18] sm:$0xf]
    %v4512 = vld [vmem:[%s4504 + $0x1c] sm:$0xf]
    %v4513 = vld [vmem:[%s4504 + $0x20] sm:$0xf]
    %v4514 = vld [vmem:[%s4504 + $0x24] sm:$0xf]
    %v4515 = vld [vmem:[%s4504 + $0x28] sm:$0xf]
    %v4516 = vld [vmem:[%s4504 + $0x2c] sm:$0xf]
    %v4517 = vld [vmem:[%s4504 + $0x30] sm:$0xf]
    %v4518 = vld [vmem:[%s4504 + $0x34] sm:$0xf]
    %v4519 = vld [vmem:[%s4504 + $0x38] sm:$0xf]
    %v4520 = vld [vmem:[%s4504 + $0x3c] sm:$0xf]
    %v4521 = vld [vmem:[%s4504 + $0x40] sm:$0xf]
    %v4522 = vld [vmem:[%s4504 + $0x44] sm:$0xf]
    %v4523 = vld [vmem:[%s4504 + $0x48] sm:$0xf]
    %v4524 = vld [vmem:[%s4504 + $0x4c] sm:$0xf]
    %v4525 = vld [vmem:[%s4504 + $0x50] sm:$0xf]
    %v4526 = vld [vmem:[%s4504 + $0x54] sm:$0xf]
    %v4527 = vld [vmem:[%s4504 + $0x58] sm:$0xf]
    %v4528 = vld [vmem:[%s4504 + $0x5c] sm:$0xf]
    %v4553 = vunpack.c.l.b16 %v4505
    %v4554 = vunpack.c.l.b16 %v4506
    %v4555 = vunpack.c.l.b16 %v4507
    %v4556 = vunpack.c.l.b16 %v4508
    %v4557 = vunpack.c.l.b16 %v4509
    %v4558 = vunpack.c.l.b16 %v4510
    %v4559 = vunpack.c.l.b16 %v4511
    %v4560 = vunpack.c.l.b16 %v4512
    %v4561 = vunpack.c.l.b16 %v4513
    %v4562 = vunpack.c.l.b16 %v4514
    %v4563 = vunpack.c.l.b16 %v4515
    %v4564 = vunpack.c.l.b16 %v4516
    %v4565 = vunpack.c.l.b16 %v4517
    %v4566 = vunpack.c.l.b16 %v4518
    %v4567 = vunpack.c.l.b16 %v4519
    %v4568 = vunpack.c.l.b16 %v4520
    %v4569 = vunpack.c.l.b16 %v4521
    %v4570 = vunpack.c.l.b16 %v4522
    %v4571 = vunpack.c.l.b16 %v4523
    %v4572 = vunpack.c.l.b16 %v4524
    %v4573 = vunpack.c.l.b16 %v4525
    %v4574 = vunpack.c.l.b16 %v4526
    %v4575 = vunpack.c.l.b16 %v4527
    %v4576 = vunpack.c.l.b16 %v4528
    %v4577 = vpack.c.b16 %v4554, %v4553
    %v4578 = vpack.c.b16 %v4556, %v4555
    %v4579 = vpack.c.b16 %v4558, %v4557
    %v4580 = vpack.c.b16 %v4560, %v4559
    %v4581 = vpack.c.b16 %v4562, %v4561
    %v4582 = vpack.c.b16 %v4564, %v4563
    %v4583 = vpack.c.b16 %v4566, %v4565
    %v4584 = vpack.c.b16 %v4568, %v4567
    %v4585 = vpack.c.b16 %v4570, %v4569
    %v4586 = vpack.c.b16 %v4572, %v4571
    %v4587 = vpack.c.b16 %v4574, %v4573
    %v4588 = vpack.c.b16 %v4576, %v4575
    %v4602 = vsel %vm28, %v4495, 0
    %v4605 = vsel %vm28, %v4497, 0
    %v4608 = vsel %vm28, %v4499, 0
    %v4611 = vsel %vm28, %v4501, 0
    %v4614 = vsel %vm28, %v4503, 0
    %4616 = vmatprep.subr.bf16.mxu0 0
    %4617 = vmatpush1.bf16.msra.mxu0 %v4577
    %4618 = vmatprep.subr.bf16.mxu0 0
    %4619 = vmatpush1.bf16.msra.mxu0 %v4578
    %4620 = vmatprep.subr.bf16.mxu0 0
    %4621 = vmatpush1.bf16.msra.mxu0 %v4579
    %4622 = vmatprep.subr.bf16.mxu0 0
    %4623 = vmatpush1.bf16.msra.mxu0 %v4580
    %4624 = vmatprep.subr.bf16.mxu0 0
    %4625 = vmatpush1.bf16.msra.mxu0 %v4581
    %4626 = vmatprep.subr.bf16.mxu0 0
    %4627 = vmatpush1.bf16.msra.mxu0 %v4582
    %4628 = vmatprep.subr.bf16.mxu0 0
    %4629 = vmatpush1.bf16.msra.mxu0 %v4583
    %4630 = vmatprep.subr.bf16.mxu0 0
    %4631 = vmatpush1.bf16.msra.mxu0 %v4584
    %4632 = vmatprep.subr.bf16.mxu0 0
    %4633 = vmatpush1.bf16.msra.mxu0 %v4585
    %4634 = vmatprep.subr.bf16.mxu0 0
    %4635 = vmatpush1.bf16.msra.mxu0 %v4586
    %4636 = vmatprep.subr.bf16.mxu0 0
    %4637 = vmatpush1.bf16.msra.mxu0 %v4587
    %4638 = vmatprep.subr.bf16.mxu0 0
    %4639 = vmatpush1.bf16.msra.mxu0 %v4588
    %4640 = vmatprep.subr.bf16.mxu0 0
    %4641 = vmatpush1.bf16.msra.mxu0 0
    %4642 = vmatprep.subr.bf16.mxu0 0
    %4643 = vmatpush1.bf16.msra.mxu0 0
    %4644 = vmatprep.subr.bf16.mxu0 0
    %4645 = vmatpush1.bf16.msra.mxu0 0
    %4646 = vmatprep.subr.bf16.mxu0 0
    %4647 = vmatpush1.bf16.msra.mxu0 0
    %4648 = vmatprep.mubr.bf16.mxu0 %v4602
    %4649 = vmatmul.mubr.bf16.gmra.mrb[0].mxu0 %v4494
    %v4650 = vpop.f32.mrb[0].mxu0
    %v4651 = vadd.f32 0.0, %v4650
    %v4652 = vpop.f32.mrb[0].mxu0
    %v4653 = vpop.f32.mrb[0].mxu0
    %v4654 = vadd.f32 0.0, %v4653
    %v4655 = vpop.f32.mrb[0].mxu0
    %4656 = vmatprep.mubr.bf16.mxu0 %v4605
    %4657 = vmatmul.mubr.bf16.gmra.mrb[0].mxu0 %v4496
    %v4658 = vpop.f32.mrb[0].mxu0
    %v4659 = vadd.f32 0.0, %v4658
    %v4660 = vpop.f32.mrb[0].mxu0
    %v4661 = vpop.f32.mrb[0].mxu0
    %v4662 = vadd.f32 0.0, %v4661
    %v4663 = vpop.f32.mrb[0].mxu0
    %4664 = vmatprep.mubr.bf16.mxu0 %v4608
    %4665 = vmatmul.mubr.bf16.gmra.mrb[0].mxu0 %v4498
    %v4666 = vpop.f32.mrb[0].mxu0
    %v4667 = vadd.f32 0.0, %v4666
    %v4668 = vpop.f32.mrb[0].mxu0
    %v4669 = vpop.f32.mrb[0].mxu0
    %v4670 = vadd.f32 0.0, %v4669
    %v4671 = vpop.f32.mrb[0].mxu0
    %4672 = vmatprep.mubr.bf16.mxu0 %v4611
    %4673 = vmatmul.mubr.bf16.gmra.mrb[0].mxu0 %v4500
    %v4674 = vpop.f32.mrb[0].mxu0
    %v4675 = vadd.f32 0.0, %v4674
    %v4676 = vpop.f32.mrb[0].mxu0
    %v4677 = vpop.f32.mrb[0].mxu0
    %v4678 = vadd.f32 0.0, %v4677
    %v4679 = vpop.f32.mrb[0].mxu0
    %4680 = vmatprep.mubr.bf16.mxu0 %v4614
    %4681 = vmatmul.mubr.bf16.gmra.mrb[0].mxu0 %v4502
    %v4682 = vpop.f32.mrb[0].mxu0
    %v4683 = vadd.f32 0.0, %v4682
    %v4684 = vpop.f32.mrb[0].mxu0
    %v4685 = vpop.f32.mrb[0].mxu0
    %v4686 = vpop.f32.mrb[0].mxu0
    %4687 = vdwg.mxu0
    %v4688 = vadd.f32 %v4385, %v4651
    %v4689 = vadd.f32 %v4388, %v4654
    %v4690 = vadd.f32 %v4393, %v4659
    %v4691 = vadd.f32 %v4396, %v4662
    %v4692 = vadd.f32 %v4401, %v4667
    %v4693 = vadd.f32 %v4404, %v4670
    %v4694 = vadd.f32 %v4409, %v4675
    %v4695 = vadd.f32 %v4412, %v4678
    %v4696 = vadd.f32 %v4417, %v4683
    %v4697 = vld [vmem:[%s4 + $0xc8] sm:$0xff]
    %v4698 = vld [vmem:[%s4 + $0xd0] sm:$0xff]
    %v4699 = vld [vmem:[%s4 + $0xd8] sm:$0xff]
    %v4700 = vld [vmem:[%s4 + $0xe0] sm:$0xff]
    %v4701 = vld [vmem:[%s4 + $0xe8] sm:$0xff]
    %v4702 = vld [vmem:[%s4 + $0xf0] sm:$0xff]
    %v4703 = vld [vmem:[%s4 + $0xf8] sm:$0xff]
    %v4704 = vld [vmem:[%s4 + $0x100] sm:$0xff]
    %v4705 = vld [vmem:[%s4 + $0x108] sm:$0xff]
    %4707 = vset.pattern.permute.xlu0 0
    %4708 = vperm.xlu0 %4707, %v4697
    %v4709 = vpop.permute.xlu0 %4708
    %4712 = vset.pattern.permute.xlu0 0
    %4713 = vperm.xlu0 %4712, %v4698
    %v4714 = vpop.permute.xlu0 %4713
    %4717 = vset.pattern.permute.xlu0 0
    %4718 = vperm.xlu0 %4717, %v4699
    %v4719 = vpop.permute.xlu0 %4718
    %4722 = vset.pattern.permute.xlu0 0
    %4723 = vperm.xlu0 %4722, %v4700
    %v4724 = vpop.permute.xlu0 %4723
    %4727 = vset.pattern.permute.xlu0 0
    %4728 = vperm.xlu0 %4727, %v4701
    %v4729 = vpop.permute.xlu0 %4728
    %4732 = vset.pattern.permute.xlu0 0
    %4733 = vperm.xlu0 %4732, %v4702
    %v4734 = vpop.permute.xlu0 %4733
    %4737 = vset.pattern.permute.xlu0 0
    %4738 = vperm.xlu0 %4737, %v4703
    %v4739 = vpop.permute.xlu0 %4738
    %4742 = vset.pattern.permute.xlu0 0
    %4743 = vperm.xlu0 %4742, %v4704
    %v4744 = vpop.permute.xlu0 %4743
    %4747 = vset.pattern.permute.xlu0 0
    %4748 = vperm.xlu0 %4747, %v4705
    %v4749 = vpop.permute.xlu0 %4748
    %v4751 = vmul.f32 %v4688, %v4709
    %v4752 = vmul.f32 %v4689, %v4714
    %v4753 = vmul.f32 %v4690, %v4719
    %v4754 = vmul.f32 %v4691, %v4724
    %v4755 = vmul.f32 %v4692, %v4729
    %v4756 = vmul.f32 %v4693, %v4734
    %v4757 = vmul.f32 %v4694, %v4739
    %v4758 = vmul.f32 %v4695, %v4744
    %v4759 = vmul.f32 %v4696, %v4749
    %v4760 = vsel %vm28, %v4751, 0.0
    %v4761 = vsel %vm28, %v4752, 0.0
    %v4762 = vadd.f32 %v4760, %v4761
    %v4763 = vsel %vm28, %v4753, 0.0
    %v4764 = vadd.f32 %v4762, %v4763
    %v4765 = vsel %vm28, %v4754, 0.0
    %v4766 = vadd.f32 %v4764, %v4765
    %v4767 = vsel %vm28, %v4755, 0.0
    %v4768 = vadd.f32 %v4766, %v4767
    %v4769 = vsel %vm28, %v4756, 0.0
    %v4770 = vadd.f32 %v4768, %v4769
    %v4771 = vsel %vm28, %v4757, 0.0
    %v4772 = vadd.f32 %v4770, %v4771
    %v4773 = vsel %vm28, %v4758, 0.0
    %v4774 = vadd.f32 %v4772, %v4773
    %v4775 = vsel %vm28, %v4759, 0.0
    %v4776 = vadd.f32 %v4774, %v4775
    %v4777 = vrot.slane %v4776, 4
    %v4778 = vadd.f32 %v4776, %v4777
    %v4779 = vrot.slane %v4778, 2
    %v4780 = vadd.f32 %v4778, %v4779
    %v4781 = vrot.slane %v4780, 1
    %v4782 = vadd.f32 %v4780, %v4781
    %v4783 = vmul.f32 %v4751, %v4688
    %v4784 = vmul.f32 %v4752, %v4689
    %v4785 = vmul.f32 %v4753, %v4690
    %v4786 = vmul.f32 %v4754, %v4691
    %v4787 = vmul.f32 %v4755, %v4692
    %v4788 = vmul.f32 %v4756, %v4693
    %v4789 = vmul.f32 %v4757, %v4694
    %v4790 = vmul.f32 %v4758, %v4695
    %v4791 = vmul.f32 %v4759, %v4696
    %v4792 = vsel %vm28, %v4783, 0.0
    %v4793 = vsel %vm28, %v4784, 0.0
    %v4794 = vadd.f32 %v4792, %v4793
    %v4795 = vsel %vm28, %v4785, 0.0
    %v4796 = vadd.f32 %v4794, %v4795
    %v4797 = vsel %vm28, %v4786, 0.0
    %v4798 = vadd.f32 %v4796, %v4797
    %v4799 = vsel %vm28, %v4787, 0.0
    %v4800 = vadd.f32 %v4798, %v4799
    %v4801 = vsel %vm28, %v4788, 0.0
    %v4802 = vadd.f32 %v4800, %v4801
    %v4803 = vsel %vm28, %v4789, 0.0
    %v4804 = vadd.f32 %v4802, %v4803
    %v4805 = vsel %vm28, %v4790, 0.0
    %v4806 = vadd.f32 %v4804, %v4805
    %v4807 = vsel %vm28, %v4791, 0.0
    %v4808 = vadd.f32 %v4806, %v4807
    %v4809 = vrot.slane %v4808, 4
    %v4810 = vadd.f32 %v4808, %v4809
    %v4811 = vrot.slane %v4810, 2
    %v4812 = vadd.f32 %v4810, %v4811
    %v4813 = vrot.slane %v4812, 1
    %v4814 = vadd.f32 %v4812, %v4813
    %v4815 = vmul.f32 %v4782, 0.03125
    %v4816 = vmul.f32 %v4814, 0.03125
    %v4817 = vmul.f32 %v4815, %v4815
    %v4818 = vsub.f32 %v4816, %v4817
    %v4819 = vmax.f32 %v4818, 0.0
    %v4820 = vadd.f32 %v4819, 1e-05
    %v4821 = vrsqrt.pop %v4820
    %v4822 = vld [vmem:[%s3 + $0x4] sm:$0x1]
    %v4823 = vld [vmem:[%s3 + $0x5] sm:$0x1]
    %v4824 = vmul.f32 %v4822, %v4821
    %v4825 = vmul.f32 %v4815, %v4824
    %v4826 = vsub.f32 %v4823, %v4825
    %v4827 = vlaneseq
    %v4828 = vshrl.u32 %v4827, 7
    %v4829 = vsub.s32 0, %v4828
    %v4830 = vrot.slane %v4824, %v4829
    %v4831 = vmul.f32 %v4688, %v4830
    %v4832 = vmul.f32 %v4689, %v4830
    %v4833 = vmul.f32 %v4690, %v4830
    %v4834 = vmul.f32 %v4691, %v4830
    %v4835 = vmul.f32 %v4692, %v4830
    %v4836 = vmul.f32 %v4693, %v4830
    %v4837 = vmul.f32 %v4694, %v4830
    %v4838 = vmul.f32 %v4695, %v4830
    %v4839 = vmul.f32 %v4696, %v4830
    %v4840 = vlaneseq
    %v4841 = vshrl.u32 %v4840, 7
    %v4842 = vsub.s32 0, %v4841
    %v4843 = vrot.slane %v4826, %v4842
    %v4844 = vadd.f32 %v4831, %v4843
    %v4845 = vadd.f32 %v4832, %v4843
    %v4846 = vadd.f32 %v4833, %v4843
    %v4847 = vadd.f32 %v4834, %v4843
    %v4848 = vadd.f32 %v4835, %v4843
    %v4849 = vadd.f32 %v4836, %v4843
    %v4850 = vadd.f32 %v4837, %v4843
    %v4851 = vadd.f32 %v4838, %v4843
    %v4852 = vadd.f32 %v4839, %v4843
    %v4853 = vmax.f32 %v4844, 0.0
    %v4854 = vmax.f32 %v4845, 0.0
    %v4855 = vmax.f32 %v4846, 0.0
    %v4856 = vmax.f32 %v4847, 0.0
    %v4857 = vmax.f32 %v4848, 0.0
    %v4858 = vmax.f32 %v4849, 0.0
    %v4859 = vmax.f32 %v4850, 0.0
    %v4860 = vmax.f32 %v4851, 0.0
    %v4861 = vmax.f32 %v4852, 0.0
    %4862 = vst.msk [vmem:[#allocation3] sm:$0xff] %vm28, %v4853
    %4863 = vst.msk [vmem:[#allocation3 + $0x8] sm:$0xff] %vm28, %v4854
    %4864 = vst.msk [vmem:[#allocation3 + $0x10] sm:$0xff] %vm28, %v4855
    %4865 = vst.msk [vmem:[#allocation3 + $0x18] sm:$0xff] %vm28, %v4856
    %4866 = vst.msk [vmem:[#allocation3 + $0x20] sm:$0xff] %vm28, %v4857
    %4867 = vst.msk [vmem:[#allocation3 + $0x28] sm:$0xff] %vm28, %v4858
    %4868 = vst.msk [vmem:[#allocation3 + $0x30] sm:$0xff] %vm28, %v4859
    %4869 = vst.msk [vmem:[#allocation3 + $0x38] sm:$0xff] %vm28, %v4860
    %4870 = vst.msk [vmem:[#allocation3 + $0x40] sm:$0xff] %vm28, %v4861
    %v4871 = vld [vmem:[#allocation3 + $0x1] sm:$0xff]
    %v4872 = vld [vmem:[#allocation3 + $0x9] sm:$0xff]
    %v4873 = vld [vmem:[#allocation3 + $0x11] sm:$0xff]
    %v4874 = vld [vmem:[#allocation3 + $0x19] sm:$0xff]
    %v4875 = vld [vmem:[#allocation3 + $0x21] sm:$0xff]
    %v4876 = vld [vmem:[#allocation3 + $0x29] sm:$0xff]
    %v4877 = vld [vmem:[#allocation3 + $0x31] sm:$0xff]
    %v4878 = vld [vmem:[#allocation3 + $0x39] sm:$0xff]
    %v4879 = vld [vmem:[#allocation3 + $0x41] sm:$0xff]
    %v4880 = vmax.f32 %v4853, %v4871
    %v4881 = vmax.f32 %v4854, %v4872
    %v4882 = vmax.f32 %v4855, %v4873
    %v4883 = vmax.f32 %v4856, %v4874
    %v4884 = vmax.f32 %v4857, %v4875
    %v4885 = vmax.f32 %v4858, %v4876
    %v4886 = vmax.f32 %v4859, %v4877
    %v4887 = vmax.f32 %v4860, %v4878
    %v4888 = vmax.f32 %v4861, %v4879
    %v4889 = vld [vmem:[#allocation3 + $0x6] sm:$0xff]
    %v4890 = vld [vmem:[#allocation3 + $0xe] sm:$0xff]
    %v4891 = vld [vmem:[#allocation3 + $0x16] sm:$0xff]
    %v4892 = vld [vmem:[#allocation3 + $0x1e] sm:$0xff]
    %v4893 = vld [vmem:[#allocation3 + $0x26] sm:$0xff]
    %v4894 = vld [vmem:[#allocation3 + $0x2e] sm:$0xff]
    %v4895 = vld [vmem:[#allocation3 + $0x36] sm:$0xff]
    %v4896 = vld [vmem:[#allocation3 + $0x3e] sm:$0xff]
    %v4897 = vld [vmem:[#allocation3 + $0x46] sm:$0xff]
    %v4898 = vld [vmem:[#allocation3 + $0x7] sm:$0xff]
    %v4899 = vld [vmem:[#allocation3 + $0xf] sm:$0xff]
    %v4900 = vld [vmem:[#allocation3 + $0x17] sm:$0xff]
    %v4901 = vld [vmem:[#allocation3 + $0x1f] sm:$0xff]
    %v4902 = vld [vmem:[#allocation3 + $0x27] sm:$0xff]
    %v4903 = vld [vmem:[#allocation3 + $0x2f] sm:$0xff]
    %v4904 = vld [vmem:[#allocation3 + $0x37] sm:$0xff]
    %v4905 = vld [vmem:[#allocation3 + $0x3f] sm:$0xff]
    %v4906 = vld [vmem:[#allocation3 + $0x47] sm:$0xff]
    %v4907 = vmax.f32 %v4889, %v4898
    %v4908 = vmax.f32 %v4890, %v4899
    %v4909 = vmax.f32 %v4891, %v4900
    %v4910 = vmax.f32 %v4892, %v4901
    %v4911 = vmax.f32 %v4893, %v4902
    %v4912 = vmax.f32 %v4894, %v4903
    %v4913 = vmax.f32 %v4895, %v4904
    %v4914 = vmax.f32 %v4896, %v4905
    %v4915 = vmax.f32 %v4897, %v4906
    %v4916 = vmax.f32 %v4880, %v4907
    %v4917 = vmax.f32 %v4881, %v4908
    %v4918 = vmax.f32 %v4882, %v4909
    %v4919 = vmax.f32 %v4883, %v4910
    %v4920 = vmax.f32 %v4884, %v4911
    %v4921 = vmax.f32 %v4885, %v4912
    %v4922 = vmax.f32 %v4886, %v4913
    %v4923 = vmax.f32 %v4887, %v4914
    %v4924 = vmax.f32 %v4888, %v4915
    %4925 = vst.msk [vmem:[#allocation3] sm:$0xff] %vm28, %v4916
    %4926 = vst.msk [vmem:[#allocation3 + $0x8] sm:$0xff] %vm28, %v4917
    %4927 = vst.msk [vmem:[#allocation3 + $0x10] sm:$0xff] %vm28, %v4918
    %4928 = vst.msk [vmem:[#allocation3 + $0x18] sm:$0xff] %vm28, %v4919
    %4929 = vst.msk [vmem:[#allocation3 + $0x20] sm:$0xff] %vm28, %v4920
    %4930 = vst.msk [vmem:[#allocation3 + $0x28] sm:$0xff] %vm28, %v4921
    %4931 = vst.msk [vmem:[#allocation3 + $0x30] sm:$0xff] %vm28, %v4922
    %4932 = vst.msk [vmem:[#allocation3 + $0x38] sm:$0xff] %vm28, %v4923
    %4933 = vst.msk [vmem:[#allocation3 + $0x40] sm:$0xff] %vm28, %v4924
    %s4934 = scalar_lea.vmem [#allocation3], 7
    %v4935 = vld [vmem:[%s4934] ss:$2 sm:$0x3]
    %4936 = vst.msk [vmem:[#allocation4 + $0xa] sm:$0x3] %vm74, %v4935
    %s4937 = scalar_lea.vmem [#allocation3], 19
    %v4938 = vld [vmem:[%s4937] ss:$2 sm:$0x3]
    %4939 = vst.msk [vmem:[#allocation4 + $0xe] sm:$0x3] %vm74, %v4938
    %s4940 = scalar_lea.vmem [#allocation3], 43
    %v4941 = vld [vmem:[%s4940] ss:$2 sm:$0x3]
    %4942 = vst.msk [vmem:[#allocation4 + $0x1a] sm:$0x3] %vm74, %v4941
    %s4943 = scalar_lea.vmem [#allocation3], 55
    %v4944 = vld [vmem:[%s4943] ss:$2 sm:$0x3]
    %4945 = vst.msk [vmem:[#allocation4 + $0x1e] sm:$0x3] %vm74, %v4944
    %v4946 = vld [vmem:[#allocation4] sm:$0xff]
    %v4947 = vld [vmem:[#allocation4 + $0x8] sm:$0xff]
    %v4948 = vld [vmem:[#allocation4 + $0x10] sm:$0xff]
    %v4949 = vld [vmem:[#allocation4 + $0x18] sm:$0xff]
    %v4950 = vld [vmem:[#allocation4 + $0x4] sm:$0xff]
    %v4951 = vld [vmem:[#allocation4 + $0xc] sm:$0xff]
    %v4952 = vld [vmem:[#allocation4 + $0x14] sm:$0xff]
    %v4953 = vld [vmem:[#allocation4 + $0x1c] sm:$0xff]
    %v4954 = vld [vmem:[#allocation4 + $0x20] sm:$0xff]
    %4959 = vrot.lane.b32.xlu0 %v4950, 64
    %v4960 = vpop.permute.xlu0 %4959
    %4961 = vrot.lane.b32.xlu0 %v4951, 64
    %v4962 = vpop.permute.xlu0 %4961
    %4963 = vrot.lane.b32.xlu0 %v4952, 64
    %v4964 = vpop.permute.xlu0 %4963
    %4965 = vrot.lane.b32.xlu0 %v4953, 64
    %v4966 = vpop.permute.xlu0 %4965
    %v4971 = vsel %vm28, %v4946, %v4960
    %v4972 = vsel %vm28, %v4947, %v4962
    %v4973 = vsel %vm28, %v4948, %v4964
    %v4974 = vsel %vm28, %v4949, %v4966
    %v4975 = vpack.c.bf16 %v4972, %v4971
    %v4976 = vpack.c.bf16 %v4948, %v4947
    %v4977 = vpack.c.bf16 %v4974, %v4973
    %v4978 = vpack.c.bf16 %v4954, %v4949
    %s4979 = scalar_lea.vmem %s2, 576
    %v4980 = vld [vmem:[%s4979] sm:$0xf]
    %v4981 = vld [vmem:[%s4979 + $0x4] sm:$0xf]
    %v4982 = vld [vmem:[%s4979 + $0x8] sm:$0xf]
    %v4983 = vld [vmem:[%s4979 + $0xc] sm:$0xf]
    %v4984 = vld [vmem:[%s4979 + $0x10] sm:$0xf]
    %v4985 = vld [vmem:[%s4979 + $0x14] sm:$0xf]
    %v4986 = vld [vmem:[%s4979 + $0x18] sm:$0xf]
    %v4987 = vld [vmem:[%s4979 + $0x1c] sm:$0xf]
    %v4988 = vld [vmem:[%s4979 + $0x20] sm:$0xf]
    %v4989 = vld [vmem:[%s4979 + $0x24] sm:$0xf]
    %v4990 = vld [vmem:[%s4979 + $0x28] sm:$0xf]
    %v4991 = vld [vmem:[%s4979 + $0x2c] sm:$0xf]
    %v4992 = vld [vmem:[%s4979 + $0x30] sm:$0xf]
    %v4993 = vld [vmem:[%s4979 + $0x34] sm:$0xf]
    %v4994 = vld [vmem:[%s4979 + $0x38] sm:$0xf]
    %v4995 = vld [vmem:[%s4979 + $0x3c] sm:$0xf]
    %v4996 = vld [vmem:[%s4979 + $0x40] sm:$0xf]
    %v4997 = vld [vmem:[%s4979 + $0x44] sm:$0xf]
    %v4998 = vld [vmem:[%s4979 + $0x48] sm:$0xf]
    %v4999 = vld [vmem:[%s4979 + $0x4c] sm:$0xf]
    %v5000 = vld [vmem:[%s4979 + $0x50] sm:$0xf]
    %v5001 = vld [vmem:[%s4979 + $0x54] sm:$0xf]
    %v5002 = vld [vmem:[%s4979 + $0x58] sm:$0xf]
    %v5003 = vld [vmem:[%s4979 + $0x5c] sm:$0xf]
    %v5004 = vld [vmem:[#allocation4 + $0x1] sm:$0xff]
    %v5005 = vld [vmem:[#allocation4 + $0x9] sm:$0xff]
    %v5006 = vld [vmem:[#allocation4 + $0x11] sm:$0xff]
    %v5007 = vld [vmem:[#allocation4 + $0x19] sm:$0xff]
    %v5008 = vld [vmem:[#allocation4 + $0x5] sm:$0xff]
    %v5009 = vld [vmem:[#allocation4 + $0xd] sm:$0xff]
    %v5010 = vld [vmem:[#allocation4 + $0x15] sm:$0xff]
    %v5011 = vld [vmem:[#allocation4 + $0x1d] sm:$0xff]
    %v5012 = vld [vmem:[#allocation4 + $0x21] sm:$0xff]
    %5017 = vrot.lane.b32.xlu0 %v5008, 64
    %v5018 = vpop.permute.xlu0 %5017
    %5019 = vrot.lane.b32.xlu0 %v5009, 64
    %v5020 = vpop.permute.xlu0 %5019
    %5021 = vrot.lane.b32.xlu0 %v5010, 64
    %v5022 = vpop.permute.xlu0 %5021
    %5023 = vrot.lane.b32.xlu0 %v5011, 64
    %v5024 = vpop.permute.xlu0 %5023
    %v5029 = vsel %vm28, %v5004, %v5018
    %v5030 = vsel %vm28, %v5005, %v5020
    %v5031 = vsel %vm28, %v5006, %v5022
    %v5032 = vsel %vm28, %v5007, %v5024
    %v5033 = vpack.c.bf16 %v5030, %v5029
    %v5034 = vpack.c.bf16 %v5006, %v5005
    %v5035 = vpack.c.bf16 %v5032, %v5031
    %v5036 = vpack.c.bf16 %v5012, %v5007
    %s5037 = scalar_lea.vmem %s2, 672
    %v5038 = vld [vmem:[%s5037] sm:$0xf]
    %v5039 = vld [vmem:[%s5037 + $0x4] sm:$0xf]
    %v5040 = vld [vmem:[%s5037 + $0x8] sm:$0xf]
    %v5041 = vld [vmem:[%s5037 + $0xc] sm:$0xf]
    %v5042 = vld [vmem:[%s5037 + $0x10] sm:$0xf]
    %v5043 = vld [vmem:[%s5037 + $0x14] sm:$0xf]
    %v5044 = vld [vmem:[%s5037 + $0x18] sm:$0xf]
    %v5045 = vld [vmem:[%s5037 + $0x1c] sm:$0xf]
    %v5046 = vld [vmem:[%s5037 + $0x20] sm:$0xf]
    %v5047 = vld [vmem:[%s5037 + $0x24] sm:$0xf]
    %v5048 = vld [vmem:[%s5037 + $0x28] sm:$0xf]
    %v5049 = vld [vmem:[%s5037 + $0x2c] sm:$0xf]
    %v5050 = vld [vmem:[%s5037 + $0x30] sm:$0xf]
    %v5051 = vld [vmem:[%s5037 + $0x34] sm:$0xf]
    %v5052 = vld [vmem:[%s5037 + $0x38] sm:$0xf]
    %v5053 = vld [vmem:[%s5037 + $0x3c] sm:$0xf]
    %v5054 = vld [vmem:[%s5037 + $0x40] sm:$0xf]
    %v5055 = vld [vmem:[%s5037 + $0x44] sm:$0xf]
    %v5056 = vld [vmem:[%s5037 + $0x48] sm:$0xf]
    %v5057 = vld [vmem:[%s5037 + $0x4c] sm:$0xf]
    %v5058 = vld [vmem:[%s5037 + $0x50] sm:$0xf]
    %v5059 = vld [vmem:[%s5037 + $0x54] sm:$0xf]
    %v5060 = vld [vmem:[%s5037 + $0x58] sm:$0xf]
    %v5061 = vld [vmem:[%s5037 + $0x5c] sm:$0xf]
    %v5086 = vunpack.c.l.b16 %v5038
    %v5087 = vunpack.c.l.b16 %v5039
    %v5088 = vunpack.c.l.b16 %v5040
    %v5089 = vunpack.c.l.b16 %v5041
    %v5090 = vunpack.c.l.b16 %v5042
    %v5091 = vunpack.c.l.b16 %v5043
    %v5092 = vunpack.c.l.b16 %v5044
    %v5093 = vunpack.c.l.b16 %v5045
    %v5094 = vunpack.c.l.b16 %v5046
    %v5095 = vunpack.c.l.b16 %v5047
    %v5096 = vunpack.c.l.b16 %v5048
    %v5097 = vunpack.c.l.b16 %v5049
    %v5098 = vunpack.c.l.b16 %v5050
    %v5099 = vunpack.c.l.b16 %v5051
    %v5100 = vunpack.c.l.b16 %v5052
    %v5101 = vunpack.c.l.b16 %v5053
    %v5102 = vunpack.c.l.b16 %v5054
    %v5103 = vunpack.c.l.b16 %v5055
    %v5104 = vunpack.c.l.b16 %v5056
    %v5105 = vunpack.c.l.b16 %v5057
    %v5106 = vunpack.c.l.b16 %v5058
    %v5107 = vunpack.c.l.b16 %v5059
    %v5108 = vunpack.c.l.b16 %v5060
    %v5109 = vunpack.c.l.b16 %v5061
    %v5110 = vpack.c.b16 %v5087, %v5086
    %v5111 = vpack.c.b16 %v5089, %v5088
    %v5112 = vpack.c.b16 %v5091, %v5090
    %v5113 = vpack.c.b16 %v5093, %v5092
    %v5114 = vpack.c.b16 %v5095, %v5094
    %v5115 = vpack.c.b16 %v5097, %v5096
    %v5116 = vpack.c.b16 %v5099, %v5098
    %v5117 = vpack.c.b16 %v5101, %v5100
    %v5118 = vpack.c.b16 %v5103, %v5102
    %v5119 = vpack.c.b16 %v5105, %v5104
    %v5120 = vpack.c.b16 %v5107, %v5106
    %v5121 = vpack.c.b16 %v5109, %v5108
    %v5135 = vsel %vm28, %v5034, 0
    %v5138 = vsel %vm28, %v5036, 0
    %5140 = vmatprep.subr.bf16.mxu0 0
    %5141 = vmatpush1.bf16.msra.mxu0 %v5110
    %5142 = vmatprep.subr.bf16.mxu0 0
    %5143 = vmatpush1.bf16.msra.mxu0 %v5111
    %5144 = vmatprep.subr.bf16.mxu0 0
    %5145 = vmatpush1.bf16.msra.mxu0 %v5112
    %5146 = vmatprep.subr.bf16.mxu0 0
    %5147 = vmatpush1.bf16.msra.mxu0 %v5113
    %5148 = vmatprep.subr.bf16.mxu0 0
    %5149 = vmatpush1.bf16.msra.mxu0 %v5114
    %5150 = vmatprep.subr.bf16.mxu0 0
    %5151 = vmatpush1.bf16.msra.mxu0 %v5115
    %5152 = vmatprep.subr.bf16.mxu0 0
    %5153 = vmatpush1.bf16.msra.mxu0 %v5116
    %5154 = vmatprep.subr.bf16.mxu0 0
    %5155 = vmatpush1.bf16.msra.mxu0 %v5117
    %5156 = vmatprep.subr.bf16.mxu0 0
    %5157 = vmatpush1.bf16.msra.mxu0 %v5118
    %5158 = vmatprep.subr.bf16.mxu0 0
    %5159 = vmatpush1.bf16.msra.mxu0 %v5119
    %5160 = vmatprep.subr.bf16.mxu0 0
    %5161 = vmatpush1.bf16.msra.mxu0 %v5120
    %5162 = vmatprep.subr.bf16.mxu0 0
    %5163 = vmatpush1.bf16.msra.mxu0 %v5121
    %5164 = vmatprep.subr.bf16.mxu0 0
    %5165 = vmatpush1.bf16.msra.mxu0 0
    %5166 = vmatprep.subr.bf16.mxu0 0
    %5167 = vmatpush1.bf16.msra.mxu0 0
    %5168 = vmatprep.subr.bf16.mxu0 0
    %5169 = vmatpush1.bf16.msra.mxu0 0
    %5170 = vmatprep.subr.bf16.mxu0 0
    %5171 = vmatpush1.bf16.msra.mxu0 0
    %5172 = vmatprep.mubr.bf16.mxu0 %v5135
    %5173 = vmatmul.mubr.bf16.gmra.mrb[0].mxu0 %v5033
    %v5174 = vpop.f32.mrb[0].mxu0
    %v5175 = vadd.f32 0.0, %v5174
    %v5176 = vpop.f32.mrb[0].mxu0
    %v5177 = vpop.f32.mrb[0].mxu0
    %v5178 = vadd.f32 0.0, %v5177
    %v5179 = vpop.f32.mrb[0].mxu0
    %5180 = vmatprep.mubr.bf16.mxu0 %v5138
    %5181 = vmatmul.mubr.bf16.gmra.mrb[0].mxu0 %v5035
    %v5182 = vpop.f32.mrb[0].mxu0
    %v5183 = vadd.f32 0.0, %v5182
    %v5184 = vpop.f32.mrb[0].mxu0
    %v5185 = vpop.f32.mrb[0].mxu0
    %v5186 = vadd.f32 0.0, %v5185
    %v5187 = vpop.f32.mrb[0].mxu0
    %5188 = vdwg.mxu0
    %v5213 = vunpack.c.l.b16 %v4980
    %v5214 = vunpack.c.l.b16 %v4981
    %v5215 = vunpack.c.l.b16 %v4982
    %v5216 = vunpack.c.l.b16 %v4983
    %v5217 = vunpack.c.l.b16 %v4984
    %v5218 = vunpack.c.l.b16 %v4985
    %v5219 = vunpack.c.l.b16 %v4986
    %v5220 = vunpack.c.l.b16 %v4987
    %v5221 = vunpack.c.l.b16 %v4988
    %v5222 = vunpack.c.l.b16 %v4989
    %v5223 = vunpack.c.l.b16 %v4990
    %v5224 = vunpack.c.l.b16 %v4991
    %v5225 = vunpack.c.l.b16 %v4992
    %v5226 = vunpack.c.l.b16 %v4993
    %v5227 = vunpack.c.l.b16 %v4994
    %v5228 = vunpack.c.l.b16 %v4995
    %v5229 = vunpack.c.l.b16 %v4996
    %v5230 = vunpack.c.l.b16 %v4997
    %v5231 = vunpack.c.l.b16 %v4998
    %v5232 = vunpack.c.l.b16 %v4999
    %v5233 = vunpack.c.l.b16 %v5000
    %v5234 = vunpack.c.l.b16 %v5001
    %v5235 = vunpack.c.l.b16 %v5002
    %v5236 = vunpack.c.l.b16 %v5003
    %v5237 = vpack.c.b16 %v5214, %v5213
    %v5238 = vpack.c.b16 %v5216, %v5215
    %v5239 = vpack.c.b16 %v5218, %v5217
    %v5240 = vpack.c.b16 %v5220, %v5219
    %v5241 = vpack.c.b16 %v5222, %v5221
    %v5242 = vpack.c.b16 %v5224, %v5223
    %v5243 = vpack.c.b16 %v5226, %v5225
    %v5244 = vpack.c.b16 %v5228, %v5227
    %v5245 = vpack.c.b16 %v5230, %v5229
    %v5246 = vpack.c.b16 %v5232, %v5231
    %v5247 = vpack.c.b16 %v5234, %v5233
    %v5248 = vpack.c.b16 %v5236, %v5235
    %v5262 = vsel %vm28, %v4976, 0
    %v5265 = vsel %vm28, %v4978, 0
    %5267 = vmatprep.subr.bf16.mxu0 0
    %5268 = vmatpush1.bf16.msra.mxu0 %v5237
    %5269 = vmatprep.subr.bf16.mxu0 0
    %5270 = vmatpush1.bf16.msra.mxu0 %v5238
    %5271 = vmatprep.subr.bf16.mxu0 0
    %5272 = vmatpush1.bf16.msra.mxu0 %v5239
    %5273 = vmatprep.subr.bf16.mxu0 0
    %5274 = vmatpush1.bf16.msra.mxu0 %v5240
    %5275 = vmatprep.subr.bf16.mxu0 0
    %5276 = vmatpush1.bf16.msra.mxu0 %v5241
    %5277 = vmatprep.subr.bf16.mxu0 0
    %5278 = vmatpush1.bf16.msra.mxu0 %v5242
    %5279 = vmatprep.subr.bf16.mxu0 0
    %5280 = vmatpush1.bf16.msra.mxu0 %v5243
    %5281 = vmatprep.subr.bf16.mxu0 0
    %5282 = vmatpush1.bf16.msra.mxu0 %v5244
    %5283 = vmatprep.subr.bf16.mxu0 0
    %5284 = vmatpush1.bf16.msra.mxu0 %v5245
    %5285 = vmatprep.subr.bf16.mxu0 0
    %5286 = vmatpush1.bf16.msra.mxu0 %v5246
    %5287 = vmatprep.subr.bf16.mxu0 0
    %5288 = vmatpush1.bf16.msra.mxu0 %v5247
    %5289 = vmatprep.subr.bf16.mxu0 0
    %5290 = vmatpush1.bf16.msra.mxu0 %v5248
    %5291 = vmatprep.subr.bf16.mxu0 0
    %5292 = vmatpush1.bf16.msra.mxu0 0
    %5293 = vmatprep.subr.bf16.mxu0 0
    %5294 = vmatpush1.bf16.msra.mxu0 0
    %5295 = vmatprep.subr.bf16.mxu0 0
    %5296 = vmatpush1.bf16.msra.mxu0 0
    %5297 = vmatprep.subr.bf16.mxu0 0
    %5298 = vmatpush1.bf16.msra.mxu0 0
    %5299 = vmatprep.mubr.bf16.mxu0 %v5262
    %5300 = vmatmul.mubr.bf16.gmra.mrb[0].mxu0 %v4975
    %v5301 = vpop.f32.mrb[0].mxu0
    %v5302 = vadd.f32 %v5175, %v5301
    %v5303 = vpop.f32.mrb[0].mxu0
    %v5304 = vpop.f32.mrb[0].mxu0
    %v5305 = vadd.f32 %v5178, %v5304
    %v5306 = vpop.f32.mrb[0].mxu0
    %5307 = vmatprep.mubr.bf16.mxu0 %v5265
    %5308 = vmatmul.mubr.bf16.gmra.mrb[0].mxu0 %v4977
    %v5309 = vpop.f32.mrb[0].mxu0
    %v5310 = vadd.f32 %v5183, %v5309
    %v5311 = vpop.f32.mrb[0].mxu0
    %v5312 = vpop.f32.mrb[0].mxu0
    %v5313 = vadd.f32 %v5186, %v5312
    %v5314 = vpop.f32.mrb[0].mxu0
    %5315 = vdwg.mxu0
    %v5316 = vld [vmem:[#allocation4 + $0x2] sm:$0xff]
    %v5317 = vld [vmem:[#allocation4 + $0xa] sm:$0xff]
    %v5318 = vld [vmem:[#allocation4 + $0x12] sm:$0xff]
    %v5319 = vld [vmem:[#allocation4 + $0x1a] sm:$0xff]
    %v5320 = vld [vmem:[#allocation4 + $0x6] sm:$0xff]
    %v5321 = vld [vmem:[#allocation4 + $0xe] sm:$0xff]
    %v5322 = vld [vmem:[#allocation4 + $0x16] sm:$0xff]
    %v5323 = vld [vmem:[#allocation4 + $0x1e] sm:$0xff]
    %v5324 = vld [vmem:[#allocation4 + $0x22] sm:$0xff]
    %5329 = vrot.lane.b32.xlu0 %v5320, 64
    %v5330 = vpop.permute.xlu0 %5329
    %5331 = vrot.lane.b32.xlu0 %v5321, 64
    %v5332 = vpop.permute.xlu0 %5331
    %5333 = vrot.lane.b32.xlu0 %v5322, 64
    %v5334 = vpop.permute.xlu0 %5333
    %5335 = vrot.lane.b32.xlu0 %v5323, 64
    %v5336 = vpop.permute.xlu0 %5335
    %v5341 = vsel %vm28, %v5316, %v5330
    %v5342 = vsel %vm28, %v5317, %v5332
    %v5343 = vsel %vm28, %v5318, %v5334
    %v5344 = vsel %vm28, %v5319, %v5336
    %v5345 = vpack.c.bf16 %v5342, %v5341
    %v5346 = vpack.c.bf16 %v5318, %v5317
    %v5347 = vpack.c.bf16 %v5344, %v5343
    %v5348 = vpack.c.bf16 %v5324, %v5319
    %s5349 = scalar_lea.vmem %s2, 768
    %v5350 = vld [vmem:[%s5349] sm:$0xf]
    %v5351 = vld [vmem:[%s5349 + $0x4] sm:$0xf]
    %v5352 = vld [vmem:[%s5349 + $0x8] sm:$0xf]
    %v5353 = vld [vmem:[%s5349 + $0xc] sm:$0xf]
    %v5354 = vld [vmem:[%s5349 + $0x10] sm:$0xf]
    %v5355 = vld [vmem:[%s5349 + $0x14] sm:$0xf]
    %v5356 = vld [vmem:[%s5349 + $0x18] sm:$0xf]
    %v5357 = vld [vmem:[%s5349 + $0x1c] sm:$0xf]
    %v5358 = vld [vmem:[%s5349 + $0x20] sm:$0xf]
    %v5359 = vld [vmem:[%s5349 + $0x24] sm:$0xf]
    %v5360 = vld [vmem:[%s5349 + $0x28] sm:$0xf]
    %v5361 = vld [vmem:[%s5349 + $0x2c] sm:$0xf]
    %v5362 = vld [vmem:[%s5349 + $0x30] sm:$0xf]
    %v5363 = vld [vmem:[%s5349 + $0x34] sm:$0xf]
    %v5364 = vld [vmem:[%s5349 + $0x38] sm:$0xf]
    %v5365 = vld [vmem:[%s5349 + $0x3c] sm:$0xf]
    %v5366 = vld [vmem:[%s5349 + $0x40] sm:$0xf]
    %v5367 = vld [vmem:[%s5349 + $0x44] sm:$0xf]
    %v5368 = vld [vmem:[%s5349 + $0x48] sm:$0xf]
    %v5369 = vld [vmem:[%s5349 + $0x4c] sm:$0xf]
    %v5370 = vld [vmem:[%s5349 + $0x50] sm:$0xf]
    %v5371 = vld [vmem:[%s5349 + $0x54] sm:$0xf]
    %v5372 = vld [vmem:[%s5349 + $0x58] sm:$0xf]
    %v5373 = vld [vmem:[%s5349 + $0x5c] sm:$0xf]
    %v5398 = vunpack.c.l.b16 %v5350
    %v5399 = vunpack.c.l.b16 %v5351
    %v5400 = vunpack.c.l.b16 %v5352
    %v5401 = vunpack.c.l.b16 %v5353
    %v5402 = vunpack.c.l.b16 %v5354
    %v5403 = vunpack.c.l.b16 %v5355
    %v5404 = vunpack.c.l.b16 %v5356
    %v5405 = vunpack.c.l.b16 %v5357
    %v5406 = vunpack.c.l.b16 %v5358
    %v5407 = vunpack.c.l.b16 %v5359
    %v5408 = vunpack.c.l.b16 %v5360
    %v5409 = vunpack.c.l.b16 %v5361
    %v5410 = vunpack.c.l.b16 %v5362
    %v5411 = vunpack.c.l.b16 %v5363
    %v5412 = vunpack.c.l.b16 %v5364
    %v5413 = vunpack.c.l.b16 %v5365
    %v5414 = vunpack.c.l.b16 %v5366
    %v5415 = vunpack.c.l.b16 %v5367
    %v5416 = vunpack.c.l.b16 %v5368
    %v5417 = vunpack.c.l.b16 %v5369
    %v5418 = vunpack.c.l.b16 %v5370
    %v5419 = vunpack.c.l.b16 %v5371
    %v5420 = vunpack.c.l.b16 %v5372
    %v5421 = vunpack.c.l.b16 %v5373
    %v5422 = vpack.c.b16 %v5399, %v5398
    %v5423 = vpack.c.b16 %v5401, %v5400
    %v5424 = vpack.c.b16 %v5403, %v5402
    %v5425 = vpack.c.b16 %v5405, %v5404
    %v5426 = vpack.c.b16 %v5407, %v5406
    %v5427 = vpack.c.b16 %v5409, %v5408
    %v5428 = vpack.c.b16 %v5411, %v5410
    %v5429 = vpack.c.b16 %v5413, %v5412
    %v5430 = vpack.c.b16 %v5415, %v5414
    %v5431 = vpack.c.b16 %v5417, %v5416
    %v5432 = vpack.c.b16 %v5419, %v5418
    %v5433 = vpack.c.b16 %v5421, %v5420
    %v5447 = vsel %vm28, %v5346, 0
    %v5450 = vsel %vm28, %v5348, 0
    %5452 = vmatprep.subr.bf16.mxu0 0
    %5453 = vmatpush1.bf16.msra.mxu0 %v5422
    %5454 = vmatprep.subr.bf16.mxu0 0
    %5455 = vmatpush1.bf16.msra.mxu0 %v5423
    %5456 = vmatprep.subr.bf16.mxu0 0
    %5457 = vmatpush1.bf16.msra.mxu0 %v5424
    %5458 = vmatprep.subr.bf16.mxu0 0
    %5459 = vmatpush1.bf16.msra.mxu0 %v5425
    %5460 = vmatprep.subr.bf16.mxu0 0
    %5461 = vmatpush1.bf16.msra.mxu0 %v5426
    %5462 = vmatprep.subr.bf16.mxu0 0
    %5463 = vmatpush1.bf16.msra.mxu0 %v5427
    %5464 = vmatprep.subr.bf16.mxu0 0
    %5465 = vmatpush1.bf16.msra.mxu0 %v5428
    %5466 = vmatprep.subr.bf16.mxu0 0
    %5467 = vmatpush1.bf16.msra.mxu0 %v5429
    %5468 = vmatprep.subr.bf16.mxu0 0
    %5469 = vmatpush1.bf16.msra.mxu0 %v5430
    %5470 = vmatprep.subr.bf16.mxu0 0
    %5471 = vmatpush1.bf16.msra.mxu0 %v5431
    %5472 = vmatprep.subr.bf16.mxu0 0
    %5473 = vmatpush1.bf16.msra.mxu0 %v5432
    %5474 = vmatprep.subr.bf16.mxu0 0
    %5475 = vmatpush1.bf16.msra.mxu0 %v5433
    %5476 = vmatprep.subr.bf16.mxu0 0
    %5477 = vmatpush1.bf16.msra.mxu0 0
    %5478 = vmatprep.subr.bf16.mxu0 0
    %5479 = vmatpush1.bf16.msra.mxu0 0
    %5480 = vmatprep.subr.bf16.mxu0 0
    %5481 = vmatpush1.bf16.msra.mxu0 0
    %5482 = vmatprep.subr.bf16.mxu0 0
    %5483 = vmatpush1.bf16.msra.mxu0 0
    %5484 = vmatprep.mubr.bf16.mxu0 %v5447
    %5485 = vmatmul.mubr.bf16.gmra.mrb[0].mxu0 %v5345
    %v5486 = vpop.f32.mrb[0].mxu0
    %v5487 = vadd.f32 0.0, %v5486
    %v5488 = vpop.f32.mrb[0].mxu0
    %v5489 = vpop.f32.mrb[0].mxu0
    %v5490 = vadd.f32 0.0, %v5489
    %v5491 = vpop.f32.mrb[0].mxu0
    %5492 = vmatprep.mubr.bf16.mxu0 %v5450
    %5493 = vmatmul.mubr.bf16.gmra.mrb[0].mxu0 %v5347
    %v5494 = vpop.f32.mrb[0].mxu0
    %v5495 = vadd.f32 0.0, %v5494
    %v5496 = vpop.f32.mrb[0].mxu0
    %v5497 = vpop.f32.mrb[0].mxu0
    %v5498 = vadd.f32 0.0, %v5497
    %v5499 = vpop.f32.mrb[0].mxu0
    %5500 = vdwg.mxu0
    %v5501 = vadd.f32 %v5302, %v5487
    %v5502 = vadd.f32 %v5305, %v5490
    %v5503 = vadd.f32 %v5310, %v5495
    %v5504 = vadd.f32 %v5313, %v5498
    %v5505 = vld [vmem:[%s4 + $0x110] sm:$0xff]
    %v5506 = vld [vmem:[%s4 + $0x118] sm:$0xff]
    %v5507 = vld [vmem:[%s4 + $0x120] sm:$0xff]
    %v5508 = vld [vmem:[%s4 + $0x128] sm:$0xff]
    %5510 = vset.pattern.permute.xlu0 0
    %5511 = vperm.xlu0 %5510, %v5505
    %v5512 = vpop.permute.xlu0 %5511
    %5515 = vset.pattern.permute.xlu0 0
    %5516 = vperm.xlu0 %5515, %v5506
    %v5517 = vpop.permute.xlu0 %5516
    %5520 = vset.pattern.permute.xlu0 0
    %5521 = vperm.xlu0 %5520, %v5507
    %v5522 = vpop.permute.xlu0 %5521
    %5525 = vset.pattern.permute.xlu0 0
    %5526 = vperm.xlu0 %5525, %v5508
    %v5527 = vpop.permute.xlu0 %5526
    %v5529 = vmul.f32 %v5501, %v5512
    %v5530 = vmul.f32 %v5502, %v5517
    %v5531 = vmul.f32 %v5503, %v5522
    %v5532 = vmul.f32 %v5504, %v5527
    %v5533 = vsel %vm28, %v5529, 0.0
    %v5534 = vsel %vm28, %v5530, 0.0
    %v5535 = vadd.f32 %v5533, %v5534
    %v5536 = vsel %vm28, %v5531, 0.0
    %v5537 = vadd.f32 %v5535, %v5536
    %v5538 = vsel %vm28, %v5532, 0.0
    %v5539 = vadd.f32 %v5537, %v5538
    %v5540 = vrot.slane %v5539, 4
    %v5541 = vadd.f32 %v5539, %v5540
    %v5542 = vrot.slane %v5541, 2
    %v5543 = vadd.f32 %v5541, %v5542
    %v5544 = vrot.slane %v5543, 1
    %v5545 = vadd.f32 %v5543, %v5544
    %v5546 = vmul.f32 %v5529, %v5501
    %v5547 = vmul.f32 %v5530, %v5502
    %v5548 = vmul.f32 %v5531, %v5503
    %v5549 = vmul.f32 %v5532, %v5504
    %v5550 = vsel %vm28, %v5546, 0.0
    %v5551 = vsel %vm28, %v5547, 0.0
    %v5552 = vadd.f32 %v5550, %v5551
    %v5553 = vsel %vm28, %v5548, 0.0
    %v5554 = vadd.f32 %v5552, %v5553
    %v5555 = vsel %vm28, %v5549, 0.0
    %v5556 = vadd.f32 %v5554, %v5555
    %v5557 = vrot.slane %v5556, 4
    %v5558 = vadd.f32 %v5556, %v5557
    %v5559 = vrot.slane %v5558, 2
    %v5560 = vadd.f32 %v5558, %v5559
    %v5561 = vrot.slane %v5560, 1
    %v5562 = vadd.f32 %v5560, %v5561
    %v5563 = vmul.f32 %v5545, 0.125
    %v5564 = vmul.f32 %v5562, 0.125
    %v5565 = vmul.f32 %v5563, %v5563
    %v5566 = vsub.f32 %v5564, %v5565
    %v5567 = vmax.f32 %v5566, 0.0
    %v5568 = vadd.f32 %v5567, 1e-05
    %v5569 = vrsqrt.pop %v5568
    %v5570 = vld [vmem:[%s3 + $0x6] sm:$0x1]
    %v5571 = vld [vmem:[%s3 + $0x7] sm:$0x1]
    %v5572 = vmul.f32 %v5570, %v5569
    %v5573 = vmul.f32 %v5563, %v5572
    %v5574 = vsub.f32 %v5571, %v5573
    %v5575 = vlaneseq
    %v5576 = vshrl.u32 %v5575, 7
    %v5577 = vsub.s32 0, %v5576
    %v5578 = vrot.slane %v5572, %v5577
    %v5579 = vmul.f32 %v5501, %v5578
    %v5580 = vmul.f32 %v5502, %v5578
    %v5581 = vmul.f32 %v5503, %v5578
    %v5582 = vmul.f32 %v5504, %v5578
    %v5583 = vlaneseq
    %v5584 = vshrl.u32 %v5583, 7
    %v5585 = vsub.s32 0, %v5584
    %v5586 = vrot.slane %v5574, %v5585
    %v5587 = vadd.f32 %v5579, %v5586
    %v5588 = vadd.f32 %v5580, %v5586
    %v5589 = vadd.f32 %v5581, %v5586
    %v5590 = vadd.f32 %v5582, %v5586
    %v5591 = vmax.f32 %v5587, 0.0
    %v5592 = vmax.f32 %v5588, 0.0
    %v5593 = vmax.f32 %v5589, 0.0
    %v5594 = vmax.f32 %v5590, 0.0
    %5595 = vst.msk [vmem:[#allocation4] sm:$0xff] %vm28, %v5591
    %5596 = vst.msk [vmem:[#allocation4 + $0x8] sm:$0xff] %vm28, %v5592
    %5597 = vst.msk [vmem:[#allocation4 + $0x10] sm:$0xff] %vm28, %v5593
    %5598 = vst.msk [vmem:[#allocation4 + $0x18] sm:$0xff] %vm28, %v5594
    %v5599 = vld [vmem:[#allocation4 + $0x1] sm:$0xff]
    %v5600 = vld [vmem:[#allocation4 + $0x9] sm:$0xff]
    %v5601 = vld [vmem:[#allocation4 + $0x11] sm:$0xff]
    %v5602 = vld [vmem:[#allocation4 + $0x19] sm:$0xff]
    %v5603 = vmax.f32 %v5591, %v5599
    %v5604 = vmax.f32 %v5592, %v5600
    %v5605 = vmax.f32 %v5593, %v5601
    %v5606 = vmax.f32 %v5594, %v5602
    %v5607 = vld [vmem:[#allocation4 + $0x4] sm:$0xff]
    %v5608 = vld [vmem:[#allocation4 + $0xc] sm:$0xff]
    %v5609 = vld [vmem:[#allocation4 + $0x14] sm:$0xff]
    %v5610 = vld [vmem:[#allocation4 + $0x1c] sm:$0xff]
    %v5611 = vld [vmem:[#allocation4 + $0x5] sm:$0xff]
    %v5612 = vld [vmem:[#allocation4 + $0xd] sm:$0xff]
    %v5613 = vld [vmem:[#allocation4 + $0x15] sm:$0xff]
    %v5614 = vld [vmem:[#allocation4 + $0x1d] sm:$0xff]
    %v5615 = vmax.f32 %v5607, %v5611
    %v5616 = vmax.f32 %v5608, %v5612
    %v5617 = vmax.f32 %v5609, %v5613
    %v5618 = vmax.f32 %v5610, %v5614
    %v5619 = vmax.f32 %v5603, %v5615
    %v5620 = vmax.f32 %v5604, %v5616
    %v5621 = vmax.f32 %v5605, %v5617
    %v5622 = vmax.f32 %v5606, %v5618
    %5623 = vst.msk [vmem:[#allocation4] sm:$0xff] %vm28, %v5619
    %5624 = vst.msk [vmem:[#allocation4 + $0x8] sm:$0xff] %vm28, %v5620
    %5625 = vst.msk [vmem:[#allocation4 + $0x10] sm:$0xff] %vm28, %v5621
    %5626 = vst.msk [vmem:[#allocation4 + $0x18] sm:$0xff] %vm28, %v5622
    %v5627 = vld [vmem:[#allocation4 + $0x5] sm:$0x1]
    %vm5628 = vcmask 516096
    %5629 = vst.msk [vmem:[#allocation6] sm:$0x1] %vm5628, %v5627
    %v5630 = vld [vmem:[#allocation4 + $0x15] sm:$0x1]
    %5631 = vst.msk [vmem:[#allocation6 + $0x1] sm:$0x1] %vm5628, %v5630
    %v5632 = vld [vmem:[#allocation6] sm:$0x3]
    %v5633 = vpack.c.bf16 %v5632, %v5632
    %v5634 = vld [vmem:[%s5] sm:$0xf]
    %v5635 = vld [vmem:[%s5 + $0x4] sm:$0xf]
    %v5636 = vld [vmem:[%s5 + $0x8] sm:$0xf]
    %v5637 = vld [vmem:[%s5 + $0xc] sm:$0xf]
    %v5638 = vld [vmem:[%s5 + $0x10] sm:$0xf]
    %v5639 = vld [vmem:[%s5 + $0x14] sm:$0xf]
    %v5640 = vld [vmem:[%s5 + $0x18] sm:$0xf]
    %v5641 = vld [vmem:[%s5 + $0x1c] sm:$0xf]
    %v5642 = vld [vmem:[%s6] sm:$0x1]
    %v5644 = vlaneseq
    %v5645 = vshrl.u32 %v5644, 7
    %v5646 = vsub.s32 0, %v5645
    %v5647 = vrot.slane %v5642, %v5646
    %v5657 = vunpack.c.l.b16 %v5634
    %v5658 = vunpack.c.l.b16 %v5635
    %v5659 = vunpack.c.l.b16 %v5636
    %v5660 = vunpack.c.l.b16 %v5637
    %v5661 = vunpack.c.l.b16 %v5638
    %v5662 = vunpack.c.l.b16 %v5639
    %v5663 = vunpack.c.l.b16 %v5640
    %v5664 = vunpack.c.l.b16 %v5641
    %v5665 = vpack.c.b16 %v5658, %v5657
    %v5666 = vpack.c.b16 %v5660, %v5659
    %v5667 = vpack.c.b16 %v5662, %v5661
    %v5668 = vpack.c.b16 %v5664, %v5663
    %v5674 = vsel %vm28, %v5633, 0
    %5676 = vmatprep.subr.bf16.mxu0 0
    %5677 = vmatpush1.bf16.msra.mxu0 %v5665
    %5678 = vmatprep.subr.bf16.mxu0 0
    %5679 = vmatpush1.bf16.msra.mxu0 %v5666
    %5680 = vmatprep.subr.bf16.mxu0 0
    %5681 = vmatpush1.bf16.msra.mxu0 %v5667
    %5682 = vmatprep.subr.bf16.mxu0 0
    %5683 = vmatpush1.bf16.msra.mxu0 %v5668
    %5684 = vmatprep.subr.bf16.mxu0 0
    %5685 = vmatpush1.bf16.msra.mxu0 0
    %5686 = vmatprep.subr.bf16.mxu0 0
    %5687 = vmatpush1.bf16.msra.mxu0 0
    %5688 = vmatprep.subr.bf16.mxu0 0
    %5689 = vmatpush1.bf16.msra.mxu0 0
    %5690 = vmatprep.subr.bf16.mxu0 0
    %5691 = vmatpush1.bf16.msra.mxu0 0
    %5692 = vmatprep.subr.bf16.mxu0 0
    %5693 = vmatpush1.bf16.msra.mxu0 0
    %5694 = vmatprep.subr.bf16.mxu0 0
    %5695 = vmatpush1.bf16.msra.mxu0 0
    %5696 = vmatprep.subr.bf16.mxu0 0
    %5697 = vmatpush1.bf16.msra.mxu0 0
    %5698 = vmatprep.subr.bf16.mxu0 0
    %5699 = vmatpush1.bf16.msra.mxu0 0
    %5700 = vmatprep.subr.bf16.mxu0 0
    %5701 = vmatpush1.bf16.msra.mxu0 0
    %5702 = vmatprep.subr.bf16.mxu0 0
    %5703 = vmatpush1.bf16.msra.mxu0 0
    %5704 = vmatprep.subr.bf16.mxu0 0
    %5705 = vmatpush1.bf16.msra.mxu0 0
    %5706 = vmatprep.subr.bf16.mxu0 0
    %5707 = vmatpush1.bf16.msra.mxu0 0
    %5708 = vmatprep.mubr.bf16.mxu0 0
    %5709 = vmatmul.mubr.bf16.gmra.mrb[0].mxu0 %v5674
    %v5710 = vpop.f32.mrb[0].mxu0
    %v5711 = vadd.f32 %v5647, %v5710
    %v5712 = vpop.f32.mrb[0].mxu0
    %v5713 = vpop.f32.mrb[0].mxu0
    %v5714 = vpop.f32.mrb[0].mxu0
    %5715 = vdwg.mxu0
    %5716 = vst [vmem:[#allocation7] sm:$0x3] %v5711
    // Predicated region
    $region30: #{basenet_forward.1} parent=1 // pred_check
      _
    $region31: #{basenet_forward.1} parent=1 // pred_check_branch
      %5718 = sbr.rel (0) target = $region33
    $region32: #{basenet_forward.1} parent=1 // pred_region
      %s5720 = ssub.s32 32, 32
      %5721 = vsyncadd [#allocation8], %s5720
      %s5723 = sshll.u32 [#allocation7], 4
      %s5724 = int_to_ptr.vmem [resolvable:$true] %s5723
      %5726 = dma.vmem_to_hbm [thread:$0]  %s5724, 32, %s7, [#allocation8]
    $region33: #{basenet_forward.1} parent=1 // pred_fallthru
      _
    // Predicated region
    $region34: #{basenet_forward.1} parent=1 // pred_check
      _
    $region35: #{basenet_forward.1} parent=1 // pred_check_branch
      %5728 = sbr.rel (0) target = $region37
    $region36: #{basenet_forward.1} parent=1 // pred_region
      %5729 = dma.done [#allocation8], 32
    $region37: #{basenet_forward.1} parent=1 // pred_fallthru
      _
    %5730 = vsyncpa [#allocation8], 1

</llo_original>
